<compile_context>
chip_gen: v7x
topology: tpu7x:2x2x1
jax: 0.10.0
libtpu: 0.0.40
codegen_flags: <defaults>
</compile_context>

<pallas_src>
import math
from functools import partial

import jax
import jax.numpy as jnp
from jax.experimental import pallas as pl
from jax.experimental.pallas import tpu as pltpu


# ------------------------------ fused kernel ------------------------------

def _fused_forward_kernel(x_ref, pe_ref, wi_ref, bi_ref,
                          wqkv_ref, bqkv_ref, wo_ref, bo_ref,
                          g1_ref, be1_ref, w1_ref, b1_ref,
                          w2_ref, b2_ref, g2_ref, be2_ref,
                          wfc_ref, bfc_ref, o_ref,
                          attn_scr, cls_scr,
                          *, bt, num_layers, n_head, d_head, eps, compute_dtype):
    cdt = compute_dtype                         # MXU operand dtype (bf16)
    d_model = n_head * d_head
    seq_len = x_ref.shape[1]
    in_dim = x_ref.shape[2]
    rows = bt * seq_len                         # slab height (M of every big matmul)

    def layer_norm(v, g, b):
        mu = jnp.mean(v, axis=-1, keepdims=True)
        c = v - mu
        var = jnp.mean(c * c, axis=-1, keepdims=True)     # biased, like torch LN
        return c * jax.lax.rsqrt(var + eps) * g + b

    # ---- input linear on the whole (Bt*S, Din) slab + positional encoding ----
    x = x_ref[...].reshape(rows, in_dim).astype(cdt)                    # (Bt*S, Din)
    h = jnp.dot(x, wi_ref[...], preferred_element_type=jnp.float32) + bi_ref[...]
    # PE row = batch index (faithful to the reference's pre-permute quirk),
    # broadcast over the seq positions of each batch element in the block.
    pe = jnp.broadcast_to(pe_ref[...], (bt, seq_len, d_model)).reshape(rows, d_model)
    h = h + pe                                                           # (Bt*S, D) f32

    for l in range(num_layers):                                          # static unroll
        # ----- multi-head self-attention (post-norm encoder layer) -----
        qkv = jnp.dot(h.astype(cdt), wqkv_ref[l],
                      preferred_element_type=jnp.float32) + bqkv_ref[l]  # (Bt*S, 3D)
        # 1/sqrt(d_head) is already folded into the Q weights/bias at init time.
        q = qkv[:, 0:d_model].astype(cdt)
        k = qkv[:, d_model:2 * d_model].astype(cdt)
        v = qkv[:, 2 * d_model:3 * d_model].astype(cdt)

        # Per-(batch, head) softmax attention; PV results land in column slices
        # of the (Bt*S, D) f32 scratch so the output projection is ONE matmul.
        for b in range(bt):                                              # static unroll
            rs = slice(b * seq_len, (b + 1) * seq_len)
            for hd in range(n_head):                                     # static unroll
                cs = slice(hd * d_head, (hd + 1) * d_head)
                qh = q[rs, cs]                                           # (S, Dh) bf16
                kh = k[rs, cs]
                vh = v[rs, cs]
                # q @ k^T without an explicit transpose (contract last dims).
                s = jax.lax.dot_general(qh, kh, (((1,), (1,)), ((), ())),
                                        preferred_element_type=jnp.float32)  # (S, S)
                m = jnp.max(s, axis=-1, keepdims=True)
                p = jnp.exp(s - m)
                p = p * pl.reciprocal(jnp.sum(p, axis=-1, keepdims=True),
                                      approx=True)
                attn_scr[rs, cs] = jnp.dot(p.astype(cdt), vh,
                                           preferred_element_type=jnp.float32)
        attn = jnp.dot(attn_scr[...].astype(cdt), wo_ref[l],
                       preferred_element_type=jnp.float32) + bo_ref[l]   # (Bt*S, D)
        h = layer_norm(h + attn, g1_ref[l], be1_ref[l])

        # ----- feed forward (slab-level) -----
        f = jnp.dot(h.astype(cdt), w1_ref[l],
                    preferred_element_type=jnp.float32) + b1_ref[l]      # (Bt*S, FF)
        f = jnp.maximum(f, 0.0)                                          # ReLU (f32)
        f = jnp.dot(f.astype(cdt), w2_ref[l],
                    preferred_element_type=jnp.float32) + b2_ref[l]      # (Bt*S, D)
        h = layer_norm(h + f, g2_ref[l], be2_ref[l])

    # ---- classifier: stage the row-major flatten into (Bt, S*D) scratch, then a
    #      single (Bt, S*D) @ (S*D, C) matmul (replaces the old S-deep M=1 chain).
    for b in range(bt):                                                  # static unroll
        for s_idx in range(seq_len):
            r = b * seq_len + s_idx
            cls_scr[b:b + 1, s_idx * d_model:(s_idx + 1) * d_model] = h[r:r + 1, :]
    logits = jnp.dot(cls_scr[...].astype(cdt), wfc_ref[...],
                     preferred_element_type=jnp.float32) + bfc_ref[...]  # (Bt, C)
    o_ref[:, 0, :] = logits


# ------------------------------ parameters ------------------------------

def make_positional_encoding(max_len, d_model):
    position = jnp.arange(max_len, dtype=jnp.float32)[:, None]
    div_term = jnp.exp(jnp.arange(0, d_model, 2, dtype=jnp.float32)
                       * (-math.log(10000.0) / d_model))
    pe = jnp.zeros((max_len, d_model), jnp.float32)
    pe = pe.at[:, 0::2].set(jnp.sin(position * div_term))
    pe = pe.at[:, 1::2].set(jnp.cos(position * div_term))
    return pe


def init_params(key, *, input_dim, num_classes, seq_len, d_model, n_head,
                num_layers, dim_ff, max_len=64, weight_dtype=jnp.bfloat16):
    """Weights stored in bf16 (MXU-native); biases / LN params / PE in f32.

    The 1/sqrt(d_head) attention scale is folded into the Q columns of Wqkv
    (do the same to in_proj Q rows/bias when converting a real torch checkpoint).
    """
    D, FF, L, C = d_model, dim_ff, num_layers, num_classes
    q_scale = 1.0 / math.sqrt(D // n_head)

    def dense(k, shape, scale=0.05):
        return scale * jax.random.normal(k, shape)      # f32; cast to bf16 below

    keys = jax.random.split(key, 2 + 4 * L)
    params = {
        "Wi": dense(keys[0], (input_dim, D)).astype(weight_dtype),
        "bi": jnp.zeros((1, D), jnp.float32),
        # PE stored (max_len, 1, D) so Bt rows are DMA'd per grid step.
        "pe": make_positional_encoding(max_len, D).reshape(max_len, 1, D),
        # fc weight stored as (S*D, C) == torch fc.weight.T (row-major flatten).
        "Wfc": dense(keys[1], (seq_len * D, C)).astype(weight_dtype),
        "bfc": jnp.zeros((1, C), jnp.float32),
    }
    wqkv, wo, w1, w2 = [], [], [], []
    for l in range(L):
        k = keys[2 + 4 * l: 2 + 4 * (l + 1)]
        w = dense(k[0], (D, 3 * D))
        w = w.at[:, :D].multiply(q_scale)               # fold attention scale into Q
        wqkv.append(w.astype(weight_dtype))
        wo.append(dense(k[1], (D, D)).astype(weight_dtype))
        w1.append(dense(k[2], (D, FF)).astype(weight_dtype))
        w2.append(dense(k[3], (FF, D)).astype(weight_dtype))
    params.update({
        # bqkv is zero here; a nonzero torch bias would also have its Q part scaled.
        "Wqkv": jnp.stack(wqkv), "bqkv": jnp.zeros((L, 1, 3 * D), jnp.float32),
        "Wo":   jnp.stack(wo),   "bo":   jnp.zeros((L, 1, D), jnp.float32),
        "g1":   jnp.ones((L, 1, D), jnp.float32),
        "be1":  jnp.zeros((L, 1, D), jnp.float32),
        "W1":   jnp.stack(w1),   "b1":   jnp.zeros((L, 1, FF), jnp.float32),
        "W2":   jnp.stack(w2),   "b2":   jnp.zeros((L, 1, D), jnp.float32),
        "g2":   jnp.ones((L, 1, D), jnp.float32),
        "be2":  jnp.zeros((L, 1, D), jnp.float32),
    })
    return params


# ------------------------------ model forward ------------------------------

def _pick_block_batch(batch, max_block=8):
    """Largest Bt <= max_block dividing batch while keeping >= 2 grid steps
    (so dimension_semantics=('parallel',) still feeds both v7x TensorCores)."""
    target_steps = 2 if batch >= 2 else 1
    for bt in range(min(max_block, batch), 0, -1):
        if batch % bt == 0 and batch // bt >= target_steps:
            return bt
    return 1


def transformer_classifier_forward(x, params, *, seq_len, d_model, n_head,
                                   num_layers, num_classes, dim_ff,
                                   block_batch=None):
    B, S, Din = x.shape
    assert S == seq_len
    D, FF, L, C = d_model, dim_ff, num_layers, num_classes
    assert D % n_head == 0
    # Reference indexes the PE table by *batch* index -> table must cover B.
    assert params["pe"].shape[0] >= B
    Bt = block_batch if block_batch is not None else _pick_block_batch(B)
    assert B % Bt == 0
    grid = (B // Bt,)

    kernel = partial(_fused_forward_kernel,
                     bt=Bt, num_layers=L, n_head=n_head, d_head=D // n_head,
                     eps=1e-5, compute_dtype=params["Wi"].dtype)

    # Constant-index weight specs: DMA'd into VMEM once for the whole grid.
    # At production sizes, add pipeline_mode=pl.Buffered(1) or stream per-layer
    # weights over an "arbitrary" layer axis to fit v7x's 64 MiB VMEM.
    full2 = lambda shape: pl.BlockSpec(shape, lambda i: (0, 0))
    full3 = lambda shape: pl.BlockSpec(shape, lambda i: (0, 0, 0))

    out = pl.pallas_call(
        kernel,
        grid=grid,
        in_specs=[
            pl.BlockSpec((Bt, S, Din), lambda i: (i, 0, 0)),   # x   (Bt batch rows)
            pl.BlockSpec((Bt, 1, D),   lambda i: (i, 0, 0)),   # pe rows (batch index!)
            full2((Din, D)), full2((1, D)),                    # Wi, bi
            full3((L, D, 3 * D)), full3((L, 1, 3 * D)),        # Wqkv, bqkv
            full3((L, D, D)), full3((L, 1, D)),                # Wo, bo
            full3((L, 1, D)), full3((L, 1, D)),                # g1, be1
            full3((L, D, FF)), full3((L, 1, FF)),              # W1, b1
            full3((L, FF, D)), full3((L, 1, D)),               # W2, b2
            full3((L, 1, D)), full3((L, 1, D)),                # g2, be2
            full2((S * D, C)), full2((1, C)),                  # Wfc, bfc
        ],
        out_specs=pl.BlockSpec((Bt, 1, C), lambda i: (i, 0, 0)),
        out_shape=jax.ShapeDtypeStruct((B, 1, C), jnp.float32),
        scratch_shapes=[
            pltpu.VMEM((Bt * S, D), jnp.float32),     # per-layer attention heads
            pltpu.VMEM((Bt, S * D), jnp.float32),     # classifier flatten staging
        ],
        compiler_params=pltpu.CompilerParams(
            dimension_semantics=("parallel",)),                # 2 TCs on v7x
    )(x, params["pe"], params["Wi"], params["bi"],
      params["Wqkv"], params["bqkv"], params["Wo"], params["bo"],
      params["g1"], params["be1"], params["W1"], params["b1"],
      params["W2"], params["b2"], params["g2"], params["be2"],
      params["Wfc"], params["bfc"])
    return out.reshape(B, C)


# ---------------------------------- main ----------------------------------

if __name__ == "__main__":
    # small config consistent with the module
    INPUT_DIM, NUM_CLASSES, SEQ_LEN = 16, 4, 8
    D_MODEL, N_HEAD, NUM_LAYERS, DIM_FF = 32, 4, 2, 64
    BATCH = 8          # folded as Bt=4 per grid step -> grid=(2,) (both v7x TCs busy)

    key = jax.random.PRNGKey(0)
    kx, kp = jax.random.split(key)
    x = jax.random.normal(kx, (BATCH, SEQ_LEN, INPUT_DIM), dtype=jnp.float32)
    params = init_params(kp, input_dim=INPUT_DIM, num_classes=NUM_CLASSES,
                         seq_len=SEQ_LEN, d_model=D_MODEL, n_head=N_HEAD,
                         num_layers=NUM_LAYERS, dim_ff=DIM_FF)

    fwd = jax.jit(partial(transformer_classifier_forward, seq_len=SEQ_LEN,
                          d_model=D_MODEL, n_head=N_HEAD,
                          num_layers=NUM_LAYERS, num_classes=NUM_CLASSES,
                          dim_ff=DIM_FF))
    out = fwd(x, params)
    jax.block_until_ready(out)
    assert out.shape == (BATCH, NUM_CLASSES) and out.dtype == jnp.float32
    assert bool(jnp.all(jnp.isfinite(out)))
    print("KERNEL_OK")
</pallas_src>

<mosaic_0001>
module attributes {stable_mosaic.version = 11 : i64} {
  func.func @_fused_forward_kernel(%arg0: i32, %arg1: memref<4x8x16xf32, #tpu.memory_space<vmem>>, %arg2: memref<4x1x32xf32, #tpu.memory_space<vmem>>, %arg3: memref<16x32xbf16, #tpu.memory_space<vmem>>, %arg4: memref<1x32xf32, #tpu.memory_space<vmem>>, %arg5: memref<2x32x96xbf16, #tpu.memory_space<vmem>>, %arg6: memref<2x1x96xf32, #tpu.memory_space<vmem>>, %arg7: memref<2x32x32xbf16, #tpu.memory_space<vmem>>, %arg8: memref<2x1x32xf32, #tpu.memory_space<vmem>>, %arg9: memref<2x1x32xf32, #tpu.memory_space<vmem>>, %arg10: memref<2x1x32xf32, #tpu.memory_space<vmem>>, %arg11: memref<2x32x64xbf16, #tpu.memory_space<vmem>>, %arg12: memref<2x1x64xf32, #tpu.memory_space<vmem>>, %arg13: memref<2x64x32xbf16, #tpu.memory_space<vmem>>, %arg14: memref<2x1x32xf32, #tpu.memory_space<vmem>>, %arg15: memref<2x1x32xf32, #tpu.memory_space<vmem>>, %arg16: memref<2x1x32xf32, #tpu.memory_space<vmem>>, %arg17: memref<256x4xbf16, #tpu.memory_space<vmem>>, %arg18: memref<1x4xf32, #tpu.memory_space<vmem>>, %arg19: memref<4x1x4xf32, #tpu.memory_space<vmem>>, %arg20: memref<32x32xf32, #tpu.memory_space<vmem>>, %arg21: memref<4x256xf32, #tpu.memory_space<vmem>>) attributes {dimension_semantics = [#tpu.dimension_semantics<parallel>], iteration_bounds = array<i64: 2>, scalar_prefetch = 0 : i64, scratch_operands = 2 : i64, tpu.core_type = #tpu.core_type<tc>, window_params = [{transform_indices = @transform_0, window_bounds = array<i64: 4, 8, 16>}, {transform_indices = @transform_1, window_bounds = array<i64: 4, 1, 32>}, {pipeline_mode = #tpu.pipeline_mode<synchronous>, transform_indices = @transform_2, window_bounds = array<i64: 16, 32>}, {pipeline_mode = #tpu.pipeline_mode<synchronous>, transform_indices = @transform_3, window_bounds = array<i64: 1, 32>}, {pipeline_mode = #tpu.pipeline_mode<synchronous>, transform_indices = @transform_4, window_bounds = array<i64: 2, 32, 96>}, {pipeline_mode = #tpu.pipeline_mode<synchronous>, transform_indices = @transform_5, window_bounds = array<i64: 2, 1, 96>}, {pipeline_mode = #tpu.pipeline_mode<synchronous>, transform_indices = @transform_6, window_bounds = array<i64: 2, 32, 32>}, {pipeline_mode = #tpu.pipeline_mode<synchronous>, transform_indices = @transform_7, window_bounds = array<i64: 2, 1, 32>}, {pipeline_mode = #tpu.pipeline_mode<synchronous>, transform_indices = @transform_8, window_bounds = array<i64: 2, 1, 32>}, {pipeline_mode = #tpu.pipeline_mode<synchronous>, transform_indices = @transform_9, window_bounds = array<i64: 2, 1, 32>}, {pipeline_mode = #tpu.pipeline_mode<synchronous>, transform_indices = @transform_10, window_bounds = array<i64: 2, 32, 64>}, {pipeline_mode = #tpu.pipeline_mode<synchronous>, transform_indices = @transform_11, window_bounds = array<i64: 2, 1, 64>}, {pipeline_mode = #tpu.pipeline_mode<synchronous>, transform_indices = @transform_12, window_bounds = array<i64: 2, 64, 32>}, {pipeline_mode = #tpu.pipeline_mode<synchronous>, transform_indices = @transform_13, window_bounds = array<i64: 2, 1, 32>}, {pipeline_mode = #tpu.pipeline_mode<synchronous>, transform_indices = @transform_14, window_bounds = array<i64: 2, 1, 32>}, {pipeline_mode = #tpu.pipeline_mode<synchronous>, transform_indices = @transform_15, window_bounds = array<i64: 2, 1, 32>}, {pipeline_mode = #tpu.pipeline_mode<synchronous>, transform_indices = @transform_16, window_bounds = array<i64: 256, 4>}, {pipeline_mode = #tpu.pipeline_mode<synchronous>, transform_indices = @transform_17, window_bounds = array<i64: 1, 4>}, {transform_indices = @transform_18, window_bounds = array<i64: 4, 1, 4>}]} {
    %c0 = arith.constant 0 : index
    %c0_0 = arith.constant 0 : index
    %c0_1 = arith.constant 0 : index
    %0 = vector.load %arg1[%c0, %c0_0, %c0_1] : memref<4x8x16xf32, #tpu.memory_space<vmem>>, vector<4x8x16xf32>
    %1 = vector.shape_cast %0 : vector<4x8x16xf32> to vector<32x16xf32>
    %2 = arith.truncf %1 : vector<32x16xf32> to vector<32x16xbf16>
    %c0_2 = arith.constant 0 : index
    %c0_3 = arith.constant 0 : index
    %3 = vector.load %arg3[%c0_2, %c0_3] : memref<16x32xbf16, #tpu.memory_space<vmem>>, vector<16x32xbf16>
    %cst = arith.constant dense<0.000000e+00> : vector<32x32xf32>
    %4 = tpu.matmul %2, %3, %cst {dimension_numbers = #tpu.dot_dimension_numbers<[1], [0], [0], [1], [0, 0, 1, 1], [], []>} : vector<32x16xbf16>, vector<16x32xbf16>, vector<32x32xf32> -> vector<32x32xf32>
    %c0_4 = arith.constant 0 : index
    %c0_5 = arith.constant 0 : index
    %5 = vector.load %arg4[%c0_4, %c0_5] : memref<1x32xf32, #tpu.memory_space<vmem>>, vector<1x32xf32>
    %6 = vector.broadcast %5 : vector<1x32xf32> to vector<32x32xf32>
    %7 = arith.addf %4, %6 : vector<32x32xf32>
    %c0_6 = arith.constant 0 : index
    %c0_7 = arith.constant 0 : index
    %c0_8 = arith.constant 0 : index
    %8 = vector.load %arg2[%c0_6, %c0_7, %c0_8] : memref<4x1x32xf32, #tpu.memory_space<vmem>>, vector<4x1x32xf32>
    %9 = vector.shape_cast %8 : vector<4x1x32xf32> to vector<4x1x32xf32>
    %10 = vector.broadcast %9 : vector<4x1x32xf32> to vector<4x8x32xf32>
    %11 = vector.shape_cast %10 : vector<4x8x32xf32> to vector<32x32xf32>
    %12 = arith.addf %7, %11 : vector<32x32xf32>
    %13 = arith.truncf %12 : vector<32x32xf32> to vector<32x32xbf16>
    %c0_9 = arith.constant 0 : index
    %c0_10 = arith.constant 0 : index
    %c0_11 = arith.constant 0 : index
    %14 = vector.load %arg5[%c0_9, %c0_10, %c0_11] : memref<2x32x96xbf16, #tpu.memory_space<vmem>>, vector<1x32x96xbf16>
    %15 = vector.shape_cast %14 : vector<1x32x96xbf16> to vector<32x96xbf16>
    %cst_12 = arith.constant dense<0.000000e+00> : vector<32x96xf32>
    %16 = tpu.matmul %13, %15, %cst_12 {dimension_numbers = #tpu.dot_dimension_numbers<[1], [0], [0], [1], [0, 0, 1, 1], [], []>} : vector<32x32xbf16>, vector<32x96xbf16>, vector<32x96xf32> -> vector<32x96xf32>
    %c0_13 = arith.constant 0 : index
    %c0_14 = arith.constant 0 : index
    %c0_15 = arith.constant 0 : index
    %17 = vector.load %arg6[%c0_13, %c0_14, %c0_15] : memref<2x1x96xf32, #tpu.memory_space<vmem>>, vector<1x1x96xf32>
    %18 = vector.shape_cast %17 : vector<1x1x96xf32> to vector<1x96xf32>
    %19 = vector.broadcast %18 : vector<1x96xf32> to vector<32x96xf32>
    %20 = arith.addf %16, %19 : vector<32x96xf32>
    %21 = vector.extract_strided_slice %20 {offsets = [0, 0], sizes = [32, 32], strides = [1, 1]} : vector<32x96xf32> to vector<32x32xf32>
    %22 = arith.truncf %21 : vector<32x32xf32> to vector<32x32xbf16>
    %23 = vector.extract_strided_slice %20 {offsets = [0, 32], sizes = [32, 32], strides = [1, 1]} : vector<32x96xf32> to vector<32x32xf32>
    %24 = arith.truncf %23 : vector<32x32xf32> to vector<32x32xbf16>
    %25 = vector.extract_strided_slice %20 {offsets = [0, 64], sizes = [32, 32], strides = [1, 1]} : vector<32x96xf32> to vector<32x32xf32>
    %26 = arith.truncf %25 : vector<32x32xf32> to vector<32x32xbf16>
    %27 = vector.extract_strided_slice %22 {offsets = [0, 0], sizes = [8, 8], strides = [1, 1]} : vector<32x32xbf16> to vector<8x8xbf16>
    %28 = vector.extract_strided_slice %24 {offsets = [0, 0], sizes = [8, 8], strides = [1, 1]} : vector<32x32xbf16> to vector<8x8xbf16>
    %29 = vector.extract_strided_slice %26 {offsets = [0, 0], sizes = [8, 8], strides = [1, 1]} : vector<32x32xbf16> to vector<8x8xbf16>
    %cst_16 = arith.constant dense<0.000000e+00> : vector<8x8xf32>
    %30 = tpu.matmul %27, %28, %cst_16 {dimension_numbers = #tpu.dot_dimension_numbers<[1], [1], [0], [0], [0, 0, 1, 0], [], []>} : vector<8x8xbf16>, vector<8x8xbf16>, vector<8x8xf32> -> vector<8x8xf32>
    %cst_17 = arith.constant dense<0xFF800000> : vector<8xf32>
    %31 = vector.multi_reduction <maximumf>, %30, %cst_17 [1] : vector<8x8xf32> to vector<8xf32>
    %32 = vector.shape_cast %31 : vector<8xf32> to vector<8x1xf32>
    %33 = vector.broadcast %32 : vector<8x1xf32> to vector<8x8xf32>
    %34 = arith.subf %30, %33 : vector<8x8xf32>
    %35 = math.exp %34 : vector<8x8xf32>
    %cst_18 = arith.constant dense<0.000000e+00> : vector<8xf32>
    %36 = vector.multi_reduction <add>, %35, %cst_18 [1] : vector<8x8xf32> to vector<8xf32>
    %37 = vector.shape_cast %36 : vector<8xf32> to vector<8x1xf32>
    %38 = tpu.reciprocal %37 {approx = true} : vector<8x1xf32> -> vector<8x1xf32>
    %39 = vector.broadcast %38 : vector<8x1xf32> to vector<8x8xf32>
    %40 = arith.mulf %35, %39 : vector<8x8xf32>
    %41 = arith.truncf %40 : vector<8x8xf32> to vector<8x8xbf16>
    %cst_19 = arith.constant dense<0.000000e+00> : vector<8x8xf32>
    %42 = tpu.matmul %41, %29, %cst_19 {dimension_numbers = #tpu.dot_dimension_numbers<[1], [0], [0], [1], [0, 0, 1, 1], [], []>} : vector<8x8xbf16>, vector<8x8xbf16>, vector<8x8xf32> -> vector<8x8xf32>
    %c0_20 = arith.constant 0 : index
    %c0_21 = arith.constant 0 : index
    %43 = vector.load %arg20[%c0_20, %c0_21] : memref<32x32xf32, #tpu.memory_space<vmem>>, vector<8x8xf32>
    tpu.vector_store %arg20[%c0_20, %c0_21], %42 {strides = array<i32>} : memref<32x32xf32, #tpu.memory_space<vmem>>, vector<8x8xf32>,
    %44 = vector.extract_strided_slice %22 {offsets = [0, 8], sizes = [8, 8], strides = [1, 1]} : vector<32x32xbf16> to vector<8x8xbf16>
    %45 = vector.extract_strided_slice %24 {offsets = [0, 8], sizes = [8, 8], strides = [1, 1]} : vector<32x32xbf16> to vector<8x8xbf16>
    %46 = vector.extract_strided_slice %26 {offsets = [0, 8], sizes = [8, 8], strides = [1, 1]} : vector<32x32xbf16> to vector<8x8xbf16>
    %cst_22 = arith.constant dense<0.000000e+00> : vector<8x8xf32>
    %47 = tpu.matmul %44, %45, %cst_22 {dimension_numbers = #tpu.dot_dimension_numbers<[1], [1], [0], [0], [0, 0, 1, 0], [], []>} : vector<8x8xbf16>, vector<8x8xbf16>, vector<8x8xf32> -> vector<8x8xf32>
    %cst_23 = arith.constant dense<0xFF800000> : vector<8xf32>
    %48 = vector.multi_reduction <maximumf>, %47, %cst_23 [1] : vector<8x8xf32> to vector<8xf32>
    %49 = vector.shape_cast %48 : vector<8xf32> to vector<8x1xf32>
    %50 = vector.broadcast %49 : vector<8x1xf32> to vector<8x8xf32>
    %51 = arith.subf %47, %50 : vector<8x8xf32>
    %52 = math.exp %51 : vector<8x8xf32>
    %cst_24 = arith.constant dense<0.000000e+00> : vector<8xf32>
    %53 = vector.multi_reduction <add>, %52, %cst_24 [1] : vector<8x8xf32> to vector<8xf32>
    %54 = vector.shape_cast %53 : vector<8xf32> to vector<8x1xf32>
    %55 = tpu.reciprocal %54 {approx = true} : vector<8x1xf32> -> vector<8x1xf32>
    %56 = vector.broadcast %55 : vector<8x1xf32> to vector<8x8xf32>
    %57 = arith.mulf %52, %56 : vector<8x8xf32>
    %58 = arith.truncf %57 : vector<8x8xf32> to vector<8x8xbf16>
    %cst_25 = arith.constant dense<0.000000e+00> : vector<8x8xf32>
    %59 = tpu.matmul %58, %46, %cst_25 {dimension_numbers = #tpu.dot_dimension_numbers<[1], [0], [0], [1], [0, 0, 1, 1], [], []>} : vector<8x8xbf16>, vector<8x8xbf16>, vector<8x8xf32> -> vector<8x8xf32>
    %c0_26 = arith.constant 0 : index
    %c8 = arith.constant 8 : index
    %60 = vector.load %arg20[%c0_26, %c8] : memref<32x32xf32, #tpu.memory_space<vmem>>, vector<8x8xf32>
    tpu.vector_store %arg20[%c0_26, %c8], %59 {strides = array<i32>} : memref<32x32xf32, #tpu.memory_space<vmem>>, vector<8x8xf32>,
    %61 = vector.extract_strided_slice %22 {offsets = [0, 16], sizes = [8, 8], strides = [1, 1]} : vector<32x32xbf16> to vector<8x8xbf16>
    %62 = vector.extract_strided_slice %24 {offsets = [0, 16], sizes = [8, 8], strides = [1, 1]} : vector<32x32xbf16> to vector<8x8xbf16>
    %63 = vector.extract_strided_slice %26 {offsets = [0, 16], sizes = [8, 8], strides = [1, 1]} : vector<32x32xbf16> to vector<8x8xbf16>
    %cst_27 = arith.constant dense<0.000000e+00> : vector<8x8xf32>
    %64 = tpu.matmul %61, %62, %cst_27 {dimension_numbers = #tpu.dot_dimension_numbers<[1], [1], [0], [0], [0, 0, 1, 0], [], []>} : vector<8x8xbf16>, vector<8x8xbf16>, vector<8x8xf32> -> vector<8x8xf32>
    %cst_28 = arith.constant dense<0xFF800000> : vector<8xf32>
    %65 = vector.multi_reduction <maximumf>, %64, %cst_28 [1] : vector<8x8xf32> to vector<8xf32>
    %66 = vector.shape_cast %65 : vector<8xf32> to vector<8x1xf32>
    %67 = vector.broadcast %66 : vector<8x1xf32> to vector<8x8xf32>
    %68 = arith.subf %64, %67 : vector<8x8xf32>
    %69 = math.exp %68 : vector<8x8xf32>
    %cst_29 = arith.constant dense<0.000000e+00> : vector<8xf32>
    %70 = vector.multi_reduction <add>, %69, %cst_29 [1] : vector<8x8xf32> to vector<8xf32>
    %71 = vector.shape_cast %70 : vector<8xf32> to vector<8x1xf32>
    %72 = tpu.reciprocal %71 {approx = true} : vector<8x1xf32> -> vector<8x1xf32>
    %73 = vector.broadcast %72 : vector<8x1xf32> to vector<8x8xf32>
    %74 = arith.mulf %69, %73 : vector<8x8xf32>
    %75 = arith.truncf %74 : vector<8x8xf32> to vector<8x8xbf16>
    %cst_30 = arith.constant dense<0.000000e+00> : vector<8x8xf32>
    %76 = tpu.matmul %75, %63, %cst_30 {dimension_numbers = #tpu.dot_dimension_numbers<[1], [0], [0], [1], [0, 0, 1, 1], [], []>} : vector<8x8xbf16>, vector<8x8xbf16>, vector<8x8xf32> -> vector<8x8xf32>
    %c0_31 = arith.constant 0 : index
    %c16 = arith.constant 16 : index
    %77 = vector.load %arg20[%c0_31, %c16] : memref<32x32xf32, #tpu.memory_space<vmem>>, vector<8x8xf32>
    tpu.vector_store %arg20[%c0_31, %c16], %76 {strides = array<i32>} : memref<32x32xf32, #tpu.memory_space<vmem>>, vector<8x8xf32>,
    %78 = vector.extract_strided_slice %22 {offsets = [0, 24], sizes = [8, 8], strides = [1, 1]} : vector<32x32xbf16> to vector<8x8xbf16>
    %79 = vector.extract_strided_slice %24 {offsets = [0, 24], sizes = [8, 8], strides = [1, 1]} : vector<32x32xbf16> to vector<8x8xbf16>
    %80 = vector.extract_strided_slice %26 {offsets = [0, 24], sizes = [8, 8], strides = [1, 1]} : vector<32x32xbf16> to vector<8x8xbf16>
    %cst_32 = arith.constant dense<0.000000e+00> : vector<8x8xf32>
    %81 = tpu.matmul %78, %79, %cst_32 {dimension_numbers = #tpu.dot_dimension_numbers<[1], [1], [0], [0], [0, 0, 1, 0], [], []>} : vector<8x8xbf16>, vector<8x8xbf16>, vector<8x8xf32> -> vector<8x8xf32>
    %cst_33 = arith.constant dense<0xFF800000> : vector<8xf32>
    %82 = vector.multi_reduction <maximumf>, %81, %cst_33 [1] : vector<8x8xf32> to vector<8xf32>
    %83 = vector.shape_cast %82 : vector<8xf32> to vector<8x1xf32>
    %84 = vector.broadcast %83 : vector<8x1xf32> to vector<8x8xf32>
    %85 = arith.subf %81, %84 : vector<8x8xf32>
    %86 = math.exp %85 : vector<8x8xf32>
    %cst_34 = arith.constant dense<0.000000e+00> : vector<8xf32>
    %87 = vector.multi_reduction <add>, %86, %cst_34 [1] : vector<8x8xf32> to vector<8xf32>
    %88 = vector.shape_cast %87 : vector<8xf32> to vector<8x1xf32>
    %89 = tpu.reciprocal %88 {approx = true} : vector<8x1xf32> -> vector<8x1xf32>
    %90 = vector.broadcast %89 : vector<8x1xf32> to vector<8x8xf32>
    %91 = arith.mulf %86, %90 : vector<8x8xf32>
    %92 = arith.truncf %91 : vector<8x8xf32> to vector<8x8xbf16>
    %cst_35 = arith.constant dense<0.000000e+00> : vector<8x8xf32>
    %93 = tpu.matmul %92, %80, %cst_35 {dimension_numbers = #tpu.dot_dimension_numbers<[1], [0], [0], [1], [0, 0, 1, 1], [], []>} : vector<8x8xbf16>, vector<8x8xbf16>, vector<8x8xf32> -> vector<8x8xf32>
    %c0_36 = arith.constant 0 : index
    %c24 = arith.constant 24 : index
    %94 = vector.load %arg20[%c0_36, %c24] : memref<32x32xf32, #tpu.memory_space<vmem>>, vector<8x8xf32>
    tpu.vector_store %arg20[%c0_36, %c24], %93 {strides = array<i32>} : memref<32x32xf32, #tpu.memory_space<vmem>>, vector<8x8xf32>,
    %95 = vector.extract_strided_slice %22 {offsets = [8, 0], sizes = [8, 8], strides = [1, 1]} : vector<32x32xbf16> to vector<8x8xbf16>
    %96 = vector.extract_strided_slice %24 {offsets = [8, 0], sizes = [8, 8], strides = [1, 1]} : vector<32x32xbf16> to vector<8x8xbf16>
    %97 = vector.extract_strided_slice %26 {offsets = [8, 0], sizes = [8, 8], strides = [1, 1]} : vector<32x32xbf16> to vector<8x8xbf16>
    %cst_37 = arith.constant dense<0.000000e+00> : vector<8x8xf32>
    %98 = tpu.matmul %95, %96, %cst_37 {dimension_numbers = #tpu.dot_dimension_numbers<[1], [1], [0], [0], [0, 0, 1, 0], [], []>} : vector<8x8xbf16>, vector<8x8xbf16>, vector<8x8xf32> -> vector<8x8xf32>
    %cst_38 = arith.constant dense<0xFF800000> : vector<8xf32>
    %99 = vector.multi_reduction <maximumf>, %98, %cst_38 [1] : vector<8x8xf32> to vector<8xf32>
    %100 = vector.shape_cast %99 : vector<8xf32> to vector<8x1xf32>
    %101 = vector.broadcast %100 : vector<8x1xf32> to vector<8x8xf32>
    %102 = arith.subf %98, %101 : vector<8x8xf32>
    %103 = math.exp %102 : vector<8x8xf32>
    %cst_39 = arith.constant dense<0.000000e+00> : vector<8xf32>
    %104 = vector.multi_reduction <add>, %103, %cst_39 [1] : vector<8x8xf32> to vector<8xf32>
    %105 = vector.shape_cast %104 : vector<8xf32> to vector<8x1xf32>
    %106 = tpu.reciprocal %105 {approx = true} : vector<8x1xf32> -> vector<8x1xf32>
    %107 = vector.broadcast %106 : vector<8x1xf32> to vector<8x8xf32>
    %108 = arith.mulf %103, %107 : vector<8x8xf32>
    %109 = arith.truncf %108 : vector<8x8xf32> to vector<8x8xbf16>
    %cst_40 = arith.constant dense<0.000000e+00> : vector<8x8xf32>
    %110 = tpu.matmul %109, %97, %cst_40 {dimension_numbers = #tpu.dot_dimension_numbers<[1], [0], [0], [1], [0, 0, 1, 1], [], []>} : vector<8x8xbf16>, vector<8x8xbf16>, vector<8x8xf32> -> vector<8x8xf32>
    %c8_41 = arith.constant 8 : index
    %c0_42 = arith.constant 0 : index
    %111 = vector.load %arg20[%c8_41, %c0_42] : memref<32x32xf32, #tpu.memory_space<vmem>>, vector<8x8xf32>
    tpu.vector_store %arg20[%c8_41, %c0_42], %110 {strides = array<i32>} : memref<32x32xf32, #tpu.memory_space<vmem>>, vector<8x8xf32>,
    %112 = vector.extract_strided_slice %22 {offsets = [8, 8], sizes = [8, 8], strides = [1, 1]} : vector<32x32xbf16> to vector<8x8xbf16>
    %113 = vector.extract_strided_slice %24 {offsets = [8, 8], sizes = [8, 8], strides = [1, 1]} : vector<32x32xbf16> to vector<8x8xbf16>
    %114 = vector.extract_strided_slice %26 {offsets = [8, 8], sizes = [8, 8], strides = [1, 1]} : vector<32x32xbf16> to vector<8x8xbf16>
    %cst_43 = arith.constant dense<0.000000e+00> : vector<8x8xf32>
    %115 = tpu.matmul %112, %113, %cst_43 {dimension_numbers = #tpu.dot_dimension_numbers<[1], [1], [0], [0], [0, 0, 1, 0], [], []>} : vector<8x8xbf16>, vector<8x8xbf16>, vector<8x8xf32> -> vector<8x8xf32>
    %cst_44 = arith.constant dense<0xFF800000> : vector<8xf32>
    %116 = vector.multi_reduction <maximumf>, %115, %cst_44 [1] : vector<8x8xf32> to vector<8xf32>
    %117 = vector.shape_cast %116 : vector<8xf32> to vector<8x1xf32>
    %118 = vector.broadcast %117 : vector<8x1xf32> to vector<8x8xf32>
    %119 = arith.subf %115, %118 : vector<8x8xf32>
    %120 = math.exp %119 : vector<8x8xf32>
    %cst_45 = arith.constant dense<0.000000e+00> : vector<8xf32>
    %121 = vector.multi_reduction <add>, %120, %cst_45 [1] : vector<8x8xf32> to vector<8xf32>
    %122 = vector.shape_cast %121 : vector<8xf32> to vector<8x1xf32>
    %123 = tpu.reciprocal %122 {approx = true} : vector<8x1xf32> -> vector<8x1xf32>
    %124 = vector.broadcast %123 : vector<8x1xf32> to vector<8x8xf32>
    %125 = arith.mulf %120, %124 : vector<8x8xf32>
    %126 = arith.truncf %125 : vector<8x8xf32> to vector<8x8xbf16>
    %cst_46 = arith.constant dense<0.000000e+00> : vector<8x8xf32>
    %127 = tpu.matmul %126, %114, %cst_46 {dimension_numbers = #tpu.dot_dimension_numbers<[1], [0], [0], [1], [0, 0, 1, 1], [], []>} : vector<8x8xbf16>, vector<8x8xbf16>, vector<8x8xf32> -> vector<8x8xf32>
    %c8_47 = arith.constant 8 : index
    %c8_48 = arith.constant 8 : index
    %128 = vector.load %arg20[%c8_47, %c8_48] : memref<32x32xf32, #tpu.memory_space<vmem>>, vector<8x8xf32>
    tpu.vector_store %arg20[%c8_47, %c8_48], %127 {strides = array<i32>} : memref<32x32xf32, #tpu.memory_space<vmem>>, vector<8x8xf32>,
    %129 = vector.extract_strided_slice %22 {offsets = [8, 16], sizes = [8, 8], strides = [1, 1]} : vector<32x32xbf16> to vector<8x8xbf16>
    %130 = vector.extract_strided_slice %24 {offsets = [8, 16], sizes = [8, 8], strides = [1, 1]} : vector<32x32xbf16> to vector<8x8xbf16>
    %131 = vector.extract_strided_slice %26 {offsets = [8, 16], sizes = [8, 8], strides = [1, 1]} : vector<32x32xbf16> to vector<8x8xbf16>
    %cst_49 = arith.constant dense<0.000000e+00> : vector<8x8xf32>
    %132 = tpu.matmul %129, %130, %cst_49 {dimension_numbers = #tpu.dot_dimension_numbers<[1], [1], [0], [0], [0, 0, 1, 0], [], []>} : vector<8x8xbf16>, vector<8x8xbf16>, vector<8x8xf32> -> vector<8x8xf32>
    %cst_50 = arith.constant dense<0xFF800000> : vector<8xf32>
    %133 = vector.multi_reduction <maximumf>, %132, %cst_50 [1] : vector<8x8xf32> to vector<8xf32>
    %134 = vector.shape_cast %133 : vector<8xf32> to vector<8x1xf32>
    %135 = vector.broadcast %134 : vector<8x1xf32> to vector<8x8xf32>
    %136 = arith.subf %132, %135 : vector<8x8xf32>
    %137 = math.exp %136 : vector<8x8xf32>
    %cst_51 = arith.constant dense<0.000000e+00> : vector<8xf32>
    %138 = vector.multi_reduction <add>, %137, %cst_51 [1] : vector<8x8xf32> to vector<8xf32>
    %139 = vector.shape_cast %138 : vector<8xf32> to vector<8x1xf32>
    %140 = tpu.reciprocal %139 {approx = true} : vector<8x1xf32> -> vector<8x1xf32>
    %141 = vector.broadcast %140 : vector<8x1xf32> to vector<8x8xf32>
    %142 = arith.mulf %137, %141 : vector<8x8xf32>
    %143 = arith.truncf %142 : vector<8x8xf32> to vector<8x8xbf16>
    %cst_52 = arith.constant dense<0.000000e+00> : vector<8x8xf32>
    %144 = tpu.matmul %143, %131, %cst_52 {dimension_numbers = #tpu.dot_dimension_numbers<[1], [0], [0], [1], [0, 0, 1, 1], [], []>} : vector<8x8xbf16>, vector<8x8xbf16>, vector<8x8xf32> -> vector<8x8xf32>
    %c8_53 = arith.constant 8 : index
    %c16_54 = arith.constant 16 : index
    %145 = vector.load %arg20[%c8_53, %c16_54] : memref<32x32xf32, #tpu.memory_space<vmem>>, vector<8x8xf32>
    tpu.vector_store %arg20[%c8_53, %c16_54], %144 {strides = array<i32>} : memref<32x32xf32, #tpu.memory_space<vmem>>, vector<8x8xf32>,
    %146 = vector.extract_strided_slice %22 {offsets = [8, 24], sizes = [8, 8], strides = [1, 1]} : vector<32x32xbf16> to vector<8x8xbf16>
    %147 = vector.extract_strided_slice %24 {offsets = [8, 24], sizes = [8, 8], strides = [1, 1]} : vector<32x32xbf16> to vector<8x8xbf16>
    %148 = vector.extract_strided_slice %26 {offsets = [8, 24], sizes = [8, 8], strides = [1, 1]} : vector<32x32xbf16> to vector<8x8xbf16>
    %cst_55 = arith.constant dense<0.000000e+00> : vector<8x8xf32>
    %149 = tpu.matmul %146, %147, %cst_55 {dimension_numbers = #tpu.dot_dimension_numbers<[1], [1], [0], [0], [0, 0, 1, 0], [], []>} : vector<8x8xbf16>, vector<8x8xbf16>, vector<8x8xf32> -> vector<8x8xf32>
    %cst_56 = arith.constant dense<0xFF800000> : vector<8xf32>
    %150 = vector.multi_reduction <maximumf>, %149, %cst_56 [1] : vector<8x8xf32> to vector<8xf32>
    %151 = vector.shape_cast %150 : vector<8xf32> to vector<8x1xf32>
    %152 = vector.broadcast %151 : vector<8x1xf32> to vector<8x8xf32>
    %153 = arith.subf %149, %152 : vector<8x8xf32>
    %154 = math.exp %153 : vector<8x8xf32>
    %cst_57 = arith.constant dense<0.000000e+00> : vector<8xf32>
    %155 = vector.multi_reduction <add>, %154, %cst_57 [1] : vector<8x8xf32> to vector<8xf32>
    %156 = vector.shape_cast %155 : vector<8xf32> to vector<8x1xf32>
    %157 = tpu.reciprocal %156 {approx = true} : vector<8x1xf32> -> vector<8x1xf32>
    %158 = vector.broadcast %157 : vector<8x1xf32> to vector<8x8xf32>
    %159 = arith.mulf %154, %158 : vector<8x8xf32>
    %160 = arith.truncf %159 : vector<8x8xf32> to vector<8x8xbf16>
    %cst_58 = arith.constant dense<0.000000e+00> : vector<8x8xf32>
    %161 = tpu.matmul %160, %148, %cst_58 {dimension_numbers = #tpu.dot_dimension_numbers<[1], [0], [0], [1], [0, 0, 1, 1], [], []>} : vector<8x8xbf16>, vector<8x8xbf16>, vector<8x8xf32> -> vector<8x8xf32>
    %c8_59 = arith.constant 8 : index
    %c24_60 = arith.constant 24 : index
    %162 = vector.load %arg20[%c8_59, %c24_60] : memref<32x32xf32, #tpu.memory_space<vmem>>, vector<8x8xf32>
    tpu.vector_store %arg20[%c8_59, %c24_60], %161 {strides = array<i32>} : memref<32x32xf32, #tpu.memory_space<vmem>>, vector<8x8xf32>,
    %163 = vector.extract_strided_slice %22 {offsets = [16, 0], sizes = [8, 8], strides = [1, 1]} : vector<32x32xbf16> to vector<8x8xbf16>
    %164 = vector.extract_strided_slice %24 {offsets = [16, 0], sizes = [8, 8], strides = [1, 1]} : vector<32x32xbf16> to vector<8x8xbf16>
    %165 = vector.extract_strided_slice %26 {offsets = [16, 0], sizes = [8, 8], strides = [1, 1]} : vector<32x32xbf16> to vector<8x8xbf16>
    %cst_61 = arith.constant dense<0.000000e+00> : vector<8x8xf32>
    %166 = tpu.matmul %163, %164, %cst_61 {dimension_numbers = #tpu.dot_dimension_numbers<[1], [1], [0], [0], [0, 0, 1, 0], [], []>} : vector<8x8xbf16>, vector<8x8xbf16>, vector<8x8xf32> -> vector<8x8xf32>
    %cst_62 = arith.constant dense<0xFF800000> : vector<8xf32>
    %167 = vector.multi_reduction <maximumf>, %166, %cst_62 [1] : vector<8x8xf32> to vector<8xf32>
    %168 = vector.shape_cast %167 : vector<8xf32> to vector<8x1xf32>
    %169 = vector.broadcast %168 : vector<8x1xf32> to vector<8x8xf32>
    %170 = arith.subf %166, %169 : vector<8x8xf32>
    %171 = math.exp %170 : vector<8x8xf32>
    %cst_63 = arith.constant dense<0.000000e+00> : vector<8xf32>
    %172 = vector.multi_reduction <add>, %171, %cst_63 [1] : vector<8x8xf32> to vector<8xf32>
    %173 = vector.shape_cast %172 : vector<8xf32> to vector<8x1xf32>
    %174 = tpu.reciprocal %173 {approx = true} : vector<8x1xf32> -> vector<8x1xf32>
    %175 = vector.broadcast %174 : vector<8x1xf32> to vector<8x8xf32>
    %176 = arith.mulf %171, %175 : vector<8x8xf32>
    %177 = arith.truncf %176 : vector<8x8xf32> to vector<8x8xbf16>
    %cst_64 = arith.constant dense<0.000000e+00> : vector<8x8xf32>
    %178 = tpu.matmul %177, %165, %cst_64 {dimension_numbers = #tpu.dot_dimension_numbers<[1], [0], [0], [1], [0, 0, 1, 1], [], []>} : vector<8x8xbf16>, vector<8x8xbf16>, vector<8x8xf32> -> vector<8x8xf32>
    %c16_65 = arith.constant 16 : index
    %c0_66 = arith.constant 0 : index
    %179 = vector.load %arg20[%c16_65, %c0_66] : memref<32x32xf32, #tpu.memory_space<vmem>>, vector<8x8xf32>
    tpu.vector_store %arg20[%c16_65, %c0_66], %178 {strides = array<i32>} : memref<32x32xf32, #tpu.memory_space<vmem>>, vector<8x8xf32>,
    %180 = vector.extract_strided_slice %22 {offsets = [16, 8], sizes = [8, 8], strides = [1, 1]} : vector<32x32xbf16> to vector<8x8xbf16>
    %181 = vector.extract_strided_slice %24 {offsets = [16, 8], sizes = [8, 8], strides = [1, 1]} : vector<32x32xbf16> to vector<8x8xbf16>
    %182 = vector.extract_strided_slice %26 {offsets = [16, 8], sizes = [8, 8], strides = [1, 1]} : vector<32x32xbf16> to vector<8x8xbf16>
    %cst_67 = arith.constant dense<0.000000e+00> : vector<8x8xf32>
    %183 = tpu.matmul %180, %181, %cst_67 {dimension_numbers = #tpu.dot_dimension_numbers<[1], [1], [0], [0], [0, 0, 1, 0], [], []>} : vector<8x8xbf16>, vector<8x8xbf16>, vector<8x8xf32> -> vector<8x8xf32>
    %cst_68 = arith.constant dense<0xFF800000> : vector<8xf32>
    %184 = vector.multi_reduction <maximumf>, %183, %cst_68 [1] : vector<8x8xf32> to vector<8xf32>
    %185 = vector.shape_cast %184 : vector<8xf32> to vector<8x1xf32>
    %186 = vector.broadcast %185 : vector<8x1xf32> to vector<8x8xf32>
    %187 = arith.subf %183, %186 : vector<8x8xf32>
    %188 = math.exp %187 : vector<8x8xf32>
    %cst_69 = arith.constant dense<0.000000e+00> : vector<8xf32>
    %189 = vector.multi_reduction <add>, %188, %cst_69 [1] : vector<8x8xf32> to vector<8xf32>
    %190 = vector.shape_cast %189 : vector<8xf32> to vector<8x1xf32>
    %191 = tpu.reciprocal %190 {approx = true} : vector<8x1xf32> -> vector<8x1xf32>
    %192 = vector.broadcast %191 : vector<8x1xf32> to vector<8x8xf32>
    %193 = arith.mulf %188, %192 : vector<8x8xf32>
    %194 = arith.truncf %193 : vector<8x8xf32> to vector<8x8xbf16>
    %cst_70 = arith.constant dense<0.000000e+00> : vector<8x8xf32>
    %195 = tpu.matmul %194, %182, %cst_70 {dimension_numbers = #tpu.dot_dimension_numbers<[1], [0], [0], [1], [0, 0, 1, 1], [], []>} : vector<8x8xbf16>, vector<8x8xbf16>, vector<8x8xf32> -> vector<8x8xf32>
    %c16_71 = arith.constant 16 : index
    %c8_72 = arith.constant 8 : index
    %196 = vector.load %arg20[%c16_71, %c8_72] : memref<32x32xf32, #tpu.memory_space<vmem>>, vector<8x8xf32>
    tpu.vector_store %arg20[%c16_71, %c8_72], %195 {strides = array<i32>} : memref<32x32xf32, #tpu.memory_space<vmem>>, vector<8x8xf32>,
    %197 = vector.extract_strided_slice %22 {offsets = [16, 16], sizes = [8, 8], strides = [1, 1]} : vector<32x32xbf16> to vector<8x8xbf16>
    %198 = vector.extract_strided_slice %24 {offsets = [16, 16], sizes = [8, 8], strides = [1, 1]} : vector<32x32xbf16> to vector<8x8xbf16>
    %199 = vector.extract_strided_slice %26 {offsets = [16, 16], sizes = [8, 8], strides = [1, 1]} : vector<32x32xbf16> to vector<8x8xbf16>
    %cst_73 = arith.constant dense<0.000000e+00> : vector<8x8xf32>
    %200 = tpu.matmul %197, %198, %cst_73 {dimension_numbers = #tpu.dot_dimension_numbers<[1], [1], [0], [0], [0, 0, 1, 0], [], []>} : vector<8x8xbf16>, vector<8x8xbf16>, vector<8x8xf32> -> vector<8x8xf32>
    %cst_74 = arith.constant dense<0xFF800000> : vector<8xf32>
    %201 = vector.multi_reduction <maximumf>, %200, %cst_74 [1] : vector<8x8xf32> to vector<8xf32>
    %202 = vector.shape_cast %201 : vector<8xf32> to vector<8x1xf32>
    %203 = vector.broadcast %202 : vector<8x1xf32> to vector<8x8xf32>
    %204 = arith.subf %200, %203 : vector<8x8xf32>
    %205 = math.exp %204 : vector<8x8xf32>
    %cst_75 = arith.constant dense<0.000000e+00> : vector<8xf32>
    %206 = vector.multi_reduction <add>, %205, %cst_75 [1] : vector<8x8xf32> to vector<8xf32>
    %207 = vector.shape_cast %206 : vector<8xf32> to vector<8x1xf32>
    %208 = tpu.reciprocal %207 {approx = true} : vector<8x1xf32> -> vector<8x1xf32>
    %209 = vector.broadcast %208 : vector<8x1xf32> to vector<8x8xf32>
    %210 = arith.mulf %205, %209 : vector<8x8xf32>
    %211 = arith.truncf %210 : vector<8x8xf32> to vector<8x8xbf16>
    %cst_76 = arith.constant dense<0.000000e+00> : vector<8x8xf32>
    %212 = tpu.matmul %211, %199, %cst_76 {dimension_numbers = #tpu.dot_dimension_numbers<[1], [0], [0], [1], [0, 0, 1, 1], [], []>} : vector<8x8xbf16>, vector<8x8xbf16>, vector<8x8xf32> -> vector<8x8xf32>
    %c16_77 = arith.constant 16 : index
    %c16_78 = arith.constant 16 : index
    %213 = vector.load %arg20[%c16_77, %c16_78] : memref<32x32xf32, #tpu.memory_space<vmem>>, vector<8x8xf32>
    tpu.vector_store %arg20[%c16_77, %c16_78], %212 {strides = array<i32>} : memref<32x32xf32, #tpu.memory_space<vmem>>, vector<8x8xf32>,
    %214 = vector.extract_strided_slice %22 {offsets = [16, 24], sizes = [8, 8], strides = [1, 1]} : vector<32x32xbf16> to vector<8x8xbf16>
    %215 = vector.extract_strided_slice %24 {offsets = [16, 24], sizes = [8, 8], strides = [1, 1]} : vector<32x32xbf16> to vector<8x8xbf16>
    %216 = vector.extract_strided_slice %26 {offsets = [16, 24], sizes = [8, 8], strides = [1, 1]} : vector<32x32xbf16> to vector<8x8xbf16>
    %cst_79 = arith.constant dense<0.000000e+00> : vector<8x8xf32>
    %217 = tpu.matmul %214, %215, %cst_79 {dimension_numbers = #tpu.dot_dimension_numbers<[1], [1], [0], [0], [0, 0, 1, 0], [], []>} : vector<8x8xbf16>, vector<8x8xbf16>, vector<8x8xf32> -> vector<8x8xf32>
    %cst_80 = arith.constant dense<0xFF800000> : vector<8xf32>
    %218 = vector.multi_reduction <maximumf>, %217, %cst_80 [1] : vector<8x8xf32> to vector<8xf32>
    %219 = vector.shape_cast %218 : vector<8xf32> to vector<8x1xf32>
    %220 = vector.broadcast %219 : vector<8x1xf32> to vector<8x8xf32>
    %221 = arith.subf %217, %220 : vector<8x8xf32>
    %222 = math.exp %221 : vector<8x8xf32>
    %cst_81 = arith.constant dense<0.000000e+00> : vector<8xf32>
    %223 = vector.multi_reduction <add>, %222, %cst_81 [1] : vector<8x8xf32> to vector<8xf32>
    %224 = vector.shape_cast %223 : vector<8xf32> to vector<8x1xf32>
    %225 = tpu.reciprocal %224 {approx = true} : vector<8x1xf32> -> vector<8x1xf32>
    %226 = vector.broadcast %225 : vector<8x1xf32> to vector<8x8xf32>
    %227 = arith.mulf %222, %226 : vector<8x8xf32>
    %228 = arith.truncf %227 : vector<8x8xf32> to vector<8x8xbf16>
    %cst_82 = arith.constant dense<0.000000e+00> : vector<8x8xf32>
    %229 = tpu.matmul %228, %216, %cst_82 {dimension_numbers = #tpu.dot_dimension_numbers<[1], [0], [0], [1], [0, 0, 1, 1], [], []>} : vector<8x8xbf16>, vector<8x8xbf16>, vector<8x8xf32> -> vector<8x8xf32>
    %c16_83 = arith.constant 16 : index
    %c24_84 = arith.constant 24 : index
    %230 = vector.load %arg20[%c16_83, %c24_84] : memref<32x32xf32, #tpu.memory_space<vmem>>, vector<8x8xf32>
    tpu.vector_store %arg20[%c16_83, %c24_84], %229 {strides = array<i32>} : memref<32x32xf32, #tpu.memory_space<vmem>>, vector<8x8xf32>,
    %231 = vector.extract_strided_slice %22 {offsets = [24, 0], sizes = [8, 8], strides = [1, 1]} : vector<32x32xbf16> to vector<8x8xbf16>
    %232 = vector.extract_strided_slice %24 {offsets = [24, 0], sizes = [8, 8], strides = [1, 1]} : vector<32x32xbf16> to vector<8x8xbf16>
    %233 = vector.extract_strided_slice %26 {offsets = [24, 0], sizes = [8, 8], strides = [1, 1]} : vector<32x32xbf16> to vector<8x8xbf16>
    %cst_85 = arith.constant dense<0.000000e+00> : vector<8x8xf32>
    %234 = tpu.matmul %231, %232, %cst_85 {dimension_numbers = #tpu.dot_dimension_numbers<[1], [1], [0], [0], [0, 0, 1, 0], [], []>} : vector<8x8xbf16>, vector<8x8xbf16>, vector<8x8xf32> -> vector<8x8xf32>
    %cst_86 = arith.constant dense<0xFF800000> : vector<8xf32>
    %235 = vector.multi_reduction <maximumf>, %234, %cst_86 [1] : vector<8x8xf32> to vector<8xf32>
    %236 = vector.shape_cast %235 : vector<8xf32> to vector<8x1xf32>
    %237 = vector.broadcast %236 : vector<8x1xf32> to vector<8x8xf32>
    %238 = arith.subf %234, %237 : vector<8x8xf32>
    %239 = math.exp %238 : vector<8x8xf32>
    %cst_87 = arith.constant dense<0.000000e+00> : vector<8xf32>
    %240 = vector.multi_reduction <add>, %239, %cst_87 [1] : vector<8x8xf32> to vector<8xf32>
    %241 = vector.shape_cast %240 : vector<8xf32> to vector<8x1xf32>
    %242 = tpu.reciprocal %241 {approx = true} : vector<8x1xf32> -> vector<8x1xf32>
    %243 = vector.broadcast %242 : vector<8x1xf32> to vector<8x8xf32>
    %244 = arith.mulf %239, %243 : vector<8x8xf32>
    %245 = arith.truncf %244 : vector<8x8xf32> to vector<8x8xbf16>
    %cst_88 = arith.constant dense<0.000000e+00> : vector<8x8xf32>
    %246 = tpu.matmul %245, %233, %cst_88 {dimension_numbers = #tpu.dot_dimension_numbers<[1], [0], [0], [1], [0, 0, 1, 1], [], []>} : vector<8x8xbf16>, vector<8x8xbf16>, vector<8x8xf32> -> vector<8x8xf32>
    %c24_89 = arith.constant 24 : index
    %c0_90 = arith.constant 0 : index
    %247 = vector.load %arg20[%c24_89, %c0_90] : memref<32x32xf32, #tpu.memory_space<vmem>>, vector<8x8xf32>
    tpu.vector_store %arg20[%c24_89, %c0_90], %246 {strides = array<i32>} : memref<32x32xf32, #tpu.memory_space<vmem>>, vector<8x8xf32>,
    %248 = vector.extract_strided_slice %22 {offsets = [24, 8], sizes = [8, 8], strides = [1, 1]} : vector<32x32xbf16> to vector<8x8xbf16>
    %249 = vector.extract_strided_slice %24 {offsets = [24, 8], sizes = [8, 8], strides = [1, 1]} : vector<32x32xbf16> to vector<8x8xbf16>
    %250 = vector.extract_strided_slice %26 {offsets = [24, 8], sizes = [8, 8], strides = [1, 1]} : vector<32x32xbf16> to vector<8x8xbf16>
    %cst_91 = arith.constant dense<0.000000e+00> : vector<8x8xf32>
    %251 = tpu.matmul %248, %249, %cst_91 {dimension_numbers = #tpu.dot_dimension_numbers<[1], [1], [0], [0], [0, 0, 1, 0], [], []>} : vector<8x8xbf16>, vector<8x8xbf16>, vector<8x8xf32> -> vector<8x8xf32>
    %cst_92 = arith.constant dense<0xFF800000> : vector<8xf32>
    %252 = vector.multi_reduction <maximumf>, %251, %cst_92 [1] : vector<8x8xf32> to vector<8xf32>
    %253 = vector.shape_cast %252 : vector<8xf32> to vector<8x1xf32>
    %254 = vector.broadcast %253 : vector<8x1xf32> to vector<8x8xf32>
    %255 = arith.subf %251, %254 : vector<8x8xf32>
    %256 = math.exp %255 : vector<8x8xf32>
    %cst_93 = arith.constant dense<0.000000e+00> : vector<8xf32>
    %257 = vector.multi_reduction <add>, %256, %cst_93 [1] : vector<8x8xf32> to vector<8xf32>
    %258 = vector.shape_cast %257 : vector<8xf32> to vector<8x1xf32>
    %259 = tpu.reciprocal %258 {approx = true} : vector<8x1xf32> -> vector<8x1xf32>
    %260 = vector.broadcast %259 : vector<8x1xf32> to vector<8x8xf32>
    %261 = arith.mulf %256, %260 : vector<8x8xf32>
    %262 = arith.truncf %261 : vector<8x8xf32> to vector<8x8xbf16>
    %cst_94 = arith.constant dense<0.000000e+00> : vector<8x8xf32>
    %263 = tpu.matmul %262, %250, %cst_94 {dimension_numbers = #tpu.dot_dimension_numbers<[1], [0], [0], [1], [0, 0, 1, 1], [], []>} : vector<8x8xbf16>, vector<8x8xbf16>, vector<8x8xf32> -> vector<8x8xf32>
    %c24_95 = arith.constant 24 : index
    %c8_96 = arith.constant 8 : index
    %264 = vector.load %arg20[%c24_95, %c8_96] : memref<32x32xf32, #tpu.memory_space<vmem>>, vector<8x8xf32>
    tpu.vector_store %arg20[%c24_95, %c8_96], %263 {strides = array<i32>} : memref<32x32xf32, #tpu.memory_space<vmem>>, vector<8x8xf32>,
    %265 = vector.extract_strided_slice %22 {offsets = [24, 16], sizes = [8, 8], strides = [1, 1]} : vector<32x32xbf16> to vector<8x8xbf16>
    %266 = vector.extract_strided_slice %24 {offsets = [24, 16], sizes = [8, 8], strides = [1, 1]} : vector<32x32xbf16> to vector<8x8xbf16>
    %267 = vector.extract_strided_slice %26 {offsets = [24, 16], sizes = [8, 8], strides = [1, 1]} : vector<32x32xbf16> to vector<8x8xbf16>
    %cst_97 = arith.constant dense<0.000000e+00> : vector<8x8xf32>
    %268 = tpu.matmul %265, %266, %cst_97 {dimension_numbers = #tpu.dot_dimension_numbers<[1], [1], [0], [0], [0, 0, 1, 0], [], []>} : vector<8x8xbf16>, vector<8x8xbf16>, vector<8x8xf32> -> vector<8x8xf32>
    %cst_98 = arith.constant dense<0xFF800000> : vector<8xf32>
    %269 = vector.multi_reduction <maximumf>, %268, %cst_98 [1] : vector<8x8xf32> to vector<8xf32>
    %270 = vector.shape_cast %269 : vector<8xf32> to vector<8x1xf32>
    %271 = vector.broadcast %270 : vector<8x1xf32> to vector<8x8xf32>
    %272 = arith.subf %268, %271 : vector<8x8xf32>
    %273 = math.exp %272 : vector<8x8xf32>
    %cst_99 = arith.constant dense<0.000000e+00> : vector<8xf32>
    %274 = vector.multi_reduction <add>, %273, %cst_99 [1] : vector<8x8xf32> to vector<8xf32>
    %275 = vector.shape_cast %274 : vector<8xf32> to vector<8x1xf32>
    %276 = tpu.reciprocal %275 {approx = true} : vector<8x1xf32> -> vector<8x1xf32>
    %277 = vector.broadcast %276 : vector<8x1xf32> to vector<8x8xf32>
    %278 = arith.mulf %273, %277 : vector<8x8xf32>
    %279 = arith.truncf %278 : vector<8x8xf32> to vector<8x8xbf16>
    %cst_100 = arith.constant dense<0.000000e+00> : vector<8x8xf32>
    %280 = tpu.matmul %279, %267, %cst_100 {dimension_numbers = #tpu.dot_dimension_numbers<[1], [0], [0], [1], [0, 0, 1, 1], [], []>} : vector<8x8xbf16>, vector<8x8xbf16>, vector<8x8xf32> -> vector<8x8xf32>
    %c24_101 = arith.constant 24 : index
    %c16_102 = arith.constant 16 : index
    %281 = vector.load %arg20[%c24_101, %c16_102] : memref<32x32xf32, #tpu.memory_space<vmem>>, vector<8x8xf32>
    tpu.vector_store %arg20[%c24_101, %c16_102], %280 {strides = array<i32>} : memref<32x32xf32, #tpu.memory_space<vmem>>, vector<8x8xf32>,
    %282 = vector.extract_strided_slice %22 {offsets = [24, 24], sizes = [8, 8], strides = [1, 1]} : vector<32x32xbf16> to vector<8x8xbf16>
    %283 = vector.extract_strided_slice %24 {offsets = [24, 24], sizes = [8, 8], strides = [1, 1]} : vector<32x32xbf16> to vector<8x8xbf16>
    %284 = vector.extract_strided_slice %26 {offsets = [24, 24], sizes = [8, 8], strides = [1, 1]} : vector<32x32xbf16> to vector<8x8xbf16>
    %cst_103 = arith.constant dense<0.000000e+00> : vector<8x8xf32>
    %285 = tpu.matmul %282, %283, %cst_103 {dimension_numbers = #tpu.dot_dimension_numbers<[1], [1], [0], [0], [0, 0, 1, 0], [], []>} : vector<8x8xbf16>, vector<8x8xbf16>, vector<8x8xf32> -> vector<8x8xf32>
    %cst_104 = arith.constant dense<0xFF800000> : vector<8xf32>
    %286 = vector.multi_reduction <maximumf>, %285, %cst_104 [1] : vector<8x8xf32> to vector<8xf32>
    %287 = vector.shape_cast %286 : vector<8xf32> to vector<8x1xf32>
    %288 = vector.broadcast %287 : vector<8x1xf32> to vector<8x8xf32>
    %289 = arith.subf %285, %288 : vector<8x8xf32>
    %290 = math.exp %289 : vector<8x8xf32>
    %cst_105 = arith.constant dense<0.000000e+00> : vector<8xf32>
    %291 = vector.multi_reduction <add>, %290, %cst_105 [1] : vector<8x8xf32> to vector<8xf32>
    %292 = vector.shape_cast %291 : vector<8xf32> to vector<8x1xf32>
    %293 = tpu.reciprocal %292 {approx = true} : vector<8x1xf32> -> vector<8x1xf32>
    %294 = vector.broadcast %293 : vector<8x1xf32> to vector<8x8xf32>
    %295 = arith.mulf %290, %294 : vector<8x8xf32>
    %296 = arith.truncf %295 : vector<8x8xf32> to vector<8x8xbf16>
    %cst_106 = arith.constant dense<0.000000e+00> : vector<8x8xf32>
    %297 = tpu.matmul %296, %284, %cst_106 {dimension_numbers = #tpu.dot_dimension_numbers<[1], [0], [0], [1], [0, 0, 1, 1], [], []>} : vector<8x8xbf16>, vector<8x8xbf16>, vector<8x8xf32> -> vector<8x8xf32>
    %c24_107 = arith.constant 24 : index
    %c24_108 = arith.constant 24 : index
    %298 = vector.load %arg20[%c24_107, %c24_108] : memref<32x32xf32, #tpu.memory_space<vmem>>, vector<8x8xf32>
    tpu.vector_store %arg20[%c24_107, %c24_108], %297 {strides = array<i32>} : memref<32x32xf32, #tpu.memory_space<vmem>>, vector<8x8xf32>,
    %c0_109 = arith.constant 0 : index
    %c0_110 = arith.constant 0 : index
    %299 = vector.load %arg20[%c0_109, %c0_110] : memref<32x32xf32, #tpu.memory_space<vmem>>, vector<32x32xf32>
    %300 = arith.truncf %299 : vector<32x32xf32> to vector<32x32xbf16>
    %c0_111 = arith.constant 0 : index
    %c0_112 = arith.constant 0 : index
    %c0_113 = arith.constant 0 : index
    %301 = vector.load %arg7[%c0_111, %c0_112, %c0_113] : memref<2x32x32xbf16, #tpu.memory_space<vmem>>, vector<1x32x32xbf16>
    %302 = vector.shape_cast %301 : vector<1x32x32xbf16> to vector<32x32xbf16>
    %cst_114 = arith.constant dense<0.000000e+00> : vector<32x32xf32>
    %303 = tpu.matmul %300, %302, %cst_114 {dimension_numbers = #tpu.dot_dimension_numbers<[1], [0], [0], [1], [0, 0, 1, 1], [], []>} : vector<32x32xbf16>, vector<32x32xbf16>, vector<32x32xf32> -> vector<32x32xf32>
    %c0_115 = arith.constant 0 : index
    %c0_116 = arith.constant 0 : index
    %c0_117 = arith.constant 0 : index
    %304 = vector.load %arg8[%c0_115, %c0_116, %c0_117] : memref<2x1x32xf32, #tpu.memory_space<vmem>>, vector<1x1x32xf32>
    %305 = vector.shape_cast %304 : vector<1x1x32xf32> to vector<1x32xf32>
    %306 = vector.broadcast %305 : vector<1x32xf32> to vector<32x32xf32>
    %307 = arith.addf %303, %306 : vector<32x32xf32>
    %308 = arith.addf %12, %307 : vector<32x32xf32>
    %c0_118 = arith.constant 0 : index
    %c0_119 = arith.constant 0 : index
    %c0_120 = arith.constant 0 : index
    %309 = vector.load %arg9[%c0_118, %c0_119, %c0_120] : memref<2x1x32xf32, #tpu.memory_space<vmem>>, vector<1x1x32xf32>
    %310 = vector.shape_cast %309 : vector<1x1x32xf32> to vector<1x32xf32>
    %c0_121 = arith.constant 0 : index
    %c0_122 = arith.constant 0 : index
    %c0_123 = arith.constant 0 : index
    %311 = vector.load %arg10[%c0_121, %c0_122, %c0_123] : memref<2x1x32xf32, #tpu.memory_space<vmem>>, vector<1x1x32xf32>
    %312 = vector.shape_cast %311 : vector<1x1x32xf32> to vector<1x32xf32>
    %cst_124 = arith.constant dense<0.000000e+00> : vector<32xf32>
    %313 = vector.multi_reduction <add>, %308, %cst_124 [1] : vector<32x32xf32> to vector<32xf32>
    %314 = vector.shape_cast %313 : vector<32xf32> to vector<32x1xf32>
    %cst_125 = arith.constant 3.200000e+01 : f32
    %315 = vector.broadcast %cst_125 : f32 to vector<32x1xf32>
    %316 = arith.divf %314, %315 : vector<32x1xf32>
    %317 = vector.broadcast %316 : vector<32x1xf32> to vector<32x32xf32>
    %318 = arith.subf %308, %317 : vector<32x32xf32>
    %319 = arith.mulf %318, %318 : vector<32x32xf32>
    %cst_126 = arith.constant dense<0.000000e+00> : vector<32xf32>
    %320 = vector.multi_reduction <add>, %319, %cst_126 [1] : vector<32x32xf32> to vector<32xf32>
    %321 = vector.shape_cast %320 : vector<32xf32> to vector<32x1xf32>
    %cst_127 = arith.constant 3.200000e+01 : f32
    %322 = vector.broadcast %cst_127 : f32 to vector<32x1xf32>
    %323 = arith.divf %321, %322 : vector<32x1xf32>
    %cst_128 = arith.constant 9.99999974E-6 : f32
    %324 = vector.broadcast %cst_128 : f32 to vector<32x1xf32>
    %325 = arith.addf %323, %324 : vector<32x1xf32>
    %326 = math.rsqrt %325 : vector<32x1xf32>
    %327 = vector.broadcast %326 : vector<32x1xf32> to vector<32x32xf32>
    %328 = arith.mulf %318, %327 : vector<32x32xf32>
    %329 = vector.broadcast %310 : vector<1x32xf32> to vector<32x32xf32>
    %330 = arith.mulf %328, %329 : vector<32x32xf32>
    %331 = vector.broadcast %312 : vector<1x32xf32> to vector<32x32xf32>
    %332 = arith.addf %330, %331 : vector<32x32xf32>
    %333 = arith.truncf %332 : vector<32x32xf32> to vector<32x32xbf16>
    %c0_129 = arith.constant 0 : index
    %c0_130 = arith.constant 0 : index
    %c0_131 = arith.constant 0 : index
    %334 = vector.load %arg11[%c0_129, %c0_130, %c0_131] : memref<2x32x64xbf16, #tpu.memory_space<vmem>>, vector<1x32x64xbf16>
    %335 = vector.shape_cast %334 : vector<1x32x64xbf16> to vector<32x64xbf16>
    %cst_132 = arith.constant dense<0.000000e+00> : vector<32x64xf32>
    %336 = tpu.matmul %333, %335, %cst_132 {dimension_numbers = #tpu.dot_dimension_numbers<[1], [0], [0], [1], [0, 0, 1, 1], [], []>} : vector<32x32xbf16>, vector<32x64xbf16>, vector<32x64xf32> -> vector<32x64xf32>
    %c0_133 = arith.constant 0 : index
    %c0_134 = arith.constant 0 : index
    %c0_135 = arith.constant 0 : index
    %337 = vector.load %arg12[%c0_133, %c0_134, %c0_135] : memref<2x1x64xf32, #tpu.memory_space<vmem>>, vector<1x1x64xf32>
    %338 = vector.shape_cast %337 : vector<1x1x64xf32> to vector<1x64xf32>
    %339 = vector.broadcast %338 : vector<1x64xf32> to vector<32x64xf32>
    %340 = arith.addf %336, %339 : vector<32x64xf32>
    %cst_136 = arith.constant 0.000000e+00 : f32
    %341 = vector.broadcast %cst_136 : f32 to vector<32x64xf32>
    %342 = arith.maximumf %340, %341 : vector<32x64xf32>
    %343 = arith.truncf %342 : vector<32x64xf32> to vector<32x64xbf16>
    %c0_137 = arith.constant 0 : index
    %c0_138 = arith.constant 0 : index
    %c0_139 = arith.constant 0 : index
    %344 = vector.load %arg13[%c0_137, %c0_138, %c0_139] : memref<2x64x32xbf16, #tpu.memory_space<vmem>>, vector<1x64x32xbf16>
    %345 = vector.shape_cast %344 : vector<1x64x32xbf16> to vector<64x32xbf16>
    %cst_140 = arith.constant dense<0.000000e+00> : vector<32x32xf32>
    %346 = tpu.matmul %343, %345, %cst_140 {dimension_numbers = #tpu.dot_dimension_numbers<[1], [0], [0], [1], [0, 0, 1, 1], [], []>} : vector<32x64xbf16>, vector<64x32xbf16>, vector<32x32xf32> -> vector<32x32xf32>
    %c0_141 = arith.constant 0 : index
    %c0_142 = arith.constant 0 : index
    %c0_143 = arith.constant 0 : index
    %347 = vector.load %arg14[%c0_141, %c0_142, %c0_143] : memref<2x1x32xf32, #tpu.memory_space<vmem>>, vector<1x1x32xf32>
    %348 = vector.shape_cast %347 : vector<1x1x32xf32> to vector<1x32xf32>
    %349 = vector.broadcast %348 : vector<1x32xf32> to vector<32x32xf32>
    %350 = arith.addf %346, %349 : vector<32x32xf32>
    %351 = arith.addf %332, %350 : vector<32x32xf32>
    %c0_144 = arith.constant 0 : index
    %c0_145 = arith.constant 0 : index
    %c0_146 = arith.constant 0 : index
    %352 = vector.load %arg15[%c0_144, %c0_145, %c0_146] : memref<2x1x32xf32, #tpu.memory_space<vmem>>, vector<1x1x32xf32>
    %353 = vector.shape_cast %352 : vector<1x1x32xf32> to vector<1x32xf32>
    %c0_147 = arith.constant 0 : index
    %c0_148 = arith.constant 0 : index
    %c0_149 = arith.constant 0 : index
    %354 = vector.load %arg16[%c0_147, %c0_148, %c0_149] : memref<2x1x32xf32, #tpu.memory_space<vmem>>, vector<1x1x32xf32>
    %355 = vector.shape_cast %354 : vector<1x1x32xf32> to vector<1x32xf32>
    %cst_150 = arith.constant dense<0.000000e+00> : vector<32xf32>
    %356 = vector.multi_reduction <add>, %351, %cst_150 [1] : vector<32x32xf32> to vector<32xf32>
    %357 = vector.shape_cast %356 : vector<32xf32> to vector<32x1xf32>
    %cst_151 = arith.constant 3.200000e+01 : f32
    %358 = vector.broadcast %cst_151 : f32 to vector<32x1xf32>
    %359 = arith.divf %357, %358 : vector<32x1xf32>
    %360 = vector.broadcast %359 : vector<32x1xf32> to vector<32x32xf32>
    %361 = arith.subf %351, %360 : vector<32x32xf32>
    %362 = arith.mulf %361, %361 : vector<32x32xf32>
    %cst_152 = arith.constant dense<0.000000e+00> : vector<32xf32>
    %363 = vector.multi_reduction <add>, %362, %cst_152 [1] : vector<32x32xf32> to vector<32xf32>
    %364 = vector.shape_cast %363 : vector<32xf32> to vector<32x1xf32>
    %cst_153 = arith.constant 3.200000e+01 : f32
    %365 = vector.broadcast %cst_153 : f32 to vector<32x1xf32>
    %366 = arith.divf %364, %365 : vector<32x1xf32>
    %cst_154 = arith.constant 9.99999974E-6 : f32
    %367 = vector.broadcast %cst_154 : f32 to vector<32x1xf32>
    %368 = arith.addf %366, %367 : vector<32x1xf32>
    %369 = math.rsqrt %368 : vector<32x1xf32>
    %370 = vector.broadcast %369 : vector<32x1xf32> to vector<32x32xf32>
    %371 = arith.mulf %361, %370 : vector<32x32xf32>
    %372 = vector.broadcast %353 : vector<1x32xf32> to vector<32x32xf32>
    %373 = arith.mulf %371, %372 : vector<32x32xf32>
    %374 = vector.broadcast %355 : vector<1x32xf32> to vector<32x32xf32>
    %375 = arith.addf %373, %374 : vector<32x32xf32>
    %376 = arith.truncf %375 : vector<32x32xf32> to vector<32x32xbf16>
    %c1 = arith.constant 1 : index
    %c0_155 = arith.constant 0 : index
    %c0_156 = arith.constant 0 : index
    %377 = vector.load %arg5[%c1, %c0_155, %c0_156] : memref<2x32x96xbf16, #tpu.memory_space<vmem>>, vector<1x32x96xbf16>
    %378 = vector.shape_cast %377 : vector<1x32x96xbf16> to vector<32x96xbf16>
    %cst_157 = arith.constant dense<0.000000e+00> : vector<32x96xf32>
    %379 = tpu.matmul %376, %378, %cst_157 {dimension_numbers = #tpu.dot_dimension_numbers<[1], [0], [0], [1], [0, 0, 1, 1], [], []>} : vector<32x32xbf16>, vector<32x96xbf16>, vector<32x96xf32> -> vector<32x96xf32>
    %c1_158 = arith.constant 1 : index
    %c0_159 = arith.constant 0 : index
    %c0_160 = arith.constant 0 : index
    %380 = vector.load %arg6[%c1_158, %c0_159, %c0_160] : memref<2x1x96xf32, #tpu.memory_space<vmem>>, vector<1x1x96xf32>
    %381 = vector.shape_cast %380 : vector<1x1x96xf32> to vector<1x96xf32>
    %382 = vector.broadcast %381 : vector<1x96xf32> to vector<32x96xf32>
    %383 = arith.addf %379, %382 : vector<32x96xf32>
    %384 = vector.extract_strided_slice %383 {offsets = [0, 0], sizes = [32, 32], strides = [1, 1]} : vector<32x96xf32> to vector<32x32xf32>
    %385 = arith.truncf %384 : vector<32x32xf32> to vector<32x32xbf16>
    %386 = vector.extract_strided_slice %383 {offsets = [0, 32], sizes = [32, 32], strides = [1, 1]} : vector<32x96xf32> to vector<32x32xf32>
    %387 = arith.truncf %386 : vector<32x32xf32> to vector<32x32xbf16>
    %388 = vector.extract_strided_slice %383 {offsets = [0, 64], sizes = [32, 32], strides = [1, 1]} : vector<32x96xf32> to vector<32x32xf32>
    %389 = arith.truncf %388 : vector<32x32xf32> to vector<32x32xbf16>
    %390 = vector.extract_strided_slice %385 {offsets = [0, 0], sizes = [8, 8], strides = [1, 1]} : vector<32x32xbf16> to vector<8x8xbf16>
    %391 = vector.extract_strided_slice %387 {offsets = [0, 0], sizes = [8, 8], strides = [1, 1]} : vector<32x32xbf16> to vector<8x8xbf16>
    %392 = vector.extract_strided_slice %389 {offsets = [0, 0], sizes = [8, 8], strides = [1, 1]} : vector<32x32xbf16> to vector<8x8xbf16>
    %cst_161 = arith.constant dense<0.000000e+00> : vector<8x8xf32>
    %393 = tpu.matmul %390, %391, %cst_161 {dimension_numbers = #tpu.dot_dimension_numbers<[1], [1], [0], [0], [0, 0, 1, 0], [], []>} : vector<8x8xbf16>, vector<8x8xbf16>, vector<8x8xf32> -> vector<8x8xf32>
    %cst_162 = arith.constant dense<0xFF800000> : vector<8xf32>
    %394 = vector.multi_reduction <maximumf>, %393, %cst_162 [1] : vector<8x8xf32> to vector<8xf32>
    %395 = vector.shape_cast %394 : vector<8xf32> to vector<8x1xf32>
    %396 = vector.broadcast %395 : vector<8x1xf32> to vector<8x8xf32>
    %397 = arith.subf %393, %396 : vector<8x8xf32>
    %398 = math.exp %397 : vector<8x8xf32>
    %cst_163 = arith.constant dense<0.000000e+00> : vector<8xf32>
    %399 = vector.multi_reduction <add>, %398, %cst_163 [1] : vector<8x8xf32> to vector<8xf32>
    %400 = vector.shape_cast %399 : vector<8xf32> to vector<8x1xf32>
    %401 = tpu.reciprocal %400 {approx = true} : vector<8x1xf32> -> vector<8x1xf32>
    %402 = vector.broadcast %401 : vector<8x1xf32> to vector<8x8xf32>
    %403 = arith.mulf %398, %402 : vector<8x8xf32>
    %404 = arith.truncf %403 : vector<8x8xf32> to vector<8x8xbf16>
    %cst_164 = arith.constant dense<0.000000e+00> : vector<8x8xf32>
    %405 = tpu.matmul %404, %392, %cst_164 {dimension_numbers = #tpu.dot_dimension_numbers<[1], [0], [0], [1], [0, 0, 1, 1], [], []>} : vector<8x8xbf16>, vector<8x8xbf16>, vector<8x8xf32> -> vector<8x8xf32>
    %c0_165 = arith.constant 0 : index
    %c0_166 = arith.constant 0 : index
    %406 = vector.load %arg20[%c0_165, %c0_166] : memref<32x32xf32, #tpu.memory_space<vmem>>, vector<8x8xf32>
    tpu.vector_store %arg20[%c0_165, %c0_166], %405 {strides = array<i32>} : memref<32x32xf32, #tpu.memory_space<vmem>>, vector<8x8xf32>,
    %407 = vector.extract_strided_slice %385 {offsets = [0, 8], sizes = [8, 8], strides = [1, 1]} : vector<32x32xbf16> to vector<8x8xbf16>
    %408 = vector.extract_strided_slice %387 {offsets = [0, 8], sizes = [8, 8], strides = [1, 1]} : vector<32x32xbf16> to vector<8x8xbf16>
    %409 = vector.extract_strided_slice %389 {offsets = [0, 8], sizes = [8, 8], strides = [1, 1]} : vector<32x32xbf16> to vector<8x8xbf16>
    %cst_167 = arith.constant dense<0.000000e+00> : vector<8x8xf32>
    %410 = tpu.matmul %407, %408, %cst_167 {dimension_numbers = #tpu.dot_dimension_numbers<[1], [1], [0], [0], [0, 0, 1, 0], [], []>} : vector<8x8xbf16>, vector<8x8xbf16>, vector<8x8xf32> -> vector<8x8xf32>
    %cst_168 = arith.constant dense<0xFF800000> : vector<8xf32>
    %411 = vector.multi_reduction <maximumf>, %410, %cst_168 [1] : vector<8x8xf32> to vector<8xf32>
    %412 = vector.shape_cast %411 : vector<8xf32> to vector<8x1xf32>
    %413 = vector.broadcast %412 : vector<8x1xf32> to vector<8x8xf32>
    %414 = arith.subf %410, %413 : vector<8x8xf32>
    %415 = math.exp %414 : vector<8x8xf32>
    %cst_169 = arith.constant dense<0.000000e+00> : vector<8xf32>
    %416 = vector.multi_reduction <add>, %415, %cst_169 [1] : vector<8x8xf32> to vector<8xf32>
    %417 = vector.shape_cast %416 : vector<8xf32> to vector<8x1xf32>
    %418 = tpu.reciprocal %417 {approx = true} : vector<8x1xf32> -> vector<8x1xf32>
    %419 = vector.broadcast %418 : vector<8x1xf32> to vector<8x8xf32>
    %420 = arith.mulf %415, %419 : vector<8x8xf32>
    %421 = arith.truncf %420 : vector<8x8xf32> to vector<8x8xbf16>
    %cst_170 = arith.constant dense<0.000000e+00> : vector<8x8xf32>
    %422 = tpu.matmul %421, %409, %cst_170 {dimension_numbers = #tpu.dot_dimension_numbers<[1], [0], [0], [1], [0, 0, 1, 1], [], []>} : vector<8x8xbf16>, vector<8x8xbf16>, vector<8x8xf32> -> vector<8x8xf32>
    %c0_171 = arith.constant 0 : index
    %c8_172 = arith.constant 8 : index
    %423 = vector.load %arg20[%c0_171, %c8_172] : memref<32x32xf32, #tpu.memory_space<vmem>>, vector<8x8xf32>
    tpu.vector_store %arg20[%c0_171, %c8_172], %422 {strides = array<i32>} : memref<32x32xf32, #tpu.memory_space<vmem>>, vector<8x8xf32>,
    %424 = vector.extract_strided_slice %385 {offsets = [0, 16], sizes = [8, 8], strides = [1, 1]} : vector<32x32xbf16> to vector<8x8xbf16>
    %425 = vector.extract_strided_slice %387 {offsets = [0, 16], sizes = [8, 8], strides = [1, 1]} : vector<32x32xbf16> to vector<8x8xbf16>
    %426 = vector.extract_strided_slice %389 {offsets = [0, 16], sizes = [8, 8], strides = [1, 1]} : vector<32x32xbf16> to vector<8x8xbf16>
    %cst_173 = arith.constant dense<0.000000e+00> : vector<8x8xf32>
    %427 = tpu.matmul %424, %425, %cst_173 {dimension_numbers = #tpu.dot_dimension_numbers<[1], [1], [0], [0], [0, 0, 1, 0], [], []>} : vector<8x8xbf16>, vector<8x8xbf16>, vector<8x8xf32> -> vector<8x8xf32>
    %cst_174 = arith.constant dense<0xFF800000> : vector<8xf32>
    %428 = vector.multi_reduction <maximumf>, %427, %cst_174 [1] : vector<8x8xf32> to vector<8xf32>
    %429 = vector.shape_cast %428 : vector<8xf32> to vector<8x1xf32>
    %430 = vector.broadcast %429 : vector<8x1xf32> to vector<8x8xf32>
    %431 = arith.subf %427, %430 : vector<8x8xf32>
    %432 = math.exp %431 : vector<8x8xf32>
    %cst_175 = arith.constant dense<0.000000e+00> : vector<8xf32>
    %433 = vector.multi_reduction <add>, %432, %cst_175 [1] : vector<8x8xf32> to vector<8xf32>
    %434 = vector.shape_cast %433 : vector<8xf32> to vector<8x1xf32>
    %435 = tpu.reciprocal %434 {approx = true} : vector<8x1xf32> -> vector<8x1xf32>
    %436 = vector.broadcast %435 : vector<8x1xf32> to vector<8x8xf32>
    %437 = arith.mulf %432, %436 : vector<8x8xf32>
    %438 = arith.truncf %437 : vector<8x8xf32> to vector<8x8xbf16>
    %cst_176 = arith.constant dense<0.000000e+00> : vector<8x8xf32>
    %439 = tpu.matmul %438, %426, %cst_176 {dimension_numbers = #tpu.dot_dimension_numbers<[1], [0], [0], [1], [0, 0, 1, 1], [], []>} : vector<8x8xbf16>, vector<8x8xbf16>, vector<8x8xf32> -> vector<8x8xf32>
    %c0_177 = arith.constant 0 : index
    %c16_178 = arith.constant 16 : index
    %440 = vector.load %arg20[%c0_177, %c16_178] : memref<32x32xf32, #tpu.memory_space<vmem>>, vector<8x8xf32>
    tpu.vector_store %arg20[%c0_177, %c16_178], %439 {strides = array<i32>} : memref<32x32xf32, #tpu.memory_space<vmem>>, vector<8x8xf32>,
    %441 = vector.extract_strided_slice %385 {offsets = [0, 24], sizes = [8, 8], strides = [1, 1]} : vector<32x32xbf16> to vector<8x8xbf16>
    %442 = vector.extract_strided_slice %387 {offsets = [0, 24], sizes = [8, 8], strides = [1, 1]} : vector<32x32xbf16> to vector<8x8xbf16>
    %443 = vector.extract_strided_slice %389 {offsets = [0, 24], sizes = [8, 8], strides = [1, 1]} : vector<32x32xbf16> to vector<8x8xbf16>
    %cst_179 = arith.constant dense<0.000000e+00> : vector<8x8xf32>
    %444 = tpu.matmul %441, %442, %cst_179 {dimension_numbers = #tpu.dot_dimension_numbers<[1], [1], [0], [0], [0, 0, 1, 0], [], []>} : vector<8x8xbf16>, vector<8x8xbf16>, vector<8x8xf32> -> vector<8x8xf32>
    %cst_180 = arith.constant dense<0xFF800000> : vector<8xf32>
    %445 = vector.multi_reduction <maximumf>, %444, %cst_180 [1] : vector<8x8xf32> to vector<8xf32>
    %446 = vector.shape_cast %445 : vector<8xf32> to vector<8x1xf32>
    %447 = vector.broadcast %446 : vector<8x1xf32> to vector<8x8xf32>
    %448 = arith.subf %444, %447 : vector<8x8xf32>
    %449 = math.exp %448 : vector<8x8xf32>
    %cst_181 = arith.constant dense<0.000000e+00> : vector<8xf32>
    %450 = vector.multi_reduction <add>, %449, %cst_181 [1] : vector<8x8xf32> to vector<8xf32>
    %451 = vector.shape_cast %450 : vector<8xf32> to vector<8x1xf32>
    %452 = tpu.reciprocal %451 {approx = true} : vector<8x1xf32> -> vector<8x1xf32>
    %453 = vector.broadcast %452 : vector<8x1xf32> to vector<8x8xf32>
    %454 = arith.mulf %449, %453 : vector<8x8xf32>
    %455 = arith.truncf %454 : vector<8x8xf32> to vector<8x8xbf16>
    %cst_182 = arith.constant dense<0.000000e+00> : vector<8x8xf32>
    %456 = tpu.matmul %455, %443, %cst_182 {dimension_numbers = #tpu.dot_dimension_numbers<[1], [0], [0], [1], [0, 0, 1, 1], [], []>} : vector<8x8xbf16>, vector<8x8xbf16>, vector<8x8xf32> -> vector<8x8xf32>
    %c0_183 = arith.constant 0 : index
    %c24_184 = arith.constant 24 : index
    %457 = vector.load %arg20[%c0_183, %c24_184] : memref<32x32xf32, #tpu.memory_space<vmem>>, vector<8x8xf32>
    tpu.vector_store %arg20[%c0_183, %c24_184], %456 {strides = array<i32>} : memref<32x32xf32, #tpu.memory_space<vmem>>, vector<8x8xf32>,
    %458 = vector.extract_strided_slice %385 {offsets = [8, 0], sizes = [8, 8], strides = [1, 1]} : vector<32x32xbf16> to vector<8x8xbf16>
    %459 = vector.extract_strided_slice %387 {offsets = [8, 0], sizes = [8, 8], strides = [1, 1]} : vector<32x32xbf16> to vector<8x8xbf16>
    %460 = vector.extract_strided_slice %389 {offsets = [8, 0], sizes = [8, 8], strides = [1, 1]} : vector<32x32xbf16> to vector<8x8xbf16>
    %cst_185 = arith.constant dense<0.000000e+00> : vector<8x8xf32>
    %461 = tpu.matmul %458, %459, %cst_185 {dimension_numbers = #tpu.dot_dimension_numbers<[1], [1], [0], [0], [0, 0, 1, 0], [], []>} : vector<8x8xbf16>, vector<8x8xbf16>, vector<8x8xf32> -> vector<8x8xf32>
    %cst_186 = arith.constant dense<0xFF800000> : vector<8xf32>
    %462 = vector.multi_reduction <maximumf>, %461, %cst_186 [1] : vector<8x8xf32> to vector<8xf32>
    %463 = vector.shape_cast %462 : vector<8xf32> to vector<8x1xf32>
    %464 = vector.broadcast %463 : vector<8x1xf32> to vector<8x8xf32>
    %465 = arith.subf %461, %464 : vector<8x8xf32>
    %466 = math.exp %465 : vector<8x8xf32>
    %cst_187 = arith.constant dense<0.000000e+00> : vector<8xf32>
    %467 = vector.multi_reduction <add>, %466, %cst_187 [1] : vector<8x8xf32> to vector<8xf32>
    %468 = vector.shape_cast %467 : vector<8xf32> to vector<8x1xf32>
    %469 = tpu.reciprocal %468 {approx = true} : vector<8x1xf32> -> vector<8x1xf32>
    %470 = vector.broadcast %469 : vector<8x1xf32> to vector<8x8xf32>
    %471 = arith.mulf %466, %470 : vector<8x8xf32>
    %472 = arith.truncf %471 : vector<8x8xf32> to vector<8x8xbf16>
    %cst_188 = arith.constant dense<0.000000e+00> : vector<8x8xf32>
    %473 = tpu.matmul %472, %460, %cst_188 {dimension_numbers = #tpu.dot_dimension_numbers<[1], [0], [0], [1], [0, 0, 1, 1], [], []>} : vector<8x8xbf16>, vector<8x8xbf16>, vector<8x8xf32> -> vector<8x8xf32>
    %c8_189 = arith.constant 8 : index
    %c0_190 = arith.constant 0 : index
    %474 = vector.load %arg20[%c8_189, %c0_190] : memref<32x32xf32, #tpu.memory_space<vmem>>, vector<8x8xf32>
    tpu.vector_store %arg20[%c8_189, %c0_190], %473 {strides = array<i32>} : memref<32x32xf32, #tpu.memory_space<vmem>>, vector<8x8xf32>,
    %475 = vector.extract_strided_slice %385 {offsets = [8, 8], sizes = [8, 8], strides = [1, 1]} : vector<32x32xbf16> to vector<8x8xbf16>
    %476 = vector.extract_strided_slice %387 {offsets = [8, 8], sizes = [8, 8], strides = [1, 1]} : vector<32x32xbf16> to vector<8x8xbf16>
    %477 = vector.extract_strided_slice %389 {offsets = [8, 8], sizes = [8, 8], strides = [1, 1]} : vector<32x32xbf16> to vector<8x8xbf16>
    %cst_191 = arith.constant dense<0.000000e+00> : vector<8x8xf32>
    %478 = tpu.matmul %475, %476, %cst_191 {dimension_numbers = #tpu.dot_dimension_numbers<[1], [1], [0], [0], [0, 0, 1, 0], [], []>} : vector<8x8xbf16>, vector<8x8xbf16>, vector<8x8xf32> -> vector<8x8xf32>
    %cst_192 = arith.constant dense<0xFF800000> : vector<8xf32>
    %479 = vector.multi_reduction <maximumf>, %478, %cst_192 [1] : vector<8x8xf32> to vector<8xf32>
    %480 = vector.shape_cast %479 : vector<8xf32> to vector<8x1xf32>
    %481 = vector.broadcast %480 : vector<8x1xf32> to vector<8x8xf32>
    %482 = arith.subf %478, %481 : vector<8x8xf32>
    %483 = math.exp %482 : vector<8x8xf32>
    %cst_193 = arith.constant dense<0.000000e+00> : vector<8xf32>
    %484 = vector.multi_reduction <add>, %483, %cst_193 [1] : vector<8x8xf32> to vector<8xf32>
    %485 = vector.shape_cast %484 : vector<8xf32> to vector<8x1xf32>
    %486 = tpu.reciprocal %485 {approx = true} : vector<8x1xf32> -> vector<8x1xf32>
    %487 = vector.broadcast %486 : vector<8x1xf32> to vector<8x8xf32>
    %488 = arith.mulf %483, %487 : vector<8x8xf32>
    %489 = arith.truncf %488 : vector<8x8xf32> to vector<8x8xbf16>
    %cst_194 = arith.constant dense<0.000000e+00> : vector<8x8xf32>
    %490 = tpu.matmul %489, %477, %cst_194 {dimension_numbers = #tpu.dot_dimension_numbers<[1], [0], [0], [1], [0, 0, 1, 1], [], []>} : vector<8x8xbf16>, vector<8x8xbf16>, vector<8x8xf32> -> vector<8x8xf32>
    %c8_195 = arith.constant 8 : index
    %c8_196 = arith.constant 8 : index
    %491 = vector.load %arg20[%c8_195, %c8_196] : memref<32x32xf32, #tpu.memory_space<vmem>>, vector<8x8xf32>
    tpu.vector_store %arg20[%c8_195, %c8_196], %490 {strides = array<i32>} : memref<32x32xf32, #tpu.memory_space<vmem>>, vector<8x8xf32>,
    %492 = vector.extract_strided_slice %385 {offsets = [8, 16], sizes = [8, 8], strides = [1, 1]} : vector<32x32xbf16> to vector<8x8xbf16>
    %493 = vector.extract_strided_slice %387 {offsets = [8, 16], sizes = [8, 8], strides = [1, 1]} : vector<32x32xbf16> to vector<8x8xbf16>
    %494 = vector.extract_strided_slice %389 {offsets = [8, 16], sizes = [8, 8], strides = [1, 1]} : vector<32x32xbf16> to vector<8x8xbf16>
    %cst_197 = arith.constant dense<0.000000e+00> : vector<8x8xf32>
    %495 = tpu.matmul %492, %493, %cst_197 {dimension_numbers = #tpu.dot_dimension_numbers<[1], [1], [0], [0], [0, 0, 1, 0], [], []>} : vector<8x8xbf16>, vector<8x8xbf16>, vector<8x8xf32> -> vector<8x8xf32>
    %cst_198 = arith.constant dense<0xFF800000> : vector<8xf32>
    %496 = vector.multi_reduction <maximumf>, %495, %cst_198 [1] : vector<8x8xf32> to vector<8xf32>
    %497 = vector.shape_cast %496 : vector<8xf32> to vector<8x1xf32>
    %498 = vector.broadcast %497 : vector<8x1xf32> to vector<8x8xf32>
    %499 = arith.subf %495, %498 : vector<8x8xf32>
    %500 = math.exp %499 : vector<8x8xf32>
    %cst_199 = arith.constant dense<0.000000e+00> : vector<8xf32>
    %501 = vector.multi_reduction <add>, %500, %cst_199 [1] : vector<8x8xf32> to vector<8xf32>
    %502 = vector.shape_cast %501 : vector<8xf32> to vector<8x1xf32>
    %503 = tpu.reciprocal %502 {approx = true} : vector<8x1xf32> -> vector<8x1xf32>
    %504 = vector.broadcast %503 : vector<8x1xf32> to vector<8x8xf32>
    %505 = arith.mulf %500, %504 : vector<8x8xf32>
    %506 = arith.truncf %505 : vector<8x8xf32> to vector<8x8xbf16>
    %cst_200 = arith.constant dense<0.000000e+00> : vector<8x8xf32>
    %507 = tpu.matmul %506, %494, %cst_200 {dimension_numbers = #tpu.dot_dimension_numbers<[1], [0], [0], [1], [0, 0, 1, 1], [], []>} : vector<8x8xbf16>, vector<8x8xbf16>, vector<8x8xf32> -> vector<8x8xf32>
    %c8_201 = arith.constant 8 : index
    %c16_202 = arith.constant 16 : index
    %508 = vector.load %arg20[%c8_201, %c16_202] : memref<32x32xf32, #tpu.memory_space<vmem>>, vector<8x8xf32>
    tpu.vector_store %arg20[%c8_201, %c16_202], %507 {strides = array<i32>} : memref<32x32xf32, #tpu.memory_space<vmem>>, vector<8x8xf32>,
    %509 = vector.extract_strided_slice %385 {offsets = [8, 24], sizes = [8, 8], strides = [1, 1]} : vector<32x32xbf16> to vector<8x8xbf16>
    %510 = vector.extract_strided_slice %387 {offsets = [8, 24], sizes = [8, 8], strides = [1, 1]} : vector<32x32xbf16> to vector<8x8xbf16>
    %511 = vector.extract_strided_slice %389 {offsets = [8, 24], sizes = [8, 8], strides = [1, 1]} : vector<32x32xbf16> to vector<8x8xbf16>
    %cst_203 = arith.constant dense<0.000000e+00> : vector<8x8xf32>
    %512 = tpu.matmul %509, %510, %cst_203 {dimension_numbers = #tpu.dot_dimension_numbers<[1], [1], [0], [0], [0, 0, 1, 0], [], []>} : vector<8x8xbf16>, vector<8x8xbf16>, vector<8x8xf32> -> vector<8x8xf32>
    %cst_204 = arith.constant dense<0xFF800000> : vector<8xf32>
    %513 = vector.multi_reduction <maximumf>, %512, %cst_204 [1] : vector<8x8xf32> to vector<8xf32>
    %514 = vector.shape_cast %513 : vector<8xf32> to vector<8x1xf32>
    %515 = vector.broadcast %514 : vector<8x1xf32> to vector<8x8xf32>
    %516 = arith.subf %512, %515 : vector<8x8xf32>
    %517 = math.exp %516 : vector<8x8xf32>
    %cst_205 = arith.constant dense<0.000000e+00> : vector<8xf32>
    %518 = vector.multi_reduction <add>, %517, %cst_205 [1] : vector<8x8xf32> to vector<8xf32>
    %519 = vector.shape_cast %518 : vector<8xf32> to vector<8x1xf32>
    %520 = tpu.reciprocal %519 {approx = true} : vector<8x1xf32> -> vector<8x1xf32>
    %521 = vector.broadcast %520 : vector<8x1xf32> to vector<8x8xf32>
    %522 = arith.mulf %517, %521 : vector<8x8xf32>
    %523 = arith.truncf %522 : vector<8x8xf32> to vector<8x8xbf16>
    %cst_206 = arith.constant dense<0.000000e+00> : vector<8x8xf32>
    %524 = tpu.matmul %523, %511, %cst_206 {dimension_numbers = #tpu.dot_dimension_numbers<[1], [0], [0], [1], [0, 0, 1, 1], [], []>} : vector<8x8xbf16>, vector<8x8xbf16>, vector<8x8xf32> -> vector<8x8xf32>
    %c8_207 = arith.constant 8 : index
    %c24_208 = arith.constant 24 : index
    %525 = vector.load %arg20[%c8_207, %c24_208] : memref<32x32xf32, #tpu.memory_space<vmem>>, vector<8x8xf32>
    tpu.vector_store %arg20[%c8_207, %c24_208], %524 {strides = array<i32>} : memref<32x32xf32, #tpu.memory_space<vmem>>, vector<8x8xf32>,
    %526 = vector.extract_strided_slice %385 {offsets = [16, 0], sizes = [8, 8], strides = [1, 1]} : vector<32x32xbf16> to vector<8x8xbf16>
    %527 = vector.extract_strided_slice %387 {offsets = [16, 0], sizes = [8, 8], strides = [1, 1]} : vector<32x32xbf16> to vector<8x8xbf16>
    %528 = vector.extract_strided_slice %389 {offsets = [16, 0], sizes = [8, 8], strides = [1, 1]} : vector<32x32xbf16> to vector<8x8xbf16>
    %cst_209 = arith.constant dense<0.000000e+00> : vector<8x8xf32>
    %529 = tpu.matmul %526, %527, %cst_209 {dimension_numbers = #tpu.dot_dimension_numbers<[1], [1], [0], [0], [0, 0, 1, 0], [], []>} : vector<8x8xbf16>, vector<8x8xbf16>, vector<8x8xf32> -> vector<8x8xf32>
    %cst_210 = arith.constant dense<0xFF800000> : vector<8xf32>
    %530 = vector.multi_reduction <maximumf>, %529, %cst_210 [1] : vector<8x8xf32> to vector<8xf32>
    %531 = vector.shape_cast %530 : vector<8xf32> to vector<8x1xf32>
    %532 = vector.broadcast %531 : vector<8x1xf32> to vector<8x8xf32>
    %533 = arith.subf %529, %532 : vector<8x8xf32>
    %534 = math.exp %533 : vector<8x8xf32>
    %cst_211 = arith.constant dense<0.000000e+00> : vector<8xf32>
    %535 = vector.multi_reduction <add>, %534, %cst_211 [1] : vector<8x8xf32> to vector<8xf32>
    %536 = vector.shape_cast %535 : vector<8xf32> to vector<8x1xf32>
    %537 = tpu.reciprocal %536 {approx = true} : vector<8x1xf32> -> vector<8x1xf32>
    %538 = vector.broadcast %537 : vector<8x1xf32> to vector<8x8xf32>
    %539 = arith.mulf %534, %538 : vector<8x8xf32>
    %540 = arith.truncf %539 : vector<8x8xf32> to vector<8x8xbf16>
    %cst_212 = arith.constant dense<0.000000e+00> : vector<8x8xf32>
    %541 = tpu.matmul %540, %528, %cst_212 {dimension_numbers = #tpu.dot_dimension_numbers<[1], [0], [0], [1], [0, 0, 1, 1], [], []>} : vector<8x8xbf16>, vector<8x8xbf16>, vector<8x8xf32> -> vector<8x8xf32>
    %c16_213 = arith.constant 16 : index
    %c0_214 = arith.constant 0 : index
    %542 = vector.load %arg20[%c16_213, %c0_214] : memref<32x32xf32, #tpu.memory_space<vmem>>, vector<8x8xf32>
    tpu.vector_store %arg20[%c16_213, %c0_214], %541 {strides = array<i32>} : memref<32x32xf32, #tpu.memory_space<vmem>>, vector<8x8xf32>,
    %543 = vector.extract_strided_slice %385 {offsets = [16, 8], sizes = [8, 8], strides = [1, 1]} : vector<32x32xbf16> to vector<8x8xbf16>
    %544 = vector.extract_strided_slice %387 {offsets = [16, 8], sizes = [8, 8], strides = [1, 1]} : vector<32x32xbf16> to vector<8x8xbf16>
    %545 = vector.extract_strided_slice %389 {offsets = [16, 8], sizes = [8, 8], strides = [1, 1]} : vector<32x32xbf16> to vector<8x8xbf16>
    %cst_215 = arith.constant dense<0.000000e+00> : vector<8x8xf32>
    %546 = tpu.matmul %543, %544, %cst_215 {dimension_numbers = #tpu.dot_dimension_numbers<[1], [1], [0], [0], [0, 0, 1, 0], [], []>} : vector<8x8xbf16>, vector<8x8xbf16>, vector<8x8xf32> -> vector<8x8xf32>
    %cst_216 = arith.constant dense<0xFF800000> : vector<8xf32>
    %547 = vector.multi_reduction <maximumf>, %546, %cst_216 [1] : vector<8x8xf32> to vector<8xf32>
    %548 = vector.shape_cast %547 : vector<8xf32> to vector<8x1xf32>
    %549 = vector.broadcast %548 : vector<8x1xf32> to vector<8x8xf32>
    %550 = arith.subf %546, %549 : vector<8x8xf32>
    %551 = math.exp %550 : vector<8x8xf32>
    %cst_217 = arith.constant dense<0.000000e+00> : vector<8xf32>
    %552 = vector.multi_reduction <add>, %551, %cst_217 [1] : vector<8x8xf32> to vector<8xf32>
    %553 = vector.shape_cast %552 : vector<8xf32> to vector<8x1xf32>
    %554 = tpu.reciprocal %553 {approx = true} : vector<8x1xf32> -> vector<8x1xf32>
    %555 = vector.broadcast %554 : vector<8x1xf32> to vector<8x8xf32>
    %556 = arith.mulf %551, %555 : vector<8x8xf32>
    %557 = arith.truncf %556 : vector<8x8xf32> to vector<8x8xbf16>
    %cst_218 = arith.constant dense<0.000000e+00> : vector<8x8xf32>
    %558 = tpu.matmul %557, %545, %cst_218 {dimension_numbers = #tpu.dot_dimension_numbers<[1], [0], [0], [1], [0, 0, 1, 1], [], []>} : vector<8x8xbf16>, vector<8x8xbf16>, vector<8x8xf32> -> vector<8x8xf32>
    %c16_219 = arith.constant 16 : index
    %c8_220 = arith.constant 8 : index
    %559 = vector.load %arg20[%c16_219, %c8_220] : memref<32x32xf32, #tpu.memory_space<vmem>>, vector<8x8xf32>
    tpu.vector_store %arg20[%c16_219, %c8_220], %558 {strides = array<i32>} : memref<32x32xf32, #tpu.memory_space<vmem>>, vector<8x8xf32>,
    %560 = vector.extract_strided_slice %385 {offsets = [16, 16], sizes = [8, 8], strides = [1, 1]} : vector<32x32xbf16> to vector<8x8xbf16>
    %561 = vector.extract_strided_slice %387 {offsets = [16, 16], sizes = [8, 8], strides = [1, 1]} : vector<32x32xbf16> to vector<8x8xbf16>
    %562 = vector.extract_strided_slice %389 {offsets = [16, 16], sizes = [8, 8], strides = [1, 1]} : vector<32x32xbf16> to vector<8x8xbf16>
    %cst_221 = arith.constant dense<0.000000e+00> : vector<8x8xf32>
    %563 = tpu.matmul %560, %561, %cst_221 {dimension_numbers = #tpu.dot_dimension_numbers<[1], [1], [0], [0], [0, 0, 1, 0], [], []>} : vector<8x8xbf16>, vector<8x8xbf16>, vector<8x8xf32> -> vector<8x8xf32>
    %cst_222 = arith.constant dense<0xFF800000> : vector<8xf32>
    %564 = vector.multi_reduction <maximumf>, %563, %cst_222 [1] : vector<8x8xf32> to vector<8xf32>
    %565 = vector.shape_cast %564 : vector<8xf32> to vector<8x1xf32>
    %566 = vector.broadcast %565 : vector<8x1xf32> to vector<8x8xf32>
    %567 = arith.subf %563, %566 : vector<8x8xf32>
    %568 = math.exp %567 : vector<8x8xf32>
    %cst_223 = arith.constant dense<0.000000e+00> : vector<8xf32>
    %569 = vector.multi_reduction <add>, %568, %cst_223 [1] : vector<8x8xf32> to vector<8xf32>
    %570 = vector.shape_cast %569 : vector<8xf32> to vector<8x1xf32>
    %571 = tpu.reciprocal %570 {approx = true} : vector<8x1xf32> -> vector<8x1xf32>
    %572 = vector.broadcast %571 : vector<8x1xf32> to vector<8x8xf32>
    %573 = arith.mulf %568, %572 : vector<8x8xf32>
    %574 = arith.truncf %573 : vector<8x8xf32> to vector<8x8xbf16>
    %cst_224 = arith.constant dense<0.000000e+00> : vector<8x8xf32>
    %575 = tpu.matmul %574, %562, %cst_224 {dimension_numbers = #tpu.dot_dimension_numbers<[1], [0], [0], [1], [0, 0, 1, 1], [], []>} : vector<8x8xbf16>, vector<8x8xbf16>, vector<8x8xf32> -> vector<8x8xf32>
    %c16_225 = arith.constant 16 : index
    %c16_226 = arith.constant 16 : index
    %576 = vector.load %arg20[%c16_225, %c16_226] : memref<32x32xf32, #tpu.memory_space<vmem>>, vector<8x8xf32>
    tpu.vector_store %arg20[%c16_225, %c16_226], %575 {strides = array<i32>} : memref<32x32xf32, #tpu.memory_space<vmem>>, vector<8x8xf32>,
    %577 = vector.extract_strided_slice %385 {offsets = [16, 24], sizes = [8, 8], strides = [1, 1]} : vector<32x32xbf16> to vector<8x8xbf16>
    %578 = vector.extract_strided_slice %387 {offsets = [16, 24], sizes = [8, 8], strides = [1, 1]} : vector<32x32xbf16> to vector<8x8xbf16>
    %579 = vector.extract_strided_slice %389 {offsets = [16, 24], sizes = [8, 8], strides = [1, 1]} : vector<32x32xbf16> to vector<8x8xbf16>
    %cst_227 = arith.constant dense<0.000000e+00> : vector<8x8xf32>
    %580 = tpu.matmul %577, %578, %cst_227 {dimension_numbers = #tpu.dot_dimension_numbers<[1], [1], [0], [0], [0, 0, 1, 0], [], []>} : vector<8x8xbf16>, vector<8x8xbf16>, vector<8x8xf32> -> vector<8x8xf32>
    %cst_228 = arith.constant dense<0xFF800000> : vector<8xf32>
    %581 = vector.multi_reduction <maximumf>, %580, %cst_228 [1] : vector<8x8xf32> to vector<8xf32>
    %582 = vector.shape_cast %581 : vector<8xf32> to vector<8x1xf32>
    %583 = vector.broadcast %582 : vector<8x1xf32> to vector<8x8xf32>
    %584 = arith.subf %580, %583 : vector<8x8xf32>
    %585 = math.exp %584 : vector<8x8xf32>
    %cst_229 = arith.constant dense<0.000000e+00> : vector<8xf32>
    %586 = vector.multi_reduction <add>, %585, %cst_229 [1] : vector<8x8xf32> to vector<8xf32>
    %587 = vector.shape_cast %586 : vector<8xf32> to vector<8x1xf32>
    %588 = tpu.reciprocal %587 {approx = true} : vector<8x1xf32> -> vector<8x1xf32>
    %589 = vector.broadcast %588 : vector<8x1xf32> to vector<8x8xf32>
    %590 = arith.mulf %585, %589 : vector<8x8xf32>
    %591 = arith.truncf %590 : vector<8x8xf32> to vector<8x8xbf16>
    %cst_230 = arith.constant dense<0.000000e+00> : vector<8x8xf32>
    %592 = tpu.matmul %591, %579, %cst_230 {dimension_numbers = #tpu.dot_dimension_numbers<[1], [0], [0], [1], [0, 0, 1, 1], [], []>} : vector<8x8xbf16>, vector<8x8xbf16>, vector<8x8xf32> -> vector<8x8xf32>
    %c16_231 = arith.constant 16 : index
    %c24_232 = arith.constant 24 : index
    %593 = vector.load %arg20[%c16_231, %c24_232] : memref<32x32xf32, #tpu.memory_space<vmem>>, vector<8x8xf32>
    tpu.vector_store %arg20[%c16_231, %c24_232], %592 {strides = array<i32>} : memref<32x32xf32, #tpu.memory_space<vmem>>, vector<8x8xf32>,
    %594 = vector.extract_strided_slice %385 {offsets = [24, 0], sizes = [8, 8], strides = [1, 1]} : vector<32x32xbf16> to vector<8x8xbf16>
    %595 = vector.extract_strided_slice %387 {offsets = [24, 0], sizes = [8, 8], strides = [1, 1]} : vector<32x32xbf16> to vector<8x8xbf16>
    %596 = vector.extract_strided_slice %389 {offsets = [24, 0], sizes = [8, 8], strides = [1, 1]} : vector<32x32xbf16> to vector<8x8xbf16>
    %cst_233 = arith.constant dense<0.000000e+00> : vector<8x8xf32>
    %597 = tpu.matmul %594, %595, %cst_233 {dimension_numbers = #tpu.dot_dimension_numbers<[1], [1], [0], [0], [0, 0, 1, 0], [], []>} : vector<8x8xbf16>, vector<8x8xbf16>, vector<8x8xf32> -> vector<8x8xf32>
    %cst_234 = arith.constant dense<0xFF800000> : vector<8xf32>
    %598 = vector.multi_reduction <maximumf>, %597, %cst_234 [1] : vector<8x8xf32> to vector<8xf32>
    %599 = vector.shape_cast %598 : vector<8xf32> to vector<8x1xf32>
    %600 = vector.broadcast %599 : vector<8x1xf32> to vector<8x8xf32>
    %601 = arith.subf %597, %600 : vector<8x8xf32>
    %602 = math.exp %601 : vector<8x8xf32>
    %cst_235 = arith.constant dense<0.000000e+00> : vector<8xf32>
    %603 = vector.multi_reduction <add>, %602, %cst_235 [1] : vector<8x8xf32> to vector<8xf32>
    %604 = vector.shape_cast %603 : vector<8xf32> to vector<8x1xf32>
    %605 = tpu.reciprocal %604 {approx = true} : vector<8x1xf32> -> vector<8x1xf32>
    %606 = vector.broadcast %605 : vector<8x1xf32> to vector<8x8xf32>
    %607 = arith.mulf %602, %606 : vector<8x8xf32>
    %608 = arith.truncf %607 : vector<8x8xf32> to vector<8x8xbf16>
    %cst_236 = arith.constant dense<0.000000e+00> : vector<8x8xf32>
    %609 = tpu.matmul %608, %596, %cst_236 {dimension_numbers = #tpu.dot_dimension_numbers<[1], [0], [0], [1], [0, 0, 1, 1], [], []>} : vector<8x8xbf16>, vector<8x8xbf16>, vector<8x8xf32> -> vector<8x8xf32>
    %c24_237 = arith.constant 24 : index
    %c0_238 = arith.constant 0 : index
    %610 = vector.load %arg20[%c24_237, %c0_238] : memref<32x32xf32, #tpu.memory_space<vmem>>, vector<8x8xf32>
    tpu.vector_store %arg20[%c24_237, %c0_238], %609 {strides = array<i32>} : memref<32x32xf32, #tpu.memory_space<vmem>>, vector<8x8xf32>,
    %611 = vector.extract_strided_slice %385 {offsets = [24, 8], sizes = [8, 8], strides = [1, 1]} : vector<32x32xbf16> to vector<8x8xbf16>
    %612 = vector.extract_strided_slice %387 {offsets = [24, 8], sizes = [8, 8], strides = [1, 1]} : vector<32x32xbf16> to vector<8x8xbf16>
    %613 = vector.extract_strided_slice %389 {offsets = [24, 8], sizes = [8, 8], strides = [1, 1]} : vector<32x32xbf16> to vector<8x8xbf16>
    %cst_239 = arith.constant dense<0.000000e+00> : vector<8x8xf32>
    %614 = tpu.matmul %611, %612, %cst_239 {dimension_numbers = #tpu.dot_dimension_numbers<[1], [1], [0], [0], [0, 0, 1, 0], [], []>} : vector<8x8xbf16>, vector<8x8xbf16>, vector<8x8xf32> -> vector<8x8xf32>
    %cst_240 = arith.constant dense<0xFF800000> : vector<8xf32>
    %615 = vector.multi_reduction <maximumf>, %614, %cst_240 [1] : vector<8x8xf32> to vector<8xf32>
    %616 = vector.shape_cast %615 : vector<8xf32> to vector<8x1xf32>
    %617 = vector.broadcast %616 : vector<8x1xf32> to vector<8x8xf32>
    %618 = arith.subf %614, %617 : vector<8x8xf32>
    %619 = math.exp %618 : vector<8x8xf32>
    %cst_241 = arith.constant dense<0.000000e+00> : vector<8xf32>
    %620 = vector.multi_reduction <add>, %619, %cst_241 [1] : vector<8x8xf32> to vector<8xf32>
    %621 = vector.shape_cast %620 : vector<8xf32> to vector<8x1xf32>
    %622 = tpu.reciprocal %621 {approx = true} : vector<8x1xf32> -> vector<8x1xf32>
    %623 = vector.broadcast %622 : vector<8x1xf32> to vector<8x8xf32>
    %624 = arith.mulf %619, %623 : vector<8x8xf32>
    %625 = arith.truncf %624 : vector<8x8xf32> to vector<8x8xbf16>
    %cst_242 = arith.constant dense<0.000000e+00> : vector<8x8xf32>
    %626 = tpu.matmul %625, %613, %cst_242 {dimension_numbers = #tpu.dot_dimension_numbers<[1], [0], [0], [1], [0, 0, 1, 1], [], []>} : vector<8x8xbf16>, vector<8x8xbf16>, vector<8x8xf32> -> vector<8x8xf32>
    %c24_243 = arith.constant 24 : index
    %c8_244 = arith.constant 8 : index
    %627 = vector.load %arg20[%c24_243, %c8_244] : memref<32x32xf32, #tpu.memory_space<vmem>>, vector<8x8xf32>
    tpu.vector_store %arg20[%c24_243, %c8_244], %626 {strides = array<i32>} : memref<32x32xf32, #tpu.memory_space<vmem>>, vector<8x8xf32>,
    %628 = vector.extract_strided_slice %385 {offsets = [24, 16], sizes = [8, 8], strides = [1, 1]} : vector<32x32xbf16> to vector<8x8xbf16>
    %629 = vector.extract_strided_slice %387 {offsets = [24, 16], sizes = [8, 8], strides = [1, 1]} : vector<32x32xbf16> to vector<8x8xbf16>
    %630 = vector.extract_strided_slice %389 {offsets = [24, 16], sizes = [8, 8], strides = [1, 1]} : vector<32x32xbf16> to vector<8x8xbf16>
    %cst_245 = arith.constant dense<0.000000e+00> : vector<8x8xf32>
    %631 = tpu.matmul %628, %629, %cst_245 {dimension_numbers = #tpu.dot_dimension_numbers<[1], [1], [0], [0], [0, 0, 1, 0], [], []>} : vector<8x8xbf16>, vector<8x8xbf16>, vector<8x8xf32> -> vector<8x8xf32>
    %cst_246 = arith.constant dense<0xFF800000> : vector<8xf32>
    %632 = vector.multi_reduction <maximumf>, %631, %cst_246 [1] : vector<8x8xf32> to vector<8xf32>
    %633 = vector.shape_cast %632 : vector<8xf32> to vector<8x1xf32>
    %634 = vector.broadcast %633 : vector<8x1xf32> to vector<8x8xf32>
    %635 = arith.subf %631, %634 : vector<8x8xf32>
    %636 = math.exp %635 : vector<8x8xf32>
    %cst_247 = arith.constant dense<0.000000e+00> : vector<8xf32>
    %637 = vector.multi_reduction <add>, %636, %cst_247 [1] : vector<8x8xf32> to vector<8xf32>
    %638 = vector.shape_cast %637 : vector<8xf32> to vector<8x1xf32>
    %639 = tpu.reciprocal %638 {approx = true} : vector<8x1xf32> -> vector<8x1xf32>
    %640 = vector.broadcast %639 : vector<8x1xf32> to vector<8x8xf32>
    %641 = arith.mulf %636, %640 : vector<8x8xf32>
    %642 = arith.truncf %641 : vector<8x8xf32> to vector<8x8xbf16>
    %cst_248 = arith.constant dense<0.000000e+00> : vector<8x8xf32>
    %643 = tpu.matmul %642, %630, %cst_248 {dimension_numbers = #tpu.dot_dimension_numbers<[1], [0], [0], [1], [0, 0, 1, 1], [], []>} : vector<8x8xbf16>, vector<8x8xbf16>, vector<8x8xf32> -> vector<8x8xf32>
    %c24_249 = arith.constant 24 : index
    %c16_250 = arith.constant 16 : index
    %644 = vector.load %arg20[%c24_249, %c16_250] : memref<32x32xf32, #tpu.memory_space<vmem>>, vector<8x8xf32>
    tpu.vector_store %arg20[%c24_249, %c16_250], %643 {strides = array<i32>} : memref<32x32xf32, #tpu.memory_space<vmem>>, vector<8x8xf32>,
    %645 = vector.extract_strided_slice %385 {offsets = [24, 24], sizes = [8, 8], strides = [1, 1]} : vector<32x32xbf16> to vector<8x8xbf16>
    %646 = vector.extract_strided_slice %387 {offsets = [24, 24], sizes = [8, 8], strides = [1, 1]} : vector<32x32xbf16> to vector<8x8xbf16>
    %647 = vector.extract_strided_slice %389 {offsets = [24, 24], sizes = [8, 8], strides = [1, 1]} : vector<32x32xbf16> to vector<8x8xbf16>
    %cst_251 = arith.constant dense<0.000000e+00> : vector<8x8xf32>
    %648 = tpu.matmul %645, %646, %cst_251 {dimension_numbers = #tpu.dot_dimension_numbers<[1], [1], [0], [0], [0, 0, 1, 0], [], []>} : vector<8x8xbf16>, vector<8x8xbf16>, vector<8x8xf32> -> vector<8x8xf32>
    %cst_252 = arith.constant dense<0xFF800000> : vector<8xf32>
    %649 = vector.multi_reduction <maximumf>, %648, %cst_252 [1] : vector<8x8xf32> to vector<8xf32>
    %650 = vector.shape_cast %649 : vector<8xf32> to vector<8x1xf32>
    %651 = vector.broadcast %650 : vector<8x1xf32> to vector<8x8xf32>
    %652 = arith.subf %648, %651 : vector<8x8xf32>
    %653 = math.exp %652 : vector<8x8xf32>
    %cst_253 = arith.constant dense<0.000000e+00> : vector<8xf32>
    %654 = vector.multi_reduction <add>, %653, %cst_253 [1] : vector<8x8xf32> to vector<8xf32>
    %655 = vector.shape_cast %654 : vector<8xf32> to vector<8x1xf32>
    %656 = tpu.reciprocal %655 {approx = true} : vector<8x1xf32> -> vector<8x1xf32>
    %657 = vector.broadcast %656 : vector<8x1xf32> to vector<8x8xf32>
    %658 = arith.mulf %653, %657 : vector<8x8xf32>
    %659 = arith.truncf %658 : vector<8x8xf32> to vector<8x8xbf16>
    %cst_254 = arith.constant dense<0.000000e+00> : vector<8x8xf32>
    %660 = tpu.matmul %659, %647, %cst_254 {dimension_numbers = #tpu.dot_dimension_numbers<[1], [0], [0], [1], [0, 0, 1, 1], [], []>} : vector<8x8xbf16>, vector<8x8xbf16>, vector<8x8xf32> -> vector<8x8xf32>
    %c24_255 = arith.constant 24 : index
    %c24_256 = arith.constant 24 : index
    %661 = vector.load %arg20[%c24_255, %c24_256] : memref<32x32xf32, #tpu.memory_space<vmem>>, vector<8x8xf32>
    tpu.vector_store %arg20[%c24_255, %c24_256], %660 {strides = array<i32>} : memref<32x32xf32, #tpu.memory_space<vmem>>, vector<8x8xf32>,
    %c0_257 = arith.constant 0 : index
    %c0_258 = arith.constant 0 : index
    %662 = vector.load %arg20[%c0_257, %c0_258] : memref<32x32xf32, #tpu.memory_space<vmem>>, vector<32x32xf32>
    %663 = arith.truncf %662 : vector<32x32xf32> to vector<32x32xbf16>
    %c1_259 = arith.constant 1 : index
    %c0_260 = arith.constant 0 : index
    %c0_261 = arith.constant 0 : index
    %664 = vector.load %arg7[%c1_259, %c0_260, %c0_261] : memref<2x32x32xbf16, #tpu.memory_space<vmem>>, vector<1x32x32xbf16>
    %665 = vector.shape_cast %664 : vector<1x32x32xbf16> to vector<32x32xbf16>
    %cst_262 = arith.constant dense<0.000000e+00> : vector<32x32xf32>
    %666 = tpu.matmul %663, %665, %cst_262 {dimension_numbers = #tpu.dot_dimension_numbers<[1], [0], [0], [1], [0, 0, 1, 1], [], []>} : vector<32x32xbf16>, vector<32x32xbf16>, vector<32x32xf32> -> vector<32x32xf32>
    %c1_263 = arith.constant 1 : index
    %c0_264 = arith.constant 0 : index
    %c0_265 = arith.constant 0 : index
    %667 = vector.load %arg8[%c1_263, %c0_264, %c0_265] : memref<2x1x32xf32, #tpu.memory_space<vmem>>, vector<1x1x32xf32>
    %668 = vector.shape_cast %667 : vector<1x1x32xf32> to vector<1x32xf32>
    %669 = vector.broadcast %668 : vector<1x32xf32> to vector<32x32xf32>
    %670 = arith.addf %666, %669 : vector<32x32xf32>
    %671 = arith.addf %375, %670 : vector<32x32xf32>
    %c1_266 = arith.constant 1 : index
    %c0_267 = arith.constant 0 : index
    %c0_268 = arith.constant 0 : index
    %672 = vector.load %arg9[%c1_266, %c0_267, %c0_268] : memref<2x1x32xf32, #tpu.memory_space<vmem>>, vector<1x1x32xf32>
    %673 = vector.shape_cast %672 : vector<1x1x32xf32> to vector<1x32xf32>
    %c1_269 = arith.constant 1 : index
    %c0_270 = arith.constant 0 : index
    %c0_271 = arith.constant 0 : index
    %674 = vector.load %arg10[%c1_269, %c0_270, %c0_271] : memref<2x1x32xf32, #tpu.memory_space<vmem>>, vector<1x1x32xf32>
    %675 = vector.shape_cast %674 : vector<1x1x32xf32> to vector<1x32xf32>
    %cst_272 = arith.constant dense<0.000000e+00> : vector<32xf32>
    %676 = vector.multi_reduction <add>, %671, %cst_272 [1] : vector<32x32xf32> to vector<32xf32>
    %677 = vector.shape_cast %676 : vector<32xf32> to vector<32x1xf32>
    %cst_273 = arith.constant 3.200000e+01 : f32
    %678 = vector.broadcast %cst_273 : f32 to vector<32x1xf32>
    %679 = arith.divf %677, %678 : vector<32x1xf32>
    %680 = vector.broadcast %679 : vector<32x1xf32> to vector<32x32xf32>
    %681 = arith.subf %671, %680 : vector<32x32xf32>
    %682 = arith.mulf %681, %681 : vector<32x32xf32>
    %cst_274 = arith.constant dense<0.000000e+00> : vector<32xf32>
    %683 = vector.multi_reduction <add>, %682, %cst_274 [1] : vector<32x32xf32> to vector<32xf32>
    %684 = vector.shape_cast %683 : vector<32xf32> to vector<32x1xf32>
    %cst_275 = arith.constant 3.200000e+01 : f32
    %685 = vector.broadcast %cst_275 : f32 to vector<32x1xf32>
    %686 = arith.divf %684, %685 : vector<32x1xf32>
    %cst_276 = arith.constant 9.99999974E-6 : f32
    %687 = vector.broadcast %cst_276 : f32 to vector<32x1xf32>
    %688 = arith.addf %686, %687 : vector<32x1xf32>
    %689 = math.rsqrt %688 : vector<32x1xf32>
    %690 = vector.broadcast %689 : vector<32x1xf32> to vector<32x32xf32>
    %691 = arith.mulf %681, %690 : vector<32x32xf32>
    %692 = vector.broadcast %673 : vector<1x32xf32> to vector<32x32xf32>
    %693 = arith.mulf %691, %692 : vector<32x32xf32>
    %694 = vector.broadcast %675 : vector<1x32xf32> to vector<32x32xf32>
    %695 = arith.addf %693, %694 : vector<32x32xf32>
    %696 = arith.truncf %695 : vector<32x32xf32> to vector<32x32xbf16>
    %c1_277 = arith.constant 1 : index
    %c0_278 = arith.constant 0 : index
    %c0_279 = arith.constant 0 : index
    %697 = vector.load %arg11[%c1_277, %c0_278, %c0_279] : memref<2x32x64xbf16, #tpu.memory_space<vmem>>, vector<1x32x64xbf16>
    %698 = vector.shape_cast %697 : vector<1x32x64xbf16> to vector<32x64xbf16>
    %cst_280 = arith.constant dense<0.000000e+00> : vector<32x64xf32>
    %699 = tpu.matmul %696, %698, %cst_280 {dimension_numbers = #tpu.dot_dimension_numbers<[1], [0], [0], [1], [0, 0, 1, 1], [], []>} : vector<32x32xbf16>, vector<32x64xbf16>, vector<32x64xf32> -> vector<32x64xf32>
    %c1_281 = arith.constant 1 : index
    %c0_282 = arith.constant 0 : index
    %c0_283 = arith.constant 0 : index
    %700 = vector.load %arg12[%c1_281, %c0_282, %c0_283] : memref<2x1x64xf32, #tpu.memory_space<vmem>>, vector<1x1x64xf32>
    %701 = vector.shape_cast %700 : vector<1x1x64xf32> to vector<1x64xf32>
    %702 = vector.broadcast %701 : vector<1x64xf32> to vector<32x64xf32>
    %703 = arith.addf %699, %702 : vector<32x64xf32>
    %cst_284 = arith.constant 0.000000e+00 : f32
    %704 = vector.broadcast %cst_284 : f32 to vector<32x64xf32>
    %705 = arith.maximumf %703, %704 : vector<32x64xf32>
    %706 = arith.truncf %705 : vector<32x64xf32> to vector<32x64xbf16>
    %c1_285 = arith.constant 1 : index
    %c0_286 = arith.constant 0 : index
    %c0_287 = arith.constant 0 : index
    %707 = vector.load %arg13[%c1_285, %c0_286, %c0_287] : memref<2x64x32xbf16, #tpu.memory_space<vmem>>, vector<1x64x32xbf16>
    %708 = vector.shape_cast %707 : vector<1x64x32xbf16> to vector<64x32xbf16>
    %cst_288 = arith.constant dense<0.000000e+00> : vector<32x32xf32>
    %709 = tpu.matmul %706, %708, %cst_288 {dimension_numbers = #tpu.dot_dimension_numbers<[1], [0], [0], [1], [0, 0, 1, 1], [], []>} : vector<32x64xbf16>, vector<64x32xbf16>, vector<32x32xf32> -> vector<32x32xf32>
    %c1_289 = arith.constant 1 : index
    %c0_290 = arith.constant 0 : index
    %c0_291 = arith.constant 0 : index
    %710 = vector.load %arg14[%c1_289, %c0_290, %c0_291] : memref<2x1x32xf32, #tpu.memory_space<vmem>>, vector<1x1x32xf32>
    %711 = vector.shape_cast %710 : vector<1x1x32xf32> to vector<1x32xf32>
    %712 = vector.broadcast %711 : vector<1x32xf32> to vector<32x32xf32>
    %713 = arith.addf %709, %712 : vector<32x32xf32>
    %714 = arith.addf %695, %713 : vector<32x32xf32>
    %c1_292 = arith.constant 1 : index
    %c0_293 = arith.constant 0 : index
    %c0_294 = arith.constant 0 : index
    %715 = vector.load %arg15[%c1_292, %c0_293, %c0_294] : memref<2x1x32xf32, #tpu.memory_space<vmem>>, vector<1x1x32xf32>
    %716 = vector.shape_cast %715 : vector<1x1x32xf32> to vector<1x32xf32>
    %c1_295 = arith.constant 1 : index
    %c0_296 = arith.constant 0 : index
    %c0_297 = arith.constant 0 : index
    %717 = vector.load %arg16[%c1_295, %c0_296, %c0_297] : memref<2x1x32xf32, #tpu.memory_space<vmem>>, vector<1x1x32xf32>
    %718 = vector.shape_cast %717 : vector<1x1x32xf32> to vector<1x32xf32>
    %cst_298 = arith.constant dense<0.000000e+00> : vector<32xf32>
    %719 = vector.multi_reduction <add>, %714, %cst_298 [1] : vector<32x32xf32> to vector<32xf32>
    %720 = vector.shape_cast %719 : vector<32xf32> to vector<32x1xf32>
    %cst_299 = arith.constant 3.200000e+01 : f32
    %721 = vector.broadcast %cst_299 : f32 to vector<32x1xf32>
    %722 = arith.divf %720, %721 : vector<32x1xf32>
    %723 = vector.broadcast %722 : vector<32x1xf32> to vector<32x32xf32>
    %724 = arith.subf %714, %723 : vector<32x32xf32>
    %725 = arith.mulf %724, %724 : vector<32x32xf32>
    %cst_300 = arith.constant dense<0.000000e+00> : vector<32xf32>
    %726 = vector.multi_reduction <add>, %725, %cst_300 [1] : vector<32x32xf32> to vector<32xf32>
    %727 = vector.shape_cast %726 : vector<32xf32> to vector<32x1xf32>
    %cst_301 = arith.constant 3.200000e+01 : f32
    %728 = vector.broadcast %cst_301 : f32 to vector<32x1xf32>
    %729 = arith.divf %727, %728 : vector<32x1xf32>
    %cst_302 = arith.constant 9.99999974E-6 : f32
    %730 = vector.broadcast %cst_302 : f32 to vector<32x1xf32>
    %731 = arith.addf %729, %730 : vector<32x1xf32>
    %732 = math.rsqrt %731 : vector<32x1xf32>
    %733 = vector.broadcast %732 : vector<32x1xf32> to vector<32x32xf32>
    %734 = arith.mulf %724, %733 : vector<32x32xf32>
    %735 = vector.broadcast %716 : vector<1x32xf32> to vector<32x32xf32>
    %736 = arith.mulf %734, %735 : vector<32x32xf32>
    %737 = vector.broadcast %718 : vector<1x32xf32> to vector<32x32xf32>
    %738 = arith.addf %736, %737 : vector<32x32xf32>
    %739 = vector.extract_strided_slice %738 {offsets = [0, 0], sizes = [1, 32], strides = [1, 1]} : vector<32x32xf32> to vector<1x32xf32>
    %c0_303 = arith.constant 0 : index
    %c0_304 = arith.constant 0 : index
    %740 = vector.load %arg21[%c0_303, %c0_304] : memref<4x256xf32, #tpu.memory_space<vmem>>, vector<1x32xf32>
    tpu.vector_store %arg21[%c0_303, %c0_304], %739 {strides = array<i32>} : memref<4x256xf32, #tpu.memory_space<vmem>>, vector<1x32xf32>,
    %741 = vector.extract_strided_slice %738 {offsets = [1, 0], sizes = [1, 32], strides = [1, 1]} : vector<32x32xf32> to vector<1x32xf32>
    %c0_305 = arith.constant 0 : index
    %c32 = arith.constant 32 : index
    %742 = vector.load %arg21[%c0_305, %c32] : memref<4x256xf32, #tpu.memory_space<vmem>>, vector<1x32xf32>
    tpu.vector_store %arg21[%c0_305, %c32], %741 {strides = array<i32>} : memref<4x256xf32, #tpu.memory_space<vmem>>, vector<1x32xf32>,
    %743 = vector.extract_strided_slice %738 {offsets = [2, 0], sizes = [1, 32], strides = [1, 1]} : vector<32x32xf32> to vector<1x32xf32>
    %c0_306 = arith.constant 0 : index
    %c64 = arith.constant 64 : index
    %744 = vector.load %arg21[%c0_306, %c64] : memref<4x256xf32, #tpu.memory_space<vmem>>, vector<1x32xf32>
    tpu.vector_store %arg21[%c0_306, %c64], %743 {strides = array<i32>} : memref<4x256xf32, #tpu.memory_space<vmem>>, vector<1x32xf32>,
    %745 = vector.extract_strided_slice %738 {offsets = [3, 0], sizes = [1, 32], strides = [1, 1]} : vector<32x32xf32> to vector<1x32xf32>
    %c0_307 = arith.constant 0 : index
    %c96 = arith.constant 96 : index
    %746 = vector.load %arg21[%c0_307, %c96] : memref<4x256xf32, #tpu.memory_space<vmem>>, vector<1x32xf32>
    tpu.vector_store %arg21[%c0_307, %c96], %745 {strides = array<i32>} : memref<4x256xf32, #tpu.memory_space<vmem>>, vector<1x32xf32>,
    %747 = vector.extract_strided_slice %738 {offsets = [4, 0], sizes = [1, 32], strides = [1, 1]} : vector<32x32xf32> to vector<1x32xf32>
    %c0_308 = arith.constant 0 : index
    %c128 = arith.constant 128 : index
    %748 = vector.load %arg21[%c0_308, %c128] : memref<4x256xf32, #tpu.memory_space<vmem>>, vector<1x32xf32>
    tpu.vector_store %arg21[%c0_308, %c128], %747 {strides = array<i32>} : memref<4x256xf32, #tpu.memory_space<vmem>>, vector<1x32xf32>,
    %749 = vector.extract_strided_slice %738 {offsets = [5, 0], sizes = [1, 32], strides = [1, 1]} : vector<32x32xf32> to vector<1x32xf32>
    %c0_309 = arith.constant 0 : index
    %c160 = arith.constant 160 : index
    %750 = vector.load %arg21[%c0_309, %c160] : memref<4x256xf32, #tpu.memory_space<vmem>>, vector<1x32xf32>
    tpu.vector_store %arg21[%c0_309, %c160], %749 {strides = array<i32>} : memref<4x256xf32, #tpu.memory_space<vmem>>, vector<1x32xf32>,
    %751 = vector.extract_strided_slice %738 {offsets = [6, 0], sizes = [1, 32], strides = [1, 1]} : vector<32x32xf32> to vector<1x32xf32>
    %c0_310 = arith.constant 0 : index
    %c192 = arith.constant 192 : index
    %752 = vector.load %arg21[%c0_310, %c192] : memref<4x256xf32, #tpu.memory_space<vmem>>, vector<1x32xf32>
    tpu.vector_store %arg21[%c0_310, %c192], %751 {strides = array<i32>} : memref<4x256xf32, #tpu.memory_space<vmem>>, vector<1x32xf32>,
    %753 = vector.extract_strided_slice %738 {offsets = [7, 0], sizes = [1, 32], strides = [1, 1]} : vector<32x32xf32> to vector<1x32xf32>
    %c0_311 = arith.constant 0 : index
    %c224 = arith.constant 224 : index
    %754 = vector.load %arg21[%c0_311, %c224] : memref<4x256xf32, #tpu.memory_space<vmem>>, vector<1x32xf32>
    tpu.vector_store %arg21[%c0_311, %c224], %753 {strides = array<i32>} : memref<4x256xf32, #tpu.memory_space<vmem>>, vector<1x32xf32>,
    %755 = vector.extract_strided_slice %738 {offsets = [8, 0], sizes = [1, 32], strides = [1, 1]} : vector<32x32xf32> to vector<1x32xf32>
    %c1_312 = arith.constant 1 : index
    %c0_313 = arith.constant 0 : index
    %756 = vector.load %arg21[%c1_312, %c0_313] : memref<4x256xf32, #tpu.memory_space<vmem>>, vector<1x32xf32>
    tpu.vector_store %arg21[%c1_312, %c0_313], %755 {strides = array<i32>} : memref<4x256xf32, #tpu.memory_space<vmem>>, vector<1x32xf32>,
    %757 = vector.extract_strided_slice %738 {offsets = [9, 0], sizes = [1, 32], strides = [1, 1]} : vector<32x32xf32> to vector<1x32xf32>
    %c1_314 = arith.constant 1 : index
    %c32_315 = arith.constant 32 : index
    %758 = vector.load %arg21[%c1_314, %c32_315] : memref<4x256xf32, #tpu.memory_space<vmem>>, vector<1x32xf32>
    tpu.vector_store %arg21[%c1_314, %c32_315], %757 {strides = array<i32>} : memref<4x256xf32, #tpu.memory_space<vmem>>, vector<1x32xf32>,
    %759 = vector.extract_strided_slice %738 {offsets = [10, 0], sizes = [1, 32], strides = [1, 1]} : vector<32x32xf32> to vector<1x32xf32>
    %c1_316 = arith.constant 1 : index
    %c64_317 = arith.constant 64 : index
    %760 = vector.load %arg21[%c1_316, %c64_317] : memref<4x256xf32, #tpu.memory_space<vmem>>, vector<1x32xf32>
    tpu.vector_store %arg21[%c1_316, %c64_317], %759 {strides = array<i32>} : memref<4x256xf32, #tpu.memory_space<vmem>>, vector<1x32xf32>,
    %761 = vector.extract_strided_slice %738 {offsets = [11, 0], sizes = [1, 32], strides = [1, 1]} : vector<32x32xf32> to vector<1x32xf32>
    %c1_318 = arith.constant 1 : index
    %c96_319 = arith.constant 96 : index
    %762 = vector.load %arg21[%c1_318, %c96_319] : memref<4x256xf32, #tpu.memory_space<vmem>>, vector<1x32xf32>
    tpu.vector_store %arg21[%c1_318, %c96_319], %761 {strides = array<i32>} : memref<4x256xf32, #tpu.memory_space<vmem>>, vector<1x32xf32>,
    %763 = vector.extract_strided_slice %738 {offsets = [12, 0], sizes = [1, 32], strides = [1, 1]} : vector<32x32xf32> to vector<1x32xf32>
    %c1_320 = arith.constant 1 : index
    %c128_321 = arith.constant 128 : index
    %764 = vector.load %arg21[%c1_320, %c128_321] : memref<4x256xf32, #tpu.memory_space<vmem>>, vector<1x32xf32>
    tpu.vector_store %arg21[%c1_320, %c128_321], %763 {strides = array<i32>} : memref<4x256xf32, #tpu.memory_space<vmem>>, vector<1x32xf32>,
    %765 = vector.extract_strided_slice %738 {offsets = [13, 0], sizes = [1, 32], strides = [1, 1]} : vector<32x32xf32> to vector<1x32xf32>
    %c1_322 = arith.constant 1 : index
    %c160_323 = arith.constant 160 : index
    %766 = vector.load %arg21[%c1_322, %c160_323] : memref<4x256xf32, #tpu.memory_space<vmem>>, vector<1x32xf32>
    tpu.vector_store %arg21[%c1_322, %c160_323], %765 {strides = array<i32>} : memref<4x256xf32, #tpu.memory_space<vmem>>, vector<1x32xf32>,
    %767 = vector.extract_strided_slice %738 {offsets = [14, 0], sizes = [1, 32], strides = [1, 1]} : vector<32x32xf32> to vector<1x32xf32>
    %c1_324 = arith.constant 1 : index
    %c192_325 = arith.constant 192 : index
    %768 = vector.load %arg21[%c1_324, %c192_325] : memref<4x256xf32, #tpu.memory_space<vmem>>, vector<1x32xf32>
    tpu.vector_store %arg21[%c1_324, %c192_325], %767 {strides = array<i32>} : memref<4x256xf32, #tpu.memory_space<vmem>>, vector<1x32xf32>,
    %769 = vector.extract_strided_slice %738 {offsets = [15, 0], sizes = [1, 32], strides = [1, 1]} : vector<32x32xf32> to vector<1x32xf32>
    %c1_326 = arith.constant 1 : index
    %c224_327 = arith.constant 224 : index
    %770 = vector.load %arg21[%c1_326, %c224_327] : memref<4x256xf32, #tpu.memory_space<vmem>>, vector<1x32xf32>
    tpu.vector_store %arg21[%c1_326, %c224_327], %769 {strides = array<i32>} : memref<4x256xf32, #tpu.memory_space<vmem>>, vector<1x32xf32>,
    %771 = vector.extract_strided_slice %738 {offsets = [16, 0], sizes = [1, 32], strides = [1, 1]} : vector<32x32xf32> to vector<1x32xf32>
    %c2 = arith.constant 2 : index
    %c0_328 = arith.constant 0 : index
    %772 = vector.load %arg21[%c2, %c0_328] : memref<4x256xf32, #tpu.memory_space<vmem>>, vector<1x32xf32>
    tpu.vector_store %arg21[%c2, %c0_328], %771 {strides = array<i32>} : memref<4x256xf32, #tpu.memory_space<vmem>>, vector<1x32xf32>,
    %773 = vector.extract_strided_slice %738 {offsets = [17, 0], sizes = [1, 32], strides = [1, 1]} : vector<32x32xf32> to vector<1x32xf32>
    %c2_329 = arith.constant 2 : index
    %c32_330 = arith.constant 32 : index
    %774 = vector.load %arg21[%c2_329, %c32_330] : memref<4x256xf32, #tpu.memory_space<vmem>>, vector<1x32xf32>
    tpu.vector_store %arg21[%c2_329, %c32_330], %773 {strides = array<i32>} : memref<4x256xf32, #tpu.memory_space<vmem>>, vector<1x32xf32>,
    %775 = vector.extract_strided_slice %738 {offsets = [18, 0], sizes = [1, 32], strides = [1, 1]} : vector<32x32xf32> to vector<1x32xf32>
    %c2_331 = arith.constant 2 : index
    %c64_332 = arith.constant 64 : index
    %776 = vector.load %arg21[%c2_331, %c64_332] : memref<4x256xf32, #tpu.memory_space<vmem>>, vector<1x32xf32>
    tpu.vector_store %arg21[%c2_331, %c64_332], %775 {strides = array<i32>} : memref<4x256xf32, #tpu.memory_space<vmem>>, vector<1x32xf32>,
    %777 = vector.extract_strided_slice %738 {offsets = [19, 0], sizes = [1, 32], strides = [1, 1]} : vector<32x32xf32> to vector<1x32xf32>
    %c2_333 = arith.constant 2 : index
    %c96_334 = arith.constant 96 : index
    %778 = vector.load %arg21[%c2_333, %c96_334] : memref<4x256xf32, #tpu.memory_space<vmem>>, vector<1x32xf32>
    tpu.vector_store %arg21[%c2_333, %c96_334], %777 {strides = array<i32>} : memref<4x256xf32, #tpu.memory_space<vmem>>, vector<1x32xf32>,
    %779 = vector.extract_strided_slice %738 {offsets = [20, 0], sizes = [1, 32], strides = [1, 1]} : vector<32x32xf32> to vector<1x32xf32>
    %c2_335 = arith.constant 2 : index
    %c128_336 = arith.constant 128 : index
    %780 = vector.load %arg21[%c2_335, %c128_336] : memref<4x256xf32, #tpu.memory_space<vmem>>, vector<1x32xf32>
    tpu.vector_store %arg21[%c2_335, %c128_336], %779 {strides = array<i32>} : memref<4x256xf32, #tpu.memory_space<vmem>>, vector<1x32xf32>,
    %781 = vector.extract_strided_slice %738 {offsets = [21, 0], sizes = [1, 32], strides = [1, 1]} : vector<32x32xf32> to vector<1x32xf32>
    %c2_337 = arith.constant 2 : index
    %c160_338 = arith.constant 160 : index
    %782 = vector.load %arg21[%c2_337, %c160_338] : memref<4x256xf32, #tpu.memory_space<vmem>>, vector<1x32xf32>
    tpu.vector_store %arg21[%c2_337, %c160_338], %781 {strides = array<i32>} : memref<4x256xf32, #tpu.memory_space<vmem>>, vector<1x32xf32>,
    %783 = vector.extract_strided_slice %738 {offsets = [22, 0], sizes = [1, 32], strides = [1, 1]} : vector<32x32xf32> to vector<1x32xf32>
    %c2_339 = arith.constant 2 : index
    %c192_340 = arith.constant 192 : index
    %784 = vector.load %arg21[%c2_339, %c192_340] : memref<4x256xf32, #tpu.memory_space<vmem>>, vector<1x32xf32>
    tpu.vector_store %arg21[%c2_339, %c192_340], %783 {strides = array<i32>} : memref<4x256xf32, #tpu.memory_space<vmem>>, vector<1x32xf32>,
    %785 = vector.extract_strided_slice %738 {offsets = [23, 0], sizes = [1, 32], strides = [1, 1]} : vector<32x32xf32> to vector<1x32xf32>
    %c2_341 = arith.constant 2 : index
    %c224_342 = arith.constant 224 : index
    %786 = vector.load %arg21[%c2_341, %c224_342] : memref<4x256xf32, #tpu.memory_space<vmem>>, vector<1x32xf32>
    tpu.vector_store %arg21[%c2_341, %c224_342], %785 {strides = array<i32>} : memref<4x256xf32, #tpu.memory_space<vmem>>, vector<1x32xf32>,
    %787 = vector.extract_strided_slice %738 {offsets = [24, 0], sizes = [1, 32], strides = [1, 1]} : vector<32x32xf32> to vector<1x32xf32>
    %c3 = arith.constant 3 : index
    %c0_343 = arith.constant 0 : index
    %788 = vector.load %arg21[%c3, %c0_343] : memref<4x256xf32, #tpu.memory_space<vmem>>, vector<1x32xf32>
    tpu.vector_store %arg21[%c3, %c0_343], %787 {strides = array<i32>} : memref<4x256xf32, #tpu.memory_space<vmem>>, vector<1x32xf32>,
    %789 = vector.extract_strided_slice %738 {offsets = [25, 0], sizes = [1, 32], strides = [1, 1]} : vector<32x32xf32> to vector<1x32xf32>
    %c3_344 = arith.constant 3 : index
    %c32_345 = arith.constant 32 : index
    %790 = vector.load %arg21[%c3_344, %c32_345] : memref<4x256xf32, #tpu.memory_space<vmem>>, vector<1x32xf32>
    tpu.vector_store %arg21[%c3_344, %c32_345], %789 {strides = array<i32>} : memref<4x256xf32, #tpu.memory_space<vmem>>, vector<1x32xf32>,
    %791 = vector.extract_strided_slice %738 {offsets = [26, 0], sizes = [1, 32], strides = [1, 1]} : vector<32x32xf32> to vector<1x32xf32>
    %c3_346 = arith.constant 3 : index
    %c64_347 = arith.constant 64 : index
    %792 = vector.load %arg21[%c3_346, %c64_347] : memref<4x256xf32, #tpu.memory_space<vmem>>, vector<1x32xf32>
    tpu.vector_store %arg21[%c3_346, %c64_347], %791 {strides = array<i32>} : memref<4x256xf32, #tpu.memory_space<vmem>>, vector<1x32xf32>,
    %793 = vector.extract_strided_slice %738 {offsets = [27, 0], sizes = [1, 32], strides = [1, 1]} : vector<32x32xf32> to vector<1x32xf32>
    %c3_348 = arith.constant 3 : index
    %c96_349 = arith.constant 96 : index
    %794 = vector.load %arg21[%c3_348, %c96_349] : memref<4x256xf32, #tpu.memory_space<vmem>>, vector<1x32xf32>
    tpu.vector_store %arg21[%c3_348, %c96_349], %793 {strides = array<i32>} : memref<4x256xf32, #tpu.memory_space<vmem>>, vector<1x32xf32>,
    %795 = vector.extract_strided_slice %738 {offsets = [28, 0], sizes = [1, 32], strides = [1, 1]} : vector<32x32xf32> to vector<1x32xf32>
    %c3_350 = arith.constant 3 : index
    %c128_351 = arith.constant 128 : index
    %796 = vector.load %arg21[%c3_350, %c128_351] : memref<4x256xf32, #tpu.memory_space<vmem>>, vector<1x32xf32>
    tpu.vector_store %arg21[%c3_350, %c128_351], %795 {strides = array<i32>} : memref<4x256xf32, #tpu.memory_space<vmem>>, vector<1x32xf32>,
    %797 = vector.extract_strided_slice %738 {offsets = [29, 0], sizes = [1, 32], strides = [1, 1]} : vector<32x32xf32> to vector<1x32xf32>
    %c3_352 = arith.constant 3 : index
    %c160_353 = arith.constant 160 : index
    %798 = vector.load %arg21[%c3_352, %c160_353] : memref<4x256xf32, #tpu.memory_space<vmem>>, vector<1x32xf32>
    tpu.vector_store %arg21[%c3_352, %c160_353], %797 {strides = array<i32>} : memref<4x256xf32, #tpu.memory_space<vmem>>, vector<1x32xf32>,
    %799 = vector.extract_strided_slice %738 {offsets = [30, 0], sizes = [1, 32], strides = [1, 1]} : vector<32x32xf32> to vector<1x32xf32>
    %c3_354 = arith.constant 3 : index
    %c192_355 = arith.constant 192 : index
    %800 = vector.load %arg21[%c3_354, %c192_355] : memref<4x256xf32, #tpu.memory_space<vmem>>, vector<1x32xf32>
    tpu.vector_store %arg21[%c3_354, %c192_355], %799 {strides = array<i32>} : memref<4x256xf32, #tpu.memory_space<vmem>>, vector<1x32xf32>,
    %801 = vector.extract_strided_slice %738 {offsets = [31, 0], sizes = [1, 32], strides = [1, 1]} : vector<32x32xf32> to vector<1x32xf32>
    %c3_356 = arith.constant 3 : index
    %c224_357 = arith.constant 224 : index
    %802 = vector.load %arg21[%c3_356, %c224_357] : memref<4x256xf32, #tpu.memory_space<vmem>>, vector<1x32xf32>
    tpu.vector_store %arg21[%c3_356, %c224_357], %801 {strides = array<i32>} : memref<4x256xf32, #tpu.memory_space<vmem>>, vector<1x32xf32>,
    %c0_358 = arith.constant 0 : index
    %c0_359 = arith.constant 0 : index
    %803 = vector.load %arg21[%c0_358, %c0_359] : memref<4x256xf32, #tpu.memory_space<vmem>>, vector<4x256xf32>
    %804 = arith.truncf %803 : vector<4x256xf32> to vector<4x256xbf16>
    %c0_360 = arith.constant 0 : index
    %c0_361 = arith.constant 0 : index
    %805 = vector.load %arg17[%c0_360, %c0_361] : memref<256x4xbf16, #tpu.memory_space<vmem>>, vector<256x4xbf16>
    %cst_362 = arith.constant dense<0.000000e+00> : vector<4x4xf32>
    %806 = tpu.matmul %804, %805, %cst_362 {dimension_numbers = #tpu.dot_dimension_numbers<[1], [0], [0], [1], [0, 0, 1, 1], [], []>} : vector<4x256xbf16>, vector<256x4xbf16>, vector<4x4xf32> -> vector<4x4xf32>
    %c0_363 = arith.constant 0 : index
    %c0_364 = arith.constant 0 : index
    %807 = vector.load %arg18[%c0_363, %c0_364] : memref<1x4xf32, #tpu.memory_space<vmem>>, vector<1x4xf32>
    %808 = vector.broadcast %807 : vector<1x4xf32> to vector<4x4xf32>
    %809 = arith.addf %806, %808 : vector<4x4xf32>
    %c0_365 = arith.constant 0 : index
    %c0_366 = arith.constant 0 : index
    %c0_367 = arith.constant 0 : index
    %810 = vector.load %arg19[%c0_365, %c0_366, %c0_367] : memref<4x1x4xf32, #tpu.memory_space<vmem>>, vector<4x1x4xf32>
    %811 = vector.shape_cast %810 : vector<4x1x4xf32> to vector<4x4xf32>
    %812 = vector.shape_cast %809 : vector<4x4xf32> to vector<4x1x4xf32>
    tpu.vector_store %arg19[%c0_365, %c0_366, %c0_367], %812 {strides = array<i32>} : memref<4x1x4xf32, #tpu.memory_space<vmem>>, vector<4x1x4xf32>,
    return
  }
  func.func @transform_0(%arg0: i32) -> (i32, i32, i32) {
    %c0_i32 = arith.constant 0 : i32
    %c0_i32_0 = arith.constant 0 : i32
    %c0_i32_1 = arith.constant 0 : i32
    return %arg0, %c0_i32, %c0_i32_0 : i32, i32, i32
  }
  func.func @transform_1(%arg0: i32) -> (i32, i32, i32) {
    %c0_i32 = arith.constant 0 : i32
    %c0_i32_0 = arith.constant 0 : i32
    %c0_i32_1 = arith.constant 0 : i32
    return %arg0, %c0_i32, %c0_i32_0 : i32, i32, i32
  }
  func.func @transform_2(%arg0: i32) -> (i32, i32) {
    %c0_i32 = arith.constant 0 : i32
    %c0_i32_0 = arith.constant 0 : i32
    %c0_i32_1 = arith.constant 0 : i32
    return %c0_i32, %c0_i32_0 : i32, i32
  }
  func.func @transform_3(%arg0: i32) -> (i32, i32) {
    %c0_i32 = arith.constant 0 : i32
    %c0_i32_0 = arith.constant 0 : i32
    %c0_i32_1 = arith.constant 0 : i32
    return %c0_i32, %c0_i32_0 : i32, i32
  }
  func.func @transform_4(%arg0: i32) -> (i32, i32, i32) {
    %c0_i32 = arith.constant 0 : i32
    %c0_i32_0 = arith.constant 0 : i32
    %c0_i32_1 = arith.constant 0 : i32
    %c0_i32_2 = arith.constant 0 : i32
    return %c0_i32, %c0_i32_0, %c0_i32_1 : i32, i32, i32
  }
  func.func @transform_5(%arg0: i32) -> (i32, i32, i32) {
    %c0_i32 = arith.constant 0 : i32
    %c0_i32_0 = arith.constant 0 : i32
    %c0_i32_1 = arith.constant 0 : i32
    %c0_i32_2 = arith.constant 0 : i32
    return %c0_i32, %c0_i32_0, %c0_i32_1 : i32, i32, i32
  }
  func.func @transform_6(%arg0: i32) -> (i32, i32, i32) {
    %c0_i32 = arith.constant 0 : i32
    %c0_i32_0 = arith.constant 0 : i32
    %c0_i32_1 = arith.constant 0 : i32
    %c0_i32_2 = arith.constant 0 : i32
    return %c0_i32, %c0_i32_0, %c0_i32_1 : i32, i32, i32
  }
  func.func @transform_7(%arg0: i32) -> (i32, i32, i32) {
    %c0_i32 = arith.constant 0 : i32
    %c0_i32_0 = arith.constant 0 : i32
    %c0_i32_1 = arith.constant 0 : i32
    %c0_i32_2 = arith.constant 0 : i32
    return %c0_i32, %c0_i32_0, %c0_i32_1 : i32, i32, i32
  }
  func.func @transform_8(%arg0: i32) -> (i32, i32, i32) {
    %c0_i32 = arith.constant 0 : i32
    %c0_i32_0 = arith.constant 0 : i32
    %c0_i32_1 = arith.constant 0 : i32
    %c0_i32_2 = arith.constant 0 : i32
    return %c0_i32, %c0_i32_0, %c0_i32_1 : i32, i32, i32
  }
  func.func @transform_9(%arg0: i32) -> (i32, i32, i32) {
    %c0_i32 = arith.constant 0 : i32
    %c0_i32_0 = arith.constant 0 : i32
    %c0_i32_1 = arith.constant 0 : i32
    %c0_i32_2 = arith.constant 0 : i32
    return %c0_i32, %c0_i32_0, %c0_i32_1 : i32, i32, i32
  }
  func.func @transform_10(%arg0: i32) -> (i32, i32, i32) {
    %c0_i32 = arith.constant 0 : i32
    %c0_i32_0 = arith.constant 0 : i32
    %c0_i32_1 = arith.constant 0 : i32
    %c0_i32_2 = arith.constant 0 : i32
    return %c0_i32, %c0_i32_0, %c0_i32_1 : i32, i32, i32
  }
  func.func @transform_11(%arg0: i32) -> (i32, i32, i32) {
    %c0_i32 = arith.constant 0 : i32
    %c0_i32_0 = arith.constant 0 : i32
    %c0_i32_1 = arith.constant 0 : i32
    %c0_i32_2 = arith.constant 0 : i32
    return %c0_i32, %c0_i32_0, %c0_i32_1 : i32, i32, i32
  }
  func.func @transform_12(%arg0: i32) -> (i32, i32, i32) {
    %c0_i32 = arith.constant 0 : i32
    %c0_i32_0 = arith.constant 0 : i32
    %c0_i32_1 = arith.constant 0 : i32
    %c0_i32_2 = arith.constant 0 : i32
    return %c0_i32, %c0_i32_0, %c0_i32_1 : i32, i32, i32
  }
  func.func @transform_13(%arg0: i32) -> (i32, i32, i32) {
    %c0_i32 = arith.constant 0 : i32
    %c0_i32_0 = arith.constant 0 : i32
    %c0_i32_1 = arith.constant 0 : i32
    %c0_i32_2 = arith.constant 0 : i32
    return %c0_i32, %c0_i32_0, %c0_i32_1 : i32, i32, i32
  }
  func.func @transform_14(%arg0: i32) -> (i32, i32, i32) {
    %c0_i32 = arith.constant 0 : i32
    %c0_i32_0 = arith.constant 0 : i32
    %c0_i32_1 = arith.constant 0 : i32
    %c0_i32_2 = arith.constant 0 : i32
    return %c0_i32, %c0_i32_0, %c0_i32_1 : i32, i32, i32
  }
  func.func @transform_15(%arg0: i32) -> (i32, i32, i32) {
    %c0_i32 = arith.constant 0 : i32
    %c0_i32_0 = arith.constant 0 : i32
    %c0_i32_1 = arith.constant 0 : i32
    %c0_i32_2 = arith.constant 0 : i32
    return %c0_i32, %c0_i32_0, %c0_i32_1 : i32, i32, i32
  }
  func.func @transform_16(%arg0: i32) -> (i32, i32) {
    %c0_i32 = arith.constant 0 : i32
    %c0_i32_0 = arith.constant 0 : i32
    %c0_i32_1 = arith.constant 0 : i32
    return %c0_i32, %c0_i32_0 : i32, i32
  }
  func.func @transform_17(%arg0: i32) -> (i32, i32) {
    %c0_i32 = arith.constant 0 : i32
    %c0_i32_0 = arith.constant 0 : i32
    %c0_i32_1 = arith.constant 0 : i32
    return %c0_i32, %c0_i32_0 : i32, i32
  }
  func.func @transform_18(%arg0: i32) -> (i32, i32, i32) {
    %c0_i32 = arith.constant 0 : i32
    %c0_i32_0 = arith.constant 0 : i32
    %c0_i32_1 = arith.constant 0 : i32
    return %arg0, %c0_i32, %c0_i32_0 : i32, i32, i32
  }
}

</mosaic_0001>

<llo_original>
// kernel: transformer_classifier_forward.1
$region0: #{transformer_classifier_forward.1}
  #allocation0 [shape = 'u32[]', space=smem, size = 0x4, offset = 0x4, fixed_abs, tag = 'smem constant byte address 0x4 - core index']
  #allocation1 [shape = 'u32[144,128]{1,0:T(1,128)}', space=vmem, size = 0x12000, scoped, tag = 'internal scratch']
  #allocation2 [shape = 'f32[32,32]{1,0:T(8,128)}', space=vmem, size = 0x4000, scoped, tag = 'scratch operand']
  #allocation3 [shape = 'f32[4,256]{1,0:T(4,128)}', space=vmem, size = 0x1000, scoped, tag = 'scratch operand']
  %s0 = inlined_call_operand.vmem [shape: f32[8,8,16], index: 0, kind: input, shape index: {}]
  %s1 = inlined_call_operand.vmem [shape: f32[64,1,32], index: 1, kind: input, shape index: {}]
  %s2 = inlined_call_operand.vmem [shape: bf16[16,32], index: 2, kind: input, shape index: {}]
  %s3 = inlined_call_operand.vmem [shape: f32[1,32], index: 3, kind: input, shape index: {}]
  %s4 = inlined_call_operand.vmem [shape: bf16[2,32,96], index: 4, kind: input, shape index: {}]
  %s5 = inlined_call_operand.vmem [shape: f32[2,1,96], index: 5, kind: input, shape index: {}]
  %s6 = inlined_call_operand.vmem [shape: bf16[2,32,32], index: 6, kind: input, shape index: {}]
  %s7 = inlined_call_operand.vmem [shape: f32[2,1,32], index: 7, kind: input, shape index: {}]
  %s8 = inlined_call_operand.vmem [shape: f32[2,1,32], index: 8, kind: input, shape index: {}]
  %s9 = inlined_call_operand.vmem [shape: f32[2,1,32], index: 9, kind: input, shape index: {}]
  %s10 = inlined_call_operand.vmem [shape: bf16[2,32,64], index: 10, kind: input, shape index: {}]
  %s11 = inlined_call_operand.vmem [shape: f32[2,1,64], index: 11, kind: input, shape index: {}]
  %s12 = inlined_call_operand.vmem [shape: bf16[2,64,32], index: 12, kind: input, shape index: {}]
  %s13 = inlined_call_operand.vmem [shape: f32[2,1,32], index: 13, kind: input, shape index: {}]
  %s14 = inlined_call_operand.vmem [shape: f32[2,1,32], index: 14, kind: input, shape index: {}]
  %s15 = inlined_call_operand.vmem [shape: f32[2,1,32], index: 15, kind: input, shape index: {}]
  %s16 = inlined_call_operand.vmem [shape: bf16[256,4], index: 16, kind: input, shape index: {}]
  %s17 = inlined_call_operand.vmem [shape: f32[1,4], index: 17, kind: input, shape index: {}]
  %s18 = inlined_call_operand.vmem [shape: f32[8,1,4], index: 18, kind: output, shape index: {}]
  %s19 = sld [smem:[#allocation0]]
  $region105: #{transformer_classifier_forward.1} parent=0
    _
  %s21 = ssub.s32 1, %s19
  %s22 = scalar_select 0, %s21, %s19
  loop: start=0, step=1, limit=4
  $region2: #{transformer_classifier_forward.1} parent=0 // loop_pre_header
    _
  $region3: #{transformer_classifier_forward.1} parent=0 // loop_header
    %s24 = sphi 0, %s28
    %p25 = scmp.ge.s32.totalorder %s24, 4
    %s34 = sphi 0, %s36
    %s37 = sphi 0, %s34
    %s38 = sphi 0, %s37
    %s54 = sphi 0, %s38
    %s60 = sphi 0, %s62
    %s63 = sphi 0, %s60
    %s64 = sphi 0, %s63
    %s80 = sphi 0, %s64
    %s84 = sphi 0, %s84
    %s86 = sphi 0, %s84
    %s87 = sphi 0, %s86
    %s101 = sphi 0, %s87
    %s105 = sphi 0, %s105
    %s107 = sphi 0, %s105
    %s108 = sphi 0, %s107
    %s122 = sphi 0, %s108
    %s126 = sphi 0, %s126
    %s128 = sphi 0, %s126
    %s129 = sphi 0, %s128
    %s143 = sphi 0, %s129
    %s147 = sphi 0, %s147
    %s149 = sphi 0, %s147
    %s150 = sphi 0, %s149
    %s164 = sphi 0, %s150
    %s168 = sphi 0, %s168
    %s170 = sphi 0, %s168
    %s171 = sphi 0, %s170
    %s185 = sphi 0, %s171
    %s189 = sphi 0, %s189
    %s191 = sphi 0, %s189
    %s192 = sphi 0, %s191
    %s206 = sphi 0, %s192
    %s210 = sphi 0, %s210
    %s212 = sphi 0, %s210
    %s213 = sphi 0, %s212
    %s227 = sphi 0, %s213
    %s231 = sphi 0, %s231
    %s233 = sphi 0, %s231
    %s234 = sphi 0, %s233
    %s248 = sphi 0, %s234
    %s252 = sphi 0, %s252
    %s254 = sphi 0, %s252
    %s255 = sphi 0, %s254
    %s269 = sphi 0, %s255
    %s273 = sphi 0, %s273
    %s275 = sphi 0, %s273
    %s276 = sphi 0, %s275
    %s290 = sphi 0, %s276
    %s294 = sphi 0, %s294
    %s296 = sphi 0, %s294
    %s297 = sphi 0, %s296
    %s311 = sphi 0, %s297
    %s315 = sphi 0, %s315
    %s317 = sphi 0, %s315
    %s318 = sphi 0, %s317
    %s332 = sphi 0, %s318
    %s336 = sphi 0, %s336
    %s338 = sphi 0, %s336
    %s339 = sphi 0, %s338
    %s353 = sphi 0, %s339
    %s357 = sphi 0, %s357
    %s359 = sphi 0, %s357
    %s360 = sphi 0, %s359
    %s374 = sphi 0, %s360
    %s378 = sphi 0, %s378
    %s380 = sphi 0, %s378
    %s381 = sphi 0, %s380
    %s395 = sphi 0, %s381
    %s399 = sphi 0, %s399
    %s401 = sphi 0, %s399
    %s402 = sphi 0, %s401
    %s416 = sphi 0, %s402
    %s422 = sphi 0, %s424
    %s425 = sphi 0, %s422
    %s426 = sphi 0, %s425
    %s442 = sphi 0, %s426
  $region4: #{transformer_classifier_forward.1} parent=0 // loop_header_branch
    %27 = sbr.rel (%p25) target = $region8
  $region5: #{transformer_classifier_forward.1} parent=0 // loop_body
    %s29 = ssub.s32 %s24, 1
    %s30 = ssub.s32 %s24, 2
    %s31 = sadd.s32 %s24, 1
    %s32 = ssub.s32 %s24, %s31
    %p33 = scmp.eq.s32.totalorder %s32, 0
    %s35 = sadd.s32 %s34, 1
    %s36 = scalar_select %p33, %s34, %s35
    %p39 = pneg %p33
    %p40 = scmp.eq.s32.totalorder %s24, 1
    %p41 = por %p39, %p40
    %p42 = scmp.ne.s32.totalorder %s34, %s37
    %p43 = scmp.eq.s32.totalorder %s24, 0
    %p44 = por %p42, %p43
    %p45 = scmp.ne.s32.totalorder %s34, %s37
    %p46 = scmp.eq.s32.totalorder %s29, 1
    %p47 = por %p45, %p46
    %p48 = scmp.ne.s32.totalorder %s37, %s38
    %p49 = scmp.eq.s32.totalorder %s29, 0
    %p50 = por %p48, %p49
    %p51 = scmp.ne.s32.totalorder %s37, %s38
    %p52 = scmp.eq.s32.totalorder %s30, 1
    %p53 = por %p51, %p52
    %p55 = scmp.ne.s32.totalorder %s38, %s54
    %p56 = scmp.eq.s32.totalorder %s30, 0
    %p57 = por %p55, %p56
    %s58 = ssub.s32 %s24, %s31
    %p59 = scmp.eq.s32.totalorder %s58, 0
    %s61 = sadd.s32 %s60, 1
    %s62 = scalar_select %p59, %s60, %s61
    %p65 = pneg %p59
    %p66 = scmp.eq.s32.totalorder %s24, 1
    %p67 = por %p65, %p66
    %p68 = scmp.ne.s32.totalorder %s60, %s63
    %p69 = scmp.eq.s32.totalorder %s24, 0
    %p70 = por %p68, %p69
    %p71 = scmp.ne.s32.totalorder %s60, %s63
    %p72 = scmp.eq.s32.totalorder %s29, 1
    %p73 = por %p71, %p72
    %p74 = scmp.ne.s32.totalorder %s63, %s64
    %p75 = scmp.eq.s32.totalorder %s29, 0
    %p76 = por %p74, %p75
    %p77 = scmp.ne.s32.totalorder %s63, %s64
    %p78 = scmp.eq.s32.totalorder %s30, 1
    %p79 = por %p77, %p78
    %p81 = scmp.ne.s32.totalorder %s64, %s80
    %p82 = scmp.eq.s32.totalorder %s30, 0
    %p83 = por %p81, %p82
    %s85 = sadd.s32 %s84, 1
    %p88 = scmp.eq.s32.totalorder %s24, 1
    %p89 = scmp.ne.s32.totalorder %s84, %s86
    %p90 = scmp.eq.s32.totalorder %s24, 0
    %p91 = por %p89, %p90
    %p92 = scmp.ne.s32.totalorder %s84, %s86
    %p93 = scmp.eq.s32.totalorder %s29, 1
    %p94 = por %p92, %p93
    %p95 = scmp.ne.s32.totalorder %s86, %s87
    %p96 = scmp.eq.s32.totalorder %s29, 0
    %p97 = por %p95, %p96
    %p98 = scmp.ne.s32.totalorder %s86, %s87
    %p99 = scmp.eq.s32.totalorder %s30, 1
    %p100 = por %p98, %p99
    %p102 = scmp.ne.s32.totalorder %s87, %s101
    %p103 = scmp.eq.s32.totalorder %s30, 0
    %p104 = por %p102, %p103
    %s106 = sadd.s32 %s105, 1
    %p109 = scmp.eq.s32.totalorder %s24, 1
    %p110 = scmp.ne.s32.totalorder %s105, %s107
    %p111 = scmp.eq.s32.totalorder %s24, 0
    %p112 = por %p110, %p111
    %p113 = scmp.ne.s32.totalorder %s105, %s107
    %p114 = scmp.eq.s32.totalorder %s29, 1
    %p115 = por %p113, %p114
    %p116 = scmp.ne.s32.totalorder %s107, %s108
    %p117 = scmp.eq.s32.totalorder %s29, 0
    %p118 = por %p116, %p117
    %p119 = scmp.ne.s32.totalorder %s107, %s108
    %p120 = scmp.eq.s32.totalorder %s30, 1
    %p121 = por %p119, %p120
    %p123 = scmp.ne.s32.totalorder %s108, %s122
    %p124 = scmp.eq.s32.totalorder %s30, 0
    %p125 = por %p123, %p124
    %s127 = sadd.s32 %s126, 1
    %p130 = scmp.eq.s32.totalorder %s24, 1
    %p131 = scmp.ne.s32.totalorder %s126, %s128
    %p132 = scmp.eq.s32.totalorder %s24, 0
    %p133 = por %p131, %p132
    %p134 = scmp.ne.s32.totalorder %s126, %s128
    %p135 = scmp.eq.s32.totalorder %s29, 1
    %p136 = por %p134, %p135
    %p137 = scmp.ne.s32.totalorder %s128, %s129
    %p138 = scmp.eq.s32.totalorder %s29, 0
    %p139 = por %p137, %p138
    %p140 = scmp.ne.s32.totalorder %s128, %s129
    %p141 = scmp.eq.s32.totalorder %s30, 1
    %p142 = por %p140, %p141
    %p144 = scmp.ne.s32.totalorder %s129, %s143
    %p145 = scmp.eq.s32.totalorder %s30, 0
    %p146 = por %p144, %p145
    %s148 = sadd.s32 %s147, 1
    %p151 = scmp.eq.s32.totalorder %s24, 1
    %p152 = scmp.ne.s32.totalorder %s147, %s149
    %p153 = scmp.eq.s32.totalorder %s24, 0
    %p154 = por %p152, %p153
    %p155 = scmp.ne.s32.totalorder %s147, %s149
    %p156 = scmp.eq.s32.totalorder %s29, 1
    %p157 = por %p155, %p156
    %p158 = scmp.ne.s32.totalorder %s149, %s150
    %p159 = scmp.eq.s32.totalorder %s29, 0
    %p160 = por %p158, %p159
    %p161 = scmp.ne.s32.totalorder %s149, %s150
    %p162 = scmp.eq.s32.totalorder %s30, 1
    %p163 = por %p161, %p162
    %p165 = scmp.ne.s32.totalorder %s150, %s164
    %p166 = scmp.eq.s32.totalorder %s30, 0
    %p167 = por %p165, %p166
    %s169 = sadd.s32 %s168, 1
    %p172 = scmp.eq.s32.totalorder %s24, 1
    %p173 = scmp.ne.s32.totalorder %s168, %s170
    %p174 = scmp.eq.s32.totalorder %s24, 0
    %p175 = por %p173, %p174
    %p176 = scmp.ne.s32.totalorder %s168, %s170
    %p177 = scmp.eq.s32.totalorder %s29, 1
    %p178 = por %p176, %p177
    %p179 = scmp.ne.s32.totalorder %s170, %s171
    %p180 = scmp.eq.s32.totalorder %s29, 0
    %p181 = por %p179, %p180
    %p182 = scmp.ne.s32.totalorder %s170, %s171
    %p183 = scmp.eq.s32.totalorder %s30, 1
    %p184 = por %p182, %p183
    %p186 = scmp.ne.s32.totalorder %s171, %s185
    %p187 = scmp.eq.s32.totalorder %s30, 0
    %p188 = por %p186, %p187
    %s190 = sadd.s32 %s189, 1
    %p193 = scmp.eq.s32.totalorder %s24, 1
    %p194 = scmp.ne.s32.totalorder %s189, %s191
    %p195 = scmp.eq.s32.totalorder %s24, 0
    %p196 = por %p194, %p195
    %p197 = scmp.ne.s32.totalorder %s189, %s191
    %p198 = scmp.eq.s32.totalorder %s29, 1
    %p199 = por %p197, %p198
    %p200 = scmp.ne.s32.totalorder %s191, %s192
    %p201 = scmp.eq.s32.totalorder %s29, 0
    %p202 = por %p200, %p201
    %p203 = scmp.ne.s32.totalorder %s191, %s192
    %p204 = scmp.eq.s32.totalorder %s30, 1
    %p205 = por %p203, %p204
    %p207 = scmp.ne.s32.totalorder %s192, %s206
    %p208 = scmp.eq.s32.totalorder %s30, 0
    %p209 = por %p207, %p208
    %s211 = sadd.s32 %s210, 1
    %p214 = scmp.eq.s32.totalorder %s24, 1
    %p215 = scmp.ne.s32.totalorder %s210, %s212
    %p216 = scmp.eq.s32.totalorder %s24, 0
    %p217 = por %p215, %p216
    %p218 = scmp.ne.s32.totalorder %s210, %s212
    %p219 = scmp.eq.s32.totalorder %s29, 1
    %p220 = por %p218, %p219
    %p221 = scmp.ne.s32.totalorder %s212, %s213
    %p222 = scmp.eq.s32.totalorder %s29, 0
    %p223 = por %p221, %p222
    %p224 = scmp.ne.s32.totalorder %s212, %s213
    %p225 = scmp.eq.s32.totalorder %s30, 1
    %p226 = por %p224, %p225
    %p228 = scmp.ne.s32.totalorder %s213, %s227
    %p229 = scmp.eq.s32.totalorder %s30, 0
    %p230 = por %p228, %p229
    %s232 = sadd.s32 %s231, 1
    %p235 = scmp.eq.s32.totalorder %s24, 1
    %p236 = scmp.ne.s32.totalorder %s231, %s233
    %p237 = scmp.eq.s32.totalorder %s24, 0
    %p238 = por %p236, %p237
    %p239 = scmp.ne.s32.totalorder %s231, %s233
    %p240 = scmp.eq.s32.totalorder %s29, 1
    %p241 = por %p239, %p240
    %p242 = scmp.ne.s32.totalorder %s233, %s234
    %p243 = scmp.eq.s32.totalorder %s29, 0
    %p244 = por %p242, %p243
    %p245 = scmp.ne.s32.totalorder %s233, %s234
    %p246 = scmp.eq.s32.totalorder %s30, 1
    %p247 = por %p245, %p246
    %p249 = scmp.ne.s32.totalorder %s234, %s248
    %p250 = scmp.eq.s32.totalorder %s30, 0
    %p251 = por %p249, %p250
    %s253 = sadd.s32 %s252, 1
    %p256 = scmp.eq.s32.totalorder %s24, 1
    %p257 = scmp.ne.s32.totalorder %s252, %s254
    %p258 = scmp.eq.s32.totalorder %s24, 0
    %p259 = por %p257, %p258
    %p260 = scmp.ne.s32.totalorder %s252, %s254
    %p261 = scmp.eq.s32.totalorder %s29, 1
    %p262 = por %p260, %p261
    %p263 = scmp.ne.s32.totalorder %s254, %s255
    %p264 = scmp.eq.s32.totalorder %s29, 0
    %p265 = por %p263, %p264
    %p266 = scmp.ne.s32.totalorder %s254, %s255
    %p267 = scmp.eq.s32.totalorder %s30, 1
    %p268 = por %p266, %p267
    %p270 = scmp.ne.s32.totalorder %s255, %s269
    %p271 = scmp.eq.s32.totalorder %s30, 0
    %p272 = por %p270, %p271
    %s274 = sadd.s32 %s273, 1
    %p277 = scmp.eq.s32.totalorder %s24, 1
    %p278 = scmp.ne.s32.totalorder %s273, %s275
    %p279 = scmp.eq.s32.totalorder %s24, 0
    %p280 = por %p278, %p279
    %p281 = scmp.ne.s32.totalorder %s273, %s275
    %p282 = scmp.eq.s32.totalorder %s29, 1
    %p283 = por %p281, %p282
    %p284 = scmp.ne.s32.totalorder %s275, %s276
    %p285 = scmp.eq.s32.totalorder %s29, 0
    %p286 = por %p284, %p285
    %p287 = scmp.ne.s32.totalorder %s275, %s276
    %p288 = scmp.eq.s32.totalorder %s30, 1
    %p289 = por %p287, %p288
    %p291 = scmp.ne.s32.totalorder %s276, %s290
    %p292 = scmp.eq.s32.totalorder %s30, 0
    %p293 = por %p291, %p292
    %s295 = sadd.s32 %s294, 1
    %p298 = scmp.eq.s32.totalorder %s24, 1
    %p299 = scmp.ne.s32.totalorder %s294, %s296
    %p300 = scmp.eq.s32.totalorder %s24, 0
    %p301 = por %p299, %p300
    %p302 = scmp.ne.s32.totalorder %s294, %s296
    %p303 = scmp.eq.s32.totalorder %s29, 1
    %p304 = por %p302, %p303
    %p305 = scmp.ne.s32.totalorder %s296, %s297
    %p306 = scmp.eq.s32.totalorder %s29, 0
    %p307 = por %p305, %p306
    %p308 = scmp.ne.s32.totalorder %s296, %s297
    %p309 = scmp.eq.s32.totalorder %s30, 1
    %p310 = por %p308, %p309
    %p312 = scmp.ne.s32.totalorder %s297, %s311
    %p313 = scmp.eq.s32.totalorder %s30, 0
    %p314 = por %p312, %p313
    %s316 = sadd.s32 %s315, 1
    %p319 = scmp.eq.s32.totalorder %s24, 1
    %p320 = scmp.ne.s32.totalorder %s315, %s317
    %p321 = scmp.eq.s32.totalorder %s24, 0
    %p322 = por %p320, %p321
    %p323 = scmp.ne.s32.totalorder %s315, %s317
    %p324 = scmp.eq.s32.totalorder %s29, 1
    %p325 = por %p323, %p324
    %p326 = scmp.ne.s32.totalorder %s317, %s318
    %p327 = scmp.eq.s32.totalorder %s29, 0
    %p328 = por %p326, %p327
    %p329 = scmp.ne.s32.totalorder %s317, %s318
    %p330 = scmp.eq.s32.totalorder %s30, 1
    %p331 = por %p329, %p330
    %p333 = scmp.ne.s32.totalorder %s318, %s332
    %p334 = scmp.eq.s32.totalorder %s30, 0
    %p335 = por %p333, %p334
    %s337 = sadd.s32 %s336, 1
    %p340 = scmp.eq.s32.totalorder %s24, 1
    %p341 = scmp.ne.s32.totalorder %s336, %s338
    %p342 = scmp.eq.s32.totalorder %s24, 0
    %p343 = por %p341, %p342
    %p344 = scmp.ne.s32.totalorder %s336, %s338
    %p345 = scmp.eq.s32.totalorder %s29, 1
    %p346 = por %p344, %p345
    %p347 = scmp.ne.s32.totalorder %s338, %s339
    %p348 = scmp.eq.s32.totalorder %s29, 0
    %p349 = por %p347, %p348
    %p350 = scmp.ne.s32.totalorder %s338, %s339
    %p351 = scmp.eq.s32.totalorder %s30, 1
    %p352 = por %p350, %p351
    %p354 = scmp.ne.s32.totalorder %s339, %s353
    %p355 = scmp.eq.s32.totalorder %s30, 0
    %p356 = por %p354, %p355
    %s358 = sadd.s32 %s357, 1
    %p361 = scmp.eq.s32.totalorder %s24, 1
    %p362 = scmp.ne.s32.totalorder %s357, %s359
    %p363 = scmp.eq.s32.totalorder %s24, 0
    %p364 = por %p362, %p363
    %p365 = scmp.ne.s32.totalorder %s357, %s359
    %p366 = scmp.eq.s32.totalorder %s29, 1
    %p367 = por %p365, %p366
    %p368 = scmp.ne.s32.totalorder %s359, %s360
    %p369 = scmp.eq.s32.totalorder %s29, 0
    %p370 = por %p368, %p369
    %p371 = scmp.ne.s32.totalorder %s359, %s360
    %p372 = scmp.eq.s32.totalorder %s30, 1
    %p373 = por %p371, %p372
    %p375 = scmp.ne.s32.totalorder %s360, %s374
    %p376 = scmp.eq.s32.totalorder %s30, 0
    %p377 = por %p375, %p376
    %s379 = sadd.s32 %s378, 1
    %p382 = scmp.eq.s32.totalorder %s24, 1
    %p383 = scmp.ne.s32.totalorder %s378, %s380
    %p384 = scmp.eq.s32.totalorder %s24, 0
    %p385 = por %p383, %p384
    %p386 = scmp.ne.s32.totalorder %s378, %s380
    %p387 = scmp.eq.s32.totalorder %s29, 1
    %p388 = por %p386, %p387
    %p389 = scmp.ne.s32.totalorder %s380, %s381
    %p390 = scmp.eq.s32.totalorder %s29, 0
    %p391 = por %p389, %p390
    %p392 = scmp.ne.s32.totalorder %s380, %s381
    %p393 = scmp.eq.s32.totalorder %s30, 1
    %p394 = por %p392, %p393
    %p396 = scmp.ne.s32.totalorder %s381, %s395
    %p397 = scmp.eq.s32.totalorder %s30, 0
    %p398 = por %p396, %p397
    %s400 = sadd.s32 %s399, 1
    %p403 = scmp.eq.s32.totalorder %s24, 1
    %p404 = scmp.ne.s32.totalorder %s399, %s401
    %p405 = scmp.eq.s32.totalorder %s24, 0
    %p406 = por %p404, %p405
    %p407 = scmp.ne.s32.totalorder %s399, %s401
    %p408 = scmp.eq.s32.totalorder %s29, 1
    %p409 = por %p407, %p408
    %p410 = scmp.ne.s32.totalorder %s401, %s402
    %p411 = scmp.eq.s32.totalorder %s29, 0
    %p412 = por %p410, %p411
    %p413 = scmp.ne.s32.totalorder %s401, %s402
    %p414 = scmp.eq.s32.totalorder %s30, 1
    %p415 = por %p413, %p414
    %p417 = scmp.ne.s32.totalorder %s402, %s416
    %p418 = scmp.eq.s32.totalorder %s30, 0
    %p419 = por %p417, %p418
    %s420 = ssub.s32 %s24, %s31
    %p421 = scmp.eq.s32.totalorder %s420, 0
    %s423 = sadd.s32 %s422, 1
    %s424 = scalar_select %p421, %s422, %s423
    %p427 = pneg %p421
    %p428 = scmp.eq.s32.totalorder %s24, 1
    %p429 = por %p427, %p428
    %p430 = scmp.ne.s32.totalorder %s422, %s425
    %p431 = scmp.eq.s32.totalorder %s24, 0
    %p432 = por %p430, %p431
    %p433 = scmp.ne.s32.totalorder %s422, %s425
    %p434 = scmp.eq.s32.totalorder %s29, 1
    %p435 = por %p433, %p434
    %p436 = scmp.ne.s32.totalorder %s425, %s426
    %p437 = scmp.eq.s32.totalorder %s29, 0
    %p438 = por %p436, %p437
    %p439 = scmp.ne.s32.totalorder %s425, %s426
    %p440 = scmp.eq.s32.totalorder %s30, 1
    %p441 = por %p439, %p440
    %p443 = scmp.ne.s32.totalorder %s426, %s442
    %p444 = scmp.eq.s32.totalorder %s30, 0
    %p445 = por %p443, %p444
    %p446 = scmp.le.s32.totalorder 1, %s24
    %p447 = scmp.lt.s32.totalorder %s24, 3
    %p448 = pnand %p446, %p447
    %p449 = pneg %p448
    // Predicated region
    $region9: #{transformer_classifier_forward.1} parent=5 // pred_check
      _
    $region10: #{transformer_classifier_forward.1} parent=5 // pred_check_branch
      %451 = sbr.rel (%p448) target = $region12
    $region11: #{transformer_classifier_forward.1} parent=5 // pred_region
      %s452 = ssub.s32 %s24, 1
      // Predicated region
      $region13: #{transformer_classifier_forward.1} parent=11 // pred_check
        %p453 = pneg %p97
      $region14: #{transformer_classifier_forward.1} parent=11 // pred_check_branch
        %455 = sbr.rel (%p453) target = $region16
      $region15: #{transformer_classifier_forward.1} parent=11 // pred_region
        _
      $region16: #{transformer_classifier_forward.1} parent=11 // pred_fallthru
        _
      // Predicated region
      $region17: #{transformer_classifier_forward.1} parent=11 // pred_check
        %p456 = pneg %p118
      $region18: #{transformer_classifier_forward.1} parent=11 // pred_check_branch
        %458 = sbr.rel (%p456) target = $region20
      $region19: #{transformer_classifier_forward.1} parent=11 // pred_region
        _
      $region20: #{transformer_classifier_forward.1} parent=11 // pred_fallthru
        _
      // Predicated region
      $region21: #{transformer_classifier_forward.1} parent=11 // pred_check
        %p459 = pneg %p139
      $region22: #{transformer_classifier_forward.1} parent=11 // pred_check_branch
        %461 = sbr.rel (%p459) target = $region24
      $region23: #{transformer_classifier_forward.1} parent=11 // pred_region
        _
      $region24: #{transformer_classifier_forward.1} parent=11 // pred_fallthru
        _
      // Predicated region
      $region25: #{transformer_classifier_forward.1} parent=11 // pred_check
        %p462 = pneg %p160
      $region26: #{transformer_classifier_forward.1} parent=11 // pred_check_branch
        %464 = sbr.rel (%p462) target = $region28
      $region27: #{transformer_classifier_forward.1} parent=11 // pred_region
        _
      $region28: #{transformer_classifier_forward.1} parent=11 // pred_fallthru
        _
      // Predicated region
      $region29: #{transformer_classifier_forward.1} parent=11 // pred_check
        %p465 = pneg %p181
      $region30: #{transformer_classifier_forward.1} parent=11 // pred_check_branch
        %467 = sbr.rel (%p465) target = $region32
      $region31: #{transformer_classifier_forward.1} parent=11 // pred_region
        _
      $region32: #{transformer_classifier_forward.1} parent=11 // pred_fallthru
        _
      // Predicated region
      $region33: #{transformer_classifier_forward.1} parent=11 // pred_check
        %p468 = pneg %p202
      $region34: #{transformer_classifier_forward.1} parent=11 // pred_check_branch
        %470 = sbr.rel (%p468) target = $region36
      $region35: #{transformer_classifier_forward.1} parent=11 // pred_region
        _
      $region36: #{transformer_classifier_forward.1} parent=11 // pred_fallthru
        _
      // Predicated region
      $region37: #{transformer_classifier_forward.1} parent=11 // pred_check
        %p471 = pneg %p223
      $region38: #{transformer_classifier_forward.1} parent=11 // pred_check_branch
        %473 = sbr.rel (%p471) target = $region40
      $region39: #{transformer_classifier_forward.1} parent=11 // pred_region
        _
      $region40: #{transformer_classifier_forward.1} parent=11 // pred_fallthru
        _
      // Predicated region
      $region41: #{transformer_classifier_forward.1} parent=11 // pred_check
        %p474 = pneg %p244
      $region42: #{transformer_classifier_forward.1} parent=11 // pred_check_branch
        %476 = sbr.rel (%p474) target = $region44
      $region43: #{transformer_classifier_forward.1} parent=11 // pred_region
        _
      $region44: #{transformer_classifier_forward.1} parent=11 // pred_fallthru
        _
      // Predicated region
      $region45: #{transformer_classifier_forward.1} parent=11 // pred_check
        %p477 = pneg %p265
      $region46: #{transformer_classifier_forward.1} parent=11 // pred_check_branch
        %479 = sbr.rel (%p477) target = $region48
      $region47: #{transformer_classifier_forward.1} parent=11 // pred_region
        _
      $region48: #{transformer_classifier_forward.1} parent=11 // pred_fallthru
        _
      // Predicated region
      $region49: #{transformer_classifier_forward.1} parent=11 // pred_check
        %p480 = pneg %p286
      $region50: #{transformer_classifier_forward.1} parent=11 // pred_check_branch
        %482 = sbr.rel (%p480) target = $region52
      $region51: #{transformer_classifier_forward.1} parent=11 // pred_region
        _
      $region52: #{transformer_classifier_forward.1} parent=11 // pred_fallthru
        _
      // Predicated region
      $region53: #{transformer_classifier_forward.1} parent=11 // pred_check
        %p483 = pneg %p307
      $region54: #{transformer_classifier_forward.1} parent=11 // pred_check_branch
        %485 = sbr.rel (%p483) target = $region56
      $region55: #{transformer_classifier_forward.1} parent=11 // pred_region
        _
      $region56: #{transformer_classifier_forward.1} parent=11 // pred_fallthru
        _
      // Predicated region
      $region57: #{transformer_classifier_forward.1} parent=11 // pred_check
        %p486 = pneg %p328
      $region58: #{transformer_classifier_forward.1} parent=11 // pred_check_branch
        %488 = sbr.rel (%p486) target = $region60
      $region59: #{transformer_classifier_forward.1} parent=11 // pred_region
        _
      $region60: #{transformer_classifier_forward.1} parent=11 // pred_fallthru
        _
      // Predicated region
      $region61: #{transformer_classifier_forward.1} parent=11 // pred_check
        %p489 = pneg %p349
      $region62: #{transformer_classifier_forward.1} parent=11 // pred_check_branch
        %491 = sbr.rel (%p489) target = $region64
      $region63: #{transformer_classifier_forward.1} parent=11 // pred_region
        _
      $region64: #{transformer_classifier_forward.1} parent=11 // pred_fallthru
        _
      // Predicated region
      $region65: #{transformer_classifier_forward.1} parent=11 // pred_check
        %p492 = pneg %p370
      $region66: #{transformer_classifier_forward.1} parent=11 // pred_check_branch
        %494 = sbr.rel (%p492) target = $region68
      $region67: #{transformer_classifier_forward.1} parent=11 // pred_region
        _
      $region68: #{transformer_classifier_forward.1} parent=11 // pred_fallthru
        _
      // Predicated region
      $region69: #{transformer_classifier_forward.1} parent=11 // pred_check
        %p495 = pneg %p391
      $region70: #{transformer_classifier_forward.1} parent=11 // pred_check_branch
        %497 = sbr.rel (%p495) target = $region72
      $region71: #{transformer_classifier_forward.1} parent=11 // pred_region
        _
      $region72: #{transformer_classifier_forward.1} parent=11 // pred_fallthru
        _
      // Predicated region
      $region73: #{transformer_classifier_forward.1} parent=11 // pred_check
        %p498 = pneg %p412
      $region74: #{transformer_classifier_forward.1} parent=11 // pred_check_branch
        %500 = sbr.rel (%p498) target = $region76
      $region75: #{transformer_classifier_forward.1} parent=11 // pred_region
        _
      $region76: #{transformer_classifier_forward.1} parent=11 // pred_fallthru
        _
    $region12: #{transformer_classifier_forward.1} parent=5 // pred_fallthru
      _
    %p501 = scmp.lt.s32.totalorder %s24, 2
    // Predicated region
    $region77: #{transformer_classifier_forward.1} parent=5 // pred_check
      %p502 = pneg %p501
    $region78: #{transformer_classifier_forward.1} parent=5 // pred_check_branch
      %504 = sbr.rel (%p502) target = $region80
    $region79: #{transformer_classifier_forward.1} parent=5 // pred_region
      // Predicated region
      $region81: #{transformer_classifier_forward.1} parent=79 // pred_check
        %p505 = pneg %p44
      $region82: #{transformer_classifier_forward.1} parent=79 // pred_check_branch
        %507 = sbr.rel (%p505) target = $region84
      $region83: #{transformer_classifier_forward.1} parent=79 // pred_region
        %s508 = smul.u32 4, %s24
        %p509 = scmp.lt.s32.totalorder %s508, 7
        %s510 = scalar_select %p509, %s508, 7
        %s511 = smul.addr %s510, 8
        %s512 = scalar_lea.vmem %s0, %s511
        %s513 = smul.u32 4, %s24
      $region84: #{transformer_classifier_forward.1} parent=79 // pred_fallthru
        _
      // Predicated region
      $region85: #{transformer_classifier_forward.1} parent=79 // pred_check
        %p514 = pneg %p70
      $region86: #{transformer_classifier_forward.1} parent=79 // pred_check_branch
        %516 = sbr.rel (%p514) target = $region88
      $region87: #{transformer_classifier_forward.1} parent=79 // pred_region
        %s517 = smul.u32 4, %s24
        %p518 = scmp.lt.s32.totalorder %s517, 63
        %s519 = scalar_select %p518, %s517, 63
        %s520 = scalar_lea.vmem %s1, %s519
        %s521 = smul.u32 4, %s24
      $region88: #{transformer_classifier_forward.1} parent=79 // pred_fallthru
        _
    $region80: #{transformer_classifier_forward.1} parent=5 // pred_fallthru
      _
    %p522 = scmp.le.s32.totalorder 1, %s24
    %p523 = scmp.lt.s32.totalorder %s24, 3
    %p524 = pnand %p522, %p523
    %p525 = pneg %p524
    // Predicated region
    $region89: #{transformer_classifier_forward.1} parent=5 // pred_check
      _
    $region90: #{transformer_classifier_forward.1} parent=5 // pred_check_branch
      %527 = sbr.rel (%p524) target = $region92
    $region91: #{transformer_classifier_forward.1} parent=5 // pred_region
      %s528 = ssub.s32 %s24, 1
      %s529 = smul.u32 4, %s29
      %p530 = scmp.lt.s32.totalorder %s529, 7
      %s531 = scalar_select %p530, %s529, 7
      %s532 = smul.addr %s531, 8
      %s533 = scalar_lea.vmem %s0, %s532
      %p534 = pneg %p50
      %p535 = pneg %p47
      %s536 = smul.u32 4, %s29
      %p537 = scmp.lt.s32.totalorder %s536, 63
      %s538 = scalar_select %p537, %s536, 63
      %s539 = scalar_lea.vmem %s1, %s538
      %p540 = pneg %p76
      %p541 = pneg %p73
      %p542 = pneg %p97
      %p543 = pneg %p94
      %p544 = pneg %p118
      %p545 = pneg %p115
      %p546 = pneg %p139
      %p547 = pneg %p136
      %p548 = pneg %p160
      %p549 = pneg %p157
      %p550 = pneg %p181
      %p551 = pneg %p178
      %p552 = pneg %p202
      %p553 = pneg %p199
      %p554 = pneg %p223
      %p555 = pneg %p220
      %p556 = pneg %p244
      %p557 = pneg %p241
      %p558 = pneg %p265
      %p559 = pneg %p262
      %p560 = pneg %p286
      %p561 = pneg %p283
      %p562 = pneg %p307
      %p563 = pneg %p304
      %p564 = pneg %p328
      %p565 = pneg %p325
      %p566 = pneg %p349
      %p567 = pneg %p346
      %p568 = pneg %p370
      %p569 = pneg %p367
      %p570 = pneg %p391
      %p571 = pneg %p388
      %p572 = pneg %p412
      %p573 = pneg %p409
      %p574 = pneg %p438
      %p575 = pneg %p435
      %s576 = smul.u32 4, %s29
      %p577 = scmp.lt.s32.totalorder %s576, 7
      %s578 = scalar_select %p577, %s576, 7
      %s579 = scalar_lea.vmem %s18, %s578
      %s580 = smul.u32 4, %s29
      %p581 = scmp.lt.s32.totalorder %s580, 7
      %s582 = scalar_select %p581, %s580, 7
      %s583 = smul.addr %s582, 8
      %s584 = scalar_lea.vmem %s0, %s583
      %s585 = smul.u32 4, %s29
      %s586 = smul.u32 4, %s29
      %p587 = scmp.lt.s32.totalorder %s586, 63
      %s588 = scalar_select %p587, %s586, 63
      %s589 = scalar_lea.vmem %s1, %s588
      %s590 = smul.u32 4, %s29
      %s591 = smul.u32 4, %s29
      %p592 = scmp.lt.s32.totalorder %s591, 7
      %s593 = scalar_select %p592, %s591, 7
      %s594 = scalar_lea.vmem %s18, %s593
      %s595 = smul.u32 4, %s29
      %v597 = vld [vmem:[%s584] sm:$0xff]
      %v598 = vld [vmem:[%s584 + $0x8] sm:$0xff]
      %v599 = vld [vmem:[%s584 + $0x10] sm:$0xff]
      %v600 = vld [vmem:[%s584 + $0x18] sm:$0xff]
      %v601 = vpack.c.bf16 %v598, %v597
      %v602 = vpack.c.bf16 %v600, %v599
      %v603 = vld [vmem:[%s2] sm:$0xf]
      %v604 = vld [vmem:[%s2 + $0x4] sm:$0xf]
      %v605 = vld [vmem:[%s3] sm:$0x1]
      %v607 = vlaneseq
      %v608 = vshrl.u32 %v607, 7
      %v609 = vsub.s32 0, %v608
      %v610 = vrot.slane %v605, %v609
      %v614 = vunpack.c.l.b16 %v603
      %v615 = vunpack.c.l.b16 %v604
      %v616 = vpack.c.b16 %v615, %v614
      %vm618 = vcmask 130048
      %v620 = vsel %vm618, %v601, 0
      %v623 = vsel %vm618, %v602, 0
      %625 = vmatprep.subr.bf16.mxu0 0
      %626 = vmatpush1.bf16.msra.mxu0 %v616
      %627 = vmatprep.subr.bf16.mxu0 0
      %628 = vmatpush1.bf16.msra.mxu0 0
      %629 = vmatprep.subr.bf16.mxu0 0
      %630 = vmatpush1.bf16.msra.mxu0 0
      %631 = vmatprep.subr.bf16.mxu0 0
      %632 = vmatpush1.bf16.msra.mxu0 0
      %633 = vmatprep.subr.bf16.mxu0 0
      %634 = vmatpush1.bf16.msra.mxu0 0
      %635 = vmatprep.subr.bf16.mxu0 0
      %636 = vmatpush1.bf16.msra.mxu0 0
      %637 = vmatprep.subr.bf16.mxu0 0
      %638 = vmatpush1.bf16.msra.mxu0 0
      %639 = vmatprep.subr.bf16.mxu0 0
      %640 = vmatpush1.bf16.msra.mxu0 0
      %641 = vmatprep.subr.bf16.mxu0 0
      %642 = vmatpush1.bf16.msra.mxu0 0
      %643 = vmatprep.subr.bf16.mxu0 0
      %644 = vmatpush1.bf16.msra.mxu0 0
      %645 = vmatprep.subr.bf16.mxu0 0
      %646 = vmatpush1.bf16.msra.mxu0 0
      %647 = vmatprep.subr.bf16.mxu0 0
      %648 = vmatpush1.bf16.msra.mxu0 0
      %649 = vmatprep.subr.bf16.mxu0 0
      %650 = vmatpush1.bf16.msra.mxu0 0
      %651 = vmatprep.subr.bf16.mxu0 0
      %652 = vmatpush1.bf16.msra.mxu0 0
      %653 = vmatprep.subr.bf16.mxu0 0
      %654 = vmatpush1.bf16.msra.mxu0 0
      %655 = vmatprep.subr.bf16.mxu0 0
      %656 = vmatpush1.bf16.msra.mxu0 0
      %657 = vmatprep.mubr.bf16.mxu0 0
      %658 = vmatmul.mubr.bf16.gmra.mrb[0].mxu0 %v620
      %v659 = vpop.f32.mrb[0].mxu0
      %v660 = vadd.f32 %v610, %v659
      %v661 = vpop.f32.mrb[0].mxu0
      %v662 = vpop.f32.mrb[0].mxu0
      %v663 = vadd.f32 %v610, %v662
      %v664 = vpop.f32.mrb[0].mxu0
      %665 = vmatprep.mubr.bf16.mxu0 0
      %666 = vmatmul.mubr.bf16.gmra.mrb[0].mxu0 %v623
      %v667 = vpop.f32.mrb[0].mxu0
      %v668 = vadd.f32 %v610, %v667
      %v669 = vpop.f32.mrb[0].mxu0
      %v670 = vpop.f32.mrb[0].mxu0
      %v671 = vadd.f32 %v610, %v670
      %v672 = vpop.f32.mrb[0].mxu0
      %673 = vdwg.mxu0
      %v674 = vld [vmem:[%s589] sm:$0x1]
      %v675 = vld [vmem:[%s589 + $0x1] sm:$0x1]
      %v676 = vld [vmem:[%s589 + $0x2] sm:$0x1]
      %v677 = vld [vmem:[%s589 + $0x3] sm:$0x1]
      %v682 = vlaneseq
      %v683 = vshrl.u32 %v682, 7
      %v684 = vsub.s32 0, %v683
      %v685 = vrot.slane %v674, %v684
      %v686 = vlaneseq
      %v687 = vshrl.u32 %v686, 7
      %v688 = vsub.s32 0, %v687
      %v689 = vrot.slane %v675, %v688
      %v690 = vlaneseq
      %v691 = vshrl.u32 %v690, 7
      %v692 = vsub.s32 0, %v691
      %v693 = vrot.slane %v676, %v692
      %v694 = vlaneseq
      %v695 = vshrl.u32 %v694, 7
      %v696 = vsub.s32 0, %v695
      %v697 = vrot.slane %v677, %v696
      %v702 = vadd.f32 %v660, %v685
      %v703 = vadd.f32 %v663, %v689
      %v704 = vadd.f32 %v668, %v693
      %v705 = vadd.f32 %v671, %v697
      %v706 = vpack.c.bf16 %v703, %v702
      %v707 = vpack.c.bf16 %v705, %v704
      %v708 = vld [vmem:[%s4] sm:$0xf]
      %v709 = vld [vmem:[%s4 + $0x4] sm:$0xf]
      %v710 = vld [vmem:[%s4 + $0x8] sm:$0xf]
      %v711 = vld [vmem:[%s4 + $0xc] sm:$0xf]
      %v712 = vld [vmem:[%s5] sm:$0x1]
      %v714 = vlaneseq
      %v715 = vshrl.u32 %v714, 7
      %v716 = vsub.s32 0, %v715
      %v717 = vrot.slane %v712, %v716
      %v723 = vunpack.c.l.b16 %v708
      %v724 = vunpack.c.l.b16 %v709
      %v725 = vunpack.c.l.b16 %v710
      %v726 = vunpack.c.l.b16 %v711
      %v727 = vpack.c.b16 %v724, %v723
      %v728 = vpack.c.b16 %v726, %v725
      %vm731 = vcmask 261120
      %v733 = vsel %vm731, %v706, 0
      %v736 = vsel %vm731, %v707, 0
      %738 = vmatprep.subr.bf16.mxu0 0
      %739 = vmatpush1.bf16.msra.mxu0 %v727
      %740 = vmatprep.subr.bf16.mxu0 0
      %741 = vmatpush1.bf16.msra.mxu0 %v728
      %742 = vmatprep.subr.bf16.mxu0 0
      %743 = vmatpush1.bf16.msra.mxu0 0
      %744 = vmatprep.subr.bf16.mxu0 0
      %745 = vmatpush1.bf16.msra.mxu0 0
      %746 = vmatprep.subr.bf16.mxu0 0
      %747 = vmatpush1.bf16.msra.mxu0 0
      %748 = vmatprep.subr.bf16.mxu0 0
      %749 = vmatpush1.bf16.msra.mxu0 0
      %750 = vmatprep.subr.bf16.mxu0 0
      %751 = vmatpush1.bf16.msra.mxu0 0
      %752 = vmatprep.subr.bf16.mxu0 0
      %753 = vmatpush1.bf16.msra.mxu0 0
      %754 = vmatprep.subr.bf16.mxu0 0
      %755 = vmatpush1.bf16.msra.mxu0 0
      %756 = vmatprep.subr.bf16.mxu0 0
      %757 = vmatpush1.bf16.msra.mxu0 0
      %758 = vmatprep.subr.bf16.mxu0 0
      %759 = vmatpush1.bf16.msra.mxu0 0
      %760 = vmatprep.subr.bf16.mxu0 0
      %761 = vmatpush1.bf16.msra.mxu0 0
      %762 = vmatprep.subr.bf16.mxu0 0
      %763 = vmatpush1.bf16.msra.mxu0 0
      %764 = vmatprep.subr.bf16.mxu0 0
      %765 = vmatpush1.bf16.msra.mxu0 0
      %766 = vmatprep.subr.bf16.mxu0 0
      %767 = vmatpush1.bf16.msra.mxu0 0
      %768 = vmatprep.subr.bf16.mxu0 0
      %769 = vmatpush1.bf16.msra.mxu0 0
      %770 = vmatprep.mubr.bf16.mxu0 0
      %771 = vmatmul.mubr.bf16.gmra.mrb[0].mxu0 %v733
      %v772 = vpop.f32.mrb[0].mxu0
      %v773 = vadd.f32 %v717, %v772
      %v774 = vpop.f32.mrb[0].mxu0
      %v775 = vpop.f32.mrb[0].mxu0
      %v776 = vadd.f32 %v717, %v775
      %v777 = vpop.f32.mrb[0].mxu0
      %778 = vmatprep.mubr.bf16.mxu0 0
      %779 = vmatmul.mubr.bf16.gmra.mrb[0].mxu0 %v736
      %v780 = vpop.f32.mrb[0].mxu0
      %v781 = vadd.f32 %v717, %v780
      %v782 = vpop.f32.mrb[0].mxu0
      %v783 = vpop.f32.mrb[0].mxu0
      %v784 = vadd.f32 %v717, %v783
      %v785 = vpop.f32.mrb[0].mxu0
      %786 = vdwg.mxu0
      %v787 = vpack.c.bf16 %v776, %v773
      %v788 = vpack.c.bf16 %v784, %v781
      %790 = vrot.lane.b32.xlu0 %v787, 96
      %v791 = vpop.permute.xlu0 %790
      %vm792 = vcmask 64512
      %v794 = vsel %vm792, %v787, 0
      %v797 = vsel %vm792, %v791, 0
      %799 = vmatprep.subr.bf16.mxu0 0
      %800 = vmatpush1.bf16.xpose.msra.mxu0 %v797
      %801 = vmatprep.subr.bf16.mxu0 0
      %802 = vmatpush1.bf16.xpose.msra.mxu0 0
      %803 = vmatprep.subr.bf16.mxu0 0
      %804 = vmatpush1.bf16.xpose.msra.mxu0 0
      %805 = vmatprep.subr.bf16.mxu0 0
      %806 = vmatpush1.bf16.xpose.msra.mxu0 0
      %807 = vmatprep.subr.bf16.mxu0 0
      %808 = vmatpush1.bf16.xpose.msra.mxu0 0
      %809 = vmatprep.subr.bf16.mxu0 0
      %810 = vmatpush1.bf16.xpose.msra.mxu0 0
      %811 = vmatprep.subr.bf16.mxu0 0
      %812 = vmatpush1.bf16.xpose.msra.mxu0 0
      %813 = vmatprep.subr.bf16.mxu0 0
      %814 = vmatpush1.bf16.xpose.msra.mxu0 0
      %815 = vmatprep.subr.bf16.mxu0 0
      %816 = vmatpush1.bf16.xpose.msra.mxu0 0
      %817 = vmatprep.subr.bf16.mxu0 0
      %818 = vmatpush1.bf16.xpose.msra.mxu0 0
      %819 = vmatprep.subr.bf16.mxu0 0
      %820 = vmatpush1.bf16.xpose.msra.mxu0 0
      %821 = vmatprep.subr.bf16.mxu0 0
      %822 = vmatpush1.bf16.xpose.msra.mxu0 0
      %823 = vmatprep.subr.bf16.mxu0 0
      %824 = vmatpush1.bf16.xpose.msra.mxu0 0
      %825 = vmatprep.subr.bf16.mxu0 0
      %826 = vmatpush1.bf16.xpose.msra.mxu0 0
      %827 = vmatprep.subr.bf16.mxu0 0
      %828 = vmatpush1.bf16.xpose.msra.mxu0 0
      %829 = vmatprep.subr.bf16.mxu0 0
      %830 = vmatpush1.bf16.xpose.msra.mxu0 0
      %831 = vmatprep.mubr.bf16.mxu0 0
      %832 = vmatmul.mubr.bf16.gmra.mrb[0].mxu0 %v794
      %v833 = vpop.f32.mrb[0].mxu0
      %v834 = vadd.f32 0.0, %v833
      %v835 = vpop.f32.mrb[0].mxu0
      %v836 = vpop.f32.mrb[0].mxu0
      %v837 = vpop.f32.mrb[0].mxu0
      %838 = vdwg.mxu0
      %v839 = vsel %vm792, %v834, -inf
      %840 = vmax.xlane.f32.xlu0 %v839
      %v841 = vpop.xlane.xlu0 %840
      %v842 = vsub.f32 %v834, %v841
      %v843 = vmul.f32 %v842, 1.442695
      %v844 = vpow.pop %v843
      %v845 = vsel %vm792, %v844, 0.0
      %846 = vadd.xlane.f32.xlu0 %v845
      %v847 = vpop.xlane.xlu0 %846
      %v848 = vrcp.pop %v847
      %v849 = vmul.f32 %v844, %v848
      %v850 = vpack.c.bf16 %v849, %v849
      %851 = vrot.lane.b32.xlu0 %v787, 64
      %v852 = vpop.permute.xlu0 %851
      %v854 = vsel %vm792, %v850, 0
      %vm856 = vcmask 1043456
      %v858 = vsel %vm856, %v852, 0
      %860 = vmatprep.subr.bf16.mxu0 0
      %861 = vmatpush1.bf16.msra.mxu0 %v858
      %862 = vmatprep.subr.bf16.mxu0 0
      %863 = vmatpush1.bf16.msra.mxu0 0
      %864 = vmatprep.subr.bf16.mxu0 0
      %865 = vmatpush1.bf16.msra.mxu0 0
      %866 = vmatprep.subr.bf16.mxu0 0
      %867 = vmatpush1.bf16.msra.mxu0 0
      %868 = vmatprep.subr.bf16.mxu0 0
      %869 = vmatpush1.bf16.msra.mxu0 0
      %870 = vmatprep.subr.bf16.mxu0 0
      %871 = vmatpush1.bf16.msra.mxu0 0
      %872 = vmatprep.subr.bf16.mxu0 0
      %873 = vmatpush1.bf16.msra.mxu0 0
      %874 = vmatprep.subr.bf16.mxu0 0
      %875 = vmatpush1.bf16.msra.mxu0 0
      %876 = vmatprep.subr.bf16.mxu0 0
      %877 = vmatpush1.bf16.msra.mxu0 0
      %878 = vmatprep.subr.bf16.mxu0 0
      %879 = vmatpush1.bf16.msra.mxu0 0
      %880 = vmatprep.subr.bf16.mxu0 0
      %881 = vmatpush1.bf16.msra.mxu0 0
      %882 = vmatprep.subr.bf16.mxu0 0
      %883 = vmatpush1.bf16.msra.mxu0 0
      %884 = vmatprep.subr.bf16.mxu0 0
      %885 = vmatpush1.bf16.msra.mxu0 0
      %886 = vmatprep.subr.bf16.mxu0 0
      %887 = vmatpush1.bf16.msra.mxu0 0
      %888 = vmatprep.subr.bf16.mxu0 0
      %889 = vmatpush1.bf16.msra.mxu0 0
      %890 = vmatprep.subr.bf16.mxu0 0
      %891 = vmatpush1.bf16.msra.mxu0 0
      %892 = vmatprep.mubr.bf16.mxu0 0
      %893 = vmatmul.mubr.bf16.gmra.mrb[0].mxu0 %v854
      %v894 = vpop.f32.mrb[0].mxu0
      %v895 = vadd.f32 0.0, %v894
      %v896 = vpop.f32.mrb[0].mxu0
      %v897 = vpop.f32.mrb[0].mxu0
      %v898 = vpop.f32.mrb[0].mxu0
      %899 = vdwg.mxu0
      %900 = vst.msk [vmem:[#allocation2] sm:$0xff] %vm792, %v895
      %901 = vrot.lane.b32.xlu0 %v787, 120
      %v902 = vpop.permute.xlu0 %901
      %903 = vrot.lane.b32.xlu0 %v787, 88
      %v904 = vpop.permute.xlu0 %903
      %v906 = vsel %vm792, %v902, 0
      %v909 = vsel %vm792, %v904, 0
      %911 = vmatprep.subr.bf16.mxu0 0
      %912 = vmatpush1.bf16.xpose.msra.mxu0 %v909
      %913 = vmatprep.subr.bf16.mxu0 0
      %914 = vmatpush1.bf16.xpose.msra.mxu0 0
      %915 = vmatprep.subr.bf16.mxu0 0
      %916 = vmatpush1.bf16.xpose.msra.mxu0 0
      %917 = vmatprep.subr.bf16.mxu0 0
      %918 = vmatpush1.bf16.xpose.msra.mxu0 0
      %919 = vmatprep.subr.bf16.mxu0 0
      %920 = vmatpush1.bf16.xpose.msra.mxu0 0
      %921 = vmatprep.subr.bf16.mxu0 0
      %922 = vmatpush1.bf16.xpose.msra.mxu0 0
      %923 = vmatprep.subr.bf16.mxu0 0
      %924 = vmatpush1.bf16.xpose.msra.mxu0 0
      %925 = vmatprep.subr.bf16.mxu0 0
      %926 = vmatpush1.bf16.xpose.msra.mxu0 0
      %927 = vmatprep.subr.bf16.mxu0 0
      %928 = vmatpush1.bf16.xpose.msra.mxu0 0
      %929 = vmatprep.subr.bf16.mxu0 0
      %930 = vmatpush1.bf16.xpose.msra.mxu0 0
      %931 = vmatprep.subr.bf16.mxu0 0
      %932 = vmatpush1.bf16.xpose.msra.mxu0 0
      %933 = vmatprep.subr.bf16.mxu0 0
      %934 = vmatpush1.bf16.xpose.msra.mxu0 0
      %935 = vmatprep.subr.bf16.mxu0 0
      %936 = vmatpush1.bf16.xpose.msra.mxu0 0
      %937 = vmatprep.subr.bf16.mxu0 0
      %938 = vmatpush1.bf16.xpose.msra.mxu0 0
      %939 = vmatprep.subr.bf16.mxu0 0
      %940 = vmatpush1.bf16.xpose.msra.mxu0 0
      %941 = vmatprep.subr.bf16.mxu0 0
      %942 = vmatpush1.bf16.xpose.msra.mxu0 0
      %943 = vmatprep.mubr.bf16.mxu0 0
      %944 = vmatmul.mubr.bf16.gmra.mrb[0].mxu0 %v906
      %v945 = vpop.f32.mrb[0].mxu0
      %v946 = vadd.f32 0.0, %v945
      %v947 = vpop.f32.mrb[0].mxu0
      %v948 = vpop.f32.mrb[0].mxu0
      %v949 = vpop.f32.mrb[0].mxu0
      %950 = vdwg.mxu0
      %v951 = vsel %vm792, %v946, -inf
      %952 = vmax.xlane.f32.xlu0 %v951
      %v953 = vpop.xlane.xlu0 %952
      %v954 = vsub.f32 %v946, %v953
      %v955 = vmul.f32 %v954, 1.442695
      %v956 = vpow.pop %v955
      %v957 = vsel %vm792, %v956, 0.0
      %958 = vadd.xlane.f32.xlu0 %v957
      %v959 = vpop.xlane.xlu0 %958
      %v960 = vrcp.pop %v959
      %v961 = vmul.f32 %v956, %v960
      %v962 = vpack.c.bf16 %v961, %v961
      %963 = vrot.lane.b32.xlu0 %v787, 56
      %v964 = vpop.permute.xlu0 %963
      %v966 = vsel %vm792, %v962, 0
      %v969 = vsel %vm856, %v964, 0
      %971 = vmatprep.subr.bf16.mxu0 0
      %972 = vmatpush1.bf16.msra.mxu0 %v969
      %973 = vmatprep.subr.bf16.mxu0 0
      %974 = vmatpush1.bf16.msra.mxu0 0
      %975 = vmatprep.subr.bf16.mxu0 0
      %976 = vmatpush1.bf16.msra.mxu0 0
      %977 = vmatprep.subr.bf16.mxu0 0
      %978 = vmatpush1.bf16.msra.mxu0 0
      %979 = vmatprep.subr.bf16.mxu0 0
      %980 = vmatpush1.bf16.msra.mxu0 0
      %981 = vmatprep.subr.bf16.mxu0 0
      %982 = vmatpush1.bf16.msra.mxu0 0
      %983 = vmatprep.subr.bf16.mxu0 0
      %984 = vmatpush1.bf16.msra.mxu0 0
      %985 = vmatprep.subr.bf16.mxu0 0
      %986 = vmatpush1.bf16.msra.mxu0 0
      %987 = vmatprep.subr.bf16.mxu0 0
      %988 = vmatpush1.bf16.msra.mxu0 0
      %989 = vmatprep.subr.bf16.mxu0 0
      %990 = vmatpush1.bf16.msra.mxu0 0
      %991 = vmatprep.subr.bf16.mxu0 0
      %992 = vmatpush1.bf16.msra.mxu0 0
      %993 = vmatprep.subr.bf16.mxu0 0
      %994 = vmatpush1.bf16.msra.mxu0 0
      %995 = vmatprep.subr.bf16.mxu0 0
      %996 = vmatpush1.bf16.msra.mxu0 0
      %997 = vmatprep.subr.bf16.mxu0 0
      %998 = vmatpush1.bf16.msra.mxu0 0
      %999 = vmatprep.subr.bf16.mxu0 0
      %1000 = vmatpush1.bf16.msra.mxu0 0
      %1001 = vmatprep.subr.bf16.mxu0 0
      %1002 = vmatpush1.bf16.msra.mxu0 0
      %1003 = vmatprep.mubr.bf16.mxu0 0
      %1004 = vmatmul.mubr.bf16.gmra.mrb[0].mxu0 %v966
      %v1005 = vpop.f32.mrb[0].mxu0
      %v1006 = vadd.f32 0.0, %v1005
      %v1007 = vpop.f32.mrb[0].mxu0
      %v1008 = vpop.f32.mrb[0].mxu0
      %v1009 = vpop.f32.mrb[0].mxu0
      %1010 = vdwg.mxu0
      %1012 = vrot.lane.b32.xlu0 %v1006, 8
      %v1013 = vpop.permute.xlu0 %1012
      %vm1015 = vcmask 130112
      %1016 = vst.msk [vmem:[#allocation2] sm:$0xff] %vm1015, %v1013
      %1017 = vrot.lane.b32.xlu0 %v787, 112
      %v1018 = vpop.permute.xlu0 %1017
      %1019 = vrot.lane.b32.xlu0 %v787, 80
      %v1020 = vpop.permute.xlu0 %1019
      %v1022 = vsel %vm792, %v1018, 0
      %v1025 = vsel %vm792, %v1020, 0
      %1027 = vmatprep.subr.bf16.mxu0 0
      %1028 = vmatpush1.bf16.xpose.msra.mxu0 %v1025
      %1029 = vmatprep.subr.bf16.mxu0 0
      %1030 = vmatpush1.bf16.xpose.msra.mxu0 0
      %1031 = vmatprep.subr.bf16.mxu0 0
      %1032 = vmatpush1.bf16.xpose.msra.mxu0 0
      %1033 = vmatprep.subr.bf16.mxu0 0
      %1034 = vmatpush1.bf16.xpose.msra.mxu0 0
      %1035 = vmatprep.subr.bf16.mxu0 0
      %1036 = vmatpush1.bf16.xpose.msra.mxu0 0
      %1037 = vmatprep.subr.bf16.mxu0 0
      %1038 = vmatpush1.bf16.xpose.msra.mxu0 0
      %1039 = vmatprep.subr.bf16.mxu0 0
      %1040 = vmatpush1.bf16.xpose.msra.mxu0 0
      %1041 = vmatprep.subr.bf16.mxu0 0
      %1042 = vmatpush1.bf16.xpose.msra.mxu0 0
      %1043 = vmatprep.subr.bf16.mxu0 0
      %1044 = vmatpush1.bf16.xpose.msra.mxu0 0
      %1045 = vmatprep.subr.bf16.mxu0 0
      %1046 = vmatpush1.bf16.xpose.msra.mxu0 0
      %1047 = vmatprep.subr.bf16.mxu0 0
      %1048 = vmatpush1.bf16.xpose.msra.mxu0 0
      %1049 = vmatprep.subr.bf16.mxu0 0
      %1050 = vmatpush1.bf16.xpose.msra.mxu0 0
      %1051 = vmatprep.subr.bf16.mxu0 0
      %1052 = vmatpush1.bf16.xpose.msra.mxu0 0
      %1053 = vmatprep.subr.bf16.mxu0 0
      %1054 = vmatpush1.bf16.xpose.msra.mxu0 0
      %1055 = vmatprep.subr.bf16.mxu0 0
      %1056 = vmatpush1.bf16.xpose.msra.mxu0 0
      %1057 = vmatprep.subr.bf16.mxu0 0
      %1058 = vmatpush1.bf16.xpose.msra.mxu0 0
      %1059 = vmatprep.mubr.bf16.mxu0 0
      %1060 = vmatmul.mubr.bf16.gmra.mrb[0].mxu0 %v1022
      %v1061 = vpop.f32.mrb[0].mxu0
      %v1062 = vadd.f32 0.0, %v1061
      %v1063 = vpop.f32.mrb[0].mxu0
      %v1064 = vpop.f32.mrb[0].mxu0
      %v1065 = vpop.f32.mrb[0].mxu0
      %1066 = vdwg.mxu0
      %v1067 = vsel %vm792, %v1062, -inf
      %1068 = vmax.xlane.f32.xlu0 %v1067
      %v1069 = vpop.xlane.xlu0 %1068
      %v1070 = vsub.f32 %v1062, %v1069
      %v1071 = vmul.f32 %v1070, 1.442695
      %v1072 = vpow.pop %v1071
      %v1073 = vsel %vm792, %v1072, 0.0
      %1074 = vadd.xlane.f32.xlu0 %v1073
      %v1075 = vpop.xlane.xlu0 %1074
      %v1076 = vrcp.pop %v1075
      %v1077 = vmul.f32 %v1072, %v1076
      %v1078 = vpack.c.bf16 %v1077, %v1077
      %1079 = vrot.lane.b32.xlu0 %v787, 48
      %v1080 = vpop.permute.xlu0 %1079
      %v1082 = vsel %vm792, %v1078, 0
      %v1085 = vsel %vm856, %v1080, 0
      %1087 = vmatprep.subr.bf16.mxu0 0
      %1088 = vmatpush1.bf16.msra.mxu0 %v1085
      %1089 = vmatprep.subr.bf16.mxu0 0
      %1090 = vmatpush1.bf16.msra.mxu0 0
      %1091 = vmatprep.subr.bf16.mxu0 0
      %1092 = vmatpush1.bf16.msra.mxu0 0
      %1093 = vmatprep.subr.bf16.mxu0 0
      %1094 = vmatpush1.bf16.msra.mxu0 0
      %1095 = vmatprep.subr.bf16.mxu0 0
      %1096 = vmatpush1.bf16.msra.mxu0 0
      %1097 = vmatprep.subr.bf16.mxu0 0
      %1098 = vmatpush1.bf16.msra.mxu0 0
      %1099 = vmatprep.subr.bf16.mxu0 0
      %1100 = vmatpush1.bf16.msra.mxu0 0
      %1101 = vmatprep.subr.bf16.mxu0 0
      %1102 = vmatpush1.bf16.msra.mxu0 0
      %1103 = vmatprep.subr.bf16.mxu0 0
      %1104 = vmatpush1.bf16.msra.mxu0 0
      %1105 = vmatprep.subr.bf16.mxu0 0
      %1106 = vmatpush1.bf16.msra.mxu0 0
      %1107 = vmatprep.subr.bf16.mxu0 0
      %1108 = vmatpush1.bf16.msra.mxu0 0
      %1109 = vmatprep.subr.bf16.mxu0 0
      %1110 = vmatpush1.bf16.msra.mxu0 0
      %1111 = vmatprep.subr.bf16.mxu0 0
      %1112 = vmatpush1.bf16.msra.mxu0 0
      %1113 = vmatprep.subr.bf16.mxu0 0
      %1114 = vmatpush1.bf16.msra.mxu0 0
      %1115 = vmatprep.subr.bf16.mxu0 0
      %1116 = vmatpush1.bf16.msra.mxu0 0
      %1117 = vmatprep.subr.bf16.mxu0 0
      %1118 = vmatpush1.bf16.msra.mxu0 0
      %1119 = vmatprep.mubr.bf16.mxu0 0
      %1120 = vmatmul.mubr.bf16.gmra.mrb[0].mxu0 %v1082
      %v1121 = vpop.f32.mrb[0].mxu0
      %v1122 = vadd.f32 0.0, %v1121
      %v1123 = vpop.f32.mrb[0].mxu0
      %v1124 = vpop.f32.mrb[0].mxu0
      %v1125 = vpop.f32.mrb[0].mxu0
      %1126 = vdwg.mxu0
      %1128 = vrot.lane.b32.xlu0 %v1122, 16
      %v1129 = vpop.permute.xlu0 %1128
      %vm1131 = vcmask 195712
      %1132 = vst.msk [vmem:[#allocation2] sm:$0xff] %vm1131, %v1129
      %1133 = vrot.lane.b32.xlu0 %v787, 104
      %v1134 = vpop.permute.xlu0 %1133
      %1135 = vrot.lane.b32.xlu0 %v787, 72
      %v1136 = vpop.permute.xlu0 %1135
      %v1138 = vsel %vm792, %v1134, 0
      %v1141 = vsel %vm792, %v1136, 0
      %1143 = vmatprep.subr.bf16.mxu0 0
      %1144 = vmatpush1.bf16.xpose.msra.mxu0 %v1141
      %1145 = vmatprep.subr.bf16.mxu0 0
      %1146 = vmatpush1.bf16.xpose.msra.mxu0 0
      %1147 = vmatprep.subr.bf16.mxu0 0
      %1148 = vmatpush1.bf16.xpose.msra.mxu0 0
      %1149 = vmatprep.subr.bf16.mxu0 0
      %1150 = vmatpush1.bf16.xpose.msra.mxu0 0
      %1151 = vmatprep.subr.bf16.mxu0 0
      %1152 = vmatpush1.bf16.xpose.msra.mxu0 0
      %1153 = vmatprep.subr.bf16.mxu0 0
      %1154 = vmatpush1.bf16.xpose.msra.mxu0 0
      %1155 = vmatprep.subr.bf16.mxu0 0
      %1156 = vmatpush1.bf16.xpose.msra.mxu0 0
      %1157 = vmatprep.subr.bf16.mxu0 0
      %1158 = vmatpush1.bf16.xpose.msra.mxu0 0
      %1159 = vmatprep.subr.bf16.mxu0 0
      %1160 = vmatpush1.bf16.xpose.msra.mxu0 0
      %1161 = vmatprep.subr.bf16.mxu0 0
      %1162 = vmatpush1.bf16.xpose.msra.mxu0 0
      %1163 = vmatprep.subr.bf16.mxu0 0
      %1164 = vmatpush1.bf16.xpose.msra.mxu0 0
      %1165 = vmatprep.subr.bf16.mxu0 0
      %1166 = vmatpush1.bf16.xpose.msra.mxu0 0
      %1167 = vmatprep.subr.bf16.mxu0 0
      %1168 = vmatpush1.bf16.xpose.msra.mxu0 0
      %1169 = vmatprep.subr.bf16.mxu0 0
      %1170 = vmatpush1.bf16.xpose.msra.mxu0 0
      %1171 = vmatprep.subr.bf16.mxu0 0
      %1172 = vmatpush1.bf16.xpose.msra.mxu0 0
      %1173 = vmatprep.subr.bf16.mxu0 0
      %1174 = vmatpush1.bf16.xpose.msra.mxu0 0
      %1175 = vmatprep.mubr.bf16.mxu0 0
      %1176 = vmatmul.mubr.bf16.gmra.mrb[0].mxu0 %v1138
      %v1177 = vpop.f32.mrb[0].mxu0
      %v1178 = vadd.f32 0.0, %v1177
      %v1179 = vpop.f32.mrb[0].mxu0
      %v1180 = vpop.f32.mrb[0].mxu0
      %v1181 = vpop.f32.mrb[0].mxu0
      %1182 = vdwg.mxu0
      %v1183 = vsel %vm792, %v1178, -inf
      %1184 = vmax.xlane.f32.xlu0 %v1183
      %v1185 = vpop.xlane.xlu0 %1184
      %v1186 = vsub.f32 %v1178, %v1185
      %v1187 = vmul.f32 %v1186, 1.442695
      %v1188 = vpow.pop %v1187
      %v1189 = vsel %vm792, %v1188, 0.0
      %1190 = vadd.xlane.f32.xlu0 %v1189
      %v1191 = vpop.xlane.xlu0 %1190
      %v1192 = vrcp.pop %v1191
      %v1193 = vmul.f32 %v1188, %v1192
      %v1194 = vpack.c.bf16 %v1193, %v1193
      %1195 = vrot.lane.b32.xlu0 %v787, 40
      %v1196 = vpop.permute.xlu0 %1195
      %v1198 = vsel %vm792, %v1194, 0
      %v1201 = vsel %vm856, %v1196, 0
      %1203 = vmatprep.subr.bf16.mxu0 0
      %1204 = vmatpush1.bf16.msra.mxu0 %v1201
      %1205 = vmatprep.subr.bf16.mxu0 0
      %1206 = vmatpush1.bf16.msra.mxu0 0
      %1207 = vmatprep.subr.bf16.mxu0 0
      %1208 = vmatpush1.bf16.msra.mxu0 0
      %1209 = vmatprep.subr.bf16.mxu0 0
      %1210 = vmatpush1.bf16.msra.mxu0 0
      %1211 = vmatprep.subr.bf16.mxu0 0
      %1212 = vmatpush1.bf16.msra.mxu0 0
      %1213 = vmatprep.subr.bf16.mxu0 0
      %1214 = vmatpush1.bf16.msra.mxu0 0
      %1215 = vmatprep.subr.bf16.mxu0 0
      %1216 = vmatpush1.bf16.msra.mxu0 0
      %1217 = vmatprep.subr.bf16.mxu0 0
      %1218 = vmatpush1.bf16.msra.mxu0 0
      %1219 = vmatprep.subr.bf16.mxu0 0
      %1220 = vmatpush1.bf16.msra.mxu0 0
      %1221 = vmatprep.subr.bf16.mxu0 0
      %1222 = vmatpush1.bf16.msra.mxu0 0
      %1223 = vmatprep.subr.bf16.mxu0 0
      %1224 = vmatpush1.bf16.msra.mxu0 0
      %1225 = vmatprep.subr.bf16.mxu0 0
      %1226 = vmatpush1.bf16.msra.mxu0 0
      %1227 = vmatprep.subr.bf16.mxu0 0
      %1228 = vmatpush1.bf16.msra.mxu0 0
      %1229 = vmatprep.subr.bf16.mxu0 0
      %1230 = vmatpush1.bf16.msra.mxu0 0
      %1231 = vmatprep.subr.bf16.mxu0 0
      %1232 = vmatpush1.bf16.msra.mxu0 0
      %1233 = vmatprep.subr.bf16.mxu0 0
      %1234 = vmatpush1.bf16.msra.mxu0 0
      %1235 = vmatprep.mubr.bf16.mxu0 0
      %1236 = vmatmul.mubr.bf16.gmra.mrb[0].mxu0 %v1198
      %v1237 = vpop.f32.mrb[0].mxu0
      %v1238 = vadd.f32 0.0, %v1237
      %v1239 = vpop.f32.mrb[0].mxu0
      %v1240 = vpop.f32.mrb[0].mxu0
      %v1241 = vpop.f32.mrb[0].mxu0
      %1242 = vdwg.mxu0
      %1244 = vrot.lane.b32.xlu0 %v1238, 24
      %v1245 = vpop.permute.xlu0 %1244
      %vm1247 = vcmask 261312
      %1248 = vst.msk [vmem:[#allocation2] sm:$0xff] %vm1247, %v1245
      %v1249 = vrot.slane %v787, 4
      %1250 = vrot.lane.b32.xlu0 %v1249, 96
      %v1251 = vpop.permute.xlu0 %1250
      %v1253 = vsel %vm792, %v1249, 0
      %v1256 = vsel %vm792, %v1251, 0
      %1258 = vmatprep.subr.bf16.mxu0 0
      %1259 = vmatpush1.bf16.xpose.msra.mxu0 %v1256
      %1260 = vmatprep.subr.bf16.mxu0 0
      %1261 = vmatpush1.bf16.xpose.msra.mxu0 0
      %1262 = vmatprep.subr.bf16.mxu0 0
      %1263 = vmatpush1.bf16.xpose.msra.mxu0 0
      %1264 = vmatprep.subr.bf16.mxu0 0
      %1265 = vmatpush1.bf16.xpose.msra.mxu0 0
      %1266 = vmatprep.subr.bf16.mxu0 0
      %1267 = vmatpush1.bf16.xpose.msra.mxu0 0
      %1268 = vmatprep.subr.bf16.mxu0 0
      %1269 = vmatpush1.bf16.xpose.msra.mxu0 0
      %1270 = vmatprep.subr.bf16.mxu0 0
      %1271 = vmatpush1.bf16.xpose.msra.mxu0 0
      %1272 = vmatprep.subr.bf16.mxu0 0
      %1273 = vmatpush1.bf16.xpose.msra.mxu0 0
      %1274 = vmatprep.subr.bf16.mxu0 0
      %1275 = vmatpush1.bf16.xpose.msra.mxu0 0
      %1276 = vmatprep.subr.bf16.mxu0 0
      %1277 = vmatpush1.bf16.xpose.msra.mxu0 0
      %1278 = vmatprep.subr.bf16.mxu0 0
      %1279 = vmatpush1.bf16.xpose.msra.mxu0 0
      %1280 = vmatprep.subr.bf16.mxu0 0
      %1281 = vmatpush1.bf16.xpose.msra.mxu0 0
      %1282 = vmatprep.subr.bf16.mxu0 0
      %1283 = vmatpush1.bf16.xpose.msra.mxu0 0
      %1284 = vmatprep.subr.bf16.mxu0 0
      %1285 = vmatpush1.bf16.xpose.msra.mxu0 0
      %1286 = vmatprep.subr.bf16.mxu0 0
      %1287 = vmatpush1.bf16.xpose.msra.mxu0 0
      %1288 = vmatprep.subr.bf16.mxu0 0
      %1289 = vmatpush1.bf16.xpose.msra.mxu0 0
      %1290 = vmatprep.mubr.bf16.mxu0 0
      %1291 = vmatmul.mubr.bf16.gmra.mrb[0].mxu0 %v1253
      %v1292 = vpop.f32.mrb[0].mxu0
      %v1293 = vadd.f32 0.0, %v1292
      %v1294 = vpop.f32.mrb[0].mxu0
      %v1295 = vpop.f32.mrb[0].mxu0
      %v1296 = vpop.f32.mrb[0].mxu0
      %1297 = vdwg.mxu0
      %v1298 = vsel %vm792, %v1293, -inf
      %1299 = vmax.xlane.f32.xlu0 %v1298
      %v1300 = vpop.xlane.xlu0 %1299
      %v1301 = vsub.f32 %v1293, %v1300
      %v1302 = vmul.f32 %v1301, 1.442695
      %v1303 = vpow.pop %v1302
      %v1304 = vsel %vm792, %v1303, 0.0
      %1305 = vadd.xlane.f32.xlu0 %v1304
      %v1306 = vpop.xlane.xlu0 %1305
      %v1307 = vrcp.pop %v1306
      %v1308 = vmul.f32 %v1303, %v1307
      %v1309 = vpack.c.bf16 %v1308, %v1308
      %1310 = vrot.lane.b32.xlu0 %v1249, 64
      %v1311 = vpop.permute.xlu0 %1310
      %v1313 = vsel %vm792, %v1309, 0
      %v1316 = vsel %vm856, %v1311, 0
      %1318 = vmatprep.subr.bf16.mxu0 0
      %1319 = vmatpush1.bf16.msra.mxu0 %v1316
      %1320 = vmatprep.subr.bf16.mxu0 0
      %1321 = vmatpush1.bf16.msra.mxu0 0
      %1322 = vmatprep.subr.bf16.mxu0 0
      %1323 = vmatpush1.bf16.msra.mxu0 0
      %1324 = vmatprep.subr.bf16.mxu0 0
      %1325 = vmatpush1.bf16.msra.mxu0 0
      %1326 = vmatprep.subr.bf16.mxu0 0
      %1327 = vmatpush1.bf16.msra.mxu0 0
      %1328 = vmatprep.subr.bf16.mxu0 0
      %1329 = vmatpush1.bf16.msra.mxu0 0
      %1330 = vmatprep.subr.bf16.mxu0 0
      %1331 = vmatpush1.bf16.msra.mxu0 0
      %1332 = vmatprep.subr.bf16.mxu0 0
      %1333 = vmatpush1.bf16.msra.mxu0 0
      %1334 = vmatprep.subr.bf16.mxu0 0
      %1335 = vmatpush1.bf16.msra.mxu0 0
      %1336 = vmatprep.subr.bf16.mxu0 0
      %1337 = vmatpush1.bf16.msra.mxu0 0
      %1338 = vmatprep.subr.bf16.mxu0 0
      %1339 = vmatpush1.bf16.msra.mxu0 0
      %1340 = vmatprep.subr.bf16.mxu0 0
      %1341 = vmatpush1.bf16.msra.mxu0 0
      %1342 = vmatprep.subr.bf16.mxu0 0
      %1343 = vmatpush1.bf16.msra.mxu0 0
      %1344 = vmatprep.subr.bf16.mxu0 0
      %1345 = vmatpush1.bf16.msra.mxu0 0
      %1346 = vmatprep.subr.bf16.mxu0 0
      %1347 = vmatpush1.bf16.msra.mxu0 0
      %1348 = vmatprep.subr.bf16.mxu0 0
      %1349 = vmatpush1.bf16.msra.mxu0 0
      %1350 = vmatprep.mubr.bf16.mxu0 0
      %1351 = vmatmul.mubr.bf16.gmra.mrb[0].mxu0 %v1313
      %v1352 = vpop.f32.mrb[0].mxu0
      %v1353 = vadd.f32 0.0, %v1352
      %v1354 = vpop.f32.mrb[0].mxu0
      %v1355 = vpop.f32.mrb[0].mxu0
      %v1356 = vpop.f32.mrb[0].mxu0
      %1357 = vdwg.mxu0
      %1358 = vst.msk [vmem:[#allocation2 + $0x8] sm:$0xff] %vm792, %v1353
      %1359 = vrot.lane.b32.xlu0 %v1249, 120
      %v1360 = vpop.permute.xlu0 %1359
      %1361 = vrot.lane.b32.xlu0 %v1249, 88
      %v1362 = vpop.permute.xlu0 %1361
      %v1364 = vsel %vm792, %v1360, 0
      %v1367 = vsel %vm792, %v1362, 0
      %1369 = vmatprep.subr.bf16.mxu0 0
      %1370 = vmatpush1.bf16.xpose.msra.mxu0 %v1367
      %1371 = vmatprep.subr.bf16.mxu0 0
      %1372 = vmatpush1.bf16.xpose.msra.mxu0 0
      %1373 = vmatprep.subr.bf16.mxu0 0
      %1374 = vmatpush1.bf16.xpose.msra.mxu0 0
      %1375 = vmatprep.subr.bf16.mxu0 0
      %1376 = vmatpush1.bf16.xpose.msra.mxu0 0
      %1377 = vmatprep.subr.bf16.mxu0 0
      %1378 = vmatpush1.bf16.xpose.msra.mxu0 0
      %1379 = vmatprep.subr.bf16.mxu0 0
      %1380 = vmatpush1.bf16.xpose.msra.mxu0 0
      %1381 = vmatprep.subr.bf16.mxu0 0
      %1382 = vmatpush1.bf16.xpose.msra.mxu0 0
      %1383 = vmatprep.subr.bf16.mxu0 0
      %1384 = vmatpush1.bf16.xpose.msra.mxu0 0
      %1385 = vmatprep.subr.bf16.mxu0 0
      %1386 = vmatpush1.bf16.xpose.msra.mxu0 0
      %1387 = vmatprep.subr.bf16.mxu0 0
      %1388 = vmatpush1.bf16.xpose.msra.mxu0 0
      %1389 = vmatprep.subr.bf16.mxu0 0
      %1390 = vmatpush1.bf16.xpose.msra.mxu0 0
      %1391 = vmatprep.subr.bf16.mxu0 0
      %1392 = vmatpush1.bf16.xpose.msra.mxu0 0
      %1393 = vmatprep.subr.bf16.mxu0 0
      %1394 = vmatpush1.bf16.xpose.msra.mxu0 0
      %1395 = vmatprep.subr.bf16.mxu0 0
      %1396 = vmatpush1.bf16.xpose.msra.mxu0 0
      %1397 = vmatprep.subr.bf16.mxu0 0
      %1398 = vmatpush1.bf16.xpose.msra.mxu0 0
      %1399 = vmatprep.subr.bf16.mxu0 0
      %1400 = vmatpush1.bf16.xpose.msra.mxu0 0
      %1401 = vmatprep.mubr.bf16.mxu0 0
      %1402 = vmatmul.mubr.bf16.gmra.mrb[0].mxu0 %v1364
      %v1403 = vpop.f32.mrb[0].mxu0
      %v1404 = vadd.f32 0.0, %v1403
      %v1405 = vpop.f32.mrb[0].mxu0
      %v1406 = vpop.f32.mrb[0].mxu0
      %v1407 = vpop.f32.mrb[0].mxu0
      %1408 = vdwg.mxu0
      %v1409 = vsel %vm792, %v1404, -inf
      %1410 = vmax.xlane.f32.xlu0 %v1409
      %v1411 = vpop.xlane.xlu0 %1410
      %v1412 = vsub.f32 %v1404, %v1411
      %v1413 = vmul.f32 %v1412, 1.442695
      %v1414 = vpow.pop %v1413
      %v1415 = vsel %vm792, %v1414, 0.0
      %1416 = vadd.xlane.f32.xlu0 %v1415
      %v1417 = vpop.xlane.xlu0 %1416
      %v1418 = vrcp.pop %v1417
      %v1419 = vmul.f32 %v1414, %v1418
      %v1420 = vpack.c.bf16 %v1419, %v1419
      %1421 = vrot.lane.b32.xlu0 %v1249, 56
      %v1422 = vpop.permute.xlu0 %1421
      %v1424 = vsel %vm792, %v1420, 0
      %v1427 = vsel %vm856, %v1422, 0
      %1429 = vmatprep.subr.bf16.mxu0 0
      %1430 = vmatpush1.bf16.msra.mxu0 %v1427
      %1431 = vmatprep.subr.bf16.mxu0 0
      %1432 = vmatpush1.bf16.msra.mxu0 0
      %1433 = vmatprep.subr.bf16.mxu0 0
      %1434 = vmatpush1.bf16.msra.mxu0 0
      %1435 = vmatprep.subr.bf16.mxu0 0
      %1436 = vmatpush1.bf16.msra.mxu0 0
      %1437 = vmatprep.subr.bf16.mxu0 0
      %1438 = vmatpush1.bf16.msra.mxu0 0
      %1439 = vmatprep.subr.bf16.mxu0 0
      %1440 = vmatpush1.bf16.msra.mxu0 0
      %1441 = vmatprep.subr.bf16.mxu0 0
      %1442 = vmatpush1.bf16.msra.mxu0 0
      %1443 = vmatprep.subr.bf16.mxu0 0
      %1444 = vmatpush1.bf16.msra.mxu0 0
      %1445 = vmatprep.subr.bf16.mxu0 0
      %1446 = vmatpush1.bf16.msra.mxu0 0
      %1447 = vmatprep.subr.bf16.mxu0 0
      %1448 = vmatpush1.bf16.msra.mxu0 0
      %1449 = vmatprep.subr.bf16.mxu0 0
      %1450 = vmatpush1.bf16.msra.mxu0 0
      %1451 = vmatprep.subr.bf16.mxu0 0
      %1452 = vmatpush1.bf16.msra.mxu0 0
      %1453 = vmatprep.subr.bf16.mxu0 0
      %1454 = vmatpush1.bf16.msra.mxu0 0
      %1455 = vmatprep.subr.bf16.mxu0 0
      %1456 = vmatpush1.bf16.msra.mxu0 0
      %1457 = vmatprep.subr.bf16.mxu0 0
      %1458 = vmatpush1.bf16.msra.mxu0 0
      %1459 = vmatprep.subr.bf16.mxu0 0
      %1460 = vmatpush1.bf16.msra.mxu0 0
      %1461 = vmatprep.mubr.bf16.mxu0 0
      %1462 = vmatmul.mubr.bf16.gmra.mrb[0].mxu0 %v1424
      %v1463 = vpop.f32.mrb[0].mxu0
      %v1464 = vadd.f32 0.0, %v1463
      %v1465 = vpop.f32.mrb[0].mxu0
      %v1466 = vpop.f32.mrb[0].mxu0
      %v1467 = vpop.f32.mrb[0].mxu0
      %1468 = vdwg.mxu0
      %1470 = vrot.lane.b32.xlu0 %v1464, 8
      %v1471 = vpop.permute.xlu0 %1470
      %1473 = vst.msk [vmem:[#allocation2 + $0x8] sm:$0xff] %vm1015, %v1471
      %1474 = vrot.lane.b32.xlu0 %v1249, 112
      %v1475 = vpop.permute.xlu0 %1474
      %1476 = vrot.lane.b32.xlu0 %v1249, 80
      %v1477 = vpop.permute.xlu0 %1476
      %v1479 = vsel %vm792, %v1475, 0
      %v1482 = vsel %vm792, %v1477, 0
      %1484 = vmatprep.subr.bf16.mxu0 0
      %1485 = vmatpush1.bf16.xpose.msra.mxu0 %v1482
      %1486 = vmatprep.subr.bf16.mxu0 0
      %1487 = vmatpush1.bf16.xpose.msra.mxu0 0
      %1488 = vmatprep.subr.bf16.mxu0 0
      %1489 = vmatpush1.bf16.xpose.msra.mxu0 0
      %1490 = vmatprep.subr.bf16.mxu0 0
      %1491 = vmatpush1.bf16.xpose.msra.mxu0 0
      %1492 = vmatprep.subr.bf16.mxu0 0
      %1493 = vmatpush1.bf16.xpose.msra.mxu0 0
      %1494 = vmatprep.subr.bf16.mxu0 0
      %1495 = vmatpush1.bf16.xpose.msra.mxu0 0
      %1496 = vmatprep.subr.bf16.mxu0 0
      %1497 = vmatpush1.bf16.xpose.msra.mxu0 0
      %1498 = vmatprep.subr.bf16.mxu0 0
      %1499 = vmatpush1.bf16.xpose.msra.mxu0 0
      %1500 = vmatprep.subr.bf16.mxu0 0
      %1501 = vmatpush1.bf16.xpose.msra.mxu0 0
      %1502 = vmatprep.subr.bf16.mxu0 0
      %1503 = vmatpush1.bf16.xpose.msra.mxu0 0
      %1504 = vmatprep.subr.bf16.mxu0 0
      %1505 = vmatpush1.bf16.xpose.msra.mxu0 0
      %1506 = vmatprep.subr.bf16.mxu0 0
      %1507 = vmatpush1.bf16.xpose.msra.mxu0 0
      %1508 = vmatprep.subr.bf16.mxu0 0
      %1509 = vmatpush1.bf16.xpose.msra.mxu0 0
      %1510 = vmatprep.subr.bf16.mxu0 0
      %1511 = vmatpush1.bf16.xpose.msra.mxu0 0
      %1512 = vmatprep.subr.bf16.mxu0 0
      %1513 = vmatpush1.bf16.xpose.msra.mxu0 0
      %1514 = vmatprep.subr.bf16.mxu0 0
      %1515 = vmatpush1.bf16.xpose.msra.mxu0 0
      %1516 = vmatprep.mubr.bf16.mxu0 0
      %1517 = vmatmul.mubr.bf16.gmra.mrb[0].mxu0 %v1479
      %v1518 = vpop.f32.mrb[0].mxu0
      %v1519 = vadd.f32 0.0, %v1518
      %v1520 = vpop.f32.mrb[0].mxu0
      %v1521 = vpop.f32.mrb[0].mxu0
      %v1522 = vpop.f32.mrb[0].mxu0
      %1523 = vdwg.mxu0
      %v1524 = vsel %vm792, %v1519, -inf
      %1525 = vmax.xlane.f32.xlu0 %v1524
      %v1526 = vpop.xlane.xlu0 %1525
      %v1527 = vsub.f32 %v1519, %v1526
      %v1528 = vmul.f32 %v1527, 1.442695
      %v1529 = vpow.pop %v1528
      %v1530 = vsel %vm792, %v1529, 0.0
      %1531 = vadd.xlane.f32.xlu0 %v1530
      %v1532 = vpop.xlane.xlu0 %1531
      %v1533 = vrcp.pop %v1532
      %v1534 = vmul.f32 %v1529, %v1533
      %v1535 = vpack.c.bf16 %v1534, %v1534
      %1536 = vrot.lane.b32.xlu0 %v1249, 48
      %v1537 = vpop.permute.xlu0 %1536
      %v1539 = vsel %vm792, %v1535, 0
      %v1542 = vsel %vm856, %v1537, 0
      %1544 = vmatprep.subr.bf16.mxu0 0
      %1545 = vmatpush1.bf16.msra.mxu0 %v1542
      %1546 = vmatprep.subr.bf16.mxu0 0
      %1547 = vmatpush1.bf16.msra.mxu0 0
      %1548 = vmatprep.subr.bf16.mxu0 0
      %1549 = vmatpush1.bf16.msra.mxu0 0
      %1550 = vmatprep.subr.bf16.mxu0 0
      %1551 = vmatpush1.bf16.msra.mxu0 0
      %1552 = vmatprep.subr.bf16.mxu0 0
      %1553 = vmatpush1.bf16.msra.mxu0 0
      %1554 = vmatprep.subr.bf16.mxu0 0
      %1555 = vmatpush1.bf16.msra.mxu0 0
      %1556 = vmatprep.subr.bf16.mxu0 0
      %1557 = vmatpush1.bf16.msra.mxu0 0
      %1558 = vmatprep.subr.bf16.mxu0 0
      %1559 = vmatpush1.bf16.msra.mxu0 0
      %1560 = vmatprep.subr.bf16.mxu0 0
      %1561 = vmatpush1.bf16.msra.mxu0 0
      %1562 = vmatprep.subr.bf16.mxu0 0
      %1563 = vmatpush1.bf16.msra.mxu0 0
      %1564 = vmatprep.subr.bf16.mxu0 0
      %1565 = vmatpush1.bf16.msra.mxu0 0
      %1566 = vmatprep.subr.bf16.mxu0 0
      %1567 = vmatpush1.bf16.msra.mxu0 0
      %1568 = vmatprep.subr.bf16.mxu0 0
      %1569 = vmatpush1.bf16.msra.mxu0 0
      %1570 = vmatprep.subr.bf16.mxu0 0
      %1571 = vmatpush1.bf16.msra.mxu0 0
      %1572 = vmatprep.subr.bf16.mxu0 0
      %1573 = vmatpush1.bf16.msra.mxu0 0
      %1574 = vmatprep.subr.bf16.mxu0 0
      %1575 = vmatpush1.bf16.msra.mxu0 0
      %1576 = vmatprep.mubr.bf16.mxu0 0
      %1577 = vmatmul.mubr.bf16.gmra.mrb[0].mxu0 %v1539
      %v1578 = vpop.f32.mrb[0].mxu0
      %v1579 = vadd.f32 0.0, %v1578
      %v1580 = vpop.f32.mrb[0].mxu0
      %v1581 = vpop.f32.mrb[0].mxu0
      %v1582 = vpop.f32.mrb[0].mxu0
      %1583 = vdwg.mxu0
      %1585 = vrot.lane.b32.xlu0 %v1579, 16
      %v1586 = vpop.permute.xlu0 %1585
      %1588 = vst.msk [vmem:[#allocation2 + $0x8] sm:$0xff] %vm1131, %v1586
      %1589 = vrot.lane.b32.xlu0 %v1249, 104
      %v1590 = vpop.permute.xlu0 %1589
      %1591 = vrot.lane.b32.xlu0 %v1249, 72
      %v1592 = vpop.permute.xlu0 %1591
      %v1594 = vsel %vm792, %v1590, 0
      %v1597 = vsel %vm792, %v1592, 0
      %1599 = vmatprep.subr.bf16.mxu0 0
      %1600 = vmatpush1.bf16.xpose.msra.mxu0 %v1597
      %1601 = vmatprep.subr.bf16.mxu0 0
      %1602 = vmatpush1.bf16.xpose.msra.mxu0 0
      %1603 = vmatprep.subr.bf16.mxu0 0
      %1604 = vmatpush1.bf16.xpose.msra.mxu0 0
      %1605 = vmatprep.subr.bf16.mxu0 0
      %1606 = vmatpush1.bf16.xpose.msra.mxu0 0
      %1607 = vmatprep.subr.bf16.mxu0 0
      %1608 = vmatpush1.bf16.xpose.msra.mxu0 0
      %1609 = vmatprep.subr.bf16.mxu0 0
      %1610 = vmatpush1.bf16.xpose.msra.mxu0 0
      %1611 = vmatprep.subr.bf16.mxu0 0
      %1612 = vmatpush1.bf16.xpose.msra.mxu0 0
      %1613 = vmatprep.subr.bf16.mxu0 0
      %1614 = vmatpush1.bf16.xpose.msra.mxu0 0
      %1615 = vmatprep.subr.bf16.mxu0 0
      %1616 = vmatpush1.bf16.xpose.msra.mxu0 0
      %1617 = vmatprep.subr.bf16.mxu0 0
      %1618 = vmatpush1.bf16.xpose.msra.mxu0 0
      %1619 = vmatprep.subr.bf16.mxu0 0
      %1620 = vmatpush1.bf16.xpose.msra.mxu0 0
      %1621 = vmatprep.subr.bf16.mxu0 0
      %1622 = vmatpush1.bf16.xpose.msra.mxu0 0
      %1623 = vmatprep.subr.bf16.mxu0 0
      %1624 = vmatpush1.bf16.xpose.msra.mxu0 0
      %1625 = vmatprep.subr.bf16.mxu0 0
      %1626 = vmatpush1.bf16.xpose.msra.mxu0 0
      %1627 = vmatprep.subr.bf16.mxu0 0
      %1628 = vmatpush1.bf16.xpose.msra.mxu0 0
      %1629 = vmatprep.subr.bf16.mxu0 0
      %1630 = vmatpush1.bf16.xpose.msra.mxu0 0
      %1631 = vmatprep.mubr.bf16.mxu0 0
      %1632 = vmatmul.mubr.bf16.gmra.mrb[0].mxu0 %v1594
      %v1633 = vpop.f32.mrb[0].mxu0
      %v1634 = vadd.f32 0.0, %v1633
      %v1635 = vpop.f32.mrb[0].mxu0
      %v1636 = vpop.f32.mrb[0].mxu0
      %v1637 = vpop.f32.mrb[0].mxu0
      %1638 = vdwg.mxu0
      %v1639 = vsel %vm792, %v1634, -inf
      %1640 = vmax.xlane.f32.xlu0 %v1639
      %v1641 = vpop.xlane.xlu0 %1640
      %v1642 = vsub.f32 %v1634, %v1641
      %v1643 = vmul.f32 %v1642, 1.442695
      %v1644 = vpow.pop %v1643
      %v1645 = vsel %vm792, %v1644, 0.0
      %1646 = vadd.xlane.f32.xlu0 %v1645
      %v1647 = vpop.xlane.xlu0 %1646
      %v1648 = vrcp.pop %v1647
      %v1649 = vmul.f32 %v1644, %v1648
      %v1650 = vpack.c.bf16 %v1649, %v1649
      %1651 = vrot.lane.b32.xlu0 %v1249, 40
      %v1652 = vpop.permute.xlu0 %1651
      %v1654 = vsel %vm792, %v1650, 0
      %v1657 = vsel %vm856, %v1652, 0
      %1659 = vmatprep.subr.bf16.mxu0 0
      %1660 = vmatpush1.bf16.msra.mxu0 %v1657
      %1661 = vmatprep.subr.bf16.mxu0 0
      %1662 = vmatpush1.bf16.msra.mxu0 0
      %1663 = vmatprep.subr.bf16.mxu0 0
      %1664 = vmatpush1.bf16.msra.mxu0 0
      %1665 = vmatprep.subr.bf16.mxu0 0
      %1666 = vmatpush1.bf16.msra.mxu0 0
      %1667 = vmatprep.subr.bf16.mxu0 0
      %1668 = vmatpush1.bf16.msra.mxu0 0
      %1669 = vmatprep.subr.bf16.mxu0 0
      %1670 = vmatpush1.bf16.msra.mxu0 0
      %1671 = vmatprep.subr.bf16.mxu0 0
      %1672 = vmatpush1.bf16.msra.mxu0 0
      %1673 = vmatprep.subr.bf16.mxu0 0
      %1674 = vmatpush1.bf16.msra.mxu0 0
      %1675 = vmatprep.subr.bf16.mxu0 0
      %1676 = vmatpush1.bf16.msra.mxu0 0
      %1677 = vmatprep.subr.bf16.mxu0 0
      %1678 = vmatpush1.bf16.msra.mxu0 0
      %1679 = vmatprep.subr.bf16.mxu0 0
      %1680 = vmatpush1.bf16.msra.mxu0 0
      %1681 = vmatprep.subr.bf16.mxu0 0
      %1682 = vmatpush1.bf16.msra.mxu0 0
      %1683 = vmatprep.subr.bf16.mxu0 0
      %1684 = vmatpush1.bf16.msra.mxu0 0
      %1685 = vmatprep.subr.bf16.mxu0 0
      %1686 = vmatpush1.bf16.msra.mxu0 0
      %1687 = vmatprep.subr.bf16.mxu0 0
      %1688 = vmatpush1.bf16.msra.mxu0 0
      %1689 = vmatprep.subr.bf16.mxu0 0
      %1690 = vmatpush1.bf16.msra.mxu0 0
      %1691 = vmatprep.mubr.bf16.mxu0 0
      %1692 = vmatmul.mubr.bf16.gmra.mrb[0].mxu0 %v1654
      %v1693 = vpop.f32.mrb[0].mxu0
      %v1694 = vadd.f32 0.0, %v1693
      %v1695 = vpop.f32.mrb[0].mxu0
      %v1696 = vpop.f32.mrb[0].mxu0
      %v1697 = vpop.f32.mrb[0].mxu0
      %1698 = vdwg.mxu0
      %1700 = vrot.lane.b32.xlu0 %v1694, 24
      %v1701 = vpop.permute.xlu0 %1700
      %1703 = vst.msk [vmem:[#allocation2 + $0x8] sm:$0xff] %vm1247, %v1701
      %1705 = vrot.lane.b32.xlu0 %v788, 96
      %v1706 = vpop.permute.xlu0 %1705
      %v1708 = vsel %vm792, %v788, 0
      %v1711 = vsel %vm792, %v1706, 0
      %1713 = vmatprep.subr.bf16.mxu0 0
      %1714 = vmatpush1.bf16.xpose.msra.mxu0 %v1711
      %1715 = vmatprep.subr.bf16.mxu0 0
      %1716 = vmatpush1.bf16.xpose.msra.mxu0 0
      %1717 = vmatprep.subr.bf16.mxu0 0
      %1718 = vmatpush1.bf16.xpose.msra.mxu0 0
      %1719 = vmatprep.subr.bf16.mxu0 0
      %1720 = vmatpush1.bf16.xpose.msra.mxu0 0
      %1721 = vmatprep.subr.bf16.mxu0 0
      %1722 = vmatpush1.bf16.xpose.msra.mxu0 0
      %1723 = vmatprep.subr.bf16.mxu0 0
      %1724 = vmatpush1.bf16.xpose.msra.mxu0 0
      %1725 = vmatprep.subr.bf16.mxu0 0
      %1726 = vmatpush1.bf16.xpose.msra.mxu0 0
      %1727 = vmatprep.subr.bf16.mxu0 0
      %1728 = vmatpush1.bf16.xpose.msra.mxu0 0
      %1729 = vmatprep.subr.bf16.mxu0 0
      %1730 = vmatpush1.bf16.xpose.msra.mxu0 0
      %1731 = vmatprep.subr.bf16.mxu0 0
      %1732 = vmatpush1.bf16.xpose.msra.mxu0 0
      %1733 = vmatprep.subr.bf16.mxu0 0
      %1734 = vmatpush1.bf16.xpose.msra.mxu0 0
      %1735 = vmatprep.subr.bf16.mxu0 0
      %1736 = vmatpush1.bf16.xpose.msra.mxu0 0
      %1737 = vmatprep.subr.bf16.mxu0 0
      %1738 = vmatpush1.bf16.xpose.msra.mxu0 0
      %1739 = vmatprep.subr.bf16.mxu0 0
      %1740 = vmatpush1.bf16.xpose.msra.mxu0 0
      %1741 = vmatprep.subr.bf16.mxu0 0
      %1742 = vmatpush1.bf16.xpose.msra.mxu0 0
      %1743 = vmatprep.subr.bf16.mxu0 0
      %1744 = vmatpush1.bf16.xpose.msra.mxu0 0
      %1745 = vmatprep.mubr.bf16.mxu0 0
      %1746 = vmatmul.mubr.bf16.gmra.mrb[0].mxu0 %v1708
      %v1747 = vpop.f32.mrb[0].mxu0
      %v1748 = vadd.f32 0.0, %v1747
      %v1749 = vpop.f32.mrb[0].mxu0
      %v1750 = vpop.f32.mrb[0].mxu0
      %v1751 = vpop.f32.mrb[0].mxu0
      %1752 = vdwg.mxu0
      %v1753 = vsel %vm792, %v1748, -inf
      %1754 = vmax.xlane.f32.xlu0 %v1753
      %v1755 = vpop.xlane.xlu0 %1754
      %v1756 = vsub.f32 %v1748, %v1755
      %v1757 = vmul.f32 %v1756, 1.442695
      %v1758 = vpow.pop %v1757
      %v1759 = vsel %vm792, %v1758, 0.0
      %1760 = vadd.xlane.f32.xlu0 %v1759
      %v1761 = vpop.xlane.xlu0 %1760
      %v1762 = vrcp.pop %v1761
      %v1763 = vmul.f32 %v1758, %v1762
      %v1764 = vpack.c.bf16 %v1763, %v1763
      %1765 = vrot.lane.b32.xlu0 %v788, 64
      %v1766 = vpop.permute.xlu0 %1765
      %v1768 = vsel %vm792, %v1764, 0
      %v1771 = vsel %vm856, %v1766, 0
      %1773 = vmatprep.subr.bf16.mxu0 0
      %1774 = vmatpush1.bf16.msra.mxu0 %v1771
      %1775 = vmatprep.subr.bf16.mxu0 0
      %1776 = vmatpush1.bf16.msra.mxu0 0
      %1777 = vmatprep.subr.bf16.mxu0 0
      %1778 = vmatpush1.bf16.msra.mxu0 0
      %1779 = vmatprep.subr.bf16.mxu0 0
      %1780 = vmatpush1.bf16.msra.mxu0 0
      %1781 = vmatprep.subr.bf16.mxu0 0
      %1782 = vmatpush1.bf16.msra.mxu0 0
      %1783 = vmatprep.subr.bf16.mxu0 0
      %1784 = vmatpush1.bf16.msra.mxu0 0
      %1785 = vmatprep.subr.bf16.mxu0 0
      %1786 = vmatpush1.bf16.msra.mxu0 0
      %1787 = vmatprep.subr.bf16.mxu0 0
      %1788 = vmatpush1.bf16.msra.mxu0 0
      %1789 = vmatprep.subr.bf16.mxu0 0
      %1790 = vmatpush1.bf16.msra.mxu0 0
      %1791 = vmatprep.subr.bf16.mxu0 0
      %1792 = vmatpush1.bf16.msra.mxu0 0
      %1793 = vmatprep.subr.bf16.mxu0 0
      %1794 = vmatpush1.bf16.msra.mxu0 0
      %1795 = vmatprep.subr.bf16.mxu0 0
      %1796 = vmatpush1.bf16.msra.mxu0 0
      %1797 = vmatprep.subr.bf16.mxu0 0
      %1798 = vmatpush1.bf16.msra.mxu0 0
      %1799 = vmatprep.subr.bf16.mxu0 0
      %1800 = vmatpush1.bf16.msra.mxu0 0
      %1801 = vmatprep.subr.bf16.mxu0 0
      %1802 = vmatpush1.bf16.msra.mxu0 0
      %1803 = vmatprep.subr.bf16.mxu0 0
      %1804 = vmatpush1.bf16.msra.mxu0 0
      %1805 = vmatprep.mubr.bf16.mxu0 0
      %1806 = vmatmul.mubr.bf16.gmra.mrb[0].mxu0 %v1768
      %v1807 = vpop.f32.mrb[0].mxu0
      %v1808 = vadd.f32 0.0, %v1807
      %v1809 = vpop.f32.mrb[0].mxu0
      %v1810 = vpop.f32.mrb[0].mxu0
      %v1811 = vpop.f32.mrb[0].mxu0
      %1812 = vdwg.mxu0
      %1813 = vst.msk [vmem:[#allocation2 + $0x10] sm:$0xff] %vm792, %v1808
      %1814 = vrot.lane.b32.xlu0 %v788, 120
      %v1815 = vpop.permute.xlu0 %1814
      %1816 = vrot.lane.b32.xlu0 %v788, 88
      %v1817 = vpop.permute.xlu0 %1816
      %v1819 = vsel %vm792, %v1815, 0
      %v1822 = vsel %vm792, %v1817, 0
      %1824 = vmatprep.subr.bf16.mxu0 0
      %1825 = vmatpush1.bf16.xpose.msra.mxu0 %v1822
      %1826 = vmatprep.subr.bf16.mxu0 0
      %1827 = vmatpush1.bf16.xpose.msra.mxu0 0
      %1828 = vmatprep.subr.bf16.mxu0 0
      %1829 = vmatpush1.bf16.xpose.msra.mxu0 0
      %1830 = vmatprep.subr.bf16.mxu0 0
      %1831 = vmatpush1.bf16.xpose.msra.mxu0 0
      %1832 = vmatprep.subr.bf16.mxu0 0
      %1833 = vmatpush1.bf16.xpose.msra.mxu0 0
      %1834 = vmatprep.subr.bf16.mxu0 0
      %1835 = vmatpush1.bf16.xpose.msra.mxu0 0
      %1836 = vmatprep.subr.bf16.mxu0 0
      %1837 = vmatpush1.bf16.xpose.msra.mxu0 0
      %1838 = vmatprep.subr.bf16.mxu0 0
      %1839 = vmatpush1.bf16.xpose.msra.mxu0 0
      %1840 = vmatprep.subr.bf16.mxu0 0
      %1841 = vmatpush1.bf16.xpose.msra.mxu0 0
      %1842 = vmatprep.subr.bf16.mxu0 0
      %1843 = vmatpush1.bf16.xpose.msra.mxu0 0
      %1844 = vmatprep.subr.bf16.mxu0 0
      %1845 = vmatpush1.bf16.xpose.msra.mxu0 0
      %1846 = vmatprep.subr.bf16.mxu0 0
      %1847 = vmatpush1.bf16.xpose.msra.mxu0 0
      %1848 = vmatprep.subr.bf16.mxu0 0
      %1849 = vmatpush1.bf16.xpose.msra.mxu0 0
      %1850 = vmatprep.subr.bf16.mxu0 0
      %1851 = vmatpush1.bf16.xpose.msra.mxu0 0
      %1852 = vmatprep.subr.bf16.mxu0 0
      %1853 = vmatpush1.bf16.xpose.msra.mxu0 0
      %1854 = vmatprep.subr.bf16.mxu0 0
      %1855 = vmatpush1.bf16.xpose.msra.mxu0 0
      %1856 = vmatprep.mubr.bf16.mxu0 0
      %1857 = vmatmul.mubr.bf16.gmra.mrb[0].mxu0 %v1819
      %v1858 = vpop.f32.mrb[0].mxu0
      %v1859 = vadd.f32 0.0, %v1858
      %v1860 = vpop.f32.mrb[0].mxu0
      %v1861 = vpop.f32.mrb[0].mxu0
      %v1862 = vpop.f32.mrb[0].mxu0
      %1863 = vdwg.mxu0
      %v1864 = vsel %vm792, %v1859, -inf
      %1865 = vmax.xlane.f32.xlu0 %v1864
      %v1866 = vpop.xlane.xlu0 %1865
      %v1867 = vsub.f32 %v1859, %v1866
      %v1868 = vmul.f32 %v1867, 1.442695
      %v1869 = vpow.pop %v1868
      %v1870 = vsel %vm792, %v1869, 0.0
      %1871 = vadd.xlane.f32.xlu0 %v1870
      %v1872 = vpop.xlane.xlu0 %1871
      %v1873 = vrcp.pop %v1872
      %v1874 = vmul.f32 %v1869, %v1873
      %v1875 = vpack.c.bf16 %v1874, %v1874
      %1876 = vrot.lane.b32.xlu0 %v788, 56
      %v1877 = vpop.permute.xlu0 %1876
      %v1879 = vsel %vm792, %v1875, 0
      %v1882 = vsel %vm856, %v1877, 0
      %1884 = vmatprep.subr.bf16.mxu0 0
      %1885 = vmatpush1.bf16.msra.mxu0 %v1882
      %1886 = vmatprep.subr.bf16.mxu0 0
      %1887 = vmatpush1.bf16.msra.mxu0 0
      %1888 = vmatprep.subr.bf16.mxu0 0
      %1889 = vmatpush1.bf16.msra.mxu0 0
      %1890 = vmatprep.subr.bf16.mxu0 0
      %1891 = vmatpush1.bf16.msra.mxu0 0
      %1892 = vmatprep.subr.bf16.mxu0 0
      %1893 = vmatpush1.bf16.msra.mxu0 0
      %1894 = vmatprep.subr.bf16.mxu0 0
      %1895 = vmatpush1.bf16.msra.mxu0 0
      %1896 = vmatprep.subr.bf16.mxu0 0
      %1897 = vmatpush1.bf16.msra.mxu0 0
      %1898 = vmatprep.subr.bf16.mxu0 0
      %1899 = vmatpush1.bf16.msra.mxu0 0
      %1900 = vmatprep.subr.bf16.mxu0 0
      %1901 = vmatpush1.bf16.msra.mxu0 0
      %1902 = vmatprep.subr.bf16.mxu0 0
      %1903 = vmatpush1.bf16.msra.mxu0 0
      %1904 = vmatprep.subr.bf16.mxu0 0
      %1905 = vmatpush1.bf16.msra.mxu0 0
      %1906 = vmatprep.subr.bf16.mxu0 0
      %1907 = vmatpush1.bf16.msra.mxu0 0
      %1908 = vmatprep.subr.bf16.mxu0 0
      %1909 = vmatpush1.bf16.msra.mxu0 0
      %1910 = vmatprep.subr.bf16.mxu0 0
      %1911 = vmatpush1.bf16.msra.mxu0 0
      %1912 = vmatprep.subr.bf16.mxu0 0
      %1913 = vmatpush1.bf16.msra.mxu0 0
      %1914 = vmatprep.subr.bf16.mxu0 0
      %1915 = vmatpush1.bf16.msra.mxu0 0
      %1916 = vmatprep.mubr.bf16.mxu0 0
      %1917 = vmatmul.mubr.bf16.gmra.mrb[0].mxu0 %v1879
      %v1918 = vpop.f32.mrb[0].mxu0
      %v1919 = vadd.f32 0.0, %v1918
      %v1920 = vpop.f32.mrb[0].mxu0
      %v1921 = vpop.f32.mrb[0].mxu0
      %v1922 = vpop.f32.mrb[0].mxu0
      %1923 = vdwg.mxu0
      %1925 = vrot.lane.b32.xlu0 %v1919, 8
      %v1926 = vpop.permute.xlu0 %1925
      %1928 = vst.msk [vmem:[#allocation2 + $0x10] sm:$0xff] %vm1015, %v1926
      %1929 = vrot.lane.b32.xlu0 %v788, 112
      %v1930 = vpop.permute.xlu0 %1929
      %1931 = vrot.lane.b32.xlu0 %v788, 80
      %v1932 = vpop.permute.xlu0 %1931
      %v1934 = vsel %vm792, %v1930, 0
      %v1937 = vsel %vm792, %v1932, 0
      %1939 = vmatprep.subr.bf16.mxu0 0
      %1940 = vmatpush1.bf16.xpose.msra.mxu0 %v1937
      %1941 = vmatprep.subr.bf16.mxu0 0
      %1942 = vmatpush1.bf16.xpose.msra.mxu0 0
      %1943 = vmatprep.subr.bf16.mxu0 0
      %1944 = vmatpush1.bf16.xpose.msra.mxu0 0
      %1945 = vmatprep.subr.bf16.mxu0 0
      %1946 = vmatpush1.bf16.xpose.msra.mxu0 0
      %1947 = vmatprep.subr.bf16.mxu0 0
      %1948 = vmatpush1.bf16.xpose.msra.mxu0 0
      %1949 = vmatprep.subr.bf16.mxu0 0
      %1950 = vmatpush1.bf16.xpose.msra.mxu0 0
      %1951 = vmatprep.subr.bf16.mxu0 0
      %1952 = vmatpush1.bf16.xpose.msra.mxu0 0
      %1953 = vmatprep.subr.bf16.mxu0 0
      %1954 = vmatpush1.bf16.xpose.msra.mxu0 0
      %1955 = vmatprep.subr.bf16.mxu0 0
      %1956 = vmatpush1.bf16.xpose.msra.mxu0 0
      %1957 = vmatprep.subr.bf16.mxu0 0
      %1958 = vmatpush1.bf16.xpose.msra.mxu0 0
      %1959 = vmatprep.subr.bf16.mxu0 0
      %1960 = vmatpush1.bf16.xpose.msra.mxu0 0
      %1961 = vmatprep.subr.bf16.mxu0 0
      %1962 = vmatpush1.bf16.xpose.msra.mxu0 0
      %1963 = vmatprep.subr.bf16.mxu0 0
      %1964 = vmatpush1.bf16.xpose.msra.mxu0 0
      %1965 = vmatprep.subr.bf16.mxu0 0
      %1966 = vmatpush1.bf16.xpose.msra.mxu0 0
      %1967 = vmatprep.subr.bf16.mxu0 0
      %1968 = vmatpush1.bf16.xpose.msra.mxu0 0
      %1969 = vmatprep.subr.bf16.mxu0 0
      %1970 = vmatpush1.bf16.xpose.msra.mxu0 0
      %1971 = vmatprep.mubr.bf16.mxu0 0
      %1972 = vmatmul.mubr.bf16.gmra.mrb[0].mxu0 %v1934
      %v1973 = vpop.f32.mrb[0].mxu0
      %v1974 = vadd.f32 0.0, %v1973
      %v1975 = vpop.f32.mrb[0].mxu0
      %v1976 = vpop.f32.mrb[0].mxu0
      %v1977 = vpop.f32.mrb[0].mxu0
      %1978 = vdwg.mxu0
      %v1979 = vsel %vm792, %v1974, -inf
      %1980 = vmax.xlane.f32.xlu0 %v1979
      %v1981 = vpop.xlane.xlu0 %1980
      %v1982 = vsub.f32 %v1974, %v1981
      %v1983 = vmul.f32 %v1982, 1.442695
      %v1984 = vpow.pop %v1983
      %v1985 = vsel %vm792, %v1984, 0.0
      %1986 = vadd.xlane.f32.xlu0 %v1985
      %v1987 = vpop.xlane.xlu0 %1986
      %v1988 = vrcp.pop %v1987
      %v1989 = vmul.f32 %v1984, %v1988
      %v1990 = vpack.c.bf16 %v1989, %v1989
      %1991 = vrot.lane.b32.xlu0 %v788, 48
      %v1992 = vpop.permute.xlu0 %1991
      %v1994 = vsel %vm792, %v1990, 0
      %v1997 = vsel %vm856, %v1992, 0
      %1999 = vmatprep.subr.bf16.mxu0 0
      %2000 = vmatpush1.bf16.msra.mxu0 %v1997
      %2001 = vmatprep.subr.bf16.mxu0 0
      %2002 = vmatpush1.bf16.msra.mxu0 0
      %2003 = vmatprep.subr.bf16.mxu0 0
      %2004 = vmatpush1.bf16.msra.mxu0 0
      %2005 = vmatprep.subr.bf16.mxu0 0
      %2006 = vmatpush1.bf16.msra.mxu0 0
      %2007 = vmatprep.subr.bf16.mxu0 0
      %2008 = vmatpush1.bf16.msra.mxu0 0
      %2009 = vmatprep.subr.bf16.mxu0 0
      %2010 = vmatpush1.bf16.msra.mxu0 0
      %2011 = vmatprep.subr.bf16.mxu0 0
      %2012 = vmatpush1.bf16.msra.mxu0 0
      %2013 = vmatprep.subr.bf16.mxu0 0
      %2014 = vmatpush1.bf16.msra.mxu0 0
      %2015 = vmatprep.subr.bf16.mxu0 0
      %2016 = vmatpush1.bf16.msra.mxu0 0
      %2017 = vmatprep.subr.bf16.mxu0 0
      %2018 = vmatpush1.bf16.msra.mxu0 0
      %2019 = vmatprep.subr.bf16.mxu0 0
      %2020 = vmatpush1.bf16.msra.mxu0 0
      %2021 = vmatprep.subr.bf16.mxu0 0
      %2022 = vmatpush1.bf16.msra.mxu0 0
      %2023 = vmatprep.subr.bf16.mxu0 0
      %2024 = vmatpush1.bf16.msra.mxu0 0
      %2025 = vmatprep.subr.bf16.mxu0 0
      %2026 = vmatpush1.bf16.msra.mxu0 0
      %2027 = vmatprep.subr.bf16.mxu0 0
      %2028 = vmatpush1.bf16.msra.mxu0 0
      %2029 = vmatprep.subr.bf16.mxu0 0
      %2030 = vmatpush1.bf16.msra.mxu0 0
      %2031 = vmatprep.mubr.bf16.mxu0 0
      %2032 = vmatmul.mubr.bf16.gmra.mrb[0].mxu0 %v1994
      %v2033 = vpop.f32.mrb[0].mxu0
      %v2034 = vadd.f32 0.0, %v2033
      %v2035 = vpop.f32.mrb[0].mxu0
      %v2036 = vpop.f32.mrb[0].mxu0
      %v2037 = vpop.f32.mrb[0].mxu0
      %2038 = vdwg.mxu0
      %2040 = vrot.lane.b32.xlu0 %v2034, 16
      %v2041 = vpop.permute.xlu0 %2040
      %2043 = vst.msk [vmem:[#allocation2 + $0x10] sm:$0xff] %vm1131, %v2041
      %2044 = vrot.lane.b32.xlu0 %v788, 104
      %v2045 = vpop.permute.xlu0 %2044
      %2046 = vrot.lane.b32.xlu0 %v788, 72
      %v2047 = vpop.permute.xlu0 %2046
      %v2049 = vsel %vm792, %v2045, 0
      %v2052 = vsel %vm792, %v2047, 0
      %2054 = vmatprep.subr.bf16.mxu0 0
      %2055 = vmatpush1.bf16.xpose.msra.mxu0 %v2052
      %2056 = vmatprep.subr.bf16.mxu0 0
      %2057 = vmatpush1.bf16.xpose.msra.mxu0 0
      %2058 = vmatprep.subr.bf16.mxu0 0
      %2059 = vmatpush1.bf16.xpose.msra.mxu0 0
      %2060 = vmatprep.subr.bf16.mxu0 0
      %2061 = vmatpush1.bf16.xpose.msra.mxu0 0
      %2062 = vmatprep.subr.bf16.mxu0 0
      %2063 = vmatpush1.bf16.xpose.msra.mxu0 0
      %2064 = vmatprep.subr.bf16.mxu0 0
      %2065 = vmatpush1.bf16.xpose.msra.mxu0 0
      %2066 = vmatprep.subr.bf16.mxu0 0
      %2067 = vmatpush1.bf16.xpose.msra.mxu0 0
      %2068 = vmatprep.subr.bf16.mxu0 0
      %2069 = vmatpush1.bf16.xpose.msra.mxu0 0
      %2070 = vmatprep.subr.bf16.mxu0 0
      %2071 = vmatpush1.bf16.xpose.msra.mxu0 0
      %2072 = vmatprep.subr.bf16.mxu0 0
      %2073 = vmatpush1.bf16.xpose.msra.mxu0 0
      %2074 = vmatprep.subr.bf16.mxu0 0
      %2075 = vmatpush1.bf16.xpose.msra.mxu0 0
      %2076 = vmatprep.subr.bf16.mxu0 0
      %2077 = vmatpush1.bf16.xpose.msra.mxu0 0
      %2078 = vmatprep.subr.bf16.mxu0 0
      %2079 = vmatpush1.bf16.xpose.msra.mxu0 0
      %2080 = vmatprep.subr.bf16.mxu0 0
      %2081 = vmatpush1.bf16.xpose.msra.mxu0 0
      %2082 = vmatprep.subr.bf16.mxu0 0
      %2083 = vmatpush1.bf16.xpose.msra.mxu0 0
      %2084 = vmatprep.subr.bf16.mxu0 0
      %2085 = vmatpush1.bf16.xpose.msra.mxu0 0
      %2086 = vmatprep.mubr.bf16.mxu0 0
      %2087 = vmatmul.mubr.bf16.gmra.mrb[0].mxu0 %v2049
      %v2088 = vpop.f32.mrb[0].mxu0
      %v2089 = vadd.f32 0.0, %v2088
      %v2090 = vpop.f32.mrb[0].mxu0
      %v2091 = vpop.f32.mrb[0].mxu0
      %v2092 = vpop.f32.mrb[0].mxu0
      %2093 = vdwg.mxu0
      %v2094 = vsel %vm792, %v2089, -inf
      %2095 = vmax.xlane.f32.xlu0 %v2094
      %v2096 = vpop.xlane.xlu0 %2095
      %v2097 = vsub.f32 %v2089, %v2096
      %v2098 = vmul.f32 %v2097, 1.442695
      %v2099 = vpow.pop %v2098
      %v2100 = vsel %vm792, %v2099, 0.0
      %2101 = vadd.xlane.f32.xlu0 %v2100
      %v2102 = vpop.xlane.xlu0 %2101
      %v2103 = vrcp.pop %v2102
      %v2104 = vmul.f32 %v2099, %v2103
      %v2105 = vpack.c.bf16 %v2104, %v2104
      %2106 = vrot.lane.b32.xlu0 %v788, 40
      %v2107 = vpop.permute.xlu0 %2106
      %v2109 = vsel %vm792, %v2105, 0
      %v2112 = vsel %vm856, %v2107, 0
      %2114 = vmatprep.subr.bf16.mxu0 0
      %2115 = vmatpush1.bf16.msra.mxu0 %v2112
      %2116 = vmatprep.subr.bf16.mxu0 0
      %2117 = vmatpush1.bf16.msra.mxu0 0
      %2118 = vmatprep.subr.bf16.mxu0 0
      %2119 = vmatpush1.bf16.msra.mxu0 0
      %2120 = vmatprep.subr.bf16.mxu0 0
      %2121 = vmatpush1.bf16.msra.mxu0 0
      %2122 = vmatprep.subr.bf16.mxu0 0
      %2123 = vmatpush1.bf16.msra.mxu0 0
      %2124 = vmatprep.subr.bf16.mxu0 0
      %2125 = vmatpush1.bf16.msra.mxu0 0
      %2126 = vmatprep.subr.bf16.mxu0 0
      %2127 = vmatpush1.bf16.msra.mxu0 0
      %2128 = vmatprep.subr.bf16.mxu0 0
      %2129 = vmatpush1.bf16.msra.mxu0 0
      %2130 = vmatprep.subr.bf16.mxu0 0
      %2131 = vmatpush1.bf16.msra.mxu0 0
      %2132 = vmatprep.subr.bf16.mxu0 0
      %2133 = vmatpush1.bf16.msra.mxu0 0
      %2134 = vmatprep.subr.bf16.mxu0 0
      %2135 = vmatpush1.bf16.msra.mxu0 0
      %2136 = vmatprep.subr.bf16.mxu0 0
      %2137 = vmatpush1.bf16.msra.mxu0 0
      %2138 = vmatprep.subr.bf16.mxu0 0
      %2139 = vmatpush1.bf16.msra.mxu0 0
      %2140 = vmatprep.subr.bf16.mxu0 0
      %2141 = vmatpush1.bf16.msra.mxu0 0
      %2142 = vmatprep.subr.bf16.mxu0 0
      %2143 = vmatpush1.bf16.msra.mxu0 0
      %2144 = vmatprep.subr.bf16.mxu0 0
      %2145 = vmatpush1.bf16.msra.mxu0 0
      %2146 = vmatprep.mubr.bf16.mxu0 0
      %2147 = vmatmul.mubr.bf16.gmra.mrb[0].mxu0 %v2109
      %v2148 = vpop.f32.mrb[0].mxu0
      %v2149 = vadd.f32 0.0, %v2148
      %v2150 = vpop.f32.mrb[0].mxu0
      %v2151 = vpop.f32.mrb[0].mxu0
      %v2152 = vpop.f32.mrb[0].mxu0
      %2153 = vdwg.mxu0
      %2155 = vrot.lane.b32.xlu0 %v2149, 24
      %v2156 = vpop.permute.xlu0 %2155
      %2158 = vst.msk [vmem:[#allocation2 + $0x10] sm:$0xff] %vm1247, %v2156
      %v2159 = vrot.slane %v788, 4
      %2160 = vrot.lane.b32.xlu0 %v2159, 96
      %v2161 = vpop.permute.xlu0 %2160
      %v2163 = vsel %vm792, %v2159, 0
      %v2166 = vsel %vm792, %v2161, 0
      %2168 = vmatprep.subr.bf16.mxu0 0
      %2169 = vmatpush1.bf16.xpose.msra.mxu0 %v2166
      %2170 = vmatprep.subr.bf16.mxu0 0
      %2171 = vmatpush1.bf16.xpose.msra.mxu0 0
      %2172 = vmatprep.subr.bf16.mxu0 0
      %2173 = vmatpush1.bf16.xpose.msra.mxu0 0
      %2174 = vmatprep.subr.bf16.mxu0 0
      %2175 = vmatpush1.bf16.xpose.msra.mxu0 0
      %2176 = vmatprep.subr.bf16.mxu0 0
      %2177 = vmatpush1.bf16.xpose.msra.mxu0 0
      %2178 = vmatprep.subr.bf16.mxu0 0
      %2179 = vmatpush1.bf16.xpose.msra.mxu0 0
      %2180 = vmatprep.subr.bf16.mxu0 0
      %2181 = vmatpush1.bf16.xpose.msra.mxu0 0
      %2182 = vmatprep.subr.bf16.mxu0 0
      %2183 = vmatpush1.bf16.xpose.msra.mxu0 0
      %2184 = vmatprep.subr.bf16.mxu0 0
      %2185 = vmatpush1.bf16.xpose.msra.mxu0 0
      %2186 = vmatprep.subr.bf16.mxu0 0
      %2187 = vmatpush1.bf16.xpose.msra.mxu0 0
      %2188 = vmatprep.subr.bf16.mxu0 0
      %2189 = vmatpush1.bf16.xpose.msra.mxu0 0
      %2190 = vmatprep.subr.bf16.mxu0 0
      %2191 = vmatpush1.bf16.xpose.msra.mxu0 0
      %2192 = vmatprep.subr.bf16.mxu0 0
      %2193 = vmatpush1.bf16.xpose.msra.mxu0 0
      %2194 = vmatprep.subr.bf16.mxu0 0
      %2195 = vmatpush1.bf16.xpose.msra.mxu0 0
      %2196 = vmatprep.subr.bf16.mxu0 0
      %2197 = vmatpush1.bf16.xpose.msra.mxu0 0
      %2198 = vmatprep.subr.bf16.mxu0 0
      %2199 = vmatpush1.bf16.xpose.msra.mxu0 0
      %2200 = vmatprep.mubr.bf16.mxu0 0
      %2201 = vmatmul.mubr.bf16.gmra.mrb[0].mxu0 %v2163
      %v2202 = vpop.f32.mrb[0].mxu0
      %v2203 = vadd.f32 0.0, %v2202
      %v2204 = vpop.f32.mrb[0].mxu0
      %v2205 = vpop.f32.mrb[0].mxu0
      %v2206 = vpop.f32.mrb[0].mxu0
      %2207 = vdwg.mxu0
      %v2208 = vsel %vm792, %v2203, -inf
      %2209 = vmax.xlane.f32.xlu0 %v2208
      %v2210 = vpop.xlane.xlu0 %2209
      %v2211 = vsub.f32 %v2203, %v2210
      %v2212 = vmul.f32 %v2211, 1.442695
      %v2213 = vpow.pop %v2212
      %v2214 = vsel %vm792, %v2213, 0.0
      %2215 = vadd.xlane.f32.xlu0 %v2214
      %v2216 = vpop.xlane.xlu0 %2215
      %v2217 = vrcp.pop %v2216
      %v2218 = vmul.f32 %v2213, %v2217
      %v2219 = vpack.c.bf16 %v2218, %v2218
      %2220 = vrot.lane.b32.xlu0 %v2159, 64
      %v2221 = vpop.permute.xlu0 %2220
      %v2223 = vsel %vm792, %v2219, 0
      %v2226 = vsel %vm856, %v2221, 0
      %2228 = vmatprep.subr.bf16.mxu0 0
      %2229 = vmatpush1.bf16.msra.mxu0 %v2226
      %2230 = vmatprep.subr.bf16.mxu0 0
      %2231 = vmatpush1.bf16.msra.mxu0 0
      %2232 = vmatprep.subr.bf16.mxu0 0
      %2233 = vmatpush1.bf16.msra.mxu0 0
      %2234 = vmatprep.subr.bf16.mxu0 0
      %2235 = vmatpush1.bf16.msra.mxu0 0
      %2236 = vmatprep.subr.bf16.mxu0 0
      %2237 = vmatpush1.bf16.msra.mxu0 0
      %2238 = vmatprep.subr.bf16.mxu0 0
      %2239 = vmatpush1.bf16.msra.mxu0 0
      %2240 = vmatprep.subr.bf16.mxu0 0
      %2241 = vmatpush1.bf16.msra.mxu0 0
      %2242 = vmatprep.subr.bf16.mxu0 0
      %2243 = vmatpush1.bf16.msra.mxu0 0
      %2244 = vmatprep.subr.bf16.mxu0 0
      %2245 = vmatpush1.bf16.msra.mxu0 0
      %2246 = vmatprep.subr.bf16.mxu0 0
      %2247 = vmatpush1.bf16.msra.mxu0 0
      %2248 = vmatprep.subr.bf16.mxu0 0
      %2249 = vmatpush1.bf16.msra.mxu0 0
      %2250 = vmatprep.subr.bf16.mxu0 0
      %2251 = vmatpush1.bf16.msra.mxu0 0
      %2252 = vmatprep.subr.bf16.mxu0 0
      %2253 = vmatpush1.bf16.msra.mxu0 0
      %2254 = vmatprep.subr.bf16.mxu0 0
      %2255 = vmatpush1.bf16.msra.mxu0 0
      %2256 = vmatprep.subr.bf16.mxu0 0
      %2257 = vmatpush1.bf16.msra.mxu0 0
      %2258 = vmatprep.subr.bf16.mxu0 0
      %2259 = vmatpush1.bf16.msra.mxu0 0
      %2260 = vmatprep.mubr.bf16.mxu0 0
      %2261 = vmatmul.mubr.bf16.gmra.mrb[0].mxu0 %v2223
      %v2262 = vpop.f32.mrb[0].mxu0
      %v2263 = vadd.f32 0.0, %v2262
      %v2264 = vpop.f32.mrb[0].mxu0
      %v2265 = vpop.f32.mrb[0].mxu0
      %v2266 = vpop.f32.mrb[0].mxu0
      %2267 = vdwg.mxu0
      %2268 = vst.msk [vmem:[#allocation2 + $0x18] sm:$0xff] %vm792, %v2263
      %2269 = vrot.lane.b32.xlu0 %v2159, 120
      %v2270 = vpop.permute.xlu0 %2269
      %2271 = vrot.lane.b32.xlu0 %v2159, 88
      %v2272 = vpop.permute.xlu0 %2271
      %v2274 = vsel %vm792, %v2270, 0
      %v2277 = vsel %vm792, %v2272, 0
      %2279 = vmatprep.subr.bf16.mxu0 0
      %2280 = vmatpush1.bf16.xpose.msra.mxu0 %v2277
      %2281 = vmatprep.subr.bf16.mxu0 0
      %2282 = vmatpush1.bf16.xpose.msra.mxu0 0
      %2283 = vmatprep.subr.bf16.mxu0 0
      %2284 = vmatpush1.bf16.xpose.msra.mxu0 0
      %2285 = vmatprep.subr.bf16.mxu0 0
      %2286 = vmatpush1.bf16.xpose.msra.mxu0 0
      %2287 = vmatprep.subr.bf16.mxu0 0
      %2288 = vmatpush1.bf16.xpose.msra.mxu0 0
      %2289 = vmatprep.subr.bf16.mxu0 0
      %2290 = vmatpush1.bf16.xpose.msra.mxu0 0
      %2291 = vmatprep.subr.bf16.mxu0 0
      %2292 = vmatpush1.bf16.xpose.msra.mxu0 0
      %2293 = vmatprep.subr.bf16.mxu0 0
      %2294 = vmatpush1.bf16.xpose.msra.mxu0 0
      %2295 = vmatprep.subr.bf16.mxu0 0
      %2296 = vmatpush1.bf16.xpose.msra.mxu0 0
      %2297 = vmatprep.subr.bf16.mxu0 0
      %2298 = vmatpush1.bf16.xpose.msra.mxu0 0
      %2299 = vmatprep.subr.bf16.mxu0 0
      %2300 = vmatpush1.bf16.xpose.msra.mxu0 0
      %2301 = vmatprep.subr.bf16.mxu0 0
      %2302 = vmatpush1.bf16.xpose.msra.mxu0 0
      %2303 = vmatprep.subr.bf16.mxu0 0
      %2304 = vmatpush1.bf16.xpose.msra.mxu0 0
      %2305 = vmatprep.subr.bf16.mxu0 0
      %2306 = vmatpush1.bf16.xpose.msra.mxu0 0
      %2307 = vmatprep.subr.bf16.mxu0 0
      %2308 = vmatpush1.bf16.xpose.msra.mxu0 0
      %2309 = vmatprep.subr.bf16.mxu0 0
      %2310 = vmatpush1.bf16.xpose.msra.mxu0 0
      %2311 = vmatprep.mubr.bf16.mxu0 0
      %2312 = vmatmul.mubr.bf16.gmra.mrb[0].mxu0 %v2274
      %v2313 = vpop.f32.mrb[0].mxu0
      %v2314 = vadd.f32 0.0, %v2313
      %v2315 = vpop.f32.mrb[0].mxu0
      %v2316 = vpop.f32.mrb[0].mxu0
      %v2317 = vpop.f32.mrb[0].mxu0
      %2318 = vdwg.mxu0
      %v2319 = vsel %vm792, %v2314, -inf
      %2320 = vmax.xlane.f32.xlu0 %v2319
      %v2321 = vpop.xlane.xlu0 %2320
      %v2322 = vsub.f32 %v2314, %v2321
      %v2323 = vmul.f32 %v2322, 1.442695
      %v2324 = vpow.pop %v2323
      %v2325 = vsel %vm792, %v2324, 0.0
      %2326 = vadd.xlane.f32.xlu0 %v2325
      %v2327 = vpop.xlane.xlu0 %2326
      %v2328 = vrcp.pop %v2327
      %v2329 = vmul.f32 %v2324, %v2328
      %v2330 = vpack.c.bf16 %v2329, %v2329
      %2331 = vrot.lane.b32.xlu0 %v2159, 56
      %v2332 = vpop.permute.xlu0 %2331
      %v2334 = vsel %vm792, %v2330, 0
      %v2337 = vsel %vm856, %v2332, 0
      %2339 = vmatprep.subr.bf16.mxu0 0
      %2340 = vmatpush1.bf16.msra.mxu0 %v2337
      %2341 = vmatprep.subr.bf16.mxu0 0
      %2342 = vmatpush1.bf16.msra.mxu0 0
      %2343 = vmatprep.subr.bf16.mxu0 0
      %2344 = vmatpush1.bf16.msra.mxu0 0
      %2345 = vmatprep.subr.bf16.mxu0 0
      %2346 = vmatpush1.bf16.msra.mxu0 0
      %2347 = vmatprep.subr.bf16.mxu0 0
      %2348 = vmatpush1.bf16.msra.mxu0 0
      %2349 = vmatprep.subr.bf16.mxu0 0
      %2350 = vmatpush1.bf16.msra.mxu0 0
      %2351 = vmatprep.subr.bf16.mxu0 0
      %2352 = vmatpush1.bf16.msra.mxu0 0
      %2353 = vmatprep.subr.bf16.mxu0 0
      %2354 = vmatpush1.bf16.msra.mxu0 0
      %2355 = vmatprep.subr.bf16.mxu0 0
      %2356 = vmatpush1.bf16.msra.mxu0 0
      %2357 = vmatprep.subr.bf16.mxu0 0
      %2358 = vmatpush1.bf16.msra.mxu0 0
      %2359 = vmatprep.subr.bf16.mxu0 0
      %2360 = vmatpush1.bf16.msra.mxu0 0
      %2361 = vmatprep.subr.bf16.mxu0 0
      %2362 = vmatpush1.bf16.msra.mxu0 0
      %2363 = vmatprep.subr.bf16.mxu0 0
      %2364 = vmatpush1.bf16.msra.mxu0 0
      %2365 = vmatprep.subr.bf16.mxu0 0
      %2366 = vmatpush1.bf16.msra.mxu0 0
      %2367 = vmatprep.subr.bf16.mxu0 0
      %2368 = vmatpush1.bf16.msra.mxu0 0
      %2369 = vmatprep.subr.bf16.mxu0 0
      %2370 = vmatpush1.bf16.msra.mxu0 0
      %2371 = vmatprep.mubr.bf16.mxu0 0
      %2372 = vmatmul.mubr.bf16.gmra.mrb[0].mxu0 %v2334
      %v2373 = vpop.f32.mrb[0].mxu0
      %v2374 = vadd.f32 0.0, %v2373
      %v2375 = vpop.f32.mrb[0].mxu0
      %v2376 = vpop.f32.mrb[0].mxu0
      %v2377 = vpop.f32.mrb[0].mxu0
      %2378 = vdwg.mxu0
      %2380 = vrot.lane.b32.xlu0 %v2374, 8
      %v2381 = vpop.permute.xlu0 %2380
      %2383 = vst.msk [vmem:[#allocation2 + $0x18] sm:$0xff] %vm1015, %v2381
      %2384 = vrot.lane.b32.xlu0 %v2159, 112
      %v2385 = vpop.permute.xlu0 %2384
      %2386 = vrot.lane.b32.xlu0 %v2159, 80
      %v2387 = vpop.permute.xlu0 %2386
      %v2389 = vsel %vm792, %v2385, 0
      %v2392 = vsel %vm792, %v2387, 0
      %2394 = vmatprep.subr.bf16.mxu0 0
      %2395 = vmatpush1.bf16.xpose.msra.mxu0 %v2392
      %2396 = vmatprep.subr.bf16.mxu0 0
      %2397 = vmatpush1.bf16.xpose.msra.mxu0 0
      %2398 = vmatprep.subr.bf16.mxu0 0
      %2399 = vmatpush1.bf16.xpose.msra.mxu0 0
      %2400 = vmatprep.subr.bf16.mxu0 0
      %2401 = vmatpush1.bf16.xpose.msra.mxu0 0
      %2402 = vmatprep.subr.bf16.mxu0 0
      %2403 = vmatpush1.bf16.xpose.msra.mxu0 0
      %2404 = vmatprep.subr.bf16.mxu0 0
      %2405 = vmatpush1.bf16.xpose.msra.mxu0 0
      %2406 = vmatprep.subr.bf16.mxu0 0
      %2407 = vmatpush1.bf16.xpose.msra.mxu0 0
      %2408 = vmatprep.subr.bf16.mxu0 0
      %2409 = vmatpush1.bf16.xpose.msra.mxu0 0
      %2410 = vmatprep.subr.bf16.mxu0 0
      %2411 = vmatpush1.bf16.xpose.msra.mxu0 0
      %2412 = vmatprep.subr.bf16.mxu0 0
      %2413 = vmatpush1.bf16.xpose.msra.mxu0 0
      %2414 = vmatprep.subr.bf16.mxu0 0
      %2415 = vmatpush1.bf16.xpose.msra.mxu0 0
      %2416 = vmatprep.subr.bf16.mxu0 0
      %2417 = vmatpush1.bf16.xpose.msra.mxu0 0
      %2418 = vmatprep.subr.bf16.mxu0 0
      %2419 = vmatpush1.bf16.xpose.msra.mxu0 0
      %2420 = vmatprep.subr.bf16.mxu0 0
      %2421 = vmatpush1.bf16.xpose.msra.mxu0 0
      %2422 = vmatprep.subr.bf16.mxu0 0
      %2423 = vmatpush1.bf16.xpose.msra.mxu0 0
      %2424 = vmatprep.subr.bf16.mxu0 0
      %2425 = vmatpush1.bf16.xpose.msra.mxu0 0
      %2426 = vmatprep.mubr.bf16.mxu0 0
      %2427 = vmatmul.mubr.bf16.gmra.mrb[0].mxu0 %v2389
      %v2428 = vpop.f32.mrb[0].mxu0
      %v2429 = vadd.f32 0.0, %v2428
      %v2430 = vpop.f32.mrb[0].mxu0
      %v2431 = vpop.f32.mrb[0].mxu0
      %v2432 = vpop.f32.mrb[0].mxu0
      %2433 = vdwg.mxu0
      %v2434 = vsel %vm792, %v2429, -inf
      %2435 = vmax.xlane.f32.xlu0 %v2434
      %v2436 = vpop.xlane.xlu0 %2435
      %v2437 = vsub.f32 %v2429, %v2436
      %v2438 = vmul.f32 %v2437, 1.442695
      %v2439 = vpow.pop %v2438
      %v2440 = vsel %vm792, %v2439, 0.0
      %2441 = vadd.xlane.f32.xlu0 %v2440
      %v2442 = vpop.xlane.xlu0 %2441
      %v2443 = vrcp.pop %v2442
      %v2444 = vmul.f32 %v2439, %v2443
      %v2445 = vpack.c.bf16 %v2444, %v2444
      %2446 = vrot.lane.b32.xlu0 %v2159, 48
      %v2447 = vpop.permute.xlu0 %2446
      %v2449 = vsel %vm792, %v2445, 0
      %v2452 = vsel %vm856, %v2447, 0
      %2454 = vmatprep.subr.bf16.mxu0 0
      %2455 = vmatpush1.bf16.msra.mxu0 %v2452
      %2456 = vmatprep.subr.bf16.mxu0 0
      %2457 = vmatpush1.bf16.msra.mxu0 0
      %2458 = vmatprep.subr.bf16.mxu0 0
      %2459 = vmatpush1.bf16.msra.mxu0 0
      %2460 = vmatprep.subr.bf16.mxu0 0
      %2461 = vmatpush1.bf16.msra.mxu0 0
      %2462 = vmatprep.subr.bf16.mxu0 0
      %2463 = vmatpush1.bf16.msra.mxu0 0
      %2464 = vmatprep.subr.bf16.mxu0 0
      %2465 = vmatpush1.bf16.msra.mxu0 0
      %2466 = vmatprep.subr.bf16.mxu0 0
      %2467 = vmatpush1.bf16.msra.mxu0 0
      %2468 = vmatprep.subr.bf16.mxu0 0
      %2469 = vmatpush1.bf16.msra.mxu0 0
      %2470 = vmatprep.subr.bf16.mxu0 0
      %2471 = vmatpush1.bf16.msra.mxu0 0
      %2472 = vmatprep.subr.bf16.mxu0 0
      %2473 = vmatpush1.bf16.msra.mxu0 0
      %2474 = vmatprep.subr.bf16.mxu0 0
      %2475 = vmatpush1.bf16.msra.mxu0 0
      %2476 = vmatprep.subr.bf16.mxu0 0
      %2477 = vmatpush1.bf16.msra.mxu0 0
      %2478 = vmatprep.subr.bf16.mxu0 0
      %2479 = vmatpush1.bf16.msra.mxu0 0
      %2480 = vmatprep.subr.bf16.mxu0 0
      %2481 = vmatpush1.bf16.msra.mxu0 0
      %2482 = vmatprep.subr.bf16.mxu0 0
      %2483 = vmatpush1.bf16.msra.mxu0 0
      %2484 = vmatprep.subr.bf16.mxu0 0
      %2485 = vmatpush1.bf16.msra.mxu0 0
      %2486 = vmatprep.mubr.bf16.mxu0 0
      %2487 = vmatmul.mubr.bf16.gmra.mrb[0].mxu0 %v2449
      %v2488 = vpop.f32.mrb[0].mxu0
      %v2489 = vadd.f32 0.0, %v2488
      %v2490 = vpop.f32.mrb[0].mxu0
      %v2491 = vpop.f32.mrb[0].mxu0
      %v2492 = vpop.f32.mrb[0].mxu0
      %2493 = vdwg.mxu0
      %2495 = vrot.lane.b32.xlu0 %v2489, 16
      %v2496 = vpop.permute.xlu0 %2495
      %2498 = vst.msk [vmem:[#allocation2 + $0x18] sm:$0xff] %vm1131, %v2496
      %2499 = vrot.lane.b32.xlu0 %v2159, 104
      %v2500 = vpop.permute.xlu0 %2499
      %2501 = vrot.lane.b32.xlu0 %v2159, 72
      %v2502 = vpop.permute.xlu0 %2501
      %v2504 = vsel %vm792, %v2500, 0
      %v2507 = vsel %vm792, %v2502, 0
      %2509 = vmatprep.subr.bf16.mxu0 0
      %2510 = vmatpush1.bf16.xpose.msra.mxu0 %v2507
      %2511 = vmatprep.subr.bf16.mxu0 0
      %2512 = vmatpush1.bf16.xpose.msra.mxu0 0
      %2513 = vmatprep.subr.bf16.mxu0 0
      %2514 = vmatpush1.bf16.xpose.msra.mxu0 0
      %2515 = vmatprep.subr.bf16.mxu0 0
      %2516 = vmatpush1.bf16.xpose.msra.mxu0 0
      %2517 = vmatprep.subr.bf16.mxu0 0
      %2518 = vmatpush1.bf16.xpose.msra.mxu0 0
      %2519 = vmatprep.subr.bf16.mxu0 0
      %2520 = vmatpush1.bf16.xpose.msra.mxu0 0
      %2521 = vmatprep.subr.bf16.mxu0 0
      %2522 = vmatpush1.bf16.xpose.msra.mxu0 0
      %2523 = vmatprep.subr.bf16.mxu0 0
      %2524 = vmatpush1.bf16.xpose.msra.mxu0 0
      %2525 = vmatprep.subr.bf16.mxu0 0
      %2526 = vmatpush1.bf16.xpose.msra.mxu0 0
      %2527 = vmatprep.subr.bf16.mxu0 0
      %2528 = vmatpush1.bf16.xpose.msra.mxu0 0
      %2529 = vmatprep.subr.bf16.mxu0 0
      %2530 = vmatpush1.bf16.xpose.msra.mxu0 0
      %2531 = vmatprep.subr.bf16.mxu0 0
      %2532 = vmatpush1.bf16.xpose.msra.mxu0 0
      %2533 = vmatprep.subr.bf16.mxu0 0
      %2534 = vmatpush1.bf16.xpose.msra.mxu0 0
      %2535 = vmatprep.subr.bf16.mxu0 0
      %2536 = vmatpush1.bf16.xpose.msra.mxu0 0
      %2537 = vmatprep.subr.bf16.mxu0 0
      %2538 = vmatpush1.bf16.xpose.msra.mxu0 0
      %2539 = vmatprep.subr.bf16.mxu0 0
      %2540 = vmatpush1.bf16.xpose.msra.mxu0 0
      %2541 = vmatprep.mubr.bf16.mxu0 0
      %2542 = vmatmul.mubr.bf16.gmra.mrb[0].mxu0 %v2504
      %v2543 = vpop.f32.mrb[0].mxu0
      %v2544 = vadd.f32 0.0, %v2543
      %v2545 = vpop.f32.mrb[0].mxu0
      %v2546 = vpop.f32.mrb[0].mxu0
      %v2547 = vpop.f32.mrb[0].mxu0
      %2548 = vdwg.mxu0
      %v2549 = vsel %vm792, %v2544, -inf
      %2550 = vmax.xlane.f32.xlu0 %v2549
      %v2551 = vpop.xlane.xlu0 %2550
      %v2552 = vsub.f32 %v2544, %v2551
      %v2553 = vmul.f32 %v2552, 1.442695
      %v2554 = vpow.pop %v2553
      %v2555 = vsel %vm792, %v2554, 0.0
      %2556 = vadd.xlane.f32.xlu0 %v2555
      %v2557 = vpop.xlane.xlu0 %2556
      %v2558 = vrcp.pop %v2557
      %v2559 = vmul.f32 %v2554, %v2558
      %v2560 = vpack.c.bf16 %v2559, %v2559
      %2561 = vrot.lane.b32.xlu0 %v2159, 40
      %v2562 = vpop.permute.xlu0 %2561
      %v2564 = vsel %vm792, %v2560, 0
      %v2567 = vsel %vm856, %v2562, 0
      %2569 = vmatprep.subr.bf16.mxu0 0
      %2570 = vmatpush1.bf16.msra.mxu0 %v2567
      %2571 = vmatprep.subr.bf16.mxu0 0
      %2572 = vmatpush1.bf16.msra.mxu0 0
      %2573 = vmatprep.subr.bf16.mxu0 0
      %2574 = vmatpush1.bf16.msra.mxu0 0
      %2575 = vmatprep.subr.bf16.mxu0 0
      %2576 = vmatpush1.bf16.msra.mxu0 0
      %2577 = vmatprep.subr.bf16.mxu0 0
      %2578 = vmatpush1.bf16.msra.mxu0 0
      %2579 = vmatprep.subr.bf16.mxu0 0
      %2580 = vmatpush1.bf16.msra.mxu0 0
      %2581 = vmatprep.subr.bf16.mxu0 0
      %2582 = vmatpush1.bf16.msra.mxu0 0
      %2583 = vmatprep.subr.bf16.mxu0 0
      %2584 = vmatpush1.bf16.msra.mxu0 0
      %2585 = vmatprep.subr.bf16.mxu0 0
      %2586 = vmatpush1.bf16.msra.mxu0 0
      %2587 = vmatprep.subr.bf16.mxu0 0
      %2588 = vmatpush1.bf16.msra.mxu0 0
      %2589 = vmatprep.subr.bf16.mxu0 0
      %2590 = vmatpush1.bf16.msra.mxu0 0
      %2591 = vmatprep.subr.bf16.mxu0 0
      %2592 = vmatpush1.bf16.msra.mxu0 0
      %2593 = vmatprep.subr.bf16.mxu0 0
      %2594 = vmatpush1.bf16.msra.mxu0 0
      %2595 = vmatprep.subr.bf16.mxu0 0
      %2596 = vmatpush1.bf16.msra.mxu0 0
      %2597 = vmatprep.subr.bf16.mxu0 0
      %2598 = vmatpush1.bf16.msra.mxu0 0
      %2599 = vmatprep.subr.bf16.mxu0 0
      %2600 = vmatpush1.bf16.msra.mxu0 0
      %2601 = vmatprep.mubr.bf16.mxu0 0
      %2602 = vmatmul.mubr.bf16.gmra.mrb[0].mxu0 %v2564
      %v2603 = vpop.f32.mrb[0].mxu0
      %v2604 = vadd.f32 0.0, %v2603
      %v2605 = vpop.f32.mrb[0].mxu0
      %v2606 = vpop.f32.mrb[0].mxu0
      %v2607 = vpop.f32.mrb[0].mxu0
      %2608 = vdwg.mxu0
      %2610 = vrot.lane.b32.xlu0 %v2604, 24
      %v2611 = vpop.permute.xlu0 %2610
      %2613 = vst.msk [vmem:[#allocation2 + $0x18] sm:$0xff] %vm1247, %v2611
      %v2614 = vld [vmem:[#allocation2] sm:$0xff]
      %v2615 = vld [vmem:[#allocation2 + $0x8] sm:$0xff]
      %v2616 = vld [vmem:[#allocation2 + $0x10] sm:$0xff]
      %v2617 = vld [vmem:[#allocation2 + $0x18] sm:$0xff]
      %v2618 = vpack.c.bf16 %v2615, %v2614
      %v2619 = vpack.c.bf16 %v2617, %v2616
      %v2620 = vld [vmem:[%s6] sm:$0xf]
      %v2621 = vld [vmem:[%s6 + $0x4] sm:$0xf]
      %v2622 = vld [vmem:[%s6 + $0x8] sm:$0xf]
      %v2623 = vld [vmem:[%s6 + $0xc] sm:$0xf]
      %v2624 = vld [vmem:[%s7] sm:$0x1]
      %v2626 = vlaneseq
      %v2627 = vshrl.u32 %v2626, 7
      %v2628 = vsub.s32 0, %v2627
      %v2629 = vrot.slane %v2624, %v2628
      %v2635 = vunpack.c.l.b16 %v2620
      %v2636 = vunpack.c.l.b16 %v2621
      %v2637 = vunpack.c.l.b16 %v2622
      %v2638 = vunpack.c.l.b16 %v2623
      %v2639 = vpack.c.b16 %v2636, %v2635
      %v2640 = vpack.c.b16 %v2638, %v2637
      %v2644 = vsel %vm731, %v2618, 0
      %v2647 = vsel %vm731, %v2619, 0
      %2649 = vmatprep.subr.bf16.mxu0 0
      %2650 = vmatpush1.bf16.msra.mxu0 %v2639
      %2651 = vmatprep.subr.bf16.mxu0 0
      %2652 = vmatpush1.bf16.msra.mxu0 %v2640
      %2653 = vmatprep.subr.bf16.mxu0 0
      %2654 = vmatpush1.bf16.msra.mxu0 0
      %2655 = vmatprep.subr.bf16.mxu0 0
      %2656 = vmatpush1.bf16.msra.mxu0 0
      %2657 = vmatprep.subr.bf16.mxu0 0
      %2658 = vmatpush1.bf16.msra.mxu0 0
      %2659 = vmatprep.subr.bf16.mxu0 0
      %2660 = vmatpush1.bf16.msra.mxu0 0
      %2661 = vmatprep.subr.bf16.mxu0 0
      %2662 = vmatpush1.bf16.msra.mxu0 0
      %2663 = vmatprep.subr.bf16.mxu0 0
      %2664 = vmatpush1.bf16.msra.mxu0 0
      %2665 = vmatprep.subr.bf16.mxu0 0
      %2666 = vmatpush1.bf16.msra.mxu0 0
      %2667 = vmatprep.subr.bf16.mxu0 0
      %2668 = vmatpush1.bf16.msra.mxu0 0
      %2669 = vmatprep.subr.bf16.mxu0 0
      %2670 = vmatpush1.bf16.msra.mxu0 0
      %2671 = vmatprep.subr.bf16.mxu0 0
      %2672 = vmatpush1.bf16.msra.mxu0 0
      %2673 = vmatprep.subr.bf16.mxu0 0
      %2674 = vmatpush1.bf16.msra.mxu0 0
      %2675 = vmatprep.subr.bf16.mxu0 0
      %2676 = vmatpush1.bf16.msra.mxu0 0
      %2677 = vmatprep.subr.bf16.mxu0 0
      %2678 = vmatpush1.bf16.msra.mxu0 0
      %2679 = vmatprep.subr.bf16.mxu0 0
      %2680 = vmatpush1.bf16.msra.mxu0 0
      %2681 = vmatprep.mubr.bf16.mxu0 0
      %2682 = vmatmul.mubr.bf16.gmra.mrb[0].mxu0 %v2644
      %v2683 = vpop.f32.mrb[0].mxu0
      %v2684 = vadd.f32 %v2629, %v2683
      %v2685 = vpop.f32.mrb[0].mxu0
      %v2686 = vpop.f32.mrb[0].mxu0
      %v2687 = vadd.f32 %v2629, %v2686
      %v2688 = vpop.f32.mrb[0].mxu0
      %2689 = vmatprep.mubr.bf16.mxu0 0
      %2690 = vmatmul.mubr.bf16.gmra.mrb[0].mxu0 %v2647
      %v2691 = vpop.f32.mrb[0].mxu0
      %v2692 = vadd.f32 %v2629, %v2691
      %v2693 = vpop.f32.mrb[0].mxu0
      %v2694 = vpop.f32.mrb[0].mxu0
      %v2695 = vadd.f32 %v2629, %v2694
      %v2696 = vpop.f32.mrb[0].mxu0
      %2697 = vdwg.mxu0
      %v2698 = vadd.f32 %v702, %v2684
      %v2699 = vadd.f32 %v703, %v2687
      %v2700 = vadd.f32 %v704, %v2692
      %v2701 = vadd.f32 %v705, %v2695
      %v2702 = vld [vmem:[%s8] sm:$0x1]
      %v2703 = vld [vmem:[%s9] sm:$0x1]
      %v2704 = vsel %vm731, %v2698, 0.0
      %2705 = vadd.xlane.f32.xlu0 %v2704
      %v2706 = vpop.xlane.xlu0 %2705
      %v2707 = vsel %vm731, %v2699, 0.0
      %2708 = vadd.xlane.f32.xlu0 %v2707
      %v2709 = vpop.xlane.xlu0 %2708
      %v2710 = vsel %vm731, %v2700, 0.0
      %2711 = vadd.xlane.f32.xlu0 %v2710
      %v2712 = vpop.xlane.xlu0 %2711
      %v2713 = vsel %vm731, %v2701, 0.0
      %2714 = vadd.xlane.f32.xlu0 %v2713
      %v2715 = vpop.xlane.xlu0 %2714
      %v2716 = vrcp.pop 32.0
      %v2717 = vmul.f32 %v2706, %v2716
      %v2718 = vmul.f32 %v2709, %v2716
      %v2719 = vmul.f32 %v2712, %v2716
      %v2720 = vmul.f32 %v2715, %v2716
      %v2721 = vsub.f32 %v2698, %v2717
      %v2722 = vsub.f32 %v2699, %v2718
      %v2723 = vsub.f32 %v2700, %v2719
      %v2724 = vsub.f32 %v2701, %v2720
      %v2725 = vmul.f32 %v2721, %v2721
      %v2726 = vmul.f32 %v2722, %v2722
      %v2727 = vmul.f32 %v2723, %v2723
      %v2728 = vmul.f32 %v2724, %v2724
      %v2729 = vsel %vm731, %v2725, 0.0
      %2730 = vadd.xlane.f32.xlu0 %v2729
      %v2731 = vpop.xlane.xlu0 %2730
      %v2732 = vsel %vm731, %v2726, 0.0
      %2733 = vadd.xlane.f32.xlu0 %v2732
      %v2734 = vpop.xlane.xlu0 %2733
      %v2735 = vsel %vm731, %v2727, 0.0
      %2736 = vadd.xlane.f32.xlu0 %v2735
      %v2737 = vpop.xlane.xlu0 %2736
      %v2738 = vsel %vm731, %v2728, 0.0
      %2739 = vadd.xlane.f32.xlu0 %v2738
      %v2740 = vpop.xlane.xlu0 %2739
      %v2741 = vmul.f32 %v2731, %v2716
      %v2742 = vmul.f32 %v2734, %v2716
      %v2743 = vmul.f32 %v2737, %v2716
      %v2744 = vmul.f32 %v2740, %v2716
      %v2745 = vadd.f32 %v2741, 1e-05
      %v2746 = vadd.f32 %v2742, 1e-05
      %v2747 = vadd.f32 %v2743, 1e-05
      %v2748 = vadd.f32 %v2744, 1e-05
      %v2749 = vrsqrt.pop %v2745
      %v2750 = vrsqrt.pop %v2746
      %v2751 = vrsqrt.pop %v2747
      %v2752 = vrsqrt.pop %v2748
      %v2753 = vmul.f32 %v2721, %v2749
      %v2754 = vmul.f32 %v2722, %v2750
      %v2755 = vmul.f32 %v2723, %v2751
      %v2756 = vmul.f32 %v2724, %v2752
      %v2758 = vlaneseq
      %v2759 = vshrl.u32 %v2758, 7
      %v2760 = vsub.s32 0, %v2759
      %v2761 = vrot.slane %v2702, %v2760
      %v2763 = vmul.f32 %v2753, %v2761
      %v2764 = vmul.f32 %v2754, %v2761
      %v2765 = vmul.f32 %v2755, %v2761
      %v2766 = vmul.f32 %v2756, %v2761
      %v2768 = vlaneseq
      %v2769 = vshrl.u32 %v2768, 7
      %v2770 = vsub.s32 0, %v2769
      %v2771 = vrot.slane %v2703, %v2770
      %v2773 = vadd.f32 %v2763, %v2771
      %v2774 = vadd.f32 %v2764, %v2771
      %v2775 = vadd.f32 %v2765, %v2771
      %v2776 = vadd.f32 %v2766, %v2771
      %v2777 = vpack.c.bf16 %v2774, %v2773
      %v2778 = vpack.c.bf16 %v2776, %v2775
      %v2779 = vld [vmem:[%s10] sm:$0xf]
      %v2780 = vld [vmem:[%s10 + $0x4] sm:$0xf]
      %v2781 = vld [vmem:[%s10 + $0x8] sm:$0xf]
      %v2782 = vld [vmem:[%s10 + $0xc] sm:$0xf]
      %v2783 = vld [vmem:[%s11] sm:$0x1]
      %v2785 = vlaneseq
      %v2786 = vshrl.u32 %v2785, 7
      %v2787 = vsub.s32 0, %v2786
      %v2788 = vrot.slane %v2783, %v2787
      %v2794 = vunpack.c.l.b16 %v2779
      %v2795 = vunpack.c.l.b16 %v2780
      %v2796 = vunpack.c.l.b16 %v2781
      %v2797 = vunpack.c.l.b16 %v2782
      %v2798 = vpack.c.b16 %v2795, %v2794
      %v2799 = vpack.c.b16 %v2797, %v2796
      %v2803 = vsel %vm731, %v2777, 0
      %v2806 = vsel %vm731, %v2778, 0
      %2808 = vmatprep.subr.bf16.mxu0 0
      %2809 = vmatpush1.bf16.msra.mxu0 %v2798
      %2810 = vmatprep.subr.bf16.mxu0 0
      %2811 = vmatpush1.bf16.msra.mxu0 %v2799
      %2812 = vmatprep.subr.bf16.mxu0 0
      %2813 = vmatpush1.bf16.msra.mxu0 0
      %2814 = vmatprep.subr.bf16.mxu0 0
      %2815 = vmatpush1.bf16.msra.mxu0 0
      %2816 = vmatprep.subr.bf16.mxu0 0
      %2817 = vmatpush1.bf16.msra.mxu0 0
      %2818 = vmatprep.subr.bf16.mxu0 0
      %2819 = vmatpush1.bf16.msra.mxu0 0
      %2820 = vmatprep.subr.bf16.mxu0 0
      %2821 = vmatpush1.bf16.msra.mxu0 0
      %2822 = vmatprep.subr.bf16.mxu0 0
      %2823 = vmatpush1.bf16.msra.mxu0 0
      %2824 = vmatprep.subr.bf16.mxu0 0
      %2825 = vmatpush1.bf16.msra.mxu0 0
      %2826 = vmatprep.subr.bf16.mxu0 0
      %2827 = vmatpush1.bf16.msra.mxu0 0
      %2828 = vmatprep.subr.bf16.mxu0 0
      %2829 = vmatpush1.bf16.msra.mxu0 0
      %2830 = vmatprep.subr.bf16.mxu0 0
      %2831 = vmatpush1.bf16.msra.mxu0 0
      %2832 = vmatprep.subr.bf16.mxu0 0
      %2833 = vmatpush1.bf16.msra.mxu0 0
      %2834 = vmatprep.subr.bf16.mxu0 0
      %2835 = vmatpush1.bf16.msra.mxu0 0
      %2836 = vmatprep.subr.bf16.mxu0 0
      %2837 = vmatpush1.bf16.msra.mxu0 0
      %2838 = vmatprep.subr.bf16.mxu0 0
      %2839 = vmatpush1.bf16.msra.mxu0 0
      %2840 = vmatprep.mubr.bf16.mxu0 0
      %2841 = vmatmul.mubr.bf16.gmra.mrb[0].mxu0 %v2803
      %v2842 = vpop.f32.mrb[0].mxu0
      %v2843 = vadd.f32 %v2788, %v2842
      %v2844 = vpop.f32.mrb[0].mxu0
      %v2845 = vpop.f32.mrb[0].mxu0
      %v2846 = vadd.f32 %v2788, %v2845
      %v2847 = vpop.f32.mrb[0].mxu0
      %2848 = vmatprep.mubr.bf16.mxu0 0
      %2849 = vmatmul.mubr.bf16.gmra.mrb[0].mxu0 %v2806
      %v2850 = vpop.f32.mrb[0].mxu0
      %v2851 = vadd.f32 %v2788, %v2850
      %v2852 = vpop.f32.mrb[0].mxu0
      %v2853 = vpop.f32.mrb[0].mxu0
      %v2854 = vadd.f32 %v2788, %v2853
      %v2855 = vpop.f32.mrb[0].mxu0
      %2856 = vdwg.mxu0
      %v2857 = vmax.f32 %v2843, 0.0
      %v2858 = vmax.f32 %v2846, 0.0
      %v2859 = vmax.f32 %v2851, 0.0
      %v2860 = vmax.f32 %v2854, 0.0
      %v2861 = vpack.c.bf16 %v2858, %v2857
      %v2862 = vpack.c.bf16 %v2860, %v2859
      %v2863 = vld [vmem:[%s12] sm:$0xf]
      %v2864 = vld [vmem:[%s12 + $0x4] sm:$0xf]
      %v2865 = vld [vmem:[%s12 + $0x8] sm:$0xf]
      %v2866 = vld [vmem:[%s12 + $0xc] sm:$0xf]
      %v2867 = vld [vmem:[%s12 + $0x10] sm:$0xf]
      %v2868 = vld [vmem:[%s12 + $0x14] sm:$0xf]
      %v2869 = vld [vmem:[%s12 + $0x18] sm:$0xf]
      %v2870 = vld [vmem:[%s12 + $0x1c] sm:$0xf]
      %v2871 = vld [vmem:[%s13] sm:$0x1]
      %v2873 = vlaneseq
      %v2874 = vshrl.u32 %v2873, 7
      %v2875 = vsub.s32 0, %v2874
      %v2876 = vrot.slane %v2871, %v2875
      %v2886 = vunpack.c.l.b16 %v2863
      %v2887 = vunpack.c.l.b16 %v2864
      %v2888 = vunpack.c.l.b16 %v2865
      %v2889 = vunpack.c.l.b16 %v2866
      %v2890 = vunpack.c.l.b16 %v2867
      %v2891 = vunpack.c.l.b16 %v2868
      %v2892 = vunpack.c.l.b16 %v2869
      %v2893 = vunpack.c.l.b16 %v2870
      %v2894 = vpack.c.b16 %v2887, %v2886
      %v2895 = vpack.c.b16 %v2889, %v2888
      %v2896 = vpack.c.b16 %v2891, %v2890
      %v2897 = vpack.c.b16 %v2893, %v2892
      %vm2902 = vcmask 523264
      %v2904 = vsel %vm2902, %v2861, 0
      %v2907 = vsel %vm2902, %v2862, 0
      %2909 = vmatprep.subr.bf16.mxu0 0
      %2910 = vmatpush1.bf16.msra.mxu0 %v2894
      %2911 = vmatprep.subr.bf16.mxu0 0
      %2912 = vmatpush1.bf16.msra.mxu0 %v2895
      %2913 = vmatprep.subr.bf16.mxu0 0
      %2914 = vmatpush1.bf16.msra.mxu0 %v2896
      %2915 = vmatprep.subr.bf16.mxu0 0
      %2916 = vmatpush1.bf16.msra.mxu0 %v2897
      %2917 = vmatprep.subr.bf16.mxu0 0
      %2918 = vmatpush1.bf16.msra.mxu0 0
      %2919 = vmatprep.subr.bf16.mxu0 0
      %2920 = vmatpush1.bf16.msra.mxu0 0
      %2921 = vmatprep.subr.bf16.mxu0 0
      %2922 = vmatpush1.bf16.msra.mxu0 0
      %2923 = vmatprep.subr.bf16.mxu0 0
      %2924 = vmatpush1.bf16.msra.mxu0 0
      %2925 = vmatprep.subr.bf16.mxu0 0
      %2926 = vmatpush1.bf16.msra.mxu0 0
      %2927 = vmatprep.subr.bf16.mxu0 0
      %2928 = vmatpush1.bf16.msra.mxu0 0
      %2929 = vmatprep.subr.bf16.mxu0 0
      %2930 = vmatpush1.bf16.msra.mxu0 0
      %2931 = vmatprep.subr.bf16.mxu0 0
      %2932 = vmatpush1.bf16.msra.mxu0 0
      %2933 = vmatprep.subr.bf16.mxu0 0
      %2934 = vmatpush1.bf16.msra.mxu0 0
      %2935 = vmatprep.subr.bf16.mxu0 0
      %2936 = vmatpush1.bf16.msra.mxu0 0
      %2937 = vmatprep.subr.bf16.mxu0 0
      %2938 = vmatpush1.bf16.msra.mxu0 0
      %2939 = vmatprep.subr.bf16.mxu0 0
      %2940 = vmatpush1.bf16.msra.mxu0 0
      %2941 = vmatprep.mubr.bf16.mxu0 0
      %2942 = vmatmul.mubr.bf16.gmra.mrb[0].mxu0 %v2904
      %v2943 = vpop.f32.mrb[0].mxu0
      %v2944 = vadd.f32 %v2876, %v2943
      %v2945 = vpop.f32.mrb[0].mxu0
      %v2946 = vpop.f32.mrb[0].mxu0
      %v2947 = vadd.f32 %v2876, %v2946
      %v2948 = vpop.f32.mrb[0].mxu0
      %2949 = vmatprep.mubr.bf16.mxu0 0
      %2950 = vmatmul.mubr.bf16.gmra.mrb[0].mxu0 %v2907
      %v2951 = vpop.f32.mrb[0].mxu0
      %v2952 = vadd.f32 %v2876, %v2951
      %v2953 = vpop.f32.mrb[0].mxu0
      %v2954 = vpop.f32.mrb[0].mxu0
      %v2955 = vadd.f32 %v2876, %v2954
      %v2956 = vpop.f32.mrb[0].mxu0
      %2957 = vdwg.mxu0
      %v2958 = vadd.f32 %v2773, %v2944
      %v2959 = vadd.f32 %v2774, %v2947
      %v2960 = vadd.f32 %v2775, %v2952
      %v2961 = vadd.f32 %v2776, %v2955
      %v2962 = vld [vmem:[%s14] sm:$0x1]
      %v2963 = vld [vmem:[%s15] sm:$0x1]
      %v2964 = vsel %vm731, %v2958, 0.0
      %2965 = vadd.xlane.f32.xlu0 %v2964
      %v2966 = vpop.xlane.xlu0 %2965
      %v2967 = vsel %vm731, %v2959, 0.0
      %2968 = vadd.xlane.f32.xlu0 %v2967
      %v2969 = vpop.xlane.xlu0 %2968
      %v2970 = vsel %vm731, %v2960, 0.0
      %2971 = vadd.xlane.f32.xlu0 %v2970
      %v2972 = vpop.xlane.xlu0 %2971
      %v2973 = vsel %vm731, %v2961, 0.0
      %2974 = vadd.xlane.f32.xlu0 %v2973
      %v2975 = vpop.xlane.xlu0 %2974
      %v2976 = vmul.f32 %v2966, %v2716
      %v2977 = vmul.f32 %v2969, %v2716
      %v2978 = vmul.f32 %v2972, %v2716
      %v2979 = vmul.f32 %v2975, %v2716
      %v2980 = vsub.f32 %v2958, %v2976
      %v2981 = vsub.f32 %v2959, %v2977
      %v2982 = vsub.f32 %v2960, %v2978
      %v2983 = vsub.f32 %v2961, %v2979
      %v2984 = vmul.f32 %v2980, %v2980
      %v2985 = vmul.f32 %v2981, %v2981
      %v2986 = vmul.f32 %v2982, %v2982
      %v2987 = vmul.f32 %v2983, %v2983
      %v2988 = vsel %vm731, %v2984, 0.0
      %2989 = vadd.xlane.f32.xlu0 %v2988
      %v2990 = vpop.xlane.xlu0 %2989
      %v2991 = vsel %vm731, %v2985, 0.0
      %2992 = vadd.xlane.f32.xlu0 %v2991
      %v2993 = vpop.xlane.xlu0 %2992
      %v2994 = vsel %vm731, %v2986, 0.0
      %2995 = vadd.xlane.f32.xlu0 %v2994
      %v2996 = vpop.xlane.xlu0 %2995
      %v2997 = vsel %vm731, %v2987, 0.0
      %2998 = vadd.xlane.f32.xlu0 %v2997
      %v2999 = vpop.xlane.xlu0 %2998
      %v3000 = vmul.f32 %v2990, %v2716
      %v3001 = vmul.f32 %v2993, %v2716
      %v3002 = vmul.f32 %v2996, %v2716
      %v3003 = vmul.f32 %v2999, %v2716
      %v3004 = vadd.f32 %v3000, 1e-05
      %v3005 = vadd.f32 %v3001, 1e-05
      %v3006 = vadd.f32 %v3002, 1e-05
      %v3007 = vadd.f32 %v3003, 1e-05
      %v3008 = vrsqrt.pop %v3004
      %v3009 = vrsqrt.pop %v3005
      %v3010 = vrsqrt.pop %v3006
      %v3011 = vrsqrt.pop %v3007
      %v3012 = vmul.f32 %v2980, %v3008
      %v3013 = vmul.f32 %v2981, %v3009
      %v3014 = vmul.f32 %v2982, %v3010
      %v3015 = vmul.f32 %v2983, %v3011
      %v3017 = vlaneseq
      %v3018 = vshrl.u32 %v3017, 7
      %v3019 = vsub.s32 0, %v3018
      %v3020 = vrot.slane %v2962, %v3019
      %v3022 = vmul.f32 %v3012, %v3020
      %v3023 = vmul.f32 %v3013, %v3020
      %v3024 = vmul.f32 %v3014, %v3020
      %v3025 = vmul.f32 %v3015, %v3020
      %v3027 = vlaneseq
      %v3028 = vshrl.u32 %v3027, 7
      %v3029 = vsub.s32 0, %v3028
      %v3030 = vrot.slane %v2963, %v3029
      %v3032 = vadd.f32 %v3022, %v3030
      %v3033 = vadd.f32 %v3023, %v3030
      %v3034 = vadd.f32 %v3024, %v3030
      %v3035 = vadd.f32 %v3025, %v3030
      %v3036 = vpack.c.bf16 %v3033, %v3032
      %v3037 = vpack.c.bf16 %v3035, %v3034
      %s3038 = scalar_lea.vmem %s4, 16
      %v3039 = vld [vmem:[%s3038] sm:$0xf]
      %v3040 = vld [vmem:[%s3038 + $0x4] sm:$0xf]
      %v3041 = vld [vmem:[%s3038 + $0x8] sm:$0xf]
      %v3042 = vld [vmem:[%s3038 + $0xc] sm:$0xf]
      %s3043 = scalar_lea.vmem %s5, 1
      %v3044 = vld [vmem:[%s3043] sm:$0x1]
      %v3046 = vlaneseq
      %v3047 = vshrl.u32 %v3046, 7
      %v3048 = vsub.s32 0, %v3047
      %v3049 = vrot.slane %v3044, %v3048
      %v3055 = vunpack.c.l.b16 %v3039
      %v3056 = vunpack.c.l.b16 %v3040
      %v3057 = vunpack.c.l.b16 %v3041
      %v3058 = vunpack.c.l.b16 %v3042
      %v3059 = vpack.c.b16 %v3056, %v3055
      %v3060 = vpack.c.b16 %v3058, %v3057
      %v3064 = vsel %vm731, %v3036, 0
      %v3067 = vsel %vm731, %v3037, 0
      %3069 = vmatprep.subr.bf16.mxu0 0
      %3070 = vmatpush1.bf16.msra.mxu0 %v3059
      %3071 = vmatprep.subr.bf16.mxu0 0
      %3072 = vmatpush1.bf16.msra.mxu0 %v3060
      %3073 = vmatprep.subr.bf16.mxu0 0
      %3074 = vmatpush1.bf16.msra.mxu0 0
      %3075 = vmatprep.subr.bf16.mxu0 0
      %3076 = vmatpush1.bf16.msra.mxu0 0
      %3077 = vmatprep.subr.bf16.mxu0 0
      %3078 = vmatpush1.bf16.msra.mxu0 0
      %3079 = vmatprep.subr.bf16.mxu0 0
      %3080 = vmatpush1.bf16.msra.mxu0 0
      %3081 = vmatprep.subr.bf16.mxu0 0
      %3082 = vmatpush1.bf16.msra.mxu0 0
      %3083 = vmatprep.subr.bf16.mxu0 0
      %3084 = vmatpush1.bf16.msra.mxu0 0
      %3085 = vmatprep.subr.bf16.mxu0 0
      %3086 = vmatpush1.bf16.msra.mxu0 0
      %3087 = vmatprep.subr.bf16.mxu0 0
      %3088 = vmatpush1.bf16.msra.mxu0 0
      %3089 = vmatprep.subr.bf16.mxu0 0
      %3090 = vmatpush1.bf16.msra.mxu0 0
      %3091 = vmatprep.subr.bf16.mxu0 0
      %3092 = vmatpush1.bf16.msra.mxu0 0
      %3093 = vmatprep.subr.bf16.mxu0 0
      %3094 = vmatpush1.bf16.msra.mxu0 0
      %3095 = vmatprep.subr.bf16.mxu0 0
      %3096 = vmatpush1.bf16.msra.mxu0 0
      %3097 = vmatprep.subr.bf16.mxu0 0
      %3098 = vmatpush1.bf16.msra.mxu0 0
      %3099 = vmatprep.subr.bf16.mxu0 0
      %3100 = vmatpush1.bf16.msra.mxu0 0
      %3101 = vmatprep.mubr.bf16.mxu0 0
      %3102 = vmatmul.mubr.bf16.gmra.mrb[0].mxu0 %v3064
      %v3103 = vpop.f32.mrb[0].mxu0
      %v3104 = vadd.f32 %v3049, %v3103
      %v3105 = vpop.f32.mrb[0].mxu0
      %v3106 = vpop.f32.mrb[0].mxu0
      %v3107 = vadd.f32 %v3049, %v3106
      %v3108 = vpop.f32.mrb[0].mxu0
      %3109 = vmatprep.mubr.bf16.mxu0 0
      %3110 = vmatmul.mubr.bf16.gmra.mrb[0].mxu0 %v3067
      %v3111 = vpop.f32.mrb[0].mxu0
      %v3112 = vadd.f32 %v3049, %v3111
      %v3113 = vpop.f32.mrb[0].mxu0
      %v3114 = vpop.f32.mrb[0].mxu0
      %v3115 = vadd.f32 %v3049, %v3114
      %v3116 = vpop.f32.mrb[0].mxu0
      %3117 = vdwg.mxu0
      %v3118 = vpack.c.bf16 %v3107, %v3104
      %v3119 = vpack.c.bf16 %v3115, %v3112
      %3121 = vrot.lane.b32.xlu0 %v3118, 96
      %v3122 = vpop.permute.xlu0 %3121
      %v3124 = vsel %vm792, %v3118, 0
      %v3127 = vsel %vm792, %v3122, 0
      %3129 = vmatprep.subr.bf16.mxu0 0
      %3130 = vmatpush1.bf16.xpose.msra.mxu0 %v3127
      %3131 = vmatprep.subr.bf16.mxu0 0
      %3132 = vmatpush1.bf16.xpose.msra.mxu0 0
      %3133 = vmatprep.subr.bf16.mxu0 0
      %3134 = vmatpush1.bf16.xpose.msra.mxu0 0
      %3135 = vmatprep.subr.bf16.mxu0 0
      %3136 = vmatpush1.bf16.xpose.msra.mxu0 0
      %3137 = vmatprep.subr.bf16.mxu0 0
      %3138 = vmatpush1.bf16.xpose.msra.mxu0 0
      %3139 = vmatprep.subr.bf16.mxu0 0
      %3140 = vmatpush1.bf16.xpose.msra.mxu0 0
      %3141 = vmatprep.subr.bf16.mxu0 0
      %3142 = vmatpush1.bf16.xpose.msra.mxu0 0
      %3143 = vmatprep.subr.bf16.mxu0 0
      %3144 = vmatpush1.bf16.xpose.msra.mxu0 0
      %3145 = vmatprep.subr.bf16.mxu0 0
      %3146 = vmatpush1.bf16.xpose.msra.mxu0 0
      %3147 = vmatprep.subr.bf16.mxu0 0
      %3148 = vmatpush1.bf16.xpose.msra.mxu0 0
      %3149 = vmatprep.subr.bf16.mxu0 0
      %3150 = vmatpush1.bf16.xpose.msra.mxu0 0
      %3151 = vmatprep.subr.bf16.mxu0 0
      %3152 = vmatpush1.bf16.xpose.msra.mxu0 0
      %3153 = vmatprep.subr.bf16.mxu0 0
      %3154 = vmatpush1.bf16.xpose.msra.mxu0 0
      %3155 = vmatprep.subr.bf16.mxu0 0
      %3156 = vmatpush1.bf16.xpose.msra.mxu0 0
      %3157 = vmatprep.subr.bf16.mxu0 0
      %3158 = vmatpush1.bf16.xpose.msra.mxu0 0
      %3159 = vmatprep.subr.bf16.mxu0 0
      %3160 = vmatpush1.bf16.xpose.msra.mxu0 0
      %3161 = vmatprep.mubr.bf16.mxu0 0
      %3162 = vmatmul.mubr.bf16.gmra.mrb[0].mxu0 %v3124
      %v3163 = vpop.f32.mrb[0].mxu0
      %v3164 = vadd.f32 0.0, %v3163
      %v3165 = vpop.f32.mrb[0].mxu0
      %v3166 = vpop.f32.mrb[0].mxu0
      %v3167 = vpop.f32.mrb[0].mxu0
      %3168 = vdwg.mxu0
      %v3169 = vsel %vm792, %v3164, -inf
      %3170 = vmax.xlane.f32.xlu0 %v3169
      %v3171 = vpop.xlane.xlu0 %3170
      %v3172 = vsub.f32 %v3164, %v3171
      %v3173 = vmul.f32 %v3172, 1.442695
      %v3174 = vpow.pop %v3173
      %v3175 = vsel %vm792, %v3174, 0.0
      %3176 = vadd.xlane.f32.xlu0 %v3175
      %v3177 = vpop.xlane.xlu0 %3176
      %v3178 = vrcp.pop %v3177
      %v3179 = vmul.f32 %v3174, %v3178
      %v3180 = vpack.c.bf16 %v3179, %v3179
      %3181 = vrot.lane.b32.xlu0 %v3118, 64
      %v3182 = vpop.permute.xlu0 %3181
      %v3184 = vsel %vm792, %v3180, 0
      %v3187 = vsel %vm856, %v3182, 0
      %3189 = vmatprep.subr.bf16.mxu0 0
      %3190 = vmatpush1.bf16.msra.mxu0 %v3187
      %3191 = vmatprep.subr.bf16.mxu0 0
      %3192 = vmatpush1.bf16.msra.mxu0 0
      %3193 = vmatprep.subr.bf16.mxu0 0
      %3194 = vmatpush1.bf16.msra.mxu0 0
      %3195 = vmatprep.subr.bf16.mxu0 0
      %3196 = vmatpush1.bf16.msra.mxu0 0
      %3197 = vmatprep.subr.bf16.mxu0 0
      %3198 = vmatpush1.bf16.msra.mxu0 0
      %3199 = vmatprep.subr.bf16.mxu0 0
      %3200 = vmatpush1.bf16.msra.mxu0 0
      %3201 = vmatprep.subr.bf16.mxu0 0
      %3202 = vmatpush1.bf16.msra.mxu0 0
      %3203 = vmatprep.subr.bf16.mxu0 0
      %3204 = vmatpush1.bf16.msra.mxu0 0
      %3205 = vmatprep.subr.bf16.mxu0 0
      %3206 = vmatpush1.bf16.msra.mxu0 0
      %3207 = vmatprep.subr.bf16.mxu0 0
      %3208 = vmatpush1.bf16.msra.mxu0 0
      %3209 = vmatprep.subr.bf16.mxu0 0
      %3210 = vmatpush1.bf16.msra.mxu0 0
      %3211 = vmatprep.subr.bf16.mxu0 0
      %3212 = vmatpush1.bf16.msra.mxu0 0
      %3213 = vmatprep.subr.bf16.mxu0 0
      %3214 = vmatpush1.bf16.msra.mxu0 0
      %3215 = vmatprep.subr.bf16.mxu0 0
      %3216 = vmatpush1.bf16.msra.mxu0 0
      %3217 = vmatprep.subr.bf16.mxu0 0
      %3218 = vmatpush1.bf16.msra.mxu0 0
      %3219 = vmatprep.subr.bf16.mxu0 0
      %3220 = vmatpush1.bf16.msra.mxu0 0
      %3221 = vmatprep.mubr.bf16.mxu0 0
      %3222 = vmatmul.mubr.bf16.gmra.mrb[0].mxu0 %v3184
      %v3223 = vpop.f32.mrb[0].mxu0
      %v3224 = vadd.f32 0.0, %v3223
      %v3225 = vpop.f32.mrb[0].mxu0
      %v3226 = vpop.f32.mrb[0].mxu0
      %v3227 = vpop.f32.mrb[0].mxu0
      %3228 = vdwg.mxu0
      %3229 = vst.msk [vmem:[#allocation2] sm:$0xff] %vm792, %v3224
      %3230 = vrot.lane.b32.xlu0 %v3118, 120
      %v3231 = vpop.permute.xlu0 %3230
      %3232 = vrot.lane.b32.xlu0 %v3118, 88
      %v3233 = vpop.permute.xlu0 %3232
      %v3235 = vsel %vm792, %v3231, 0
      %v3238 = vsel %vm792, %v3233, 0
      %3240 = vmatprep.subr.bf16.mxu0 0
      %3241 = vmatpush1.bf16.xpose.msra.mxu0 %v3238
      %3242 = vmatprep.subr.bf16.mxu0 0
      %3243 = vmatpush1.bf16.xpose.msra.mxu0 0
      %3244 = vmatprep.subr.bf16.mxu0 0
      %3245 = vmatpush1.bf16.xpose.msra.mxu0 0
      %3246 = vmatprep.subr.bf16.mxu0 0
      %3247 = vmatpush1.bf16.xpose.msra.mxu0 0
      %3248 = vmatprep.subr.bf16.mxu0 0
      %3249 = vmatpush1.bf16.xpose.msra.mxu0 0
      %3250 = vmatprep.subr.bf16.mxu0 0
      %3251 = vmatpush1.bf16.xpose.msra.mxu0 0
      %3252 = vmatprep.subr.bf16.mxu0 0
      %3253 = vmatpush1.bf16.xpose.msra.mxu0 0
      %3254 = vmatprep.subr.bf16.mxu0 0
      %3255 = vmatpush1.bf16.xpose.msra.mxu0 0
      %3256 = vmatprep.subr.bf16.mxu0 0
      %3257 = vmatpush1.bf16.xpose.msra.mxu0 0
      %3258 = vmatprep.subr.bf16.mxu0 0
      %3259 = vmatpush1.bf16.xpose.msra.mxu0 0
      %3260 = vmatprep.subr.bf16.mxu0 0
      %3261 = vmatpush1.bf16.xpose.msra.mxu0 0
      %3262 = vmatprep.subr.bf16.mxu0 0
      %3263 = vmatpush1.bf16.xpose.msra.mxu0 0
      %3264 = vmatprep.subr.bf16.mxu0 0
      %3265 = vmatpush1.bf16.xpose.msra.mxu0 0
      %3266 = vmatprep.subr.bf16.mxu0 0
      %3267 = vmatpush1.bf16.xpose.msra.mxu0 0
      %3268 = vmatprep.subr.bf16.mxu0 0
      %3269 = vmatpush1.bf16.xpose.msra.mxu0 0
      %3270 = vmatprep.subr.bf16.mxu0 0
      %3271 = vmatpush1.bf16.xpose.msra.mxu0 0
      %3272 = vmatprep.mubr.bf16.mxu0 0
      %3273 = vmatmul.mubr.bf16.gmra.mrb[0].mxu0 %v3235
      %v3274 = vpop.f32.mrb[0].mxu0
      %v3275 = vadd.f32 0.0, %v3274
      %v3276 = vpop.f32.mrb[0].mxu0
      %v3277 = vpop.f32.mrb[0].mxu0
      %v3278 = vpop.f32.mrb[0].mxu0
      %3279 = vdwg.mxu0
      %v3280 = vsel %vm792, %v3275, -inf
      %3281 = vmax.xlane.f32.xlu0 %v3280
      %v3282 = vpop.xlane.xlu0 %3281
      %v3283 = vsub.f32 %v3275, %v3282
      %v3284 = vmul.f32 %v3283, 1.442695
      %v3285 = vpow.pop %v3284
      %v3286 = vsel %vm792, %v3285, 0.0
      %3287 = vadd.xlane.f32.xlu0 %v3286
      %v3288 = vpop.xlane.xlu0 %3287
      %v3289 = vrcp.pop %v3288
      %v3290 = vmul.f32 %v3285, %v3289
      %v3291 = vpack.c.bf16 %v3290, %v3290
      %3292 = vrot.lane.b32.xlu0 %v3118, 56
      %v3293 = vpop.permute.xlu0 %3292
      %v3295 = vsel %vm792, %v3291, 0
      %v3298 = vsel %vm856, %v3293, 0
      %3300 = vmatprep.subr.bf16.mxu0 0
      %3301 = vmatpush1.bf16.msra.mxu0 %v3298
      %3302 = vmatprep.subr.bf16.mxu0 0
      %3303 = vmatpush1.bf16.msra.mxu0 0
      %3304 = vmatprep.subr.bf16.mxu0 0
      %3305 = vmatpush1.bf16.msra.mxu0 0
      %3306 = vmatprep.subr.bf16.mxu0 0
      %3307 = vmatpush1.bf16.msra.mxu0 0
      %3308 = vmatprep.subr.bf16.mxu0 0
      %3309 = vmatpush1.bf16.msra.mxu0 0
      %3310 = vmatprep.subr.bf16.mxu0 0
      %3311 = vmatpush1.bf16.msra.mxu0 0
      %3312 = vmatprep.subr.bf16.mxu0 0
      %3313 = vmatpush1.bf16.msra.mxu0 0
      %3314 = vmatprep.subr.bf16.mxu0 0
      %3315 = vmatpush1.bf16.msra.mxu0 0
      %3316 = vmatprep.subr.bf16.mxu0 0
      %3317 = vmatpush1.bf16.msra.mxu0 0
      %3318 = vmatprep.subr.bf16.mxu0 0
      %3319 = vmatpush1.bf16.msra.mxu0 0
      %3320 = vmatprep.subr.bf16.mxu0 0
      %3321 = vmatpush1.bf16.msra.mxu0 0
      %3322 = vmatprep.subr.bf16.mxu0 0
      %3323 = vmatpush1.bf16.msra.mxu0 0
      %3324 = vmatprep.subr.bf16.mxu0 0
      %3325 = vmatpush1.bf16.msra.mxu0 0
      %3326 = vmatprep.subr.bf16.mxu0 0
      %3327 = vmatpush1.bf16.msra.mxu0 0
      %3328 = vmatprep.subr.bf16.mxu0 0
      %3329 = vmatpush1.bf16.msra.mxu0 0
      %3330 = vmatprep.subr.bf16.mxu0 0
      %3331 = vmatpush1.bf16.msra.mxu0 0
      %3332 = vmatprep.mubr.bf16.mxu0 0
      %3333 = vmatmul.mubr.bf16.gmra.mrb[0].mxu0 %v3295
      %v3334 = vpop.f32.mrb[0].mxu0
      %v3335 = vadd.f32 0.0, %v3334
      %v3336 = vpop.f32.mrb[0].mxu0
      %v3337 = vpop.f32.mrb[0].mxu0
      %v3338 = vpop.f32.mrb[0].mxu0
      %3339 = vdwg.mxu0
      %3341 = vrot.lane.b32.xlu0 %v3335, 8
      %v3342 = vpop.permute.xlu0 %3341
      %3344 = vst.msk [vmem:[#allocation2] sm:$0xff] %vm1015, %v3342
      %3345 = vrot.lane.b32.xlu0 %v3118, 112
      %v3346 = vpop.permute.xlu0 %3345
      %3347 = vrot.lane.b32.xlu0 %v3118, 80
      %v3348 = vpop.permute.xlu0 %3347
      %v3350 = vsel %vm792, %v3346, 0
      %v3353 = vsel %vm792, %v3348, 0
      %3355 = vmatprep.subr.bf16.mxu0 0
      %3356 = vmatpush1.bf16.xpose.msra.mxu0 %v3353
      %3357 = vmatprep.subr.bf16.mxu0 0
      %3358 = vmatpush1.bf16.xpose.msra.mxu0 0
      %3359 = vmatprep.subr.bf16.mxu0 0
      %3360 = vmatpush1.bf16.xpose.msra.mxu0 0
      %3361 = vmatprep.subr.bf16.mxu0 0
      %3362 = vmatpush1.bf16.xpose.msra.mxu0 0
      %3363 = vmatprep.subr.bf16.mxu0 0
      %3364 = vmatpush1.bf16.xpose.msra.mxu0 0
      %3365 = vmatprep.subr.bf16.mxu0 0
      %3366 = vmatpush1.bf16.xpose.msra.mxu0 0
      %3367 = vmatprep.subr.bf16.mxu0 0
      %3368 = vmatpush1.bf16.xpose.msra.mxu0 0
      %3369 = vmatprep.subr.bf16.mxu0 0
      %3370 = vmatpush1.bf16.xpose.msra.mxu0 0
      %3371 = vmatprep.subr.bf16.mxu0 0
      %3372 = vmatpush1.bf16.xpose.msra.mxu0 0
      %3373 = vmatprep.subr.bf16.mxu0 0
      %3374 = vmatpush1.bf16.xpose.msra.mxu0 0
      %3375 = vmatprep.subr.bf16.mxu0 0
      %3376 = vmatpush1.bf16.xpose.msra.mxu0 0
      %3377 = vmatprep.subr.bf16.mxu0 0
      %3378 = vmatpush1.bf16.xpose.msra.mxu0 0
      %3379 = vmatprep.subr.bf16.mxu0 0
      %3380 = vmatpush1.bf16.xpose.msra.mxu0 0
      %3381 = vmatprep.subr.bf16.mxu0 0
      %3382 = vmatpush1.bf16.xpose.msra.mxu0 0
      %3383 = vmatprep.subr.bf16.mxu0 0
      %3384 = vmatpush1.bf16.xpose.msra.mxu0 0
      %3385 = vmatprep.subr.bf16.mxu0 0
      %3386 = vmatpush1.bf16.xpose.msra.mxu0 0
      %3387 = vmatprep.mubr.bf16.mxu0 0
      %3388 = vmatmul.mubr.bf16.gmra.mrb[0].mxu0 %v3350
      %v3389 = vpop.f32.mrb[0].mxu0
      %v3390 = vadd.f32 0.0, %v3389
      %v3391 = vpop.f32.mrb[0].mxu0
      %v3392 = vpop.f32.mrb[0].mxu0
      %v3393 = vpop.f32.mrb[0].mxu0
      %3394 = vdwg.mxu0
      %v3395 = vsel %vm792, %v3390, -inf
      %3396 = vmax.xlane.f32.xlu0 %v3395
      %v3397 = vpop.xlane.xlu0 %3396
      %v3398 = vsub.f32 %v3390, %v3397
      %v3399 = vmul.f32 %v3398, 1.442695
      %v3400 = vpow.pop %v3399
      %v3401 = vsel %vm792, %v3400, 0.0
      %3402 = vadd.xlane.f32.xlu0 %v3401
      %v3403 = vpop.xlane.xlu0 %3402
      %v3404 = vrcp.pop %v3403
      %v3405 = vmul.f32 %v3400, %v3404
      %v3406 = vpack.c.bf16 %v3405, %v3405
      %3407 = vrot.lane.b32.xlu0 %v3118, 48
      %v3408 = vpop.permute.xlu0 %3407
      %v3410 = vsel %vm792, %v3406, 0
      %v3413 = vsel %vm856, %v3408, 0
      %3415 = vmatprep.subr.bf16.mxu0 0
      %3416 = vmatpush1.bf16.msra.mxu0 %v3413
      %3417 = vmatprep.subr.bf16.mxu0 0
      %3418 = vmatpush1.bf16.msra.mxu0 0
      %3419 = vmatprep.subr.bf16.mxu0 0
      %3420 = vmatpush1.bf16.msra.mxu0 0
      %3421 = vmatprep.subr.bf16.mxu0 0
      %3422 = vmatpush1.bf16.msra.mxu0 0
      %3423 = vmatprep.subr.bf16.mxu0 0
      %3424 = vmatpush1.bf16.msra.mxu0 0
      %3425 = vmatprep.subr.bf16.mxu0 0
      %3426 = vmatpush1.bf16.msra.mxu0 0
      %3427 = vmatprep.subr.bf16.mxu0 0
      %3428 = vmatpush1.bf16.msra.mxu0 0
      %3429 = vmatprep.subr.bf16.mxu0 0
      %3430 = vmatpush1.bf16.msra.mxu0 0
      %3431 = vmatprep.subr.bf16.mxu0 0
      %3432 = vmatpush1.bf16.msra.mxu0 0
      %3433 = vmatprep.subr.bf16.mxu0 0
      %3434 = vmatpush1.bf16.msra.mxu0 0
      %3435 = vmatprep.subr.bf16.mxu0 0
      %3436 = vmatpush1.bf16.msra.mxu0 0
      %3437 = vmatprep.subr.bf16.mxu0 0
      %3438 = vmatpush1.bf16.msra.mxu0 0
      %3439 = vmatprep.subr.bf16.mxu0 0
      %3440 = vmatpush1.bf16.msra.mxu0 0
      %3441 = vmatprep.subr.bf16.mxu0 0
      %3442 = vmatpush1.bf16.msra.mxu0 0
      %3443 = vmatprep.subr.bf16.mxu0 0
      %3444 = vmatpush1.bf16.msra.mxu0 0
      %3445 = vmatprep.subr.bf16.mxu0 0
      %3446 = vmatpush1.bf16.msra.mxu0 0
      %3447 = vmatprep.mubr.bf16.mxu0 0
      %3448 = vmatmul.mubr.bf16.gmra.mrb[0].mxu0 %v3410
      %v3449 = vpop.f32.mrb[0].mxu0
      %v3450 = vadd.f32 0.0, %v3449
      %v3451 = vpop.f32.mrb[0].mxu0
      %v3452 = vpop.f32.mrb[0].mxu0
      %v3453 = vpop.f32.mrb[0].mxu0
      %3454 = vdwg.mxu0
      %3456 = vrot.lane.b32.xlu0 %v3450, 16
      %v3457 = vpop.permute.xlu0 %3456
      %3459 = vst.msk [vmem:[#allocation2] sm:$0xff] %vm1131, %v3457
      %3460 = vrot.lane.b32.xlu0 %v3118, 104
      %v3461 = vpop.permute.xlu0 %3460
      %3462 = vrot.lane.b32.xlu0 %v3118, 72
      %v3463 = vpop.permute.xlu0 %3462
      %v3465 = vsel %vm792, %v3461, 0
      %v3468 = vsel %vm792, %v3463, 0
      %3470 = vmatprep.subr.bf16.mxu0 0
      %3471 = vmatpush1.bf16.xpose.msra.mxu0 %v3468
      %3472 = vmatprep.subr.bf16.mxu0 0
      %3473 = vmatpush1.bf16.xpose.msra.mxu0 0
      %3474 = vmatprep.subr.bf16.mxu0 0
      %3475 = vmatpush1.bf16.xpose.msra.mxu0 0
      %3476 = vmatprep.subr.bf16.mxu0 0
      %3477 = vmatpush1.bf16.xpose.msra.mxu0 0
      %3478 = vmatprep.subr.bf16.mxu0 0
      %3479 = vmatpush1.bf16.xpose.msra.mxu0 0
      %3480 = vmatprep.subr.bf16.mxu0 0
      %3481 = vmatpush1.bf16.xpose.msra.mxu0 0
      %3482 = vmatprep.subr.bf16.mxu0 0
      %3483 = vmatpush1.bf16.xpose.msra.mxu0 0
      %3484 = vmatprep.subr.bf16.mxu0 0
      %3485 = vmatpush1.bf16.xpose.msra.mxu0 0
      %3486 = vmatprep.subr.bf16.mxu0 0
      %3487 = vmatpush1.bf16.xpose.msra.mxu0 0
      %3488 = vmatprep.subr.bf16.mxu0 0
      %3489 = vmatpush1.bf16.xpose.msra.mxu0 0
      %3490 = vmatprep.subr.bf16.mxu0 0
      %3491 = vmatpush1.bf16.xpose.msra.mxu0 0
      %3492 = vmatprep.subr.bf16.mxu0 0
      %3493 = vmatpush1.bf16.xpose.msra.mxu0 0
      %3494 = vmatprep.subr.bf16.mxu0 0
      %3495 = vmatpush1.bf16.xpose.msra.mxu0 0
      %3496 = vmatprep.subr.bf16.mxu0 0
      %3497 = vmatpush1.bf16.xpose.msra.mxu0 0
      %3498 = vmatprep.subr.bf16.mxu0 0
      %3499 = vmatpush1.bf16.xpose.msra.mxu0 0
      %3500 = vmatprep.subr.bf16.mxu0 0
      %3501 = vmatpush1.bf16.xpose.msra.mxu0 0
      %3502 = vmatprep.mubr.bf16.mxu0 0
      %3503 = vmatmul.mubr.bf16.gmra.mrb[0].mxu0 %v3465
      %v3504 = vpop.f32.mrb[0].mxu0
      %v3505 = vadd.f32 0.0, %v3504
      %v3506 = vpop.f32.mrb[0].mxu0
      %v3507 = vpop.f32.mrb[0].mxu0
      %v3508 = vpop.f32.mrb[0].mxu0
      %3509 = vdwg.mxu0
      %v3510 = vsel %vm792, %v3505, -inf
      %3511 = vmax.xlane.f32.xlu0 %v3510
      %v3512 = vpop.xlane.xlu0 %3511
      %v3513 = vsub.f32 %v3505, %v3512
      %v3514 = vmul.f32 %v3513, 1.442695
      %v3515 = vpow.pop %v3514
      %v3516 = vsel %vm792, %v3515, 0.0
      %3517 = vadd.xlane.f32.xlu0 %v3516
      %v3518 = vpop.xlane.xlu0 %3517
      %v3519 = vrcp.pop %v3518
      %v3520 = vmul.f32 %v3515, %v3519
      %v3521 = vpack.c.bf16 %v3520, %v3520
      %3522 = vrot.lane.b32.xlu0 %v3118, 40
      %v3523 = vpop.permute.xlu0 %3522
      %v3525 = vsel %vm792, %v3521, 0
      %v3528 = vsel %vm856, %v3523, 0
      %3530 = vmatprep.subr.bf16.mxu0 0
      %3531 = vmatpush1.bf16.msra.mxu0 %v3528
      %3532 = vmatprep.subr.bf16.mxu0 0
      %3533 = vmatpush1.bf16.msra.mxu0 0
      %3534 = vmatprep.subr.bf16.mxu0 0
      %3535 = vmatpush1.bf16.msra.mxu0 0
      %3536 = vmatprep.subr.bf16.mxu0 0
      %3537 = vmatpush1.bf16.msra.mxu0 0
      %3538 = vmatprep.subr.bf16.mxu0 0
      %3539 = vmatpush1.bf16.msra.mxu0 0
      %3540 = vmatprep.subr.bf16.mxu0 0
      %3541 = vmatpush1.bf16.msra.mxu0 0
      %3542 = vmatprep.subr.bf16.mxu0 0
      %3543 = vmatpush1.bf16.msra.mxu0 0
      %3544 = vmatprep.subr.bf16.mxu0 0
      %3545 = vmatpush1.bf16.msra.mxu0 0
      %3546 = vmatprep.subr.bf16.mxu0 0
      %3547 = vmatpush1.bf16.msra.mxu0 0
      %3548 = vmatprep.subr.bf16.mxu0 0
      %3549 = vmatpush1.bf16.msra.mxu0 0
      %3550 = vmatprep.subr.bf16.mxu0 0
      %3551 = vmatpush1.bf16.msra.mxu0 0
      %3552 = vmatprep.subr.bf16.mxu0 0
      %3553 = vmatpush1.bf16.msra.mxu0 0
      %3554 = vmatprep.subr.bf16.mxu0 0
      %3555 = vmatpush1.bf16.msra.mxu0 0
      %3556 = vmatprep.subr.bf16.mxu0 0
      %3557 = vmatpush1.bf16.msra.mxu0 0
      %3558 = vmatprep.subr.bf16.mxu0 0
      %3559 = vmatpush1.bf16.msra.mxu0 0
      %3560 = vmatprep.subr.bf16.mxu0 0
      %3561 = vmatpush1.bf16.msra.mxu0 0
      %3562 = vmatprep.mubr.bf16.mxu0 0
      %3563 = vmatmul.mubr.bf16.gmra.mrb[0].mxu0 %v3525
      %v3564 = vpop.f32.mrb[0].mxu0
      %v3565 = vadd.f32 0.0, %v3564
      %v3566 = vpop.f32.mrb[0].mxu0
      %v3567 = vpop.f32.mrb[0].mxu0
      %v3568 = vpop.f32.mrb[0].mxu0
      %3569 = vdwg.mxu0
      %3571 = vrot.lane.b32.xlu0 %v3565, 24
      %v3572 = vpop.permute.xlu0 %3571
      %3574 = vst.msk [vmem:[#allocation2] sm:$0xff] %vm1247, %v3572
      %v3575 = vrot.slane %v3118, 4
      %3576 = vrot.lane.b32.xlu0 %v3575, 96
      %v3577 = vpop.permute.xlu0 %3576
      %v3579 = vsel %vm792, %v3575, 0
      %v3582 = vsel %vm792, %v3577, 0
      %3584 = vmatprep.subr.bf16.mxu0 0
      %3585 = vmatpush1.bf16.xpose.msra.mxu0 %v3582
      %3586 = vmatprep.subr.bf16.mxu0 0
      %3587 = vmatpush1.bf16.xpose.msra.mxu0 0
      %3588 = vmatprep.subr.bf16.mxu0 0
      %3589 = vmatpush1.bf16.xpose.msra.mxu0 0
      %3590 = vmatprep.subr.bf16.mxu0 0
      %3591 = vmatpush1.bf16.xpose.msra.mxu0 0
      %3592 = vmatprep.subr.bf16.mxu0 0
      %3593 = vmatpush1.bf16.xpose.msra.mxu0 0
      %3594 = vmatprep.subr.bf16.mxu0 0
      %3595 = vmatpush1.bf16.xpose.msra.mxu0 0
      %3596 = vmatprep.subr.bf16.mxu0 0
      %3597 = vmatpush1.bf16.xpose.msra.mxu0 0
      %3598 = vmatprep.subr.bf16.mxu0 0
      %3599 = vmatpush1.bf16.xpose.msra.mxu0 0
      %3600 = vmatprep.subr.bf16.mxu0 0
      %3601 = vmatpush1.bf16.xpose.msra.mxu0 0
      %3602 = vmatprep.subr.bf16.mxu0 0
      %3603 = vmatpush1.bf16.xpose.msra.mxu0 0
      %3604 = vmatprep.subr.bf16.mxu0 0
      %3605 = vmatpush1.bf16.xpose.msra.mxu0 0
      %3606 = vmatprep.subr.bf16.mxu0 0
      %3607 = vmatpush1.bf16.xpose.msra.mxu0 0
      %3608 = vmatprep.subr.bf16.mxu0 0
      %3609 = vmatpush1.bf16.xpose.msra.mxu0 0
      %3610 = vmatprep.subr.bf16.mxu0 0
      %3611 = vmatpush1.bf16.xpose.msra.mxu0 0
      %3612 = vmatprep.subr.bf16.mxu0 0
      %3613 = vmatpush1.bf16.xpose.msra.mxu0 0
      %3614 = vmatprep.subr.bf16.mxu0 0
      %3615 = vmatpush1.bf16.xpose.msra.mxu0 0
      %3616 = vmatprep.mubr.bf16.mxu0 0
      %3617 = vmatmul.mubr.bf16.gmra.mrb[0].mxu0 %v3579
      %v3618 = vpop.f32.mrb[0].mxu0
      %v3619 = vadd.f32 0.0, %v3618
      %v3620 = vpop.f32.mrb[0].mxu0
      %v3621 = vpop.f32.mrb[0].mxu0
      %v3622 = vpop.f32.mrb[0].mxu0
      %3623 = vdwg.mxu0
      %v3624 = vsel %vm792, %v3619, -inf
      %3625 = vmax.xlane.f32.xlu0 %v3624
      %v3626 = vpop.xlane.xlu0 %3625
      %v3627 = vsub.f32 %v3619, %v3626
      %v3628 = vmul.f32 %v3627, 1.442695
      %v3629 = vpow.pop %v3628
      %v3630 = vsel %vm792, %v3629, 0.0
      %3631 = vadd.xlane.f32.xlu0 %v3630
      %v3632 = vpop.xlane.xlu0 %3631
      %v3633 = vrcp.pop %v3632
      %v3634 = vmul.f32 %v3629, %v3633
      %v3635 = vpack.c.bf16 %v3634, %v3634
      %3636 = vrot.lane.b32.xlu0 %v3575, 64
      %v3637 = vpop.permute.xlu0 %3636
      %v3639 = vsel %vm792, %v3635, 0
      %v3642 = vsel %vm856, %v3637, 0
      %3644 = vmatprep.subr.bf16.mxu0 0
      %3645 = vmatpush1.bf16.msra.mxu0 %v3642
      %3646 = vmatprep.subr.bf16.mxu0 0
      %3647 = vmatpush1.bf16.msra.mxu0 0
      %3648 = vmatprep.subr.bf16.mxu0 0
      %3649 = vmatpush1.bf16.msra.mxu0 0
      %3650 = vmatprep.subr.bf16.mxu0 0
      %3651 = vmatpush1.bf16.msra.mxu0 0
      %3652 = vmatprep.subr.bf16.mxu0 0
      %3653 = vmatpush1.bf16.msra.mxu0 0
      %3654 = vmatprep.subr.bf16.mxu0 0
      %3655 = vmatpush1.bf16.msra.mxu0 0
      %3656 = vmatprep.subr.bf16.mxu0 0
      %3657 = vmatpush1.bf16.msra.mxu0 0
      %3658 = vmatprep.subr.bf16.mxu0 0
      %3659 = vmatpush1.bf16.msra.mxu0 0
      %3660 = vmatprep.subr.bf16.mxu0 0
      %3661 = vmatpush1.bf16.msra.mxu0 0
      %3662 = vmatprep.subr.bf16.mxu0 0
      %3663 = vmatpush1.bf16.msra.mxu0 0
      %3664 = vmatprep.subr.bf16.mxu0 0
      %3665 = vmatpush1.bf16.msra.mxu0 0
      %3666 = vmatprep.subr.bf16.mxu0 0
      %3667 = vmatpush1.bf16.msra.mxu0 0
      %3668 = vmatprep.subr.bf16.mxu0 0
      %3669 = vmatpush1.bf16.msra.mxu0 0
      %3670 = vmatprep.subr.bf16.mxu0 0
      %3671 = vmatpush1.bf16.msra.mxu0 0
      %3672 = vmatprep.subr.bf16.mxu0 0
      %3673 = vmatpush1.bf16.msra.mxu0 0
      %3674 = vmatprep.subr.bf16.mxu0 0
      %3675 = vmatpush1.bf16.msra.mxu0 0
      %3676 = vmatprep.mubr.bf16.mxu0 0
      %3677 = vmatmul.mubr.bf16.gmra.mrb[0].mxu0 %v3639
      %v3678 = vpop.f32.mrb[0].mxu0
      %v3679 = vadd.f32 0.0, %v3678
      %v3680 = vpop.f32.mrb[0].mxu0
      %v3681 = vpop.f32.mrb[0].mxu0
      %v3682 = vpop.f32.mrb[0].mxu0
      %3683 = vdwg.mxu0
      %3684 = vst.msk [vmem:[#allocation2 + $0x8] sm:$0xff] %vm792, %v3679
      %3685 = vrot.lane.b32.xlu0 %v3575, 120
      %v3686 = vpop.permute.xlu0 %3685
      %3687 = vrot.lane.b32.xlu0 %v3575, 88
      %v3688 = vpop.permute.xlu0 %3687
      %v3690 = vsel %vm792, %v3686, 0
      %v3693 = vsel %vm792, %v3688, 0
      %3695 = vmatprep.subr.bf16.mxu0 0
      %3696 = vmatpush1.bf16.xpose.msra.mxu0 %v3693
      %3697 = vmatprep.subr.bf16.mxu0 0
      %3698 = vmatpush1.bf16.xpose.msra.mxu0 0
      %3699 = vmatprep.subr.bf16.mxu0 0
      %3700 = vmatpush1.bf16.xpose.msra.mxu0 0
      %3701 = vmatprep.subr.bf16.mxu0 0
      %3702 = vmatpush1.bf16.xpose.msra.mxu0 0
      %3703 = vmatprep.subr.bf16.mxu0 0
      %3704 = vmatpush1.bf16.xpose.msra.mxu0 0
      %3705 = vmatprep.subr.bf16.mxu0 0
      %3706 = vmatpush1.bf16.xpose.msra.mxu0 0
      %3707 = vmatprep.subr.bf16.mxu0 0
      %3708 = vmatpush1.bf16.xpose.msra.mxu0 0
      %3709 = vmatprep.subr.bf16.mxu0 0
      %3710 = vmatpush1.bf16.xpose.msra.mxu0 0
      %3711 = vmatprep.subr.bf16.mxu0 0
      %3712 = vmatpush1.bf16.xpose.msra.mxu0 0
      %3713 = vmatprep.subr.bf16.mxu0 0
      %3714 = vmatpush1.bf16.xpose.msra.mxu0 0
      %3715 = vmatprep.subr.bf16.mxu0 0
      %3716 = vmatpush1.bf16.xpose.msra.mxu0 0
      %3717 = vmatprep.subr.bf16.mxu0 0
      %3718 = vmatpush1.bf16.xpose.msra.mxu0 0
      %3719 = vmatprep.subr.bf16.mxu0 0
      %3720 = vmatpush1.bf16.xpose.msra.mxu0 0
      %3721 = vmatprep.subr.bf16.mxu0 0
      %3722 = vmatpush1.bf16.xpose.msra.mxu0 0
      %3723 = vmatprep.subr.bf16.mxu0 0
      %3724 = vmatpush1.bf16.xpose.msra.mxu0 0
      %3725 = vmatprep.subr.bf16.mxu0 0
      %3726 = vmatpush1.bf16.xpose.msra.mxu0 0
      %3727 = vmatprep.mubr.bf16.mxu0 0
      %3728 = vmatmul.mubr.bf16.gmra.mrb[0].mxu0 %v3690
      %v3729 = vpop.f32.mrb[0].mxu0
      %v3730 = vadd.f32 0.0, %v3729
      %v3731 = vpop.f32.mrb[0].mxu0
      %v3732 = vpop.f32.mrb[0].mxu0
      %v3733 = vpop.f32.mrb[0].mxu0
      %3734 = vdwg.mxu0
      %v3735 = vsel %vm792, %v3730, -inf
      %3736 = vmax.xlane.f32.xlu0 %v3735
      %v3737 = vpop.xlane.xlu0 %3736
      %v3738 = vsub.f32 %v3730, %v3737
      %v3739 = vmul.f32 %v3738, 1.442695
      %v3740 = vpow.pop %v3739
      %v3741 = vsel %vm792, %v3740, 0.0
      %3742 = vadd.xlane.f32.xlu0 %v3741
      %v3743 = vpop.xlane.xlu0 %3742
      %v3744 = vrcp.pop %v3743
      %v3745 = vmul.f32 %v3740, %v3744
      %v3746 = vpack.c.bf16 %v3745, %v3745
      %3747 = vrot.lane.b32.xlu0 %v3575, 56
      %v3748 = vpop.permute.xlu0 %3747
      %v3750 = vsel %vm792, %v3746, 0
      %v3753 = vsel %vm856, %v3748, 0
      %3755 = vmatprep.subr.bf16.mxu0 0
      %3756 = vmatpush1.bf16.msra.mxu0 %v3753
      %3757 = vmatprep.subr.bf16.mxu0 0
      %3758 = vmatpush1.bf16.msra.mxu0 0
      %3759 = vmatprep.subr.bf16.mxu0 0
      %3760 = vmatpush1.bf16.msra.mxu0 0
      %3761 = vmatprep.subr.bf16.mxu0 0
      %3762 = vmatpush1.bf16.msra.mxu0 0
      %3763 = vmatprep.subr.bf16.mxu0 0
      %3764 = vmatpush1.bf16.msra.mxu0 0
      %3765 = vmatprep.subr.bf16.mxu0 0
      %3766 = vmatpush1.bf16.msra.mxu0 0
      %3767 = vmatprep.subr.bf16.mxu0 0
      %3768 = vmatpush1.bf16.msra.mxu0 0
      %3769 = vmatprep.subr.bf16.mxu0 0
      %3770 = vmatpush1.bf16.msra.mxu0 0
      %3771 = vmatprep.subr.bf16.mxu0 0
      %3772 = vmatpush1.bf16.msra.mxu0 0
      %3773 = vmatprep.subr.bf16.mxu0 0
      %3774 = vmatpush1.bf16.msra.mxu0 0
      %3775 = vmatprep.subr.bf16.mxu0 0
      %3776 = vmatpush1.bf16.msra.mxu0 0
      %3777 = vmatprep.subr.bf16.mxu0 0
      %3778 = vmatpush1.bf16.msra.mxu0 0
      %3779 = vmatprep.subr.bf16.mxu0 0
      %3780 = vmatpush1.bf16.msra.mxu0 0
      %3781 = vmatprep.subr.bf16.mxu0 0
      %3782 = vmatpush1.bf16.msra.mxu0 0
      %3783 = vmatprep.subr.bf16.mxu0 0
      %3784 = vmatpush1.bf16.msra.mxu0 0
      %3785 = vmatprep.subr.bf16.mxu0 0
      %3786 = vmatpush1.bf16.msra.mxu0 0
      %3787 = vmatprep.mubr.bf16.mxu0 0
      %3788 = vmatmul.mubr.bf16.gmra.mrb[0].mxu0 %v3750
      %v3789 = vpop.f32.mrb[0].mxu0
      %v3790 = vadd.f32 0.0, %v3789
      %v3791 = vpop.f32.mrb[0].mxu0
      %v3792 = vpop.f32.mrb[0].mxu0
      %v3793 = vpop.f32.mrb[0].mxu0
      %3794 = vdwg.mxu0
      %3796 = vrot.lane.b32.xlu0 %v3790, 8
      %v3797 = vpop.permute.xlu0 %3796
      %3799 = vst.msk [vmem:[#allocation2 + $0x8] sm:$0xff] %vm1015, %v3797
      %3800 = vrot.lane.b32.xlu0 %v3575, 112
      %v3801 = vpop.permute.xlu0 %3800
      %3802 = vrot.lane.b32.xlu0 %v3575, 80
      %v3803 = vpop.permute.xlu0 %3802
      %v3805 = vsel %vm792, %v3801, 0
      %v3808 = vsel %vm792, %v3803, 0
      %3810 = vmatprep.subr.bf16.mxu0 0
      %3811 = vmatpush1.bf16.xpose.msra.mxu0 %v3808
      %3812 = vmatprep.subr.bf16.mxu0 0
      %3813 = vmatpush1.bf16.xpose.msra.mxu0 0
      %3814 = vmatprep.subr.bf16.mxu0 0
      %3815 = vmatpush1.bf16.xpose.msra.mxu0 0
      %3816 = vmatprep.subr.bf16.mxu0 0
      %3817 = vmatpush1.bf16.xpose.msra.mxu0 0
      %3818 = vmatprep.subr.bf16.mxu0 0
      %3819 = vmatpush1.bf16.xpose.msra.mxu0 0
      %3820 = vmatprep.subr.bf16.mxu0 0
      %3821 = vmatpush1.bf16.xpose.msra.mxu0 0
      %3822 = vmatprep.subr.bf16.mxu0 0
      %3823 = vmatpush1.bf16.xpose.msra.mxu0 0
      %3824 = vmatprep.subr.bf16.mxu0 0
      %3825 = vmatpush1.bf16.xpose.msra.mxu0 0
      %3826 = vmatprep.subr.bf16.mxu0 0
      %3827 = vmatpush1.bf16.xpose.msra.mxu0 0
      %3828 = vmatprep.subr.bf16.mxu0 0
      %3829 = vmatpush1.bf16.xpose.msra.mxu0 0
      %3830 = vmatprep.subr.bf16.mxu0 0
      %3831 = vmatpush1.bf16.xpose.msra.mxu0 0
      %3832 = vmatprep.subr.bf16.mxu0 0
      %3833 = vmatpush1.bf16.xpose.msra.mxu0 0
      %3834 = vmatprep.subr.bf16.mxu0 0
      %3835 = vmatpush1.bf16.xpose.msra.mxu0 0
      %3836 = vmatprep.subr.bf16.mxu0 0
      %3837 = vmatpush1.bf16.xpose.msra.mxu0 0
      %3838 = vmatprep.subr.bf16.mxu0 0
      %3839 = vmatpush1.bf16.xpose.msra.mxu0 0
      %3840 = vmatprep.subr.bf16.mxu0 0
      %3841 = vmatpush1.bf16.xpose.msra.mxu0 0
      %3842 = vmatprep.mubr.bf16.mxu0 0
      %3843 = vmatmul.mubr.bf16.gmra.mrb[0].mxu0 %v3805
      %v3844 = vpop.f32.mrb[0].mxu0
      %v3845 = vadd.f32 0.0, %v3844
      %v3846 = vpop.f32.mrb[0].mxu0
      %v3847 = vpop.f32.mrb[0].mxu0
      %v3848 = vpop.f32.mrb[0].mxu0
      %3849 = vdwg.mxu0
      %v3850 = vsel %vm792, %v3845, -inf
      %3851 = vmax.xlane.f32.xlu0 %v3850
      %v3852 = vpop.xlane.xlu0 %3851
      %v3853 = vsub.f32 %v3845, %v3852
      %v3854 = vmul.f32 %v3853, 1.442695
      %v3855 = vpow.pop %v3854
      %v3856 = vsel %vm792, %v3855, 0.0
      %3857 = vadd.xlane.f32.xlu0 %v3856
      %v3858 = vpop.xlane.xlu0 %3857
      %v3859 = vrcp.pop %v3858
      %v3860 = vmul.f32 %v3855, %v3859
      %v3861 = vpack.c.bf16 %v3860, %v3860
      %3862 = vrot.lane.b32.xlu0 %v3575, 48
      %v3863 = vpop.permute.xlu0 %3862
      %v3865 = vsel %vm792, %v3861, 0
      %v3868 = vsel %vm856, %v3863, 0
      %3870 = vmatprep.subr.bf16.mxu0 0
      %3871 = vmatpush1.bf16.msra.mxu0 %v3868
      %3872 = vmatprep.subr.bf16.mxu0 0
      %3873 = vmatpush1.bf16.msra.mxu0 0
      %3874 = vmatprep.subr.bf16.mxu0 0
      %3875 = vmatpush1.bf16.msra.mxu0 0
      %3876 = vmatprep.subr.bf16.mxu0 0
      %3877 = vmatpush1.bf16.msra.mxu0 0
      %3878 = vmatprep.subr.bf16.mxu0 0
      %3879 = vmatpush1.bf16.msra.mxu0 0
      %3880 = vmatprep.subr.bf16.mxu0 0
      %3881 = vmatpush1.bf16.msra.mxu0 0
      %3882 = vmatprep.subr.bf16.mxu0 0
      %3883 = vmatpush1.bf16.msra.mxu0 0
      %3884 = vmatprep.subr.bf16.mxu0 0
      %3885 = vmatpush1.bf16.msra.mxu0 0
      %3886 = vmatprep.subr.bf16.mxu0 0
      %3887 = vmatpush1.bf16.msra.mxu0 0
      %3888 = vmatprep.subr.bf16.mxu0 0
      %3889 = vmatpush1.bf16.msra.mxu0 0
      %3890 = vmatprep.subr.bf16.mxu0 0
      %3891 = vmatpush1.bf16.msra.mxu0 0
      %3892 = vmatprep.subr.bf16.mxu0 0
      %3893 = vmatpush1.bf16.msra.mxu0 0
      %3894 = vmatprep.subr.bf16.mxu0 0
      %3895 = vmatpush1.bf16.msra.mxu0 0
      %3896 = vmatprep.subr.bf16.mxu0 0
      %3897 = vmatpush1.bf16.msra.mxu0 0
      %3898 = vmatprep.subr.bf16.mxu0 0
      %3899 = vmatpush1.bf16.msra.mxu0 0
      %3900 = vmatprep.subr.bf16.mxu0 0
      %3901 = vmatpush1.bf16.msra.mxu0 0
      %3902 = vmatprep.mubr.bf16.mxu0 0
      %3903 = vmatmul.mubr.bf16.gmra.mrb[0].mxu0 %v3865
      %v3904 = vpop.f32.mrb[0].mxu0
      %v3905 = vadd.f32 0.0, %v3904
      %v3906 = vpop.f32.mrb[0].mxu0
      %v3907 = vpop.f32.mrb[0].mxu0
      %v3908 = vpop.f32.mrb[0].mxu0
      %3909 = vdwg.mxu0
      %3911 = vrot.lane.b32.xlu0 %v3905, 16
      %v3912 = vpop.permute.xlu0 %3911
      %3914 = vst.msk [vmem:[#allocation2 + $0x8] sm:$0xff] %vm1131, %v3912
      %3915 = vrot.lane.b32.xlu0 %v3575, 104
      %v3916 = vpop.permute.xlu0 %3915
      %3917 = vrot.lane.b32.xlu0 %v3575, 72
      %v3918 = vpop.permute.xlu0 %3917
      %v3920 = vsel %vm792, %v3916, 0
      %v3923 = vsel %vm792, %v3918, 0
      %3925 = vmatprep.subr.bf16.mxu0 0
      %3926 = vmatpush1.bf16.xpose.msra.mxu0 %v3923
      %3927 = vmatprep.subr.bf16.mxu0 0
      %3928 = vmatpush1.bf16.xpose.msra.mxu0 0
      %3929 = vmatprep.subr.bf16.mxu0 0
      %3930 = vmatpush1.bf16.xpose.msra.mxu0 0
      %3931 = vmatprep.subr.bf16.mxu0 0
      %3932 = vmatpush1.bf16.xpose.msra.mxu0 0
      %3933 = vmatprep.subr.bf16.mxu0 0
      %3934 = vmatpush1.bf16.xpose.msra.mxu0 0
      %3935 = vmatprep.subr.bf16.mxu0 0
      %3936 = vmatpush1.bf16.xpose.msra.mxu0 0
      %3937 = vmatprep.subr.bf16.mxu0 0
      %3938 = vmatpush1.bf16.xpose.msra.mxu0 0
      %3939 = vmatprep.subr.bf16.mxu0 0
      %3940 = vmatpush1.bf16.xpose.msra.mxu0 0
      %3941 = vmatprep.subr.bf16.mxu0 0
      %3942 = vmatpush1.bf16.xpose.msra.mxu0 0
      %3943 = vmatprep.subr.bf16.mxu0 0
      %3944 = vmatpush1.bf16.xpose.msra.mxu0 0
      %3945 = vmatprep.subr.bf16.mxu0 0
      %3946 = vmatpush1.bf16.xpose.msra.mxu0 0
      %3947 = vmatprep.subr.bf16.mxu0 0
      %3948 = vmatpush1.bf16.xpose.msra.mxu0 0
      %3949 = vmatprep.subr.bf16.mxu0 0
      %3950 = vmatpush1.bf16.xpose.msra.mxu0 0
      %3951 = vmatprep.subr.bf16.mxu0 0
      %3952 = vmatpush1.bf16.xpose.msra.mxu0 0
      %3953 = vmatprep.subr.bf16.mxu0 0
      %3954 = vmatpush1.bf16.xpose.msra.mxu0 0
      %3955 = vmatprep.subr.bf16.mxu0 0
      %3956 = vmatpush1.bf16.xpose.msra.mxu0 0
      %3957 = vmatprep.mubr.bf16.mxu0 0
      %3958 = vmatmul.mubr.bf16.gmra.mrb[0].mxu0 %v3920
      %v3959 = vpop.f32.mrb[0].mxu0
      %v3960 = vadd.f32 0.0, %v3959
      %v3961 = vpop.f32.mrb[0].mxu0
      %v3962 = vpop.f32.mrb[0].mxu0
      %v3963 = vpop.f32.mrb[0].mxu0
      %3964 = vdwg.mxu0
      %v3965 = vsel %vm792, %v3960, -inf
      %3966 = vmax.xlane.f32.xlu0 %v3965
      %v3967 = vpop.xlane.xlu0 %3966
      %v3968 = vsub.f32 %v3960, %v3967
      %v3969 = vmul.f32 %v3968, 1.442695
      %v3970 = vpow.pop %v3969
      %v3971 = vsel %vm792, %v3970, 0.0
      %3972 = vadd.xlane.f32.xlu0 %v3971
      %v3973 = vpop.xlane.xlu0 %3972
      %v3974 = vrcp.pop %v3973
      %v3975 = vmul.f32 %v3970, %v3974
      %v3976 = vpack.c.bf16 %v3975, %v3975
      %3977 = vrot.lane.b32.xlu0 %v3575, 40
      %v3978 = vpop.permute.xlu0 %3977
      %v3980 = vsel %vm792, %v3976, 0
      %v3983 = vsel %vm856, %v3978, 0
      %3985 = vmatprep.subr.bf16.mxu0 0
      %3986 = vmatpush1.bf16.msra.mxu0 %v3983
      %3987 = vmatprep.subr.bf16.mxu0 0
      %3988 = vmatpush1.bf16.msra.mxu0 0
      %3989 = vmatprep.subr.bf16.mxu0 0
      %3990 = vmatpush1.bf16.msra.mxu0 0
      %3991 = vmatprep.subr.bf16.mxu0 0
      %3992 = vmatpush1.bf16.msra.mxu0 0
      %3993 = vmatprep.subr.bf16.mxu0 0
      %3994 = vmatpush1.bf16.msra.mxu0 0
      %3995 = vmatprep.subr.bf16.mxu0 0
      %3996 = vmatpush1.bf16.msra.mxu0 0
      %3997 = vmatprep.subr.bf16.mxu0 0
      %3998 = vmatpush1.bf16.msra.mxu0 0
      %3999 = vmatprep.subr.bf16.mxu0 0
      %4000 = vmatpush1.bf16.msra.mxu0 0
      %4001 = vmatprep.subr.bf16.mxu0 0
      %4002 = vmatpush1.bf16.msra.mxu0 0
      %4003 = vmatprep.subr.bf16.mxu0 0
      %4004 = vmatpush1.bf16.msra.mxu0 0
      %4005 = vmatprep.subr.bf16.mxu0 0
      %4006 = vmatpush1.bf16.msra.mxu0 0
      %4007 = vmatprep.subr.bf16.mxu0 0
      %4008 = vmatpush1.bf16.msra.mxu0 0
      %4009 = vmatprep.subr.bf16.mxu0 0
      %4010 = vmatpush1.bf16.msra.mxu0 0
      %4011 = vmatprep.subr.bf16.mxu0 0
      %4012 = vmatpush1.bf16.msra.mxu0 0
      %4013 = vmatprep.subr.bf16.mxu0 0
      %4014 = vmatpush1.bf16.msra.mxu0 0
      %4015 = vmatprep.subr.bf16.mxu0 0
      %4016 = vmatpush1.bf16.msra.mxu0 0
      %4017 = vmatprep.mubr.bf16.mxu0 0
      %4018 = vmatmul.mubr.bf16.gmra.mrb[0].mxu0 %v3980
      %v4019 = vpop.f32.mrb[0].mxu0
      %v4020 = vadd.f32 0.0, %v4019
      %v4021 = vpop.f32.mrb[0].mxu0
      %v4022 = vpop.f32.mrb[0].mxu0
      %v4023 = vpop.f32.mrb[0].mxu0
      %4024 = vdwg.mxu0
      %4026 = vrot.lane.b32.xlu0 %v4020, 24
      %v4027 = vpop.permute.xlu0 %4026
      %4029 = vst.msk [vmem:[#allocation2 + $0x8] sm:$0xff] %vm1247, %v4027
      %4031 = vrot.lane.b32.xlu0 %v3119, 96
      %v4032 = vpop.permute.xlu0 %4031
      %v4034 = vsel %vm792, %v3119, 0
      %v4037 = vsel %vm792, %v4032, 0
      %4039 = vmatprep.subr.bf16.mxu0 0
      %4040 = vmatpush1.bf16.xpose.msra.mxu0 %v4037
      %4041 = vmatprep.subr.bf16.mxu0 0
      %4042 = vmatpush1.bf16.xpose.msra.mxu0 0
      %4043 = vmatprep.subr.bf16.mxu0 0
      %4044 = vmatpush1.bf16.xpose.msra.mxu0 0
      %4045 = vmatprep.subr.bf16.mxu0 0
      %4046 = vmatpush1.bf16.xpose.msra.mxu0 0
      %4047 = vmatprep.subr.bf16.mxu0 0
      %4048 = vmatpush1.bf16.xpose.msra.mxu0 0
      %4049 = vmatprep.subr.bf16.mxu0 0
      %4050 = vmatpush1.bf16.xpose.msra.mxu0 0
      %4051 = vmatprep.subr.bf16.mxu0 0
      %4052 = vmatpush1.bf16.xpose.msra.mxu0 0
      %4053 = vmatprep.subr.bf16.mxu0 0
      %4054 = vmatpush1.bf16.xpose.msra.mxu0 0
      %4055 = vmatprep.subr.bf16.mxu0 0
      %4056 = vmatpush1.bf16.xpose.msra.mxu0 0
      %4057 = vmatprep.subr.bf16.mxu0 0
      %4058 = vmatpush1.bf16.xpose.msra.mxu0 0
      %4059 = vmatprep.subr.bf16.mxu0 0
      %4060 = vmatpush1.bf16.xpose.msra.mxu0 0
      %4061 = vmatprep.subr.bf16.mxu0 0
      %4062 = vmatpush1.bf16.xpose.msra.mxu0 0
      %4063 = vmatprep.subr.bf16.mxu0 0
      %4064 = vmatpush1.bf16.xpose.msra.mxu0 0
      %4065 = vmatprep.subr.bf16.mxu0 0
      %4066 = vmatpush1.bf16.xpose.msra.mxu0 0
      %4067 = vmatprep.subr.bf16.mxu0 0
      %4068 = vmatpush1.bf16.xpose.msra.mxu0 0
      %4069 = vmatprep.subr.bf16.mxu0 0
      %4070 = vmatpush1.bf16.xpose.msra.mxu0 0
      %4071 = vmatprep.mubr.bf16.mxu0 0
      %4072 = vmatmul.mubr.bf16.gmra.mrb[0].mxu0 %v4034
      %v4073 = vpop.f32.mrb[0].mxu0
      %v4074 = vadd.f32 0.0, %v4073
      %v4075 = vpop.f32.mrb[0].mxu0
      %v4076 = vpop.f32.mrb[0].mxu0
      %v4077 = vpop.f32.mrb[0].mxu0
      %4078 = vdwg.mxu0
      %v4079 = vsel %vm792, %v4074, -inf
      %4080 = vmax.xlane.f32.xlu0 %v4079
      %v4081 = vpop.xlane.xlu0 %4080
      %v4082 = vsub.f32 %v4074, %v4081
      %v4083 = vmul.f32 %v4082, 1.442695
      %v4084 = vpow.pop %v4083
      %v4085 = vsel %vm792, %v4084, 0.0
      %4086 = vadd.xlane.f32.xlu0 %v4085
      %v4087 = vpop.xlane.xlu0 %4086
      %v4088 = vrcp.pop %v4087
      %v4089 = vmul.f32 %v4084, %v4088
      %v4090 = vpack.c.bf16 %v4089, %v4089
      %4091 = vrot.lane.b32.xlu0 %v3119, 64
      %v4092 = vpop.permute.xlu0 %4091
      %v4094 = vsel %vm792, %v4090, 0
      %v4097 = vsel %vm856, %v4092, 0
      %4099 = vmatprep.subr.bf16.mxu0 0
      %4100 = vmatpush1.bf16.msra.mxu0 %v4097
      %4101 = vmatprep.subr.bf16.mxu0 0
      %4102 = vmatpush1.bf16.msra.mxu0 0
      %4103 = vmatprep.subr.bf16.mxu0 0
      %4104 = vmatpush1.bf16.msra.mxu0 0
      %4105 = vmatprep.subr.bf16.mxu0 0
      %4106 = vmatpush1.bf16.msra.mxu0 0
      %4107 = vmatprep.subr.bf16.mxu0 0
      %4108 = vmatpush1.bf16.msra.mxu0 0
      %4109 = vmatprep.subr.bf16.mxu0 0
      %4110 = vmatpush1.bf16.msra.mxu0 0
      %4111 = vmatprep.subr.bf16.mxu0 0
      %4112 = vmatpush1.bf16.msra.mxu0 0
      %4113 = vmatprep.subr.bf16.mxu0 0
      %4114 = vmatpush1.bf16.msra.mxu0 0
      %4115 = vmatprep.subr.bf16.mxu0 0
      %4116 = vmatpush1.bf16.msra.mxu0 0
      %4117 = vmatprep.subr.bf16.mxu0 0
      %4118 = vmatpush1.bf16.msra.mxu0 0
      %4119 = vmatprep.subr.bf16.mxu0 0
      %4120 = vmatpush1.bf16.msra.mxu0 0
      %4121 = vmatprep.subr.bf16.mxu0 0
      %4122 = vmatpush1.bf16.msra.mxu0 0
      %4123 = vmatprep.subr.bf16.mxu0 0
      %4124 = vmatpush1.bf16.msra.mxu0 0
      %4125 = vmatprep.subr.bf16.mxu0 0
      %4126 = vmatpush1.bf16.msra.mxu0 0
      %4127 = vmatprep.subr.bf16.mxu0 0
      %4128 = vmatpush1.bf16.msra.mxu0 0
      %4129 = vmatprep.subr.bf16.mxu0 0
      %4130 = vmatpush1.bf16.msra.mxu0 0
      %4131 = vmatprep.mubr.bf16.mxu0 0
      %4132 = vmatmul.mubr.bf16.gmra.mrb[0].mxu0 %v4094
      %v4133 = vpop.f32.mrb[0].mxu0
      %v4134 = vadd.f32 0.0, %v4133
      %v4135 = vpop.f32.mrb[0].mxu0
      %v4136 = vpop.f32.mrb[0].mxu0
      %v4137 = vpop.f32.mrb[0].mxu0
      %4138 = vdwg.mxu0
      %4139 = vst.msk [vmem:[#allocation2 + $0x10] sm:$0xff] %vm792, %v4134
      %4140 = vrot.lane.b32.xlu0 %v3119, 120
      %v4141 = vpop.permute.xlu0 %4140
      %4142 = vrot.lane.b32.xlu0 %v3119, 88
      %v4143 = vpop.permute.xlu0 %4142
      %v4145 = vsel %vm792, %v4141, 0
      %v4148 = vsel %vm792, %v4143, 0
      %4150 = vmatprep.subr.bf16.mxu0 0
      %4151 = vmatpush1.bf16.xpose.msra.mxu0 %v4148
      %4152 = vmatprep.subr.bf16.mxu0 0
      %4153 = vmatpush1.bf16.xpose.msra.mxu0 0
      %4154 = vmatprep.subr.bf16.mxu0 0
      %4155 = vmatpush1.bf16.xpose.msra.mxu0 0
      %4156 = vmatprep.subr.bf16.mxu0 0
      %4157 = vmatpush1.bf16.xpose.msra.mxu0 0
      %4158 = vmatprep.subr.bf16.mxu0 0
      %4159 = vmatpush1.bf16.xpose.msra.mxu0 0
      %4160 = vmatprep.subr.bf16.mxu0 0
      %4161 = vmatpush1.bf16.xpose.msra.mxu0 0
      %4162 = vmatprep.subr.bf16.mxu0 0
      %4163 = vmatpush1.bf16.xpose.msra.mxu0 0
      %4164 = vmatprep.subr.bf16.mxu0 0
      %4165 = vmatpush1.bf16.xpose.msra.mxu0 0
      %4166 = vmatprep.subr.bf16.mxu0 0
      %4167 = vmatpush1.bf16.xpose.msra.mxu0 0
      %4168 = vmatprep.subr.bf16.mxu0 0
      %4169 = vmatpush1.bf16.xpose.msra.mxu0 0
      %4170 = vmatprep.subr.bf16.mxu0 0
      %4171 = vmatpush1.bf16.xpose.msra.mxu0 0
      %4172 = vmatprep.subr.bf16.mxu0 0
      %4173 = vmatpush1.bf16.xpose.msra.mxu0 0
      %4174 = vmatprep.subr.bf16.mxu0 0
      %4175 = vmatpush1.bf16.xpose.msra.mxu0 0
      %4176 = vmatprep.subr.bf16.mxu0 0
      %4177 = vmatpush1.bf16.xpose.msra.mxu0 0
      %4178 = vmatprep.subr.bf16.mxu0 0
      %4179 = vmatpush1.bf16.xpose.msra.mxu0 0
      %4180 = vmatprep.subr.bf16.mxu0 0
      %4181 = vmatpush1.bf16.xpose.msra.mxu0 0
      %4182 = vmatprep.mubr.bf16.mxu0 0
      %4183 = vmatmul.mubr.bf16.gmra.mrb[0].mxu0 %v4145
      %v4184 = vpop.f32.mrb[0].mxu0
      %v4185 = vadd.f32 0.0, %v4184
      %v4186 = vpop.f32.mrb[0].mxu0
      %v4187 = vpop.f32.mrb[0].mxu0
      %v4188 = vpop.f32.mrb[0].mxu0
      %4189 = vdwg.mxu0
      %v4190 = vsel %vm792, %v4185, -inf
      %4191 = vmax.xlane.f32.xlu0 %v4190
      %v4192 = vpop.xlane.xlu0 %4191
      %v4193 = vsub.f32 %v4185, %v4192
      %v4194 = vmul.f32 %v4193, 1.442695
      %v4195 = vpow.pop %v4194
      %v4196 = vsel %vm792, %v4195, 0.0
      %4197 = vadd.xlane.f32.xlu0 %v4196
      %v4198 = vpop.xlane.xlu0 %4197
      %v4199 = vrcp.pop %v4198
      %v4200 = vmul.f32 %v4195, %v4199
      %v4201 = vpack.c.bf16 %v4200, %v4200
      %4202 = vrot.lane.b32.xlu0 %v3119, 56
      %v4203 = vpop.permute.xlu0 %4202
      %v4205 = vsel %vm792, %v4201, 0
      %v4208 = vsel %vm856, %v4203, 0
      %4210 = vmatprep.subr.bf16.mxu0 0
      %4211 = vmatpush1.bf16.msra.mxu0 %v4208
      %4212 = vmatprep.subr.bf16.mxu0 0
      %4213 = vmatpush1.bf16.msra.mxu0 0
      %4214 = vmatprep.subr.bf16.mxu0 0
      %4215 = vmatpush1.bf16.msra.mxu0 0
      %4216 = vmatprep.subr.bf16.mxu0 0
      %4217 = vmatpush1.bf16.msra.mxu0 0
      %4218 = vmatprep.subr.bf16.mxu0 0
      %4219 = vmatpush1.bf16.msra.mxu0 0
      %4220 = vmatprep.subr.bf16.mxu0 0
      %4221 = vmatpush1.bf16.msra.mxu0 0
      %4222 = vmatprep.subr.bf16.mxu0 0
      %4223 = vmatpush1.bf16.msra.mxu0 0
      %4224 = vmatprep.subr.bf16.mxu0 0
      %4225 = vmatpush1.bf16.msra.mxu0 0
      %4226 = vmatprep.subr.bf16.mxu0 0
      %4227 = vmatpush1.bf16.msra.mxu0 0
      %4228 = vmatprep.subr.bf16.mxu0 0
      %4229 = vmatpush1.bf16.msra.mxu0 0
      %4230 = vmatprep.subr.bf16.mxu0 0
      %4231 = vmatpush1.bf16.msra.mxu0 0
      %4232 = vmatprep.subr.bf16.mxu0 0
      %4233 = vmatpush1.bf16.msra.mxu0 0
      %4234 = vmatprep.subr.bf16.mxu0 0
      %4235 = vmatpush1.bf16.msra.mxu0 0
      %4236 = vmatprep.subr.bf16.mxu0 0
      %4237 = vmatpush1.bf16.msra.mxu0 0
      %4238 = vmatprep.subr.bf16.mxu0 0
      %4239 = vmatpush1.bf16.msra.mxu0 0
      %4240 = vmatprep.subr.bf16.mxu0 0
      %4241 = vmatpush1.bf16.msra.mxu0 0
      %4242 = vmatprep.mubr.bf16.mxu0 0
      %4243 = vmatmul.mubr.bf16.gmra.mrb[0].mxu0 %v4205
      %v4244 = vpop.f32.mrb[0].mxu0
      %v4245 = vadd.f32 0.0, %v4244
      %v4246 = vpop.f32.mrb[0].mxu0
      %v4247 = vpop.f32.mrb[0].mxu0
      %v4248 = vpop.f32.mrb[0].mxu0
      %4249 = vdwg.mxu0
      %4251 = vrot.lane.b32.xlu0 %v4245, 8
      %v4252 = vpop.permute.xlu0 %4251
      %4254 = vst.msk [vmem:[#allocation2 + $0x10] sm:$0xff] %vm1015, %v4252
      %4255 = vrot.lane.b32.xlu0 %v3119, 112
      %v4256 = vpop.permute.xlu0 %4255
      %4257 = vrot.lane.b32.xlu0 %v3119, 80
      %v4258 = vpop.permute.xlu0 %4257
      %v4260 = vsel %vm792, %v4256, 0
      %v4263 = vsel %vm792, %v4258, 0
      %4265 = vmatprep.subr.bf16.mxu0 0
      %4266 = vmatpush1.bf16.xpose.msra.mxu0 %v4263
      %4267 = vmatprep.subr.bf16.mxu0 0
      %4268 = vmatpush1.bf16.xpose.msra.mxu0 0
      %4269 = vmatprep.subr.bf16.mxu0 0
      %4270 = vmatpush1.bf16.xpose.msra.mxu0 0
      %4271 = vmatprep.subr.bf16.mxu0 0
      %4272 = vmatpush1.bf16.xpose.msra.mxu0 0
      %4273 = vmatprep.subr.bf16.mxu0 0
      %4274 = vmatpush1.bf16.xpose.msra.mxu0 0
      %4275 = vmatprep.subr.bf16.mxu0 0
      %4276 = vmatpush1.bf16.xpose.msra.mxu0 0
      %4277 = vmatprep.subr.bf16.mxu0 0
      %4278 = vmatpush1.bf16.xpose.msra.mxu0 0
      %4279 = vmatprep.subr.bf16.mxu0 0
      %4280 = vmatpush1.bf16.xpose.msra.mxu0 0
      %4281 = vmatprep.subr.bf16.mxu0 0
      %4282 = vmatpush1.bf16.xpose.msra.mxu0 0
      %4283 = vmatprep.subr.bf16.mxu0 0
      %4284 = vmatpush1.bf16.xpose.msra.mxu0 0
      %4285 = vmatprep.subr.bf16.mxu0 0
      %4286 = vmatpush1.bf16.xpose.msra.mxu0 0
      %4287 = vmatprep.subr.bf16.mxu0 0
      %4288 = vmatpush1.bf16.xpose.msra.mxu0 0
      %4289 = vmatprep.subr.bf16.mxu0 0
      %4290 = vmatpush1.bf16.xpose.msra.mxu0 0
      %4291 = vmatprep.subr.bf16.mxu0 0
      %4292 = vmatpush1.bf16.xpose.msra.mxu0 0
      %4293 = vmatprep.subr.bf16.mxu0 0
      %4294 = vmatpush1.bf16.xpose.msra.mxu0 0
      %4295 = vmatprep.subr.bf16.mxu0 0
      %4296 = vmatpush1.bf16.xpose.msra.mxu0 0
      %4297 = vmatprep.mubr.bf16.mxu0 0
      %4298 = vmatmul.mubr.bf16.gmra.mrb[0].mxu0 %v4260
      %v4299 = vpop.f32.mrb[0].mxu0
      %v4300 = vadd.f32 0.0, %v4299
      %v4301 = vpop.f32.mrb[0].mxu0
      %v4302 = vpop.f32.mrb[0].mxu0
      %v4303 = vpop.f32.mrb[0].mxu0
      %4304 = vdwg.mxu0
      %v4305 = vsel %vm792, %v4300, -inf
      %4306 = vmax.xlane.f32.xlu0 %v4305
      %v4307 = vpop.xlane.xlu0 %4306
      %v4308 = vsub.f32 %v4300, %v4307
      %v4309 = vmul.f32 %v4308, 1.442695
      %v4310 = vpow.pop %v4309
      %v4311 = vsel %vm792, %v4310, 0.0
      %4312 = vadd.xlane.f32.xlu0 %v4311
      %v4313 = vpop.xlane.xlu0 %4312
      %v4314 = vrcp.pop %v4313
      %v4315 = vmul.f32 %v4310, %v4314
      %v4316 = vpack.c.bf16 %v4315, %v4315
      %4317 = vrot.lane.b32.xlu0 %v3119, 48
      %v4318 = vpop.permute.xlu0 %4317
      %v4320 = vsel %vm792, %v4316, 0
      %v4323 = vsel %vm856, %v4318, 0
      %4325 = vmatprep.subr.bf16.mxu0 0
      %4326 = vmatpush1.bf16.msra.mxu0 %v4323
      %4327 = vmatprep.subr.bf16.mxu0 0
      %4328 = vmatpush1.bf16.msra.mxu0 0
      %4329 = vmatprep.subr.bf16.mxu0 0
      %4330 = vmatpush1.bf16.msra.mxu0 0
      %4331 = vmatprep.subr.bf16.mxu0 0
      %4332 = vmatpush1.bf16.msra.mxu0 0
      %4333 = vmatprep.subr.bf16.mxu0 0
      %4334 = vmatpush1.bf16.msra.mxu0 0
      %4335 = vmatprep.subr.bf16.mxu0 0
      %4336 = vmatpush1.bf16.msra.mxu0 0
      %4337 = vmatprep.subr.bf16.mxu0 0
      %4338 = vmatpush1.bf16.msra.mxu0 0
      %4339 = vmatprep.subr.bf16.mxu0 0
      %4340 = vmatpush1.bf16.msra.mxu0 0
      %4341 = vmatprep.subr.bf16.mxu0 0
      %4342 = vmatpush1.bf16.msra.mxu0 0
      %4343 = vmatprep.subr.bf16.mxu0 0
      %4344 = vmatpush1.bf16.msra.mxu0 0
      %4345 = vmatprep.subr.bf16.mxu0 0
      %4346 = vmatpush1.bf16.msra.mxu0 0
      %4347 = vmatprep.subr.bf16.mxu0 0
      %4348 = vmatpush1.bf16.msra.mxu0 0
      %4349 = vmatprep.subr.bf16.mxu0 0
      %4350 = vmatpush1.bf16.msra.mxu0 0
      %4351 = vmatprep.subr.bf16.mxu0 0
      %4352 = vmatpush1.bf16.msra.mxu0 0
      %4353 = vmatprep.subr.bf16.mxu0 0
      %4354 = vmatpush1.bf16.msra.mxu0 0
      %4355 = vmatprep.subr.bf16.mxu0 0
      %4356 = vmatpush1.bf16.msra.mxu0 0
      %4357 = vmatprep.mubr.bf16.mxu0 0
      %4358 = vmatmul.mubr.bf16.gmra.mrb[0].mxu0 %v4320
      %v4359 = vpop.f32.mrb[0].mxu0
      %v4360 = vadd.f32 0.0, %v4359
      %v4361 = vpop.f32.mrb[0].mxu0
      %v4362 = vpop.f32.mrb[0].mxu0
      %v4363 = vpop.f32.mrb[0].mxu0
      %4364 = vdwg.mxu0
      %4366 = vrot.lane.b32.xlu0 %v4360, 16
      %v4367 = vpop.permute.xlu0 %4366
      %4369 = vst.msk [vmem:[#allocation2 + $0x10] sm:$0xff] %vm1131, %v4367
      %4370 = vrot.lane.b32.xlu0 %v3119, 104
      %v4371 = vpop.permute.xlu0 %4370
      %4372 = vrot.lane.b32.xlu0 %v3119, 72
      %v4373 = vpop.permute.xlu0 %4372
      %v4375 = vsel %vm792, %v4371, 0
      %v4378 = vsel %vm792, %v4373, 0
      %4380 = vmatprep.subr.bf16.mxu0 0
      %4381 = vmatpush1.bf16.xpose.msra.mxu0 %v4378
      %4382 = vmatprep.subr.bf16.mxu0 0
      %4383 = vmatpush1.bf16.xpose.msra.mxu0 0
      %4384 = vmatprep.subr.bf16.mxu0 0
      %4385 = vmatpush1.bf16.xpose.msra.mxu0 0
      %4386 = vmatprep.subr.bf16.mxu0 0
      %4387 = vmatpush1.bf16.xpose.msra.mxu0 0
      %4388 = vmatprep.subr.bf16.mxu0 0
      %4389 = vmatpush1.bf16.xpose.msra.mxu0 0
      %4390 = vmatprep.subr.bf16.mxu0 0
      %4391 = vmatpush1.bf16.xpose.msra.mxu0 0
      %4392 = vmatprep.subr.bf16.mxu0 0
      %4393 = vmatpush1.bf16.xpose.msra.mxu0 0
      %4394 = vmatprep.subr.bf16.mxu0 0
      %4395 = vmatpush1.bf16.xpose.msra.mxu0 0
      %4396 = vmatprep.subr.bf16.mxu0 0
      %4397 = vmatpush1.bf16.xpose.msra.mxu0 0
      %4398 = vmatprep.subr.bf16.mxu0 0
      %4399 = vmatpush1.bf16.xpose.msra.mxu0 0
      %4400 = vmatprep.subr.bf16.mxu0 0
      %4401 = vmatpush1.bf16.xpose.msra.mxu0 0
      %4402 = vmatprep.subr.bf16.mxu0 0
      %4403 = vmatpush1.bf16.xpose.msra.mxu0 0
      %4404 = vmatprep.subr.bf16.mxu0 0
      %4405 = vmatpush1.bf16.xpose.msra.mxu0 0
      %4406 = vmatprep.subr.bf16.mxu0 0
      %4407 = vmatpush1.bf16.xpose.msra.mxu0 0
      %4408 = vmatprep.subr.bf16.mxu0 0
      %4409 = vmatpush1.bf16.xpose.msra.mxu0 0
      %4410 = vmatprep.subr.bf16.mxu0 0
      %4411 = vmatpush1.bf16.xpose.msra.mxu0 0
      %4412 = vmatprep.mubr.bf16.mxu0 0
      %4413 = vmatmul.mubr.bf16.gmra.mrb[0].mxu0 %v4375
      %v4414 = vpop.f32.mrb[0].mxu0
      %v4415 = vadd.f32 0.0, %v4414
      %v4416 = vpop.f32.mrb[0].mxu0
      %v4417 = vpop.f32.mrb[0].mxu0
      %v4418 = vpop.f32.mrb[0].mxu0
      %4419 = vdwg.mxu0
      %v4420 = vsel %vm792, %v4415, -inf
      %4421 = vmax.xlane.f32.xlu0 %v4420
      %v4422 = vpop.xlane.xlu0 %4421
      %v4423 = vsub.f32 %v4415, %v4422
      %v4424 = vmul.f32 %v4423, 1.442695
      %v4425 = vpow.pop %v4424
      %v4426 = vsel %vm792, %v4425, 0.0
      %4427 = vadd.xlane.f32.xlu0 %v4426
      %v4428 = vpop.xlane.xlu0 %4427
      %v4429 = vrcp.pop %v4428
      %v4430 = vmul.f32 %v4425, %v4429
      %v4431 = vpack.c.bf16 %v4430, %v4430
      %4432 = vrot.lane.b32.xlu0 %v3119, 40
      %v4433 = vpop.permute.xlu0 %4432
      %v4435 = vsel %vm792, %v4431, 0
      %v4438 = vsel %vm856, %v4433, 0
      %4440 = vmatprep.subr.bf16.mxu0 0
      %4441 = vmatpush1.bf16.msra.mxu0 %v4438
      %4442 = vmatprep.subr.bf16.mxu0 0
      %4443 = vmatpush1.bf16.msra.mxu0 0
      %4444 = vmatprep.subr.bf16.mxu0 0
      %4445 = vmatpush1.bf16.msra.mxu0 0
      %4446 = vmatprep.subr.bf16.mxu0 0
      %4447 = vmatpush1.bf16.msra.mxu0 0
      %4448 = vmatprep.subr.bf16.mxu0 0
      %4449 = vmatpush1.bf16.msra.mxu0 0
      %4450 = vmatprep.subr.bf16.mxu0 0
      %4451 = vmatpush1.bf16.msra.mxu0 0
      %4452 = vmatprep.subr.bf16.mxu0 0
      %4453 = vmatpush1.bf16.msra.mxu0 0
      %4454 = vmatprep.subr.bf16.mxu0 0
      %4455 = vmatpush1.bf16.msra.mxu0 0
      %4456 = vmatprep.subr.bf16.mxu0 0
      %4457 = vmatpush1.bf16.msra.mxu0 0
      %4458 = vmatprep.subr.bf16.mxu0 0
      %4459 = vmatpush1.bf16.msra.mxu0 0
      %4460 = vmatprep.subr.bf16.mxu0 0
      %4461 = vmatpush1.bf16.msra.mxu0 0
      %4462 = vmatprep.subr.bf16.mxu0 0
      %4463 = vmatpush1.bf16.msra.mxu0 0
      %4464 = vmatprep.subr.bf16.mxu0 0
      %4465 = vmatpush1.bf16.msra.mxu0 0
      %4466 = vmatprep.subr.bf16.mxu0 0
      %4467 = vmatpush1.bf16.msra.mxu0 0
      %4468 = vmatprep.subr.bf16.mxu0 0
      %4469 = vmatpush1.bf16.msra.mxu0 0
      %4470 = vmatprep.subr.bf16.mxu0 0
      %4471 = vmatpush1.bf16.msra.mxu0 0
      %4472 = vmatprep.mubr.bf16.mxu0 0
      %4473 = vmatmul.mubr.bf16.gmra.mrb[0].mxu0 %v4435
      %v4474 = vpop.f32.mrb[0].mxu0
      %v4475 = vadd.f32 0.0, %v4474
      %v4476 = vpop.f32.mrb[0].mxu0
      %v4477 = vpop.f32.mrb[0].mxu0
      %v4478 = vpop.f32.mrb[0].mxu0
      %4479 = vdwg.mxu0
      %4481 = vrot.lane.b32.xlu0 %v4475, 24
      %v4482 = vpop.permute.xlu0 %4481
      %4484 = vst.msk [vmem:[#allocation2 + $0x10] sm:$0xff] %vm1247, %v4482
      %v4485 = vrot.slane %v3119, 4
      %4486 = vrot.lane.b32.xlu0 %v4485, 96
      %v4487 = vpop.permute.xlu0 %4486
      %v4489 = vsel %vm792, %v4485, 0
      %v4492 = vsel %vm792, %v4487, 0
      %4494 = vmatprep.subr.bf16.mxu0 0
      %4495 = vmatpush1.bf16.xpose.msra.mxu0 %v4492
      %4496 = vmatprep.subr.bf16.mxu0 0
      %4497 = vmatpush1.bf16.xpose.msra.mxu0 0
      %4498 = vmatprep.subr.bf16.mxu0 0
      %4499 = vmatpush1.bf16.xpose.msra.mxu0 0
      %4500 = vmatprep.subr.bf16.mxu0 0
      %4501 = vmatpush1.bf16.xpose.msra.mxu0 0
      %4502 = vmatprep.subr.bf16.mxu0 0
      %4503 = vmatpush1.bf16.xpose.msra.mxu0 0
      %4504 = vmatprep.subr.bf16.mxu0 0
      %4505 = vmatpush1.bf16.xpose.msra.mxu0 0
      %4506 = vmatprep.subr.bf16.mxu0 0
      %4507 = vmatpush1.bf16.xpose.msra.mxu0 0
      %4508 = vmatprep.subr.bf16.mxu0 0
      %4509 = vmatpush1.bf16.xpose.msra.mxu0 0
      %4510 = vmatprep.subr.bf16.mxu0 0
      %4511 = vmatpush1.bf16.xpose.msra.mxu0 0
      %4512 = vmatprep.subr.bf16.mxu0 0
      %4513 = vmatpush1.bf16.xpose.msra.mxu0 0
      %4514 = vmatprep.subr.bf16.mxu0 0
      %4515 = vmatpush1.bf16.xpose.msra.mxu0 0
      %4516 = vmatprep.subr.bf16.mxu0 0
      %4517 = vmatpush1.bf16.xpose.msra.mxu0 0
      %4518 = vmatprep.subr.bf16.mxu0 0
      %4519 = vmatpush1.bf16.xpose.msra.mxu0 0
      %4520 = vmatprep.subr.bf16.mxu0 0
      %4521 = vmatpush1.bf16.xpose.msra.mxu0 0
      %4522 = vmatprep.subr.bf16.mxu0 0
      %4523 = vmatpush1.bf16.xpose.msra.mxu0 0
      %4524 = vmatprep.subr.bf16.mxu0 0
      %4525 = vmatpush1.bf16.xpose.msra.mxu0 0
      %4526 = vmatprep.mubr.bf16.mxu0 0
      %4527 = vmatmul.mubr.bf16.gmra.mrb[0].mxu0 %v4489
      %v4528 = vpop.f32.mrb[0].mxu0
      %v4529 = vadd.f32 0.0, %v4528
      %v4530 = vpop.f32.mrb[0].mxu0
      %v4531 = vpop.f32.mrb[0].mxu0
      %v4532 = vpop.f32.mrb[0].mxu0
      %4533 = vdwg.mxu0
      %v4534 = vsel %vm792, %v4529, -inf
      %4535 = vmax.xlane.f32.xlu0 %v4534
      %v4536 = vpop.xlane.xlu0 %4535
      %v4537 = vsub.f32 %v4529, %v4536
      %v4538 = vmul.f32 %v4537, 1.442695
      %v4539 = vpow.pop %v4538
      %v4540 = vsel %vm792, %v4539, 0.0
      %4541 = vadd.xlane.f32.xlu0 %v4540
      %v4542 = vpop.xlane.xlu0 %4541
      %v4543 = vrcp.pop %v4542
      %v4544 = vmul.f32 %v4539, %v4543
      %v4545 = vpack.c.bf16 %v4544, %v4544
      %4546 = vrot.lane.b32.xlu0 %v4485, 64
      %v4547 = vpop.permute.xlu0 %4546
      %v4549 = vsel %vm792, %v4545, 0
      %v4552 = vsel %vm856, %v4547, 0
      %4554 = vmatprep.subr.bf16.mxu0 0
      %4555 = vmatpush1.bf16.msra.mxu0 %v4552
      %4556 = vmatprep.subr.bf16.mxu0 0
      %4557 = vmatpush1.bf16.msra.mxu0 0
      %4558 = vmatprep.subr.bf16.mxu0 0
      %4559 = vmatpush1.bf16.msra.mxu0 0
      %4560 = vmatprep.subr.bf16.mxu0 0
      %4561 = vmatpush1.bf16.msra.mxu0 0
      %4562 = vmatprep.subr.bf16.mxu0 0
      %4563 = vmatpush1.bf16.msra.mxu0 0
      %4564 = vmatprep.subr.bf16.mxu0 0
      %4565 = vmatpush1.bf16.msra.mxu0 0
      %4566 = vmatprep.subr.bf16.mxu0 0
      %4567 = vmatpush1.bf16.msra.mxu0 0
      %4568 = vmatprep.subr.bf16.mxu0 0
      %4569 = vmatpush1.bf16.msra.mxu0 0
      %4570 = vmatprep.subr.bf16.mxu0 0
      %4571 = vmatpush1.bf16.msra.mxu0 0
      %4572 = vmatprep.subr.bf16.mxu0 0
      %4573 = vmatpush1.bf16.msra.mxu0 0
      %4574 = vmatprep.subr.bf16.mxu0 0
      %4575 = vmatpush1.bf16.msra.mxu0 0
      %4576 = vmatprep.subr.bf16.mxu0 0
      %4577 = vmatpush1.bf16.msra.mxu0 0
      %4578 = vmatprep.subr.bf16.mxu0 0
      %4579 = vmatpush1.bf16.msra.mxu0 0
      %4580 = vmatprep.subr.bf16.mxu0 0
      %4581 = vmatpush1.bf16.msra.mxu0 0
      %4582 = vmatprep.subr.bf16.mxu0 0
      %4583 = vmatpush1.bf16.msra.mxu0 0
      %4584 = vmatprep.subr.bf16.mxu0 0
      %4585 = vmatpush1.bf16.msra.mxu0 0
      %4586 = vmatprep.mubr.bf16.mxu0 0
      %4587 = vmatmul.mubr.bf16.gmra.mrb[0].mxu0 %v4549
      %v4588 = vpop.f32.mrb[0].mxu0
      %v4589 = vadd.f32 0.0, %v4588
      %v4590 = vpop.f32.mrb[0].mxu0
      %v4591 = vpop.f32.mrb[0].mxu0
      %v4592 = vpop.f32.mrb[0].mxu0
      %4593 = vdwg.mxu0
      %4594 = vst.msk [vmem:[#allocation2 + $0x18] sm:$0xff] %vm792, %v4589
      %4595 = vrot.lane.b32.xlu0 %v4485, 120
      %v4596 = vpop.permute.xlu0 %4595
      %4597 = vrot.lane.b32.xlu0 %v4485, 88
      %v4598 = vpop.permute.xlu0 %4597
      %v4600 = vsel %vm792, %v4596, 0
      %v4603 = vsel %vm792, %v4598, 0
      %4605 = vmatprep.subr.bf16.mxu0 0
      %4606 = vmatpush1.bf16.xpose.msra.mxu0 %v4603
      %4607 = vmatprep.subr.bf16.mxu0 0
      %4608 = vmatpush1.bf16.xpose.msra.mxu0 0
      %4609 = vmatprep.subr.bf16.mxu0 0
      %4610 = vmatpush1.bf16.xpose.msra.mxu0 0
      %4611 = vmatprep.subr.bf16.mxu0 0
      %4612 = vmatpush1.bf16.xpose.msra.mxu0 0
      %4613 = vmatprep.subr.bf16.mxu0 0
      %4614 = vmatpush1.bf16.xpose.msra.mxu0 0
      %4615 = vmatprep.subr.bf16.mxu0 0
      %4616 = vmatpush1.bf16.xpose.msra.mxu0 0
      %4617 = vmatprep.subr.bf16.mxu0 0
      %4618 = vmatpush1.bf16.xpose.msra.mxu0 0
      %4619 = vmatprep.subr.bf16.mxu0 0
      %4620 = vmatpush1.bf16.xpose.msra.mxu0 0
      %4621 = vmatprep.subr.bf16.mxu0 0
      %4622 = vmatpush1.bf16.xpose.msra.mxu0 0
      %4623 = vmatprep.subr.bf16.mxu0 0
      %4624 = vmatpush1.bf16.xpose.msra.mxu0 0
      %4625 = vmatprep.subr.bf16.mxu0 0
      %4626 = vmatpush1.bf16.xpose.msra.mxu0 0
      %4627 = vmatprep.subr.bf16.mxu0 0
      %4628 = vmatpush1.bf16.xpose.msra.mxu0 0
      %4629 = vmatprep.subr.bf16.mxu0 0
      %4630 = vmatpush1.bf16.xpose.msra.mxu0 0
      %4631 = vmatprep.subr.bf16.mxu0 0
      %4632 = vmatpush1.bf16.xpose.msra.mxu0 0
      %4633 = vmatprep.subr.bf16.mxu0 0
      %4634 = vmatpush1.bf16.xpose.msra.mxu0 0
      %4635 = vmatprep.subr.bf16.mxu0 0
      %4636 = vmatpush1.bf16.xpose.msra.mxu0 0
      %4637 = vmatprep.mubr.bf16.mxu0 0
      %4638 = vmatmul.mubr.bf16.gmra.mrb[0].mxu0 %v4600
      %v4639 = vpop.f32.mrb[0].mxu0
      %v4640 = vadd.f32 0.0, %v4639
      %v4641 = vpop.f32.mrb[0].mxu0
      %v4642 = vpop.f32.mrb[0].mxu0
      %v4643 = vpop.f32.mrb[0].mxu0
      %4644 = vdwg.mxu0
      %v4645 = vsel %vm792, %v4640, -inf
      %4646 = vmax.xlane.f32.xlu0 %v4645
      %v4647 = vpop.xlane.xlu0 %4646
      %v4648 = vsub.f32 %v4640, %v4647
      %v4649 = vmul.f32 %v4648, 1.442695
      %v4650 = vpow.pop %v4649
      %v4651 = vsel %vm792, %v4650, 0.0
      %4652 = vadd.xlane.f32.xlu0 %v4651
      %v4653 = vpop.xlane.xlu0 %4652
      %v4654 = vrcp.pop %v4653
      %v4655 = vmul.f32 %v4650, %v4654
      %v4656 = vpack.c.bf16 %v4655, %v4655
      %4657 = vrot.lane.b32.xlu0 %v4485, 56
      %v4658 = vpop.permute.xlu0 %4657
      %v4660 = vsel %vm792, %v4656, 0
      %v4663 = vsel %vm856, %v4658, 0
      %4665 = vmatprep.subr.bf16.mxu0 0
      %4666 = vmatpush1.bf16.msra.mxu0 %v4663
      %4667 = vmatprep.subr.bf16.mxu0 0
      %4668 = vmatpush1.bf16.msra.mxu0 0
      %4669 = vmatprep.subr.bf16.mxu0 0
      %4670 = vmatpush1.bf16.msra.mxu0 0
      %4671 = vmatprep.subr.bf16.mxu0 0
      %4672 = vmatpush1.bf16.msra.mxu0 0
      %4673 = vmatprep.subr.bf16.mxu0 0
      %4674 = vmatpush1.bf16.msra.mxu0 0
      %4675 = vmatprep.subr.bf16.mxu0 0
      %4676 = vmatpush1.bf16.msra.mxu0 0
      %4677 = vmatprep.subr.bf16.mxu0 0
      %4678 = vmatpush1.bf16.msra.mxu0 0
      %4679 = vmatprep.subr.bf16.mxu0 0
      %4680 = vmatpush1.bf16.msra.mxu0 0
      %4681 = vmatprep.subr.bf16.mxu0 0
      %4682 = vmatpush1.bf16.msra.mxu0 0
      %4683 = vmatprep.subr.bf16.mxu0 0
      %4684 = vmatpush1.bf16.msra.mxu0 0
      %4685 = vmatprep.subr.bf16.mxu0 0
      %4686 = vmatpush1.bf16.msra.mxu0 0
      %4687 = vmatprep.subr.bf16.mxu0 0
      %4688 = vmatpush1.bf16.msra.mxu0 0
      %4689 = vmatprep.subr.bf16.mxu0 0
      %4690 = vmatpush1.bf16.msra.mxu0 0
      %4691 = vmatprep.subr.bf16.mxu0 0
      %4692 = vmatpush1.bf16.msra.mxu0 0
      %4693 = vmatprep.subr.bf16.mxu0 0
      %4694 = vmatpush1.bf16.msra.mxu0 0
      %4695 = vmatprep.subr.bf16.mxu0 0
      %4696 = vmatpush1.bf16.msra.mxu0 0
      %4697 = vmatprep.mubr.bf16.mxu0 0
      %4698 = vmatmul.mubr.bf16.gmra.mrb[0].mxu0 %v4660
      %v4699 = vpop.f32.mrb[0].mxu0
      %v4700 = vadd.f32 0.0, %v4699
      %v4701 = vpop.f32.mrb[0].mxu0
      %v4702 = vpop.f32.mrb[0].mxu0
      %v4703 = vpop.f32.mrb[0].mxu0
      %4704 = vdwg.mxu0
      %4706 = vrot.lane.b32.xlu0 %v4700, 8
      %v4707 = vpop.permute.xlu0 %4706
      %4709 = vst.msk [vmem:[#allocation2 + $0x18] sm:$0xff] %vm1015, %v4707
      %4710 = vrot.lane.b32.xlu0 %v4485, 112
      %v4711 = vpop.permute.xlu0 %4710
      %4712 = vrot.lane.b32.xlu0 %v4485, 80
      %v4713 = vpop.permute.xlu0 %4712
      %v4715 = vsel %vm792, %v4711, 0
      %v4718 = vsel %vm792, %v4713, 0
      %4720 = vmatprep.subr.bf16.mxu0 0
      %4721 = vmatpush1.bf16.xpose.msra.mxu0 %v4718
      %4722 = vmatprep.subr.bf16.mxu0 0
      %4723 = vmatpush1.bf16.xpose.msra.mxu0 0
      %4724 = vmatprep.subr.bf16.mxu0 0
      %4725 = vmatpush1.bf16.xpose.msra.mxu0 0
      %4726 = vmatprep.subr.bf16.mxu0 0
      %4727 = vmatpush1.bf16.xpose.msra.mxu0 0
      %4728 = vmatprep.subr.bf16.mxu0 0
      %4729 = vmatpush1.bf16.xpose.msra.mxu0 0
      %4730 = vmatprep.subr.bf16.mxu0 0
      %4731 = vmatpush1.bf16.xpose.msra.mxu0 0
      %4732 = vmatprep.subr.bf16.mxu0 0
      %4733 = vmatpush1.bf16.xpose.msra.mxu0 0
      %4734 = vmatprep.subr.bf16.mxu0 0
      %4735 = vmatpush1.bf16.xpose.msra.mxu0 0
      %4736 = vmatprep.subr.bf16.mxu0 0
      %4737 = vmatpush1.bf16.xpose.msra.mxu0 0
      %4738 = vmatprep.subr.bf16.mxu0 0
      %4739 = vmatpush1.bf16.xpose.msra.mxu0 0
      %4740 = vmatprep.subr.bf16.mxu0 0
      %4741 = vmatpush1.bf16.xpose.msra.mxu0 0
      %4742 = vmatprep.subr.bf16.mxu0 0
      %4743 = vmatpush1.bf16.xpose.msra.mxu0 0
      %4744 = vmatprep.subr.bf16.mxu0 0
      %4745 = vmatpush1.bf16.xpose.msra.mxu0 0
      %4746 = vmatprep.subr.bf16.mxu0 0
      %4747 = vmatpush1.bf16.xpose.msra.mxu0 0
      %4748 = vmatprep.subr.bf16.mxu0 0
      %4749 = vmatpush1.bf16.xpose.msra.mxu0 0
      %4750 = vmatprep.subr.bf16.mxu0 0
      %4751 = vmatpush1.bf16.xpose.msra.mxu0 0
      %4752 = vmatprep.mubr.bf16.mxu0 0
      %4753 = vmatmul.mubr.bf16.gmra.mrb[0].mxu0 %v4715
      %v4754 = vpop.f32.mrb[0].mxu0
      %v4755 = vadd.f32 0.0, %v4754
      %v4756 = vpop.f32.mrb[0].mxu0
      %v4757 = vpop.f32.mrb[0].mxu0
      %v4758 = vpop.f32.mrb[0].mxu0
      %4759 = vdwg.mxu0
      %v4760 = vsel %vm792, %v4755, -inf
      %4761 = vmax.xlane.f32.xlu0 %v4760
      %v4762 = vpop.xlane.xlu0 %4761
      %v4763 = vsub.f32 %v4755, %v4762
      %v4764 = vmul.f32 %v4763, 1.442695
      %v4765 = vpow.pop %v4764
      %v4766 = vsel %vm792, %v4765, 0.0
      %4767 = vadd.xlane.f32.xlu0 %v4766
      %v4768 = vpop.xlane.xlu0 %4767
      %v4769 = vrcp.pop %v4768
      %v4770 = vmul.f32 %v4765, %v4769
      %v4771 = vpack.c.bf16 %v4770, %v4770
      %4772 = vrot.lane.b32.xlu0 %v4485, 48
      %v4773 = vpop.permute.xlu0 %4772
      %v4775 = vsel %vm792, %v4771, 0
      %v4778 = vsel %vm856, %v4773, 0
      %4780 = vmatprep.subr.bf16.mxu0 0
      %4781 = vmatpush1.bf16.msra.mxu0 %v4778
      %4782 = vmatprep.subr.bf16.mxu0 0
      %4783 = vmatpush1.bf16.msra.mxu0 0
      %4784 = vmatprep.subr.bf16.mxu0 0
      %4785 = vmatpush1.bf16.msra.mxu0 0
      %4786 = vmatprep.subr.bf16.mxu0 0
      %4787 = vmatpush1.bf16.msra.mxu0 0
      %4788 = vmatprep.subr.bf16.mxu0 0
      %4789 = vmatpush1.bf16.msra.mxu0 0
      %4790 = vmatprep.subr.bf16.mxu0 0
      %4791 = vmatpush1.bf16.msra.mxu0 0
      %4792 = vmatprep.subr.bf16.mxu0 0
      %4793 = vmatpush1.bf16.msra.mxu0 0
      %4794 = vmatprep.subr.bf16.mxu0 0
      %4795 = vmatpush1.bf16.msra.mxu0 0
      %4796 = vmatprep.subr.bf16.mxu0 0
      %4797 = vmatpush1.bf16.msra.mxu0 0
      %4798 = vmatprep.subr.bf16.mxu0 0
      %4799 = vmatpush1.bf16.msra.mxu0 0
      %4800 = vmatprep.subr.bf16.mxu0 0
      %4801 = vmatpush1.bf16.msra.mxu0 0
      %4802 = vmatprep.subr.bf16.mxu0 0
      %4803 = vmatpush1.bf16.msra.mxu0 0
      %4804 = vmatprep.subr.bf16.mxu0 0
      %4805 = vmatpush1.bf16.msra.mxu0 0
      %4806 = vmatprep.subr.bf16.mxu0 0
      %4807 = vmatpush1.bf16.msra.mxu0 0
      %4808 = vmatprep.subr.bf16.mxu0 0
      %4809 = vmatpush1.bf16.msra.mxu0 0
      %4810 = vmatprep.subr.bf16.mxu0 0
      %4811 = vmatpush1.bf16.msra.mxu0 0
      %4812 = vmatprep.mubr.bf16.mxu0 0
      %4813 = vmatmul.mubr.bf16.gmra.mrb[0].mxu0 %v4775
      %v4814 = vpop.f32.mrb[0].mxu0
      %v4815 = vadd.f32 0.0, %v4814
      %v4816 = vpop.f32.mrb[0].mxu0
      %v4817 = vpop.f32.mrb[0].mxu0
      %v4818 = vpop.f32.mrb[0].mxu0
      %4819 = vdwg.mxu0
      %4821 = vrot.lane.b32.xlu0 %v4815, 16
      %v4822 = vpop.permute.xlu0 %4821
      %4824 = vst.msk [vmem:[#allocation2 + $0x18] sm:$0xff] %vm1131, %v4822
      %4825 = vrot.lane.b32.xlu0 %v4485, 104
      %v4826 = vpop.permute.xlu0 %4825
      %4827 = vrot.lane.b32.xlu0 %v4485, 72
      %v4828 = vpop.permute.xlu0 %4827
      %v4830 = vsel %vm792, %v4826, 0
      %v4833 = vsel %vm792, %v4828, 0
      %4835 = vmatprep.subr.bf16.mxu0 0
      %4836 = vmatpush1.bf16.xpose.msra.mxu0 %v4833
      %4837 = vmatprep.subr.bf16.mxu0 0
      %4838 = vmatpush1.bf16.xpose.msra.mxu0 0
      %4839 = vmatprep.subr.bf16.mxu0 0
      %4840 = vmatpush1.bf16.xpose.msra.mxu0 0
      %4841 = vmatprep.subr.bf16.mxu0 0
      %4842 = vmatpush1.bf16.xpose.msra.mxu0 0
      %4843 = vmatprep.subr.bf16.mxu0 0
      %4844 = vmatpush1.bf16.xpose.msra.mxu0 0
      %4845 = vmatprep.subr.bf16.mxu0 0
      %4846 = vmatpush1.bf16.xpose.msra.mxu0 0
      %4847 = vmatprep.subr.bf16.mxu0 0
      %4848 = vmatpush1.bf16.xpose.msra.mxu0 0
      %4849 = vmatprep.subr.bf16.mxu0 0
      %4850 = vmatpush1.bf16.xpose.msra.mxu0 0
      %4851 = vmatprep.subr.bf16.mxu0 0
      %4852 = vmatpush1.bf16.xpose.msra.mxu0 0
      %4853 = vmatprep.subr.bf16.mxu0 0
      %4854 = vmatpush1.bf16.xpose.msra.mxu0 0
      %4855 = vmatprep.subr.bf16.mxu0 0
      %4856 = vmatpush1.bf16.xpose.msra.mxu0 0
      %4857 = vmatprep.subr.bf16.mxu0 0
      %4858 = vmatpush1.bf16.xpose.msra.mxu0 0
      %4859 = vmatprep.subr.bf16.mxu0 0
      %4860 = vmatpush1.bf16.xpose.msra.mxu0 0
      %4861 = vmatprep.subr.bf16.mxu0 0
      %4862 = vmatpush1.bf16.xpose.msra.mxu0 0
      %4863 = vmatprep.subr.bf16.mxu0 0
      %4864 = vmatpush1.bf16.xpose.msra.mxu0 0
      %4865 = vmatprep.subr.bf16.mxu0 0
      %4866 = vmatpush1.bf16.xpose.msra.mxu0 0
      %4867 = vmatprep.mubr.bf16.mxu0 0
      %4868 = vmatmul.mubr.bf16.gmra.mrb[0].mxu0 %v4830
      %v4869 = vpop.f32.mrb[0].mxu0
      %v4870 = vadd.f32 0.0, %v4869
      %v4871 = vpop.f32.mrb[0].mxu0
      %v4872 = vpop.f32.mrb[0].mxu0
      %v4873 = vpop.f32.mrb[0].mxu0
      %4874 = vdwg.mxu0
      %v4875 = vsel %vm792, %v4870, -inf
      %4876 = vmax.xlane.f32.xlu0 %v4875
      %v4877 = vpop.xlane.xlu0 %4876
      %v4878 = vsub.f32 %v4870, %v4877
      %v4879 = vmul.f32 %v4878, 1.442695
      %v4880 = vpow.pop %v4879
      %v4881 = vsel %vm792, %v4880, 0.0
      %4882 = vadd.xlane.f32.xlu0 %v4881
      %v4883 = vpop.xlane.xlu0 %4882
      %v4884 = vrcp.pop %v4883
      %v4885 = vmul.f32 %v4880, %v4884
      %v4886 = vpack.c.bf16 %v4885, %v4885
      %4887 = vrot.lane.b32.xlu0 %v4485, 40
      %v4888 = vpop.permute.xlu0 %4887
      %v4890 = vsel %vm792, %v4886, 0
      %v4893 = vsel %vm856, %v4888, 0
      %4895 = vmatprep.subr.bf16.mxu0 0
      %4896 = vmatpush1.bf16.msra.mxu0 %v4893
      %4897 = vmatprep.subr.bf16.mxu0 0
      %4898 = vmatpush1.bf16.msra.mxu0 0
      %4899 = vmatprep.subr.bf16.mxu0 0
      %4900 = vmatpush1.bf16.msra.mxu0 0
      %4901 = vmatprep.subr.bf16.mxu0 0
      %4902 = vmatpush1.bf16.msra.mxu0 0
      %4903 = vmatprep.subr.bf16.mxu0 0
      %4904 = vmatpush1.bf16.msra.mxu0 0
      %4905 = vmatprep.subr.bf16.mxu0 0
      %4906 = vmatpush1.bf16.msra.mxu0 0
      %4907 = vmatprep.subr.bf16.mxu0 0
      %4908 = vmatpush1.bf16.msra.mxu0 0
      %4909 = vmatprep.subr.bf16.mxu0 0
      %4910 = vmatpush1.bf16.msra.mxu0 0
      %4911 = vmatprep.subr.bf16.mxu0 0
      %4912 = vmatpush1.bf16.msra.mxu0 0
      %4913 = vmatprep.subr.bf16.mxu0 0
      %4914 = vmatpush1.bf16.msra.mxu0 0
      %4915 = vmatprep.subr.bf16.mxu0 0
      %4916 = vmatpush1.bf16.msra.mxu0 0
      %4917 = vmatprep.subr.bf16.mxu0 0
      %4918 = vmatpush1.bf16.msra.mxu0 0
      %4919 = vmatprep.subr.bf16.mxu0 0
      %4920 = vmatpush1.bf16.msra.mxu0 0
      %4921 = vmatprep.subr.bf16.mxu0 0
      %4922 = vmatpush1.bf16.msra.mxu0 0
      %4923 = vmatprep.subr.bf16.mxu0 0
      %4924 = vmatpush1.bf16.msra.mxu0 0
      %4925 = vmatprep.subr.bf16.mxu0 0
      %4926 = vmatpush1.bf16.msra.mxu0 0
      %4927 = vmatprep.mubr.bf16.mxu0 0
      %4928 = vmatmul.mubr.bf16.gmra.mrb[0].mxu0 %v4890
      %v4929 = vpop.f32.mrb[0].mxu0
      %v4930 = vadd.f32 0.0, %v4929
      %v4931 = vpop.f32.mrb[0].mxu0
      %v4932 = vpop.f32.mrb[0].mxu0
      %v4933 = vpop.f32.mrb[0].mxu0
      %4934 = vdwg.mxu0
      %4936 = vrot.lane.b32.xlu0 %v4930, 24
      %v4937 = vpop.permute.xlu0 %4936
      %4939 = vst.msk [vmem:[#allocation2 + $0x18] sm:$0xff] %vm1247, %v4937
      %v4940 = vld [vmem:[#allocation2] sm:$0xff]
      %v4941 = vld [vmem:[#allocation2 + $0x8] sm:$0xff]
      %v4942 = vld [vmem:[#allocation2 + $0x10] sm:$0xff]
      %v4943 = vld [vmem:[#allocation2 + $0x18] sm:$0xff]
      %v4944 = vpack.c.bf16 %v4941, %v4940
      %v4945 = vpack.c.bf16 %v4943, %v4942
      %s4946 = scalar_lea.vmem %s6, 16
      %v4947 = vld [vmem:[%s4946] sm:$0xf]
      %v4948 = vld [vmem:[%s4946 + $0x4] sm:$0xf]
      %v4949 = vld [vmem:[%s4946 + $0x8] sm:$0xf]
      %v4950 = vld [vmem:[%s4946 + $0xc] sm:$0xf]
      %s4951 = scalar_lea.vmem %s7, 1
      %v4952 = vld [vmem:[%s4951] sm:$0x1]
      %v4954 = vlaneseq
      %v4955 = vshrl.u32 %v4954, 7
      %v4956 = vsub.s32 0, %v4955
      %v4957 = vrot.slane %v4952, %v4956
      %v4963 = vunpack.c.l.b16 %v4947
      %v4964 = vunpack.c.l.b16 %v4948
      %v4965 = vunpack.c.l.b16 %v4949
      %v4966 = vunpack.c.l.b16 %v4950
      %v4967 = vpack.c.b16 %v4964, %v4963
      %v4968 = vpack.c.b16 %v4966, %v4965
      %v4972 = vsel %vm731, %v4944, 0
      %v4975 = vsel %vm731, %v4945, 0
      %4977 = vmatprep.subr.bf16.mxu0 0
      %4978 = vmatpush1.bf16.msra.mxu0 %v4967
      %4979 = vmatprep.subr.bf16.mxu0 0
      %4980 = vmatpush1.bf16.msra.mxu0 %v4968
      %4981 = vmatprep.subr.bf16.mxu0 0
      %4982 = vmatpush1.bf16.msra.mxu0 0
      %4983 = vmatprep.subr.bf16.mxu0 0
      %4984 = vmatpush1.bf16.msra.mxu0 0
      %4985 = vmatprep.subr.bf16.mxu0 0
      %4986 = vmatpush1.bf16.msra.mxu0 0
      %4987 = vmatprep.subr.bf16.mxu0 0
      %4988 = vmatpush1.bf16.msra.mxu0 0
      %4989 = vmatprep.subr.bf16.mxu0 0
      %4990 = vmatpush1.bf16.msra.mxu0 0
      %4991 = vmatprep.subr.bf16.mxu0 0
      %4992 = vmatpush1.bf16.msra.mxu0 0
      %4993 = vmatprep.subr.bf16.mxu0 0
      %4994 = vmatpush1.bf16.msra.mxu0 0
      %4995 = vmatprep.subr.bf16.mxu0 0
      %4996 = vmatpush1.bf16.msra.mxu0 0
      %4997 = vmatprep.subr.bf16.mxu0 0
      %4998 = vmatpush1.bf16.msra.mxu0 0
      %4999 = vmatprep.subr.bf16.mxu0 0
      %5000 = vmatpush1.bf16.msra.mxu0 0
      %5001 = vmatprep.subr.bf16.mxu0 0
      %5002 = vmatpush1.bf16.msra.mxu0 0
      %5003 = vmatprep.subr.bf16.mxu0 0
      %5004 = vmatpush1.bf16.msra.mxu0 0
      %5005 = vmatprep.subr.bf16.mxu0 0
      %5006 = vmatpush1.bf16.msra.mxu0 0
      %5007 = vmatprep.subr.bf16.mxu0 0
      %5008 = vmatpush1.bf16.msra.mxu0 0
      %5009 = vmatprep.mubr.bf16.mxu0 0
      %5010 = vmatmul.mubr.bf16.gmra.mrb[0].mxu0 %v4972
      %v5011 = vpop.f32.mrb[0].mxu0
      %v5012 = vadd.f32 %v4957, %v5011
      %v5013 = vpop.f32.mrb[0].mxu0
      %v5014 = vpop.f32.mrb[0].mxu0
      %v5015 = vadd.f32 %v4957, %v5014
      %v5016 = vpop.f32.mrb[0].mxu0
      %5017 = vmatprep.mubr.bf16.mxu0 0
      %5018 = vmatmul.mubr.bf16.gmra.mrb[0].mxu0 %v4975
      %v5019 = vpop.f32.mrb[0].mxu0
      %v5020 = vadd.f32 %v4957, %v5019
      %v5021 = vpop.f32.mrb[0].mxu0
      %v5022 = vpop.f32.mrb[0].mxu0
      %v5023 = vadd.f32 %v4957, %v5022
      %v5024 = vpop.f32.mrb[0].mxu0
      %5025 = vdwg.mxu0
      %v5026 = vadd.f32 %v3032, %v5012
      %v5027 = vadd.f32 %v3033, %v5015
      %v5028 = vadd.f32 %v3034, %v5020
      %v5029 = vadd.f32 %v3035, %v5023
      %s5030 = scalar_lea.vmem %s8, 1
      %v5031 = vld [vmem:[%s5030] sm:$0x1]
      %s5032 = scalar_lea.vmem %s9, 1
      %v5033 = vld [vmem:[%s5032] sm:$0x1]
      %v5034 = vsel %vm731, %v5026, 0.0
      %5035 = vadd.xlane.f32.xlu0 %v5034
      %v5036 = vpop.xlane.xlu0 %5035
      %v5037 = vsel %vm731, %v5027, 0.0
      %5038 = vadd.xlane.f32.xlu0 %v5037
      %v5039 = vpop.xlane.xlu0 %5038
      %v5040 = vsel %vm731, %v5028, 0.0
      %5041 = vadd.xlane.f32.xlu0 %v5040
      %v5042 = vpop.xlane.xlu0 %5041
      %v5043 = vsel %vm731, %v5029, 0.0
      %5044 = vadd.xlane.f32.xlu0 %v5043
      %v5045 = vpop.xlane.xlu0 %5044
      %v5046 = vmul.f32 %v5036, %v2716
      %v5047 = vmul.f32 %v5039, %v2716
      %v5048 = vmul.f32 %v5042, %v2716
      %v5049 = vmul.f32 %v5045, %v2716
      %v5050 = vsub.f32 %v5026, %v5046
      %v5051 = vsub.f32 %v5027, %v5047
      %v5052 = vsub.f32 %v5028, %v5048
      %v5053 = vsub.f32 %v5029, %v5049
      %v5054 = vmul.f32 %v5050, %v5050
      %v5055 = vmul.f32 %v5051, %v5051
      %v5056 = vmul.f32 %v5052, %v5052
      %v5057 = vmul.f32 %v5053, %v5053
      %v5058 = vsel %vm731, %v5054, 0.0
      %5059 = vadd.xlane.f32.xlu0 %v5058
      %v5060 = vpop.xlane.xlu0 %5059
      %v5061 = vsel %vm731, %v5055, 0.0
      %5062 = vadd.xlane.f32.xlu0 %v5061
      %v5063 = vpop.xlane.xlu0 %5062
      %v5064 = vsel %vm731, %v5056, 0.0
      %5065 = vadd.xlane.f32.xlu0 %v5064
      %v5066 = vpop.xlane.xlu0 %5065
      %v5067 = vsel %vm731, %v5057, 0.0
      %5068 = vadd.xlane.f32.xlu0 %v5067
      %v5069 = vpop.xlane.xlu0 %5068
      %v5070 = vmul.f32 %v5060, %v2716
      %v5071 = vmul.f32 %v5063, %v2716
      %v5072 = vmul.f32 %v5066, %v2716
      %v5073 = vmul.f32 %v5069, %v2716
      %v5074 = vadd.f32 %v5070, 1e-05
      %v5075 = vadd.f32 %v5071, 1e-05
      %v5076 = vadd.f32 %v5072, 1e-05
      %v5077 = vadd.f32 %v5073, 1e-05
      %v5078 = vrsqrt.pop %v5074
      %v5079 = vrsqrt.pop %v5075
      %v5080 = vrsqrt.pop %v5076
      %v5081 = vrsqrt.pop %v5077
      %v5082 = vmul.f32 %v5050, %v5078
      %v5083 = vmul.f32 %v5051, %v5079
      %v5084 = vmul.f32 %v5052, %v5080
      %v5085 = vmul.f32 %v5053, %v5081
      %v5087 = vlaneseq
      %v5088 = vshrl.u32 %v5087, 7
      %v5089 = vsub.s32 0, %v5088
      %v5090 = vrot.slane %v5031, %v5089
      %v5092 = vmul.f32 %v5082, %v5090
      %v5093 = vmul.f32 %v5083, %v5090
      %v5094 = vmul.f32 %v5084, %v5090
      %v5095 = vmul.f32 %v5085, %v5090
      %v5097 = vlaneseq
      %v5098 = vshrl.u32 %v5097, 7
      %v5099 = vsub.s32 0, %v5098
      %v5100 = vrot.slane %v5033, %v5099
      %v5102 = vadd.f32 %v5092, %v5100
      %v5103 = vadd.f32 %v5093, %v5100
      %v5104 = vadd.f32 %v5094, %v5100
      %v5105 = vadd.f32 %v5095, %v5100
      %v5106 = vpack.c.bf16 %v5103, %v5102
      %v5107 = vpack.c.bf16 %v5105, %v5104
      %s5108 = scalar_lea.vmem %s10, 16
      %v5109 = vld [vmem:[%s5108] sm:$0xf]
      %v5110 = vld [vmem:[%s5108 + $0x4] sm:$0xf]
      %v5111 = vld [vmem:[%s5108 + $0x8] sm:$0xf]
      %v5112 = vld [vmem:[%s5108 + $0xc] sm:$0xf]
      %s5113 = scalar_lea.vmem %s11, 1
      %v5114 = vld [vmem:[%s5113] sm:$0x1]
      %v5116 = vlaneseq
      %v5117 = vshrl.u32 %v5116, 7
      %v5118 = vsub.s32 0, %v5117
      %v5119 = vrot.slane %v5114, %v5118
      %v5125 = vunpack.c.l.b16 %v5109
      %v5126 = vunpack.c.l.b16 %v5110
      %v5127 = vunpack.c.l.b16 %v5111
      %v5128 = vunpack.c.l.b16 %v5112
      %v5129 = vpack.c.b16 %v5126, %v5125
      %v5130 = vpack.c.b16 %v5128, %v5127
      %v5134 = vsel %vm731, %v5106, 0
      %v5137 = vsel %vm731, %v5107, 0
      %5139 = vmatprep.subr.bf16.mxu0 0
      %5140 = vmatpush1.bf16.msra.mxu0 %v5129
      %5141 = vmatprep.subr.bf16.mxu0 0
      %5142 = vmatpush1.bf16.msra.mxu0 %v5130
      %5143 = vmatprep.subr.bf16.mxu0 0
      %5144 = vmatpush1.bf16.msra.mxu0 0
      %5145 = vmatprep.subr.bf16.mxu0 0
      %5146 = vmatpush1.bf16.msra.mxu0 0
      %5147 = vmatprep.subr.bf16.mxu0 0
      %5148 = vmatpush1.bf16.msra.mxu0 0
      %5149 = vmatprep.subr.bf16.mxu0 0
      %5150 = vmatpush1.bf16.msra.mxu0 0
      %5151 = vmatprep.subr.bf16.mxu0 0
      %5152 = vmatpush1.bf16.msra.mxu0 0
      %5153 = vmatprep.subr.bf16.mxu0 0
      %5154 = vmatpush1.bf16.msra.mxu0 0
      %5155 = vmatprep.subr.bf16.mxu0 0
      %5156 = vmatpush1.bf16.msra.mxu0 0
      %5157 = vmatprep.subr.bf16.mxu0 0
      %5158 = vmatpush1.bf16.msra.mxu0 0
      %5159 = vmatprep.subr.bf16.mxu0 0
      %5160 = vmatpush1.bf16.msra.mxu0 0
      %5161 = vmatprep.subr.bf16.mxu0 0
      %5162 = vmatpush1.bf16.msra.mxu0 0
      %5163 = vmatprep.subr.bf16.mxu0 0
      %5164 = vmatpush1.bf16.msra.mxu0 0
      %5165 = vmatprep.subr.bf16.mxu0 0
      %5166 = vmatpush1.bf16.msra.mxu0 0
      %5167 = vmatprep.subr.bf16.mxu0 0
      %5168 = vmatpush1.bf16.msra.mxu0 0
      %5169 = vmatprep.subr.bf16.mxu0 0
      %5170 = vmatpush1.bf16.msra.mxu0 0
      %5171 = vmatprep.mubr.bf16.mxu0 0
      %5172 = vmatmul.mubr.bf16.gmra.mrb[0].mxu0 %v5134
      %v5173 = vpop.f32.mrb[0].mxu0
      %v5174 = vadd.f32 %v5119, %v5173
      %v5175 = vpop.f32.mrb[0].mxu0
      %v5176 = vpop.f32.mrb[0].mxu0
      %v5177 = vadd.f32 %v5119, %v5176
      %v5178 = vpop.f32.mrb[0].mxu0
      %5179 = vmatprep.mubr.bf16.mxu0 0
      %5180 = vmatmul.mubr.bf16.gmra.mrb[0].mxu0 %v5137
      %v5181 = vpop.f32.mrb[0].mxu0
      %v5182 = vadd.f32 %v5119, %v5181
      %v5183 = vpop.f32.mrb[0].mxu0
      %v5184 = vpop.f32.mrb[0].mxu0
      %v5185 = vadd.f32 %v5119, %v5184
      %v5186 = vpop.f32.mrb[0].mxu0
      %5187 = vdwg.mxu0
      %v5188 = vmax.f32 %v5174, 0.0
      %v5189 = vmax.f32 %v5177, 0.0
      %v5190 = vmax.f32 %v5182, 0.0
      %v5191 = vmax.f32 %v5185, 0.0
      %v5192 = vpack.c.bf16 %v5189, %v5188
      %v5193 = vpack.c.bf16 %v5191, %v5190
      %s5194 = scalar_lea.vmem %s12, 32
      %v5195 = vld [vmem:[%s5194] sm:$0xf]
      %v5196 = vld [vmem:[%s5194 + $0x4] sm:$0xf]
      %v5197 = vld [vmem:[%s5194 + $0x8] sm:$0xf]
      %v5198 = vld [vmem:[%s5194 + $0xc] sm:$0xf]
      %v5199 = vld [vmem:[%s5194 + $0x10] sm:$0xf]
      %v5200 = vld [vmem:[%s5194 + $0x14] sm:$0xf]
      %v5201 = vld [vmem:[%s5194 + $0x18] sm:$0xf]
      %v5202 = vld [vmem:[%s5194 + $0x1c] sm:$0xf]
      %s5203 = scalar_lea.vmem %s13, 1
      %v5204 = vld [vmem:[%s5203] sm:$0x1]
      %v5206 = vlaneseq
      %v5207 = vshrl.u32 %v5206, 7
      %v5208 = vsub.s32 0, %v5207
      %v5209 = vrot.slane %v5204, %v5208
      %v5219 = vunpack.c.l.b16 %v5195
      %v5220 = vunpack.c.l.b16 %v5196
      %v5221 = vunpack.c.l.b16 %v5197
      %v5222 = vunpack.c.l.b16 %v5198
      %v5223 = vunpack.c.l.b16 %v5199
      %v5224 = vunpack.c.l.b16 %v5200
      %v5225 = vunpack.c.l.b16 %v5201
      %v5226 = vunpack.c.l.b16 %v5202
      %v5227 = vpack.c.b16 %v5220, %v5219
      %v5228 = vpack.c.b16 %v5222, %v5221
      %v5229 = vpack.c.b16 %v5224, %v5223
      %v5230 = vpack.c.b16 %v5226, %v5225
      %v5236 = vsel %vm2902, %v5192, 0
      %v5239 = vsel %vm2902, %v5193, 0
      %5241 = vmatprep.subr.bf16.mxu0 0
      %5242 = vmatpush1.bf16.msra.mxu0 %v5227
      %5243 = vmatprep.subr.bf16.mxu0 0
      %5244 = vmatpush1.bf16.msra.mxu0 %v5228
      %5245 = vmatprep.subr.bf16.mxu0 0
      %5246 = vmatpush1.bf16.msra.mxu0 %v5229
      %5247 = vmatprep.subr.bf16.mxu0 0
      %5248 = vmatpush1.bf16.msra.mxu0 %v5230
      %5249 = vmatprep.subr.bf16.mxu0 0
      %5250 = vmatpush1.bf16.msra.mxu0 0
      %5251 = vmatprep.subr.bf16.mxu0 0
      %5252 = vmatpush1.bf16.msra.mxu0 0
      %5253 = vmatprep.subr.bf16.mxu0 0
      %5254 = vmatpush1.bf16.msra.mxu0 0
      %5255 = vmatprep.subr.bf16.mxu0 0
      %5256 = vmatpush1.bf16.msra.mxu0 0
      %5257 = vmatprep.subr.bf16.mxu0 0
      %5258 = vmatpush1.bf16.msra.mxu0 0
      %5259 = vmatprep.subr.bf16.mxu0 0
      %5260 = vmatpush1.bf16.msra.mxu0 0
      %5261 = vmatprep.subr.bf16.mxu0 0
      %5262 = vmatpush1.bf16.msra.mxu0 0
      %5263 = vmatprep.subr.bf16.mxu0 0
      %5264 = vmatpush1.bf16.msra.mxu0 0
      %5265 = vmatprep.subr.bf16.mxu0 0
      %5266 = vmatpush1.bf16.msra.mxu0 0
      %5267 = vmatprep.subr.bf16.mxu0 0
      %5268 = vmatpush1.bf16.msra.mxu0 0
      %5269 = vmatprep.subr.bf16.mxu0 0
      %5270 = vmatpush1.bf16.msra.mxu0 0
      %5271 = vmatprep.subr.bf16.mxu0 0
      %5272 = vmatpush1.bf16.msra.mxu0 0
      %5273 = vmatprep.mubr.bf16.mxu0 0
      %5274 = vmatmul.mubr.bf16.gmra.mrb[0].mxu0 %v5236
      %v5275 = vpop.f32.mrb[0].mxu0
      %v5276 = vadd.f32 %v5209, %v5275
      %v5277 = vpop.f32.mrb[0].mxu0
      %v5278 = vpop.f32.mrb[0].mxu0
      %v5279 = vadd.f32 %v5209, %v5278
      %v5280 = vpop.f32.mrb[0].mxu0
      %5281 = vmatprep.mubr.bf16.mxu0 0
      %5282 = vmatmul.mubr.bf16.gmra.mrb[0].mxu0 %v5239
      %v5283 = vpop.f32.mrb[0].mxu0
      %v5284 = vadd.f32 %v5209, %v5283
      %v5285 = vpop.f32.mrb[0].mxu0
      %v5286 = vpop.f32.mrb[0].mxu0
      %v5287 = vadd.f32 %v5209, %v5286
      %v5288 = vpop.f32.mrb[0].mxu0
      %5289 = vdwg.mxu0
      %v5290 = vadd.f32 %v5102, %v5276
      %v5291 = vadd.f32 %v5103, %v5279
      %v5292 = vadd.f32 %v5104, %v5284
      %v5293 = vadd.f32 %v5105, %v5287
      %s5294 = scalar_lea.vmem %s14, 1
      %v5295 = vld [vmem:[%s5294] sm:$0x1]
      %s5296 = scalar_lea.vmem %s15, 1
      %v5297 = vld [vmem:[%s5296] sm:$0x1]
      %v5298 = vsel %vm731, %v5290, 0.0
      %5299 = vadd.xlane.f32.xlu0 %v5298
      %v5300 = vpop.xlane.xlu0 %5299
      %v5301 = vsel %vm731, %v5291, 0.0
      %5302 = vadd.xlane.f32.xlu0 %v5301
      %v5303 = vpop.xlane.xlu0 %5302
      %v5304 = vsel %vm731, %v5292, 0.0
      %5305 = vadd.xlane.f32.xlu0 %v5304
      %v5306 = vpop.xlane.xlu0 %5305
      %v5307 = vsel %vm731, %v5293, 0.0
      %5308 = vadd.xlane.f32.xlu0 %v5307
      %v5309 = vpop.xlane.xlu0 %5308
      %v5310 = vmul.f32 %v5300, %v2716
      %v5311 = vmul.f32 %v5303, %v2716
      %v5312 = vmul.f32 %v5306, %v2716
      %v5313 = vmul.f32 %v5309, %v2716
      %v5314 = vsub.f32 %v5290, %v5310
      %v5315 = vsub.f32 %v5291, %v5311
      %v5316 = vsub.f32 %v5292, %v5312
      %v5317 = vsub.f32 %v5293, %v5313
      %v5318 = vmul.f32 %v5314, %v5314
      %v5319 = vmul.f32 %v5315, %v5315
      %v5320 = vmul.f32 %v5316, %v5316
      %v5321 = vmul.f32 %v5317, %v5317
      %v5322 = vsel %vm731, %v5318, 0.0
      %5323 = vadd.xlane.f32.xlu0 %v5322
      %v5324 = vpop.xlane.xlu0 %5323
      %v5325 = vsel %vm731, %v5319, 0.0
      %5326 = vadd.xlane.f32.xlu0 %v5325
      %v5327 = vpop.xlane.xlu0 %5326
      %v5328 = vsel %vm731, %v5320, 0.0
      %5329 = vadd.xlane.f32.xlu0 %v5328
      %v5330 = vpop.xlane.xlu0 %5329
      %v5331 = vsel %vm731, %v5321, 0.0
      %5332 = vadd.xlane.f32.xlu0 %v5331
      %v5333 = vpop.xlane.xlu0 %5332
      %v5334 = vmul.f32 %v5324, %v2716
      %v5335 = vmul.f32 %v5327, %v2716
      %v5336 = vmul.f32 %v5330, %v2716
      %v5337 = vmul.f32 %v5333, %v2716
      %v5338 = vadd.f32 %v5334, 1e-05
      %v5339 = vadd.f32 %v5335, 1e-05
      %v5340 = vadd.f32 %v5336, 1e-05
      %v5341 = vadd.f32 %v5337, 1e-05
      %v5342 = vrsqrt.pop %v5338
      %v5343 = vrsqrt.pop %v5339
      %v5344 = vrsqrt.pop %v5340
      %v5345 = vrsqrt.pop %v5341
      %v5346 = vmul.f32 %v5314, %v5342
      %v5347 = vmul.f32 %v5315, %v5343
      %v5348 = vmul.f32 %v5316, %v5344
      %v5349 = vmul.f32 %v5317, %v5345
      %v5351 = vlaneseq
      %v5352 = vshrl.u32 %v5351, 7
      %v5353 = vsub.s32 0, %v5352
      %v5354 = vrot.slane %v5295, %v5353
      %v5356 = vmul.f32 %v5346, %v5354
      %v5357 = vmul.f32 %v5347, %v5354
      %v5358 = vmul.f32 %v5348, %v5354
      %v5359 = vmul.f32 %v5349, %v5354
      %v5361 = vlaneseq
      %v5362 = vshrl.u32 %v5361, 7
      %v5363 = vsub.s32 0, %v5362
      %v5364 = vrot.slane %v5297, %v5363
      %v5366 = vadd.f32 %v5356, %v5364
      %v5367 = vadd.f32 %v5357, %v5364
      %v5368 = vadd.f32 %v5358, %v5364
      %v5369 = vadd.f32 %v5359, %v5364
      %vm5370 = vcmask 253952
      %5371 = vst.msk [vmem:[#allocation3] sm:$0x1] %vm5370, %v5366
      %v5373 = vrot.slane %v5366, 5
      %v5374 = vrot.slane %v5373, 4
      %5375 = vrot.lane.b32.xlu0 %v5374, 32
      %v5376 = vpop.permute.xlu0 %5375
      %vm5378 = vcmask 516352
      %5379 = vst.msk [vmem:[#allocation3] sm:$0x1] %vm5378, %v5376
      %v5380 = vrot.slane %v5366, 6
      %v5381 = vrot.slane %v5380, 4
      %5382 = vrot.lane.b32.xlu0 %v5381, 64
      %v5383 = vpop.permute.xlu0 %5382
      %vm5385 = vcmask 778752
      %5386 = vst.msk [vmem:[#allocation3] sm:$0x1] %vm5385, %v5383
      %v5387 = vrot.slane %v5366, 7
      %v5388 = vrot.slane %v5387, 4
      %5389 = vrot.lane.b32.xlu0 %v5388, 96
      %v5390 = vpop.permute.xlu0 %5389
      %vm5392 = vcmask 1041152
      %5393 = vst.msk [vmem:[#allocation3] sm:$0x1] %vm5392, %v5390
      %v5394 = vcombine.high %v5366, %v5366
      %5396 = vst.msk [vmem:[#allocation3 + $0x4] sm:$0x1] %vm5370, %v5394
      %v5397 = vrot.slane %v5394, 5
      %v5398 = vrot.slane %v5397, 4
      %5399 = vrot.lane.b32.xlu0 %v5398, 32
      %v5400 = vpop.permute.xlu0 %5399
      %5402 = vst.msk [vmem:[#allocation3 + $0x4] sm:$0x1] %vm5378, %v5400
      %v5403 = vrot.slane %v5394, 6
      %v5404 = vrot.slane %v5403, 4
      %5405 = vrot.lane.b32.xlu0 %v5404, 64
      %v5406 = vpop.permute.xlu0 %5405
      %5408 = vst.msk [vmem:[#allocation3 + $0x4] sm:$0x1] %vm5385, %v5406
      %v5409 = vrot.slane %v5394, 7
      %v5410 = vrot.slane %v5409, 4
      %5411 = vrot.lane.b32.xlu0 %v5410, 96
      %v5412 = vpop.permute.xlu0 %5411
      %5414 = vst.msk [vmem:[#allocation3 + $0x4] sm:$0x1] %vm5392, %v5412
      %5415 = vst.msk [vmem:[#allocation3 + $0x1] sm:$0x1] %vm5370, %v5367
      %v5417 = vrot.slane %v5367, 5
      %v5418 = vrot.slane %v5417, 4
      %5419 = vrot.lane.b32.xlu0 %v5418, 32
      %v5420 = vpop.permute.xlu0 %5419
      %5422 = vst.msk [vmem:[#allocation3 + $0x1] sm:$0x1] %vm5378, %v5420
      %v5423 = vrot.slane %v5367, 6
      %v5424 = vrot.slane %v5423, 4
      %5425 = vrot.lane.b32.xlu0 %v5424, 64
      %v5426 = vpop.permute.xlu0 %5425
      %5428 = vst.msk [vmem:[#allocation3 + $0x1] sm:$0x1] %vm5385, %v5426
      %v5429 = vrot.slane %v5367, 7
      %v5430 = vrot.slane %v5429, 4
      %5431 = vrot.lane.b32.xlu0 %v5430, 96
      %v5432 = vpop.permute.xlu0 %5431
      %5434 = vst.msk [vmem:[#allocation3 + $0x1] sm:$0x1] %vm5392, %v5432
      %v5435 = vcombine.high %v5367, %v5367
      %5437 = vst.msk [vmem:[#allocation3 + $0x5] sm:$0x1] %vm5370, %v5435
      %v5438 = vrot.slane %v5435, 5
      %v5439 = vrot.slane %v5438, 4
      %5440 = vrot.lane.b32.xlu0 %v5439, 32
      %v5441 = vpop.permute.xlu0 %5440
      %5443 = vst.msk [vmem:[#allocation3 + $0x5] sm:$0x1] %vm5378, %v5441
      %v5444 = vrot.slane %v5435, 6
      %v5445 = vrot.slane %v5444, 4
      %5446 = vrot.lane.b32.xlu0 %v5445, 64
      %v5447 = vpop.permute.xlu0 %5446
      %5449 = vst.msk [vmem:[#allocation3 + $0x5] sm:$0x1] %vm5385, %v5447
      %v5450 = vrot.slane %v5435, 7
      %v5451 = vrot.slane %v5450, 4
      %5452 = vrot.lane.b32.xlu0 %v5451, 96
      %v5453 = vpop.permute.xlu0 %5452
      %5455 = vst.msk [vmem:[#allocation3 + $0x5] sm:$0x1] %vm5392, %v5453
      %5456 = vst.msk [vmem:[#allocation3 + $0x2] sm:$0x1] %vm5370, %v5368
      %v5458 = vrot.slane %v5368, 5
      %v5459 = vrot.slane %v5458, 4
      %5460 = vrot.lane.b32.xlu0 %v5459, 32
      %v5461 = vpop.permute.xlu0 %5460
      %5463 = vst.msk [vmem:[#allocation3 + $0x2] sm:$0x1] %vm5378, %v5461
      %v5464 = vrot.slane %v5368, 6
      %v5465 = vrot.slane %v5464, 4
      %5466 = vrot.lane.b32.xlu0 %v5465, 64
      %v5467 = vpop.permute.xlu0 %5466
      %5469 = vst.msk [vmem:[#allocation3 + $0x2] sm:$0x1] %vm5385, %v5467
      %v5470 = vrot.slane %v5368, 7
      %v5471 = vrot.slane %v5470, 4
      %5472 = vrot.lane.b32.xlu0 %v5471, 96
      %v5473 = vpop.permute.xlu0 %5472
      %5475 = vst.msk [vmem:[#allocation3 + $0x2] sm:$0x1] %vm5392, %v5473
      %v5476 = vcombine.high %v5368, %v5368
      %5478 = vst.msk [vmem:[#allocation3 + $0x6] sm:$0x1] %vm5370, %v5476
      %v5479 = vrot.slane %v5476, 5
      %v5480 = vrot.slane %v5479, 4
      %5481 = vrot.lane.b32.xlu0 %v5480, 32
      %v5482 = vpop.permute.xlu0 %5481
      %5484 = vst.msk [vmem:[#allocation3 + $0x6] sm:$0x1] %vm5378, %v5482
      %v5485 = vrot.slane %v5476, 6
      %v5486 = vrot.slane %v5485, 4
      %5487 = vrot.lane.b32.xlu0 %v5486, 64
      %v5488 = vpop.permute.xlu0 %5487
      %5490 = vst.msk [vmem:[#allocation3 + $0x6] sm:$0x1] %vm5385, %v5488
      %v5491 = vrot.slane %v5476, 7
      %v5492 = vrot.slane %v5491, 4
      %5493 = vrot.lane.b32.xlu0 %v5492, 96
      %v5494 = vpop.permute.xlu0 %5493
      %5496 = vst.msk [vmem:[#allocation3 + $0x6] sm:$0x1] %vm5392, %v5494
      %5497 = vst.msk [vmem:[#allocation3 + $0x3] sm:$0x1] %vm5370, %v5369
      %v5499 = vrot.slane %v5369, 5
      %v5500 = vrot.slane %v5499, 4
      %5501 = vrot.lane.b32.xlu0 %v5500, 32
      %v5502 = vpop.permute.xlu0 %5501
      %5504 = vst.msk [vmem:[#allocation3 + $0x3] sm:$0x1] %vm5378, %v5502
      %v5505 = vrot.slane %v5369, 6
      %v5506 = vrot.slane %v5505, 4
      %5507 = vrot.lane.b32.xlu0 %v5506, 64
      %v5508 = vpop.permute.xlu0 %5507
      %5510 = vst.msk [vmem:[#allocation3 + $0x3] sm:$0x1] %vm5385, %v5508
      %v5511 = vrot.slane %v5369, 7
      %v5512 = vrot.slane %v5511, 4
      %5513 = vrot.lane.b32.xlu0 %v5512, 96
      %v5514 = vpop.permute.xlu0 %5513
      %5516 = vst.msk [vmem:[#allocation3 + $0x3] sm:$0x1] %vm5392, %v5514
      %v5517 = vcombine.high %v5369, %v5369
      %5519 = vst.msk [vmem:[#allocation3 + $0x7] sm:$0x1] %vm5370, %v5517
      %v5520 = vrot.slane %v5517, 5
      %v5521 = vrot.slane %v5520, 4
      %5522 = vrot.lane.b32.xlu0 %v5521, 32
      %v5523 = vpop.permute.xlu0 %5522
      %5525 = vst.msk [vmem:[#allocation3 + $0x7] sm:$0x1] %vm5378, %v5523
      %v5526 = vrot.slane %v5517, 6
      %v5527 = vrot.slane %v5526, 4
      %5528 = vrot.lane.b32.xlu0 %v5527, 64
      %v5529 = vpop.permute.xlu0 %5528
      %5531 = vst.msk [vmem:[#allocation3 + $0x7] sm:$0x1] %vm5385, %v5529
      %v5532 = vrot.slane %v5517, 7
      %v5533 = vrot.slane %v5532, 4
      %5534 = vrot.lane.b32.xlu0 %v5533, 96
      %v5535 = vpop.permute.xlu0 %5534
      %5537 = vst.msk [vmem:[#allocation3 + $0x7] sm:$0x1] %vm5392, %v5535
      %v5538 = vld [vmem:[#allocation3] sm:$0xff]
      %v5540 = vcombine.high %v5538, %v5538
      %v5542 = vpack.c.bf16 %v5538, %v5538
      %v5543 = vpack.c.bf16 %v5540, %v5540
      %v5544 = vld [vmem:[%s16] sm:$0xf]
      %v5545 = vld [vmem:[%s16 + $0x4] sm:$0xf]
      %v5546 = vld [vmem:[%s16 + $0x8] sm:$0xf]
      %v5547 = vld [vmem:[%s16 + $0xc] sm:$0xf]
      %v5548 = vld [vmem:[%s16 + $0x10] sm:$0xf]
      %v5549 = vld [vmem:[%s16 + $0x14] sm:$0xf]
      %v5550 = vld [vmem:[%s16 + $0x18] sm:$0xf]
      %v5551 = vld [vmem:[%s16 + $0x1c] sm:$0xf]
      %v5552 = vld [vmem:[%s16 + $0x20] sm:$0xf]
      %v5553 = vld [vmem:[%s16 + $0x24] sm:$0xf]
      %v5554 = vld [vmem:[%s16 + $0x28] sm:$0xf]
      %v5555 = vld [vmem:[%s16 + $0x2c] sm:$0xf]
      %v5556 = vld [vmem:[%s16 + $0x30] sm:$0xf]
      %v5557 = vld [vmem:[%s16 + $0x34] sm:$0xf]
      %v5558 = vld [vmem:[%s16 + $0x38] sm:$0xf]
      %v5559 = vld [vmem:[%s16 + $0x3c] sm:$0xf]
      %v5560 = vld [vmem:[%s16 + $0x40] sm:$0xf]
      %v5561 = vld [vmem:[%s16 + $0x44] sm:$0xf]
      %v5562 = vld [vmem:[%s16 + $0x48] sm:$0xf]
      %v5563 = vld [vmem:[%s16 + $0x4c] sm:$0xf]
      %v5564 = vld [vmem:[%s16 + $0x50] sm:$0xf]
      %v5565 = vld [vmem:[%s16 + $0x54] sm:$0xf]
      %v5566 = vld [vmem:[%s16 + $0x58] sm:$0xf]
      %v5567 = vld [vmem:[%s16 + $0x5c] sm:$0xf]
      %v5568 = vld [vmem:[%s16 + $0x60] sm:$0xf]
      %v5569 = vld [vmem:[%s16 + $0x64] sm:$0xf]
      %v5570 = vld [vmem:[%s16 + $0x68] sm:$0xf]
      %v5571 = vld [vmem:[%s16 + $0x6c] sm:$0xf]
      %v5572 = vld [vmem:[%s16 + $0x70] sm:$0xf]
      %v5573 = vld [vmem:[%s16 + $0x74] sm:$0xf]
      %v5574 = vld [vmem:[%s16 + $0x78] sm:$0xf]
      %v5575 = vld [vmem:[%s16 + $0x7c] sm:$0xf]
      %v5576 = vld [vmem:[%s17] sm:$0x1]
      %v5578 = vlaneseq
      %v5579 = vshrl.u32 %v5578, 7
      %v5580 = vsub.s32 0, %v5579
      %v5581 = vrot.slane %v5576, %v5580
      %v5615 = vunpack.c.l.b16 %v5544
      %v5616 = vunpack.c.l.b16 %v5545
      %v5617 = vunpack.c.l.b16 %v5546
      %v5618 = vunpack.c.l.b16 %v5547
      %v5619 = vunpack.c.l.b16 %v5548
      %v5620 = vunpack.c.l.b16 %v5549
      %v5621 = vunpack.c.l.b16 %v5550
      %v5622 = vunpack.c.l.b16 %v5551
      %v5623 = vunpack.c.l.b16 %v5552
      %v5624 = vunpack.c.l.b16 %v5553
      %v5625 = vunpack.c.l.b16 %v5554
      %v5626 = vunpack.c.l.b16 %v5555
      %v5627 = vunpack.c.l.b16 %v5556
      %v5628 = vunpack.c.l.b16 %v5557
      %v5629 = vunpack.c.l.b16 %v5558
      %v5630 = vunpack.c.l.b16 %v5559
      %v5631 = vunpack.c.l.b16 %v5560
      %v5632 = vunpack.c.l.b16 %v5561
      %v5633 = vunpack.c.l.b16 %v5562
      %v5634 = vunpack.c.l.b16 %v5563
      %v5635 = vunpack.c.l.b16 %v5564
      %v5636 = vunpack.c.l.b16 %v5565
      %v5637 = vunpack.c.l.b16 %v5566
      %v5638 = vunpack.c.l.b16 %v5567
      %v5639 = vunpack.c.l.b16 %v5568
      %v5640 = vunpack.c.l.b16 %v5569
      %v5641 = vunpack.c.l.b16 %v5570
      %v5642 = vunpack.c.l.b16 %v5571
      %v5643 = vunpack.c.l.b16 %v5572
      %v5644 = vunpack.c.l.b16 %v5573
      %v5645 = vunpack.c.l.b16 %v5574
      %v5646 = vunpack.c.l.b16 %v5575
      %v5647 = vpack.c.b16 %v5616, %v5615
      %v5648 = vpack.c.b16 %v5618, %v5617
      %v5649 = vpack.c.b16 %v5620, %v5619
      %v5650 = vpack.c.b16 %v5622, %v5621
      %v5651 = vpack.c.b16 %v5624, %v5623
      %v5652 = vpack.c.b16 %v5626, %v5625
      %v5653 = vpack.c.b16 %v5628, %v5627
      %v5654 = vpack.c.b16 %v5630, %v5629
      %v5655 = vpack.c.b16 %v5632, %v5631
      %v5656 = vpack.c.b16 %v5634, %v5633
      %v5657 = vpack.c.b16 %v5636, %v5635
      %v5658 = vpack.c.b16 %v5638, %v5637
      %v5659 = vpack.c.b16 %v5640, %v5639
      %v5660 = vpack.c.b16 %v5642, %v5641
      %v5661 = vpack.c.b16 %v5644, %v5643
      %v5662 = vpack.c.b16 %v5646, %v5645
      %5679 = vmatprep.subr.bf16.mxu0 0
      %5680 = vmatpush1.bf16.msra.mxu0 %v5647
      %5681 = vmatprep.subr.bf16.mxu0 0
      %5682 = vmatpush1.bf16.msra.mxu0 %v5648
      %5683 = vmatprep.subr.bf16.mxu0 0
      %5684 = vmatpush1.bf16.msra.mxu0 %v5649
      %5685 = vmatprep.subr.bf16.mxu0 0
      %5686 = vmatpush1.bf16.msra.mxu0 %v5650
      %5687 = vmatprep.subr.bf16.mxu0 0
      %5688 = vmatpush1.bf16.msra.mxu0 %v5651
      %5689 = vmatprep.subr.bf16.mxu0 0
      %5690 = vmatpush1.bf16.msra.mxu0 %v5652
      %5691 = vmatprep.subr.bf16.mxu0 0
      %5692 = vmatpush1.bf16.msra.mxu0 %v5653
      %5693 = vmatprep.subr.bf16.mxu0 0
      %5694 = vmatpush1.bf16.msra.mxu0 %v5654
      %5695 = vmatprep.subr.bf16.mxu0 0
      %5696 = vmatpush1.bf16.msra.mxu0 %v5655
      %5697 = vmatprep.subr.bf16.mxu0 0
      %5698 = vmatpush1.bf16.msra.mxu0 %v5656
      %5699 = vmatprep.subr.bf16.mxu0 0
      %5700 = vmatpush1.bf16.msra.mxu0 %v5657
      %5701 = vmatprep.subr.bf16.mxu0 0
      %5702 = vmatpush1.bf16.msra.mxu0 %v5658
      %5703 = vmatprep.subr.bf16.mxu0 0
      %5704 = vmatpush1.bf16.msra.mxu0 %v5659
      %5705 = vmatprep.subr.bf16.mxu0 0
      %5706 = vmatpush1.bf16.msra.mxu0 %v5660
      %5707 = vmatprep.subr.bf16.mxu0 0
      %5708 = vmatpush1.bf16.msra.mxu0 %v5661
      %5709 = vmatprep.subr.bf16.mxu0 0
      %5710 = vmatpush1.bf16.msra.mxu0 %v5662
      %5711 = vmatprep.mubr.bf16.mxu0 %v5543
      %5712 = vmatmul.mubr.bf16.gmra.mrb[0].mxu0 %v5542
      %v5713 = vpop.f32.mrb[0].mxu0
      %v5714 = vadd.f32 %v5581, %v5713
      %v5715 = vpop.f32.mrb[0].mxu0
      %v5716 = vpop.f32.mrb[0].mxu0
      %v5717 = vpop.f32.mrb[0].mxu0
      %5718 = vdwg.mxu0
      %v5721 = vunpack.c.l.s4 1966171168
      %v5722 = vunpack.c.0.s8 %v5721
      %v5723 = vlaneseq
      %v5724 = vshrl.u32 %v5723, 7
      %v5725 = vsub.s32 %v5722, %v5724
      %v5726 = vrot.slane %v5714, %v5725
      %v5727 = vcombine.high %v5726, %v5726
      %v5729 = vunpack.c.l.s4 1966171168
      %v5730 = vunpack.c.0.s8 %v5729
      %v5731 = vlaneseq
      %v5732 = vshrl.u32 %v5731, 7
      %v5733 = vsub.s32 %v5730, %v5732
      %v5734 = vrot.slane %v5726, %v5733
      %v5736 = vunpack.c.l.s4 1966171168
      %v5737 = vunpack.c.0.s8 %v5736
      %v5738 = vlaneseq
      %v5739 = vshrl.u32 %v5738, 7
      %v5740 = vsub.s32 %v5737, %v5739
      %v5741 = vrot.slane %v5727, %v5740
      %v5742 = vcombine.high %v5734, %v5734
      %v5743 = vcombine.high %v5741, %v5741
      %vm5748 = vcmask 24576
      %5749 = vst.msk [vmem:[%s594] sm:$0x1] %vm5748, %v5734
      %5750 = vst.msk [vmem:[%s594 + $0x1] sm:$0x1] %vm5748, %v5741
      %5751 = vst.msk [vmem:[%s594 + $0x2] sm:$0x1] %vm5748, %v5742
      %5752 = vst.msk [vmem:[%s594 + $0x3] sm:$0x1] %vm5748, %v5743
      %s5753 = smul.u32 4, %s29
      %p5754 = scmp.lt.s32.totalorder %s5753, 7
      %s5755 = scalar_select %p5754, %s5753, 7
      %s5756 = scalar_lea.vmem %s18, %s5755
      // Predicated region
      $region93: #{transformer_classifier_forward.1} parent=91 // pred_check
        %p5757 = pneg %p435
      $region94: #{transformer_classifier_forward.1} parent=91 // pred_check_branch
        %5759 = sbr.rel (%p5757) target = $region96
      $region95: #{transformer_classifier_forward.1} parent=91 // pred_region
        %s5760 = smul.u32 4, %s29
      $region96: #{transformer_classifier_forward.1} parent=91 // pred_fallthru
        _
    $region92: #{transformer_classifier_forward.1} parent=5 // pred_fallthru
      _
    %p5761 = scmp.le.s32.totalorder 2, %s24
    // Predicated region
    $region97: #{transformer_classifier_forward.1} parent=5 // pred_check
      %p5762 = pneg %p5761
    $region98: #{transformer_classifier_forward.1} parent=5 // pred_check_branch
      %5764 = sbr.rel (%p5762) target = $region100
    $region99: #{transformer_classifier_forward.1} parent=5 // pred_region
      %s5765 = ssub.s32 %s24, 2
      // Predicated region
      $region101: #{transformer_classifier_forward.1} parent=99 // pred_check
        %p5766 = pneg %p441
      $region102: #{transformer_classifier_forward.1} parent=99 // pred_check_branch
        %5768 = sbr.rel (%p5766) target = $region104
      $region103: #{transformer_classifier_forward.1} parent=99 // pred_region
        %s5769 = smul.u32 4, %s30
        %p5770 = scmp.lt.s32.totalorder %s5769, 7
        %s5771 = scalar_select %p5770, %s5769, 7
        %s5772 = scalar_lea.vmem %s18, %s5771
      $region104: #{transformer_classifier_forward.1} parent=99 // pred_fallthru
        _
    $region100: #{transformer_classifier_forward.1} parent=5 // pred_fallthru
      _
  $region6: #{transformer_classifier_forward.1} parent=0 // loop_footer
    %s28 = sadd.s32 1, %s24
  $region7: #{transformer_classifier_forward.1} parent=0 // loop_footer_branch
    %23 = sbr.rel target = $region3
  $region8: #{transformer_classifier_forward.1} parent=0 // loop_exit
    _

</llo_original>
